<compile_context>
chip_gen: v7x
topology: tpu7x:2x2x1
jax: 0.10.0
libtpu: 0.0.40
codegen_flags: <defaults>
</compile_context>

<pallas_src>
import jax
import jax.numpy as jnp
from jax import lax
from jax.experimental import pallas as pl
from jax.experimental.pallas import tpu as pltpu

# ----------------------------- geometry constants ---------------------------

K = 5                      # conv kernel size
C1, C2 = 16, 32            # conv output channels
H1, W1 = 28, 28            # conv1 output spatial size
W1P, H1P = 32, 33          # conv1 padded row stride / rows (2+28+2, 2+28+3)
M1 = H1 * W1P              # 896 flat conv1 positions (cols w>=28 per row are garbage)
H2, W2 = 14, 14            # conv2 output spatial size
W2P, H2P = 18, 19          # conv2 padded row stride / rows (2+14+2, 2+14+3)
L2 = H2P * W2P             # 342 valid flat length of the stage-2 input per channel
L2P = 384                  # lane-padded stage-1 output width (3 * 128)
M2 = H2 * W2P              # 252 flat conv2 positions
H3 = W3 = 7                # pooled-2 spatial size
L3 = H3 * W3               # 49
L3P = 128                  # lane-padded stage-2 output width
PM1 = M1 - 1 - W1P         # 863 length after the two pairwise-max steps (stage 1)
PM2 = M2 - 1 - W2P         # 233 (stage 2)

IMG_BLOCK = 16             # images per grid step (tunable; 32-64 also fine, bigger trace)

# ---- static invariants of the flat-shifted-window + fused-pool construction ----
# Shifted tap reads stay inside the padded slabs:
assert (K - 1) * W1P + (K - 1) + M1 <= H1P * W1P            # 1028 <= 1056
assert (K - 1) * W2P + (K - 1) + M2 <= H2P * W2P <= L2P     # 328 <= 342 <= 384
# Valid conv outputs never wrap into the next padded row:
assert W1P >= W1 + (K - 1) and W2P >= W2 + (K - 1)
# Pairwise-max windows of every *selected* pool source stay on valid rows/cols:
assert 2 * (H2 - 1) + 1 < W1 and 2 * (H2 - 1) + 1 < H1
assert 2 * (H3 - 1) + 1 < W2 and 2 * (H3 - 1) + 1 < H2
assert PM1 == M1 - 1 - W1P and PM2 == M2 - 1 - W2P
assert 2 * (H2 - 1) * (W1P + 1) + W1P + 1 <= M1 - 1         # 891 <= 895
assert 2 * (H3 - 1) * (W2P + 1) + W2P + 1 <= M2 - 1         # 247 <= 251
assert 2 * (H2 - 1) * (W1P + 1) < PM1 and 2 * (H3 - 1) * (W2P + 1) < PM2
assert L2P % 128 == 0 and L3P % 128 == 0 and L3 <= L3P and L2 <= L2P

_PARALLEL = pltpu.CompilerParams(dimension_semantics=("parallel",))


# ------------------------------- Pallas kernels ------------------------------

def _stage1_kernel(x_ref, w_ref, b_ref, g_ref, o_ref):
    # x_ref: (B, 1056) f32  -- B zero-padded 33x32 images, row-major flattened
    # w_ref: (16, 25)  f32  -- conv1 weights, tap t = kh*5 + kw
    # b_ref: (16, 1)   f32
    # g_ref: (863, 384) bf16 -- fused pool-select + re-pad matrix (0/1, 42 zero cols)
    # o_ref: (B, 16, 384) bf16 -- zero-padded 19x18 pooled maps, ready for conv2
    B = x_ref.shape[0]
    x = x_ref[...]                                          # (B, 1056)
    w = w_ref[...]                                          # (16, 25)
    acc = jnp.zeros((B, C1, M1), jnp.float32)
    for kh in range(K):
        for kw in range(K):
            t = kh * K + kw
            s = kh * W1P + kw
            # Cin == 1: per-tap contribution is a VPU broadcast MAC over the whole block.
            acc = acc + w[:, t:t + 1][None] * x[:, s:s + M1][:, None, :]   # (B,16,896)
    acc = jnp.maximum(acc + b_ref[...][None], 0.0)          # bias + ReLU
    # fused 2x2/2 max-pool: neighbour max along w, then along h (= +W1P lanes)
    pm = jnp.maximum(acc[:, :, :-1], acc[:, :, 1:])         # (B,16,895)
    pm = jnp.maximum(pm[:, :, :-W1P], pm[:, :, W1P:])       # (B,16,863)
    # (B,16,863) -> (B*16,863): sublane-tile aligned (16 % 8 == 0) => free reshape.
    pm2 = pm.reshape(B * C1, PM1).astype(jnp.bfloat16)
    # MXU "gather": pick positions 2ho*W1P + 2wo and scatter into the padded 19x18 layout.
    out = jnp.dot(pm2, g_ref[...], preferred_element_type=jnp.float32)     # (B*16, 384)
    o_ref[...] = out.reshape(B, C1, L2P).astype(jnp.bfloat16)


def _stage2_kernel(x_ref, w_ref, b_ref, g_ref, o_ref):
    # x_ref: (B, 16, 384) bf16 -- padded pooled maps from stage 1
    # w_ref: (32, 400)   bf16  -- conv2 weights, col = (kh*5+kw)*16 + cin
    # b_ref: (32, 1)     f32
    # g_ref: (233, 128)  bf16  -- pool-select matrix (0/1, 79 zero cols)
    # o_ref: (B, 32, 128) bf16 -- pooled 7x7 maps in the first 49 lanes
    B = x_ref.shape[0]
    w = w_ref[...]                                          # (32, 400)
    accs = []
    for bi in range(B):
        xb = x_ref[bi]                                      # (16, 384) bf16
        # fold all 25 taps into K: one (400,252) slab, one MXU matmul per image.
        xs = jnp.concatenate(
            [xb[:, kh * W2P + kw: kh * W2P + kw + M2]
             for kh in range(K) for kw in range(K)], axis=0)               # (400, 252)
        accs.append(jnp.dot(w, xs, preferred_element_type=jnp.float32))    # (32, 252)
    acc = jnp.stack(accs, axis=0)                                          # (B, 32, 252)
    acc = jnp.maximum(acc + b_ref[...][None], 0.0)
    pm = jnp.maximum(acc[:, :, :-1], acc[:, :, 1:])         # (B, 32, 251)
    pm = jnp.maximum(pm[:, :, :-W2P], pm[:, :, W2P:])       # (B, 32, 233)
    pooled = jnp.dot(pm.reshape(B * C2, PM2).astype(jnp.bfloat16), g_ref[...],
                     preferred_element_type=jnp.float32)                   # (B*32, 128)
    o_ref[...] = pooled.reshape(B, C2, L3P).astype(jnp.bfloat16)


def _linear_kernel(x_ref, w_ref, b_ref, o_ref):
    # x: (B, 4096) bf16, w: (4096, 10) bf16, b: (1, 10) f32 -> (B, 10) f32
    o_ref[...] = (jnp.dot(x_ref[...], w_ref[...], preferred_element_type=jnp.float32)
                  + b_ref[...]).astype(o_ref.dtype)


# --------------------------- pallas_call wrappers ----------------------------

def _conv_stage1(xflat, w, b, g, bimg):
    npad = xflat.shape[0]
    return pl.pallas_call(
        _stage1_kernel,
        out_shape=jax.ShapeDtypeStruct((npad, C1, L2P), jnp.bfloat16),
        grid=(npad // bimg,),
        in_specs=[
            pl.BlockSpec((bimg, H1P * W1P), lambda i: (i, 0)),
            pl.BlockSpec((C1, K * K), lambda i: (0, 0)),        # resident
            pl.BlockSpec((C1, 1), lambda i: (0, 0)),            # resident
            pl.BlockSpec((PM1, L2P), lambda i: (0, 0)),         # resident
        ],
        out_specs=pl.BlockSpec((bimg, C1, L2P), lambda i: (i, 0, 0)),
        compiler_params=_PARALLEL,
    )(xflat, w, b, g)


def _conv_stage2(a1, w, b, g, bimg):
    npad = a1.shape[0]
    return pl.pallas_call(
        _stage2_kernel,
        out_shape=jax.ShapeDtypeStruct((npad, C2, L3P), jnp.bfloat16),
        grid=(npad // bimg,),
        in_specs=[
            pl.BlockSpec((bimg, C1, L2P), lambda i: (i, 0, 0)),
            pl.BlockSpec((C2, K * K * C1), lambda i: (0, 0)),   # resident
            pl.BlockSpec((C2, 1), lambda i: (0, 0)),            # resident
            pl.BlockSpec((PM2, L3P), lambda i: (0, 0)),         # resident
        ],
        out_specs=pl.BlockSpec((bimg, C2, L3P), lambda i: (i, 0, 0)),
        compiler_params=_PARALLEL,
    )(a1, w, b, g)


def _linear(x, w, b, bimg):
    npad = x.shape[0]
    return pl.pallas_call(
        _linear_kernel,
        out_shape=jax.ShapeDtypeStruct((npad, w.shape[1]), jnp.float32),
        grid=(npad // bimg,),
        in_specs=[
            pl.BlockSpec((bimg, C2 * L3P), lambda i: (i, 0)),
            pl.BlockSpec((C2 * L3P, 10), lambda i: (0, 0)),     # resident
            pl.BlockSpec((1, 10), lambda i: (0, 0)),            # resident
        ],
        out_specs=pl.BlockSpec((bimg, 10), lambda i: (i, 0)),
        compiler_params=_PARALLEL,
    )(x, w, b)


# ------------------------------ parameter prep -------------------------------

def _pool_select_matrix(src_len, src_row_stride, n_pool, dst_w, dst_pad, dst_len):
    """0/1 matrix picking the (2ho, 2wo) positions out of the pair-maxed conv slab and
    scattering them into a zero-padded flat layout (all-zero columns = padding lanes)."""
    ho = jnp.arange(n_pool)
    wo = jnp.arange(n_pool)
    src = (2 * ho[:, None]) * src_row_stride + 2 * wo[None, :]
    dst = (ho[:, None] + dst_pad) * dst_w + (wo[None, :] + dst_pad)
    g = jnp.zeros((src_len, dst_len), jnp.float32)
    g = g.at[src.ravel(), dst.ravel()].set(1.0)
    return g.astype(jnp.bfloat16)


def prepare_params(params):
    """One-time repack of the PyTorch-layout parameters into kernel-friendly layouts."""
    w1, b1, w2, b2, wl, bl = params
    w1p = w1.reshape(C1, K * K).astype(jnp.float32)                     # (16, 25)
    b1p = b1.reshape(C1, 1).astype(jnp.float32)
    # conv2 folded-K weights: col index = (kh*5 + kw)*16 + cin
    w2f = jnp.transpose(w2, (0, 2, 3, 1)).reshape(C2, K * K * C1).astype(jnp.bfloat16)
    b2p = b2.reshape(C2, 1).astype(jnp.float32)
    # linear weight: rows reordered/padded to the lane-padded (32, 128) feature layout
    wlt = wl.T.astype(jnp.bfloat16).reshape(C2, L3, 10)                 # (32, 49, 10)
    wlp = jnp.pad(wlt, ((0, 0), (0, L3P - L3), (0, 0))).reshape(C2 * L3P, 10)  # (4096, 10)
    blp = bl.reshape(1, 10).astype(jnp.float32)
    g1 = _pool_select_matrix(PM1, W1P, H2, W2P, 2, L2P)                 # (863, 384)
    g2 = _pool_select_matrix(PM2, W2P, H3, W3, 0, L3P)                  # (233, 128)
    return w1p, b1p, w2f, b2p, wlp, blp, g1, g2


# --------------------------------- forward -----------------------------------

def mnist_net_forward(x, prepped):
    w1p, b1p, w2f, b2p, wlp, blp, g1, g2 = prepped
    n = x.shape[0]
    bimg = min(IMG_BLOCK, n)
    npad = -(-n // bimg) * bimg                  # pad batch to a multiple of the block
    # Zero-pad spatially (2 top/left/right, 3 bottom) + batch, flatten spatial dims.
    xflat = jnp.pad(x.astype(jnp.float32),
                    ((0, npad - n), (0, 0), (2, 3), (2, 2))).reshape(npad, H1P * W1P)
    a1 = _conv_stage1(xflat, w1p, b1p, g1, bimg)   # (Npad, 16, 384) bf16, padded for conv2
    a2 = _conv_stage2(a1, w2f, b2p, g2, bimg)      # (Npad, 32, 128) bf16 (first 49 lanes valid)
    flat = a2.reshape(npad, C2 * L3P)              # feature index = c*128 + h*7 + w
    logits = _linear(flat, wlp, blp, bimg)         # (Npad, 10) f32
    return logits[:n]


# ----------------------------- pure-JAX reference ----------------------------

def ref_forward(x, params):
    w1, b1, w2, b2, wl, bl = params

    def conv_relu(y, w, b):
        y = lax.conv_general_dilated(
            y, w, window_strides=(1, 1), padding=((2, 2), (2, 2)),
            dimension_numbers=("NCHW", "OIHW", "NCHW"),
            precision=lax.Precision.HIGHEST)
        return jnp.maximum(y + b[None, :, None, None], 0.0)

    def pool(y):
        return lax.reduce_window(y, -jnp.inf, lax.max,
                                 (1, 1, 2, 2), (1, 1, 2, 2), "VALID")

    y = pool(conv_relu(x, w1, b1))
    y = pool(conv_relu(y, w2, b2))
    flat = y.reshape(y.shape[0], -1)
    return flat @ wl.T + bl


# ----------------------------------- main -------------------------------------

if __name__ == "__main__":
    key = jax.random.PRNGKey(0)
    k1, k2, k3, k4, k5, k6, kx = jax.random.split(key, 7)

    # Deterministic synthetic parameters (shapes match the PyTorch module).
    w1 = jax.random.normal(k1, (16, 1, 5, 5), jnp.float32) * 0.10
    b1 = jax.random.normal(k2, (16,), jnp.float32) * 0.10
    w2 = jax.random.normal(k3, (32, 16, 5, 5), jnp.float32) * 0.05
    b2 = jax.random.normal(k4, (32,), jnp.float32) * 0.05
    wl = jax.random.normal(k5, (10, 32 * 7 * 7), jnp.float32) * 0.02
    bl = jax.random.normal(k6, (10,), jnp.float32) * 0.02
    params = (w1, b1, w2, b2, wl, bl)

    # MNIST-shaped input (28x28 is required by the 32*7*7 Linear), small batch.
    x = jax.random.normal(kx, (2, 1, 28, 28), jnp.float32)

    prepped = prepare_params(params)
    out = jax.block_until_ready(jax.jit(mnist_net_forward)(x, prepped))
    ref = jax.block_until_ready(jax.jit(ref_forward)(x, params))

    assert out.shape == (2, 10) and out.dtype == jnp.float32
    # bf16 MXU operands + bf16 inter-stage activations vs an f32 HIGHEST reference.
    assert jnp.allclose(out, ref, atol=4e-2, rtol=4e-2), (out, ref)

    print("KERNEL_OK")
</pallas_src>

<mosaic_0001>
module attributes {stable_mosaic.version = 11 : i64} {
  func.func @_linear_kernel(%arg0: i32, %arg1: memref<2x4096xbf16, #tpu.memory_space<vmem>>, %arg2: memref<4096x10xbf16, #tpu.memory_space<vmem>>, %arg3: memref<1x10xf32, #tpu.memory_space<vmem>>, %arg4: memref<2x10xf32, #tpu.memory_space<vmem>>) attributes {dimension_semantics = [#tpu.dimension_semantics<parallel>], iteration_bounds = array<i64: 1>, scalar_prefetch = 0 : i64, scratch_operands = 0 : i64, tpu.core_type = #tpu.core_type<tc>, window_params = [{transform_indices = @transform_0, window_bounds = array<i64: 2, 4096>}, {pipeline_mode = #tpu.pipeline_mode<synchronous>, transform_indices = @transform_1, window_bounds = array<i64: 4096, 10>}, {pipeline_mode = #tpu.pipeline_mode<synchronous>, transform_indices = @transform_2, window_bounds = array<i64: 1, 10>}, {transform_indices = @transform_3, window_bounds = array<i64: 2, 10>}]} {
    %c0 = arith.constant 0 : index
    %c0_0 = arith.constant 0 : index
    %0 = vector.load %arg1[%c0, %c0_0] : memref<2x4096xbf16, #tpu.memory_space<vmem>>, vector<2x4096xbf16>
    %c0_1 = arith.constant 0 : index
    %c0_2 = arith.constant 0 : index
    %1 = vector.load %arg2[%c0_1, %c0_2] : memref<4096x10xbf16, #tpu.memory_space<vmem>>, vector<4096x10xbf16>
    %cst = arith.constant dense<0.000000e+00> : vector<2x10xf32>
    %2 = tpu.matmul %0, %1, %cst {dimension_numbers = #tpu.dot_dimension_numbers<[1], [0], [0], [1], [0, 0, 1, 1], [], []>} : vector<2x4096xbf16>, vector<4096x10xbf16>, vector<2x10xf32> -> vector<2x10xf32>
    %c0_3 = arith.constant 0 : index
    %c0_4 = arith.constant 0 : index
    %3 = vector.load %arg3[%c0_3, %c0_4] : memref<1x10xf32, #tpu.memory_space<vmem>>, vector<1x10xf32>
    %4 = vector.broadcast %3 : vector<1x10xf32> to vector<2x10xf32>
    %5 = arith.addf %2, %4 : vector<2x10xf32>
    %c0_5 = arith.constant 0 : index
    %c0_6 = arith.constant 0 : index
    %6 = vector.load %arg4[%c0_5, %c0_6] : memref<2x10xf32, #tpu.memory_space<vmem>>, vector<2x10xf32>
    tpu.vector_store %arg4[%c0_5, %c0_6], %5 {strides = array<i32>} : memref<2x10xf32, #tpu.memory_space<vmem>>, vector<2x10xf32>,
    return
  }
  func.func @transform_0(%arg0: i32) -> (i32, i32) {
    %c0_i32 = arith.constant 0 : i32
    %c0_i32_0 = arith.constant 0 : i32
    return %arg0, %c0_i32 : i32, i32
  }
  func.func @transform_1(%arg0: i32) -> (i32, i32) {
    %c0_i32 = arith.constant 0 : i32
    %c0_i32_0 = arith.constant 0 : i32
    %c0_i32_1 = arith.constant 0 : i32
    return %c0_i32, %c0_i32_0 : i32, i32
  }
  func.func @transform_2(%arg0: i32) -> (i32, i32) {
    %c0_i32 = arith.constant 0 : i32
    %c0_i32_0 = arith.constant 0 : i32
    %c0_i32_1 = arith.constant 0 : i32
    return %c0_i32, %c0_i32_0 : i32, i32
  }
  func.func @transform_3(%arg0: i32) -> (i32, i32) {
    %c0_i32 = arith.constant 0 : i32
    %c0_i32_0 = arith.constant 0 : i32
    return %arg0, %c0_i32 : i32, i32
  }
}

module attributes {stable_mosaic.version = 11 : i64} {
  func.func @_stage1_kernel(%arg0: i32, %arg1: memref<2x1056xf32, #tpu.memory_space<vmem>>, %arg2: memref<16x25xf32, #tpu.memory_space<vmem>>, %arg3: memref<16x1xf32, #tpu.memory_space<vmem>>, %arg4: memref<863x384xbf16, #tpu.memory_space<vmem>>, %arg5: memref<2x16x384xbf16, #tpu.memory_space<vmem>>) attributes {dimension_semantics = [#tpu.dimension_semantics<parallel>], iteration_bounds = array<i64: 1>, scalar_prefetch = 0 : i64, scratch_operands = 0 : i64, tpu.core_type = #tpu.core_type<tc>, window_params = [{transform_indices = @transform_0, window_bounds = array<i64: 2, 1056>}, {pipeline_mode = #tpu.pipeline_mode<synchronous>, transform_indices = @transform_1, window_bounds = array<i64: 16, 25>}, {pipeline_mode = #tpu.pipeline_mode<synchronous>, transform_indices = @transform_2, window_bounds = array<i64: 16, 1>}, {pipeline_mode = #tpu.pipeline_mode<synchronous>, transform_indices = @transform_3, window_bounds = array<i64: 863, 384>}, {transform_indices = @transform_4, window_bounds = array<i64: 2, 16, 384>}]} {
    %c0 = arith.constant 0 : index
    %c0_0 = arith.constant 0 : index
    %0 = vector.load %arg1[%c0, %c0_0] : memref<2x1056xf32, #tpu.memory_space<vmem>>, vector<2x1056xf32>
    %c0_1 = arith.constant 0 : index
    %c0_2 = arith.constant 0 : index
    %1 = vector.load %arg2[%c0_1, %c0_2] : memref<16x25xf32, #tpu.memory_space<vmem>>, vector<16x25xf32>
    %cst = arith.constant 0.000000e+00 : f32
    %2 = vector.broadcast %cst : f32 to vector<2x16x896xf32>
    %3 = vector.extract_strided_slice %1 {offsets = [0, 0], sizes = [16, 1], strides = [1, 1]} : vector<16x25xf32> to vector<16x1xf32>
    %4 = vector.shape_cast %3 : vector<16x1xf32> to vector<1x16x1xf32>
    %5 = vector.extract_strided_slice %0 {offsets = [0, 0], sizes = [2, 896], strides = [1, 1]} : vector<2x1056xf32> to vector<2x896xf32>
    %6 = vector.shape_cast %5 : vector<2x896xf32> to vector<2x1x896xf32>
    %7 = vector.broadcast %4 : vector<1x16x1xf32> to vector<2x16x896xf32>
    %8 = vector.broadcast %6 : vector<2x1x896xf32> to vector<2x16x896xf32>
    %9 = arith.mulf %7, %8 : vector<2x16x896xf32>
    %10 = arith.addf %2, %9 : vector<2x16x896xf32>
    %11 = vector.extract_strided_slice %1 {offsets = [0, 1], sizes = [16, 1], strides = [1, 1]} : vector<16x25xf32> to vector<16x1xf32>
    %12 = vector.shape_cast %11 : vector<16x1xf32> to vector<1x16x1xf32>
    %13 = vector.extract_strided_slice %0 {offsets = [0, 1], sizes = [2, 896], strides = [1, 1]} : vector<2x1056xf32> to vector<2x896xf32>
    %14 = vector.shape_cast %13 : vector<2x896xf32> to vector<2x1x896xf32>
    %15 = vector.broadcast %12 : vector<1x16x1xf32> to vector<2x16x896xf32>
    %16 = vector.broadcast %14 : vector<2x1x896xf32> to vector<2x16x896xf32>
    %17 = arith.mulf %15, %16 : vector<2x16x896xf32>
    %18 = arith.addf %10, %17 : vector<2x16x896xf32>
    %19 = vector.extract_strided_slice %1 {offsets = [0, 2], sizes = [16, 1], strides = [1, 1]} : vector<16x25xf32> to vector<16x1xf32>
    %20 = vector.shape_cast %19 : vector<16x1xf32> to vector<1x16x1xf32>
    %21 = vector.extract_strided_slice %0 {offsets = [0, 2], sizes = [2, 896], strides = [1, 1]} : vector<2x1056xf32> to vector<2x896xf32>
    %22 = vector.shape_cast %21 : vector<2x896xf32> to vector<2x1x896xf32>
    %23 = vector.broadcast %20 : vector<1x16x1xf32> to vector<2x16x896xf32>
    %24 = vector.broadcast %22 : vector<2x1x896xf32> to vector<2x16x896xf32>
    %25 = arith.mulf %23, %24 : vector<2x16x896xf32>
    %26 = arith.addf %18, %25 : vector<2x16x896xf32>
    %27 = vector.extract_strided_slice %1 {offsets = [0, 3], sizes = [16, 1], strides = [1, 1]} : vector<16x25xf32> to vector<16x1xf32>
    %28 = vector.shape_cast %27 : vector<16x1xf32> to vector<1x16x1xf32>
    %29 = vector.extract_strided_slice %0 {offsets = [0, 3], sizes = [2, 896], strides = [1, 1]} : vector<2x1056xf32> to vector<2x896xf32>
    %30 = vector.shape_cast %29 : vector<2x896xf32> to vector<2x1x896xf32>
    %31 = vector.broadcast %28 : vector<1x16x1xf32> to vector<2x16x896xf32>
    %32 = vector.broadcast %30 : vector<2x1x896xf32> to vector<2x16x896xf32>
    %33 = arith.mulf %31, %32 : vector<2x16x896xf32>
    %34 = arith.addf %26, %33 : vector<2x16x896xf32>
    %35 = vector.extract_strided_slice %1 {offsets = [0, 4], sizes = [16, 1], strides = [1, 1]} : vector<16x25xf32> to vector<16x1xf32>
    %36 = vector.shape_cast %35 : vector<16x1xf32> to vector<1x16x1xf32>
    %37 = vector.extract_strided_slice %0 {offsets = [0, 4], sizes = [2, 896], strides = [1, 1]} : vector<2x1056xf32> to vector<2x896xf32>
    %38 = vector.shape_cast %37 : vector<2x896xf32> to vector<2x1x896xf32>
    %39 = vector.broadcast %36 : vector<1x16x1xf32> to vector<2x16x896xf32>
    %40 = vector.broadcast %38 : vector<2x1x896xf32> to vector<2x16x896xf32>
    %41 = arith.mulf %39, %40 : vector<2x16x896xf32>
    %42 = arith.addf %34, %41 : vector<2x16x896xf32>
    %43 = vector.extract_strided_slice %1 {offsets = [0, 5], sizes = [16, 1], strides = [1, 1]} : vector<16x25xf32> to vector<16x1xf32>
    %44 = vector.shape_cast %43 : vector<16x1xf32> to vector<1x16x1xf32>
    %45 = vector.extract_strided_slice %0 {offsets = [0, 32], sizes = [2, 896], strides = [1, 1]} : vector<2x1056xf32> to vector<2x896xf32>
    %46 = vector.shape_cast %45 : vector<2x896xf32> to vector<2x1x896xf32>
    %47 = vector.broadcast %44 : vector<1x16x1xf32> to vector<2x16x896xf32>
    %48 = vector.broadcast %46 : vector<2x1x896xf32> to vector<2x16x896xf32>
    %49 = arith.mulf %47, %48 : vector<2x16x896xf32>
    %50 = arith.addf %42, %49 : vector<2x16x896xf32>
    %51 = vector.extract_strided_slice %1 {offsets = [0, 6], sizes = [16, 1], strides = [1, 1]} : vector<16x25xf32> to vector<16x1xf32>
    %52 = vector.shape_cast %51 : vector<16x1xf32> to vector<1x16x1xf32>
    %53 = vector.extract_strided_slice %0 {offsets = [0, 33], sizes = [2, 896], strides = [1, 1]} : vector<2x1056xf32> to vector<2x896xf32>
    %54 = vector.shape_cast %53 : vector<2x896xf32> to vector<2x1x896xf32>
    %55 = vector.broadcast %52 : vector<1x16x1xf32> to vector<2x16x896xf32>
    %56 = vector.broadcast %54 : vector<2x1x896xf32> to vector<2x16x896xf32>
    %57 = arith.mulf %55, %56 : vector<2x16x896xf32>
    %58 = arith.addf %50, %57 : vector<2x16x896xf32>
    %59 = vector.extract_strided_slice %1 {offsets = [0, 7], sizes = [16, 1], strides = [1, 1]} : vector<16x25xf32> to vector<16x1xf32>
    %60 = vector.shape_cast %59 : vector<16x1xf32> to vector<1x16x1xf32>
    %61 = vector.extract_strided_slice %0 {offsets = [0, 34], sizes = [2, 896], strides = [1, 1]} : vector<2x1056xf32> to vector<2x896xf32>
    %62 = vector.shape_cast %61 : vector<2x896xf32> to vector<2x1x896xf32>
    %63 = vector.broadcast %60 : vector<1x16x1xf32> to vector<2x16x896xf32>
    %64 = vector.broadcast %62 : vector<2x1x896xf32> to vector<2x16x896xf32>
    %65 = arith.mulf %63, %64 : vector<2x16x896xf32>
    %66 = arith.addf %58, %65 : vector<2x16x896xf32>
    %67 = vector.extract_strided_slice %1 {offsets = [0, 8], sizes = [16, 1], strides = [1, 1]} : vector<16x25xf32> to vector<16x1xf32>
    %68 = vector.shape_cast %67 : vector<16x1xf32> to vector<1x16x1xf32>
    %69 = vector.extract_strided_slice %0 {offsets = [0, 35], sizes = [2, 896], strides = [1, 1]} : vector<2x1056xf32> to vector<2x896xf32>
    %70 = vector.shape_cast %69 : vector<2x896xf32> to vector<2x1x896xf32>
    %71 = vector.broadcast %68 : vector<1x16x1xf32> to vector<2x16x896xf32>
    %72 = vector.broadcast %70 : vector<2x1x896xf32> to vector<2x16x896xf32>
    %73 = arith.mulf %71, %72 : vector<2x16x896xf32>
    %74 = arith.addf %66, %73 : vector<2x16x896xf32>
    %75 = vector.extract_strided_slice %1 {offsets = [0, 9], sizes = [16, 1], strides = [1, 1]} : vector<16x25xf32> to vector<16x1xf32>
    %76 = vector.shape_cast %75 : vector<16x1xf32> to vector<1x16x1xf32>
    %77 = vector.extract_strided_slice %0 {offsets = [0, 36], sizes = [2, 896], strides = [1, 1]} : vector<2x1056xf32> to vector<2x896xf32>
    %78 = vector.shape_cast %77 : vector<2x896xf32> to vector<2x1x896xf32>
    %79 = vector.broadcast %76 : vector<1x16x1xf32> to vector<2x16x896xf32>
    %80 = vector.broadcast %78 : vector<2x1x896xf32> to vector<2x16x896xf32>
    %81 = arith.mulf %79, %80 : vector<2x16x896xf32>
    %82 = arith.addf %74, %81 : vector<2x16x896xf32>
    %83 = vector.extract_strided_slice %1 {offsets = [0, 10], sizes = [16, 1], strides = [1, 1]} : vector<16x25xf32> to vector<16x1xf32>
    %84 = vector.shape_cast %83 : vector<16x1xf32> to vector<1x16x1xf32>
    %85 = vector.extract_strided_slice %0 {offsets = [0, 64], sizes = [2, 896], strides = [1, 1]} : vector<2x1056xf32> to vector<2x896xf32>
    %86 = vector.shape_cast %85 : vector<2x896xf32> to vector<2x1x896xf32>
    %87 = vector.broadcast %84 : vector<1x16x1xf32> to vector<2x16x896xf32>
    %88 = vector.broadcast %86 : vector<2x1x896xf32> to vector<2x16x896xf32>
    %89 = arith.mulf %87, %88 : vector<2x16x896xf32>
    %90 = arith.addf %82, %89 : vector<2x16x896xf32>
    %91 = vector.extract_strided_slice %1 {offsets = [0, 11], sizes = [16, 1], strides = [1, 1]} : vector<16x25xf32> to vector<16x1xf32>
    %92 = vector.shape_cast %91 : vector<16x1xf32> to vector<1x16x1xf32>
    %93 = vector.extract_strided_slice %0 {offsets = [0, 65], sizes = [2, 896], strides = [1, 1]} : vector<2x1056xf32> to vector<2x896xf32>
    %94 = vector.shape_cast %93 : vector<2x896xf32> to vector<2x1x896xf32>
    %95 = vector.broadcast %92 : vector<1x16x1xf32> to vector<2x16x896xf32>
    %96 = vector.broadcast %94 : vector<2x1x896xf32> to vector<2x16x896xf32>
    %97 = arith.mulf %95, %96 : vector<2x16x896xf32>
    %98 = arith.addf %90, %97 : vector<2x16x896xf32>
    %99 = vector.extract_strided_slice %1 {offsets = [0, 12], sizes = [16, 1], strides = [1, 1]} : vector<16x25xf32> to vector<16x1xf32>
    %100 = vector.shape_cast %99 : vector<16x1xf32> to vector<1x16x1xf32>
    %101 = vector.extract_strided_slice %0 {offsets = [0, 66], sizes = [2, 896], strides = [1, 1]} : vector<2x1056xf32> to vector<2x896xf32>
    %102 = vector.shape_cast %101 : vector<2x896xf32> to vector<2x1x896xf32>
    %103 = vector.broadcast %100 : vector<1x16x1xf32> to vector<2x16x896xf32>
    %104 = vector.broadcast %102 : vector<2x1x896xf32> to vector<2x16x896xf32>
    %105 = arith.mulf %103, %104 : vector<2x16x896xf32>
    %106 = arith.addf %98, %105 : vector<2x16x896xf32>
    %107 = vector.extract_strided_slice %1 {offsets = [0, 13], sizes = [16, 1], strides = [1, 1]} : vector<16x25xf32> to vector<16x1xf32>
    %108 = vector.shape_cast %107 : vector<16x1xf32> to vector<1x16x1xf32>
    %109 = vector.extract_strided_slice %0 {offsets = [0, 67], sizes = [2, 896], strides = [1, 1]} : vector<2x1056xf32> to vector<2x896xf32>
    %110 = vector.shape_cast %109 : vector<2x896xf32> to vector<2x1x896xf32>
    %111 = vector.broadcast %108 : vector<1x16x1xf32> to vector<2x16x896xf32>
    %112 = vector.broadcast %110 : vector<2x1x896xf32> to vector<2x16x896xf32>
    %113 = arith.mulf %111, %112 : vector<2x16x896xf32>
    %114 = arith.addf %106, %113 : vector<2x16x896xf32>
    %115 = vector.extract_strided_slice %1 {offsets = [0, 14], sizes = [16, 1], strides = [1, 1]} : vector<16x25xf32> to vector<16x1xf32>
    %116 = vector.shape_cast %115 : vector<16x1xf32> to vector<1x16x1xf32>
    %117 = vector.extract_strided_slice %0 {offsets = [0, 68], sizes = [2, 896], strides = [1, 1]} : vector<2x1056xf32> to vector<2x896xf32>
    %118 = vector.shape_cast %117 : vector<2x896xf32> to vector<2x1x896xf32>
    %119 = vector.broadcast %116 : vector<1x16x1xf32> to vector<2x16x896xf32>
    %120 = vector.broadcast %118 : vector<2x1x896xf32> to vector<2x16x896xf32>
    %121 = arith.mulf %119, %120 : vector<2x16x896xf32>
    %122 = arith.addf %114, %121 : vector<2x16x896xf32>
    %123 = vector.extract_strided_slice %1 {offsets = [0, 15], sizes = [16, 1], strides = [1, 1]} : vector<16x25xf32> to vector<16x1xf32>
    %124 = vector.shape_cast %123 : vector<16x1xf32> to vector<1x16x1xf32>
    %125 = vector.extract_strided_slice %0 {offsets = [0, 96], sizes = [2, 896], strides = [1, 1]} : vector<2x1056xf32> to vector<2x896xf32>
    %126 = vector.shape_cast %125 : vector<2x896xf32> to vector<2x1x896xf32>
    %127 = vector.broadcast %124 : vector<1x16x1xf32> to vector<2x16x896xf32>
    %128 = vector.broadcast %126 : vector<2x1x896xf32> to vector<2x16x896xf32>
    %129 = arith.mulf %127, %128 : vector<2x16x896xf32>
    %130 = arith.addf %122, %129 : vector<2x16x896xf32>
    %131 = vector.extract_strided_slice %1 {offsets = [0, 16], sizes = [16, 1], strides = [1, 1]} : vector<16x25xf32> to vector<16x1xf32>
    %132 = vector.shape_cast %131 : vector<16x1xf32> to vector<1x16x1xf32>
    %133 = vector.extract_strided_slice %0 {offsets = [0, 97], sizes = [2, 896], strides = [1, 1]} : vector<2x1056xf32> to vector<2x896xf32>
    %134 = vector.shape_cast %133 : vector<2x896xf32> to vector<2x1x896xf32>
    %135 = vector.broadcast %132 : vector<1x16x1xf32> to vector<2x16x896xf32>
    %136 = vector.broadcast %134 : vector<2x1x896xf32> to vector<2x16x896xf32>
    %137 = arith.mulf %135, %136 : vector<2x16x896xf32>
    %138 = arith.addf %130, %137 : vector<2x16x896xf32>
    %139 = vector.extract_strided_slice %1 {offsets = [0, 17], sizes = [16, 1], strides = [1, 1]} : vector<16x25xf32> to vector<16x1xf32>
    %140 = vector.shape_cast %139 : vector<16x1xf32> to vector<1x16x1xf32>
    %141 = vector.extract_strided_slice %0 {offsets = [0, 98], sizes = [2, 896], strides = [1, 1]} : vector<2x1056xf32> to vector<2x896xf32>
    %142 = vector.shape_cast %141 : vector<2x896xf32> to vector<2x1x896xf32>
    %143 = vector.broadcast %140 : vector<1x16x1xf32> to vector<2x16x896xf32>
    %144 = vector.broadcast %142 : vector<2x1x896xf32> to vector<2x16x896xf32>
    %145 = arith.mulf %143, %144 : vector<2x16x896xf32>
    %146 = arith.addf %138, %145 : vector<2x16x896xf32>
    %147 = vector.extract_strided_slice %1 {offsets = [0, 18], sizes = [16, 1], strides = [1, 1]} : vector<16x25xf32> to vector<16x1xf32>
    %148 = vector.shape_cast %147 : vector<16x1xf32> to vector<1x16x1xf32>
    %149 = vector.extract_strided_slice %0 {offsets = [0, 99], sizes = [2, 896], strides = [1, 1]} : vector<2x1056xf32> to vector<2x896xf32>
    %150 = vector.shape_cast %149 : vector<2x896xf32> to vector<2x1x896xf32>
    %151 = vector.broadcast %148 : vector<1x16x1xf32> to vector<2x16x896xf32>
    %152 = vector.broadcast %150 : vector<2x1x896xf32> to vector<2x16x896xf32>
    %153 = arith.mulf %151, %152 : vector<2x16x896xf32>
    %154 = arith.addf %146, %153 : vector<2x16x896xf32>
    %155 = vector.extract_strided_slice %1 {offsets = [0, 19], sizes = [16, 1], strides = [1, 1]} : vector<16x25xf32> to vector<16x1xf32>
    %156 = vector.shape_cast %155 : vector<16x1xf32> to vector<1x16x1xf32>
    %157 = vector.extract_strided_slice %0 {offsets = [0, 100], sizes = [2, 896], strides = [1, 1]} : vector<2x1056xf32> to vector<2x896xf32>
    %158 = vector.shape_cast %157 : vector<2x896xf32> to vector<2x1x896xf32>
    %159 = vector.broadcast %156 : vector<1x16x1xf32> to vector<2x16x896xf32>
    %160 = vector.broadcast %158 : vector<2x1x896xf32> to vector<2x16x896xf32>
    %161 = arith.mulf %159, %160 : vector<2x16x896xf32>
    %162 = arith.addf %154, %161 : vector<2x16x896xf32>
    %163 = vector.extract_strided_slice %1 {offsets = [0, 20], sizes = [16, 1], strides = [1, 1]} : vector<16x25xf32> to vector<16x1xf32>
    %164 = vector.shape_cast %163 : vector<16x1xf32> to vector<1x16x1xf32>
    %165 = vector.extract_strided_slice %0 {offsets = [0, 128], sizes = [2, 896], strides = [1, 1]} : vector<2x1056xf32> to vector<2x896xf32>
    %166 = vector.shape_cast %165 : vector<2x896xf32> to vector<2x1x896xf32>
    %167 = vector.broadcast %164 : vector<1x16x1xf32> to vector<2x16x896xf32>
    %168 = vector.broadcast %166 : vector<2x1x896xf32> to vector<2x16x896xf32>
    %169 = arith.mulf %167, %168 : vector<2x16x896xf32>
    %170 = arith.addf %162, %169 : vector<2x16x896xf32>
    %171 = vector.extract_strided_slice %1 {offsets = [0, 21], sizes = [16, 1], strides = [1, 1]} : vector<16x25xf32> to vector<16x1xf32>
    %172 = vector.shape_cast %171 : vector<16x1xf32> to vector<1x16x1xf32>
    %173 = vector.extract_strided_slice %0 {offsets = [0, 129], sizes = [2, 896], strides = [1, 1]} : vector<2x1056xf32> to vector<2x896xf32>
    %174 = vector.shape_cast %173 : vector<2x896xf32> to vector<2x1x896xf32>
    %175 = vector.broadcast %172 : vector<1x16x1xf32> to vector<2x16x896xf32>
    %176 = vector.broadcast %174 : vector<2x1x896xf32> to vector<2x16x896xf32>
    %177 = arith.mulf %175, %176 : vector<2x16x896xf32>
    %178 = arith.addf %170, %177 : vector<2x16x896xf32>
    %179 = vector.extract_strided_slice %1 {offsets = [0, 22], sizes = [16, 1], strides = [1, 1]} : vector<16x25xf32> to vector<16x1xf32>
    %180 = vector.shape_cast %179 : vector<16x1xf32> to vector<1x16x1xf32>
    %181 = vector.extract_strided_slice %0 {offsets = [0, 130], sizes = [2, 896], strides = [1, 1]} : vector<2x1056xf32> to vector<2x896xf32>
    %182 = vector.shape_cast %181 : vector<2x896xf32> to vector<2x1x896xf32>
    %183 = vector.broadcast %180 : vector<1x16x1xf32> to vector<2x16x896xf32>
    %184 = vector.broadcast %182 : vector<2x1x896xf32> to vector<2x16x896xf32>
    %185 = arith.mulf %183, %184 : vector<2x16x896xf32>
    %186 = arith.addf %178, %185 : vector<2x16x896xf32>
    %187 = vector.extract_strided_slice %1 {offsets = [0, 23], sizes = [16, 1], strides = [1, 1]} : vector<16x25xf32> to vector<16x1xf32>
    %188 = vector.shape_cast %187 : vector<16x1xf32> to vector<1x16x1xf32>
    %189 = vector.extract_strided_slice %0 {offsets = [0, 131], sizes = [2, 896], strides = [1, 1]} : vector<2x1056xf32> to vector<2x896xf32>
    %190 = vector.shape_cast %189 : vector<2x896xf32> to vector<2x1x896xf32>
    %191 = vector.broadcast %188 : vector<1x16x1xf32> to vector<2x16x896xf32>
    %192 = vector.broadcast %190 : vector<2x1x896xf32> to vector<2x16x896xf32>
    %193 = arith.mulf %191, %192 : vector<2x16x896xf32>
    %194 = arith.addf %186, %193 : vector<2x16x896xf32>
    %195 = vector.extract_strided_slice %1 {offsets = [0, 24], sizes = [16, 1], strides = [1, 1]} : vector<16x25xf32> to vector<16x1xf32>
    %196 = vector.shape_cast %195 : vector<16x1xf32> to vector<1x16x1xf32>
    %197 = vector.extract_strided_slice %0 {offsets = [0, 132], sizes = [2, 896], strides = [1, 1]} : vector<2x1056xf32> to vector<2x896xf32>
    %198 = vector.shape_cast %197 : vector<2x896xf32> to vector<2x1x896xf32>
    %199 = vector.broadcast %196 : vector<1x16x1xf32> to vector<2x16x896xf32>
    %200 = vector.broadcast %198 : vector<2x1x896xf32> to vector<2x16x896xf32>
    %201 = arith.mulf %199, %200 : vector<2x16x896xf32>
    %202 = arith.addf %194, %201 : vector<2x16x896xf32>
    %c0_3 = arith.constant 0 : index
    %c0_4 = arith.constant 0 : index
    %203 = vector.load %arg3[%c0_3, %c0_4] : memref<16x1xf32, #tpu.memory_space<vmem>>, vector<16x1xf32>
    %204 = vector.shape_cast %203 : vector<16x1xf32> to vector<1x16x1xf32>
    %205 = vector.broadcast %204 : vector<1x16x1xf32> to vector<2x16x896xf32>
    %206 = arith.addf %202, %205 : vector<2x16x896xf32>
    %cst_5 = arith.constant 0.000000e+00 : f32
    %207 = vector.broadcast %cst_5 : f32 to vector<2x16x896xf32>
    %208 = arith.maximumf %206, %207 : vector<2x16x896xf32>
    %209 = vector.extract_strided_slice %208 {offsets = [0, 0, 0], sizes = [2, 16, 895], strides = [1, 1, 1]} : vector<2x16x896xf32> to vector<2x16x895xf32>
    %210 = vector.extract_strided_slice %208 {offsets = [0, 0, 1], sizes = [2, 16, 895], strides = [1, 1, 1]} : vector<2x16x896xf32> to vector<2x16x895xf32>
    %211 = arith.maximumf %209, %210 : vector<2x16x895xf32>
    %212 = vector.extract_strided_slice %211 {offsets = [0, 0, 0], sizes = [2, 16, 863], strides = [1, 1, 1]} : vector<2x16x895xf32> to vector<2x16x863xf32>
    %213 = vector.extract_strided_slice %211 {offsets = [0, 0, 32], sizes = [2, 16, 863], strides = [1, 1, 1]} : vector<2x16x895xf32> to vector<2x16x863xf32>
    %214 = arith.maximumf %212, %213 : vector<2x16x863xf32>
    %215 = vector.shape_cast %214 : vector<2x16x863xf32> to vector<32x863xf32>
    %216 = arith.truncf %215 : vector<32x863xf32> to vector<32x863xbf16>
    %c0_6 = arith.constant 0 : index
    %c0_7 = arith.constant 0 : index
    %217 = vector.load %arg4[%c0_6, %c0_7] : memref<863x384xbf16, #tpu.memory_space<vmem>>, vector<863x384xbf16>
    %cst_8 = arith.constant dense<0.000000e+00> : vector<32x384xf32>
    %218 = tpu.matmul %216, %217, %cst_8 {dimension_numbers = #tpu.dot_dimension_numbers<[1], [0], [0], [1], [0, 0, 1, 1], [], []>} : vector<32x863xbf16>, vector<863x384xbf16>, vector<32x384xf32> -> vector<32x384xf32>
    %219 = vector.shape_cast %218 : vector<32x384xf32> to vector<2x16x384xf32>
    %220 = arith.truncf %219 : vector<2x16x384xf32> to vector<2x16x384xbf16>
    %c0_9 = arith.constant 0 : index
    %c0_10 = arith.constant 0 : index
    %c0_11 = arith.constant 0 : index
    %221 = vector.load %arg5[%c0_9, %c0_10, %c0_11] : memref<2x16x384xbf16, #tpu.memory_space<vmem>>, vector<2x16x384xbf16>
    tpu.vector_store %arg5[%c0_9, %c0_10, %c0_11], %220 {strides = array<i32>} : memref<2x16x384xbf16, #tpu.memory_space<vmem>>, vector<2x16x384xbf16>,
    return
  }
  func.func @transform_0(%arg0: i32) -> (i32, i32) {
    %c0_i32 = arith.constant 0 : i32
    %c0_i32_0 = arith.constant 0 : i32
    return %arg0, %c0_i32 : i32, i32
  }
  func.func @transform_1(%arg0: i32) -> (i32, i32) {
    %c0_i32 = arith.constant 0 : i32
    %c0_i32_0 = arith.constant 0 : i32
    %c0_i32_1 = arith.constant 0 : i32
    return %c0_i32, %c0_i32_0 : i32, i32
  }
  func.func @transform_2(%arg0: i32) -> (i32, i32) {
    %c0_i32 = arith.constant 0 : i32
    %c0_i32_0 = arith.constant 0 : i32
    %c0_i32_1 = arith.constant 0 : i32
    return %c0_i32, %c0_i32_0 : i32, i32
  }
  func.func @transform_3(%arg0: i32) -> (i32, i32) {
    %c0_i32 = arith.constant 0 : i32
    %c0_i32_0 = arith.constant 0 : i32
    %c0_i32_1 = arith.constant 0 : i32
    return %c0_i32, %c0_i32_0 : i32, i32
  }
  func.func @transform_4(%arg0: i32) -> (i32, i32, i32) {
    %c0_i32 = arith.constant 0 : i32
    %c0_i32_0 = arith.constant 0 : i32
    %c0_i32_1 = arith.constant 0 : i32
    return %arg0, %c0_i32, %c0_i32_0 : i32, i32, i32
  }
}

module attributes {stable_mosaic.version = 11 : i64} {
  func.func @_stage2_kernel(%arg0: i32, %arg1: memref<2x16x384xbf16, #tpu.memory_space<vmem>>, %arg2: memref<32x400xbf16, #tpu.memory_space<vmem>>, %arg3: memref<32x1xf32, #tpu.memory_space<vmem>>, %arg4: memref<233x128xbf16, #tpu.memory_space<vmem>>, %arg5: memref<2x32x128xbf16, #tpu.memory_space<vmem>>) attributes {dimension_semantics = [#tpu.dimension_semantics<parallel>], iteration_bounds = array<i64: 1>, scalar_prefetch = 0 : i64, scratch_operands = 0 : i64, tpu.core_type = #tpu.core_type<tc>, window_params = [{transform_indices = @transform_0, window_bounds = array<i64: 2, 16, 384>}, {pipeline_mode = #tpu.pipeline_mode<synchronous>, transform_indices = @transform_1, window_bounds = array<i64: 32, 400>}, {pipeline_mode = #tpu.pipeline_mode<synchronous>, transform_indices = @transform_2, window_bounds = array<i64: 32, 1>}, {pipeline_mode = #tpu.pipeline_mode<synchronous>, transform_indices = @transform_3, window_bounds = array<i64: 233, 128>}, {transform_indices = @transform_4, window_bounds = array<i64: 2, 32, 128>}]} {
    %c0 = arith.constant 0 : index
    %c0_0 = arith.constant 0 : index
    %0 = vector.load %arg2[%c0, %c0_0] : memref<32x400xbf16, #tpu.memory_space<vmem>>, vector<32x400xbf16>
    %c0_1 = arith.constant 0 : index
    %c0_2 = arith.constant 0 : index
    %c0_3 = arith.constant 0 : index
    %1 = vector.load %arg1[%c0_1, %c0_2, %c0_3] : memref<2x16x384xbf16, #tpu.memory_space<vmem>>, vector<1x16x384xbf16>
    %2 = vector.shape_cast %1 : vector<1x16x384xbf16> to vector<16x384xbf16>
    %3 = vector.extract_strided_slice %2 {offsets = [0, 0], sizes = [16, 252], strides = [1, 1]} : vector<16x384xbf16> to vector<16x252xbf16>
    %4 = vector.extract_strided_slice %2 {offsets = [0, 1], sizes = [16, 252], strides = [1, 1]} : vector<16x384xbf16> to vector<16x252xbf16>
    %5 = vector.extract_strided_slice %2 {offsets = [0, 2], sizes = [16, 252], strides = [1, 1]} : vector<16x384xbf16> to vector<16x252xbf16>
    %6 = vector.extract_strided_slice %2 {offsets = [0, 3], sizes = [16, 252], strides = [1, 1]} : vector<16x384xbf16> to vector<16x252xbf16>
    %7 = vector.extract_strided_slice %2 {offsets = [0, 4], sizes = [16, 252], strides = [1, 1]} : vector<16x384xbf16> to vector<16x252xbf16>
    %8 = vector.extract_strided_slice %2 {offsets = [0, 18], sizes = [16, 252], strides = [1, 1]} : vector<16x384xbf16> to vector<16x252xbf16>
    %9 = vector.extract_strided_slice %2 {offsets = [0, 19], sizes = [16, 252], strides = [1, 1]} : vector<16x384xbf16> to vector<16x252xbf16>
    %10 = vector.extract_strided_slice %2 {offsets = [0, 20], sizes = [16, 252], strides = [1, 1]} : vector<16x384xbf16> to vector<16x252xbf16>
    %11 = vector.extract_strided_slice %2 {offsets = [0, 21], sizes = [16, 252], strides = [1, 1]} : vector<16x384xbf16> to vector<16x252xbf16>
    %12 = vector.extract_strided_slice %2 {offsets = [0, 22], sizes = [16, 252], strides = [1, 1]} : vector<16x384xbf16> to vector<16x252xbf16>
    %13 = vector.extract_strided_slice %2 {offsets = [0, 36], sizes = [16, 252], strides = [1, 1]} : vector<16x384xbf16> to vector<16x252xbf16>
    %14 = vector.extract_strided_slice %2 {offsets = [0, 37], sizes = [16, 252], strides = [1, 1]} : vector<16x384xbf16> to vector<16x252xbf16>
    %15 = vector.extract_strided_slice %2 {offsets = [0, 38], sizes = [16, 252], strides = [1, 1]} : vector<16x384xbf16> to vector<16x252xbf16>
    %16 = vector.extract_strided_slice %2 {offsets = [0, 39], sizes = [16, 252], strides = [1, 1]} : vector<16x384xbf16> to vector<16x252xbf16>
    %17 = vector.extract_strided_slice %2 {offsets = [0, 40], sizes = [16, 252], strides = [1, 1]} : vector<16x384xbf16> to vector<16x252xbf16>
    %18 = vector.extract_strided_slice %2 {offsets = [0, 54], sizes = [16, 252], strides = [1, 1]} : vector<16x384xbf16> to vector<16x252xbf16>
    %19 = vector.extract_strided_slice %2 {offsets = [0, 55], sizes = [16, 252], strides = [1, 1]} : vector<16x384xbf16> to vector<16x252xbf16>
    %20 = vector.extract_strided_slice %2 {offsets = [0, 56], sizes = [16, 252], strides = [1, 1]} : vector<16x384xbf16> to vector<16x252xbf16>
    %21 = vector.extract_strided_slice %2 {offsets = [0, 57], sizes = [16, 252], strides = [1, 1]} : vector<16x384xbf16> to vector<16x252xbf16>
    %22 = vector.extract_strided_slice %2 {offsets = [0, 58], sizes = [16, 252], strides = [1, 1]} : vector<16x384xbf16> to vector<16x252xbf16>
    %23 = vector.extract_strided_slice %2 {offsets = [0, 72], sizes = [16, 252], strides = [1, 1]} : vector<16x384xbf16> to vector<16x252xbf16>
    %24 = vector.extract_strided_slice %2 {offsets = [0, 73], sizes = [16, 252], strides = [1, 1]} : vector<16x384xbf16> to vector<16x252xbf16>
    %25 = vector.extract_strided_slice %2 {offsets = [0, 74], sizes = [16, 252], strides = [1, 1]} : vector<16x384xbf16> to vector<16x252xbf16>
    %26 = vector.extract_strided_slice %2 {offsets = [0, 75], sizes = [16, 252], strides = [1, 1]} : vector<16x384xbf16> to vector<16x252xbf16>
    %27 = vector.extract_strided_slice %2 {offsets = [0, 76], sizes = [16, 252], strides = [1, 1]} : vector<16x384xbf16> to vector<16x252xbf16>
    %28 = tpu.concatenate %3, %4, %5, %6, %7, %8, %9, %10, %11, %12, %13, %14, %15, %16, %17, %18 in 0 : vector<16x252xbf16>, vector<16x252xbf16>, vector<16x252xbf16>, vector<16x252xbf16>, vector<16x252xbf16>, vector<16x252xbf16>, vector<16x252xbf16>, vector<16x252xbf16>, vector<16x252xbf16>, vector<16x252xbf16>, vector<16x252xbf16>, vector<16x252xbf16>, vector<16x252xbf16>, vector<16x252xbf16>, vector<16x252xbf16>, vector<16x252xbf16> -> vector<256x252xbf16>
    %29 = tpu.concatenate %19, %20, %21, %22, %23, %24, %25, %26, %27 in 0 : vector<16x252xbf16>, vector<16x252xbf16>, vector<16x252xbf16>, vector<16x252xbf16>, vector<16x252xbf16>, vector<16x252xbf16>, vector<16x252xbf16>, vector<16x252xbf16>, vector<16x252xbf16> -> vector<144x252xbf16>
    %30 = tpu.concatenate %28, %29 in 0 : vector<256x252xbf16>, vector<144x252xbf16> -> vector<400x252xbf16>
    %cst = arith.constant dense<0.000000e+00> : vector<32x252xf32>
    %31 = tpu.matmul %0, %30, %cst {dimension_numbers = #tpu.dot_dimension_numbers<[1], [0], [0], [1], [0, 0, 1, 1], [], []>} : vector<32x400xbf16>, vector<400x252xbf16>, vector<32x252xf32> -> vector<32x252xf32>
    %c1 = arith.constant 1 : index
    %c0_4 = arith.constant 0 : index
    %c0_5 = arith.constant 0 : index
    %32 = vector.load %arg1[%c1, %c0_4, %c0_5] : memref<2x16x384xbf16, #tpu.memory_space<vmem>>, vector<1x16x384xbf16>
    %33 = vector.shape_cast %32 : vector<1x16x384xbf16> to vector<16x384xbf16>
    %34 = vector.extract_strided_slice %33 {offsets = [0, 0], sizes = [16, 252], strides = [1, 1]} : vector<16x384xbf16> to vector<16x252xbf16>
    %35 = vector.extract_strided_slice %33 {offsets = [0, 1], sizes = [16, 252], strides = [1, 1]} : vector<16x384xbf16> to vector<16x252xbf16>
    %36 = vector.extract_strided_slice %33 {offsets = [0, 2], sizes = [16, 252], strides = [1, 1]} : vector<16x384xbf16> to vector<16x252xbf16>
    %37 = vector.extract_strided_slice %33 {offsets = [0, 3], sizes = [16, 252], strides = [1, 1]} : vector<16x384xbf16> to vector<16x252xbf16>
    %38 = vector.extract_strided_slice %33 {offsets = [0, 4], sizes = [16, 252], strides = [1, 1]} : vector<16x384xbf16> to vector<16x252xbf16>
    %39 = vector.extract_strided_slice %33 {offsets = [0, 18], sizes = [16, 252], strides = [1, 1]} : vector<16x384xbf16> to vector<16x252xbf16>
    %40 = vector.extract_strided_slice %33 {offsets = [0, 19], sizes = [16, 252], strides = [1, 1]} : vector<16x384xbf16> to vector<16x252xbf16>
    %41 = vector.extract_strided_slice %33 {offsets = [0, 20], sizes = [16, 252], strides = [1, 1]} : vector<16x384xbf16> to vector<16x252xbf16>
    %42 = vector.extract_strided_slice %33 {offsets = [0, 21], sizes = [16, 252], strides = [1, 1]} : vector<16x384xbf16> to vector<16x252xbf16>
    %43 = vector.extract_strided_slice %33 {offsets = [0, 22], sizes = [16, 252], strides = [1, 1]} : vector<16x384xbf16> to vector<16x252xbf16>
    %44 = vector.extract_strided_slice %33 {offsets = [0, 36], sizes = [16, 252], strides = [1, 1]} : vector<16x384xbf16> to vector<16x252xbf16>
    %45 = vector.extract_strided_slice %33 {offsets = [0, 37], sizes = [16, 252], strides = [1, 1]} : vector<16x384xbf16> to vector<16x252xbf16>
    %46 = vector.extract_strided_slice %33 {offsets = [0, 38], sizes = [16, 252], strides = [1, 1]} : vector<16x384xbf16> to vector<16x252xbf16>
    %47 = vector.extract_strided_slice %33 {offsets = [0, 39], sizes = [16, 252], strides = [1, 1]} : vector<16x384xbf16> to vector<16x252xbf16>
    %48 = vector.extract_strided_slice %33 {offsets = [0, 40], sizes = [16, 252], strides = [1, 1]} : vector<16x384xbf16> to vector<16x252xbf16>
    %49 = vector.extract_strided_slice %33 {offsets = [0, 54], sizes = [16, 252], strides = [1, 1]} : vector<16x384xbf16> to vector<16x252xbf16>
    %50 = vector.extract_strided_slice %33 {offsets = [0, 55], sizes = [16, 252], strides = [1, 1]} : vector<16x384xbf16> to vector<16x252xbf16>
    %51 = vector.extract_strided_slice %33 {offsets = [0, 56], sizes = [16, 252], strides = [1, 1]} : vector<16x384xbf16> to vector<16x252xbf16>
    %52 = vector.extract_strided_slice %33 {offsets = [0, 57], sizes = [16, 252], strides = [1, 1]} : vector<16x384xbf16> to vector<16x252xbf16>
    %53 = vector.extract_strided_slice %33 {offsets = [0, 58], sizes = [16, 252], strides = [1, 1]} : vector<16x384xbf16> to vector<16x252xbf16>
    %54 = vector.extract_strided_slice %33 {offsets = [0, 72], sizes = [16, 252], strides = [1, 1]} : vector<16x384xbf16> to vector<16x252xbf16>
    %55 = vector.extract_strided_slice %33 {offsets = [0, 73], sizes = [16, 252], strides = [1, 1]} : vector<16x384xbf16> to vector<16x252xbf16>
    %56 = vector.extract_strided_slice %33 {offsets = [0, 74], sizes = [16, 252], strides = [1, 1]} : vector<16x384xbf16> to vector<16x252xbf16>
    %57 = vector.extract_strided_slice %33 {offsets = [0, 75], sizes = [16, 252], strides = [1, 1]} : vector<16x384xbf16> to vector<16x252xbf16>
    %58 = vector.extract_strided_slice %33 {offsets = [0, 76], sizes = [16, 252], strides = [1, 1]} : vector<16x384xbf16> to vector<16x252xbf16>
    %59 = tpu.concatenate %34, %35, %36, %37, %38, %39, %40, %41, %42, %43, %44, %45, %46, %47, %48, %49 in 0 : vector<16x252xbf16>, vector<16x252xbf16>, vector<16x252xbf16>, vector<16x252xbf16>, vector<16x252xbf16>, vector<16x252xbf16>, vector<16x252xbf16>, vector<16x252xbf16>, vector<16x252xbf16>, vector<16x252xbf16>, vector<16x252xbf16>, vector<16x252xbf16>, vector<16x252xbf16>, vector<16x252xbf16>, vector<16x252xbf16>, vector<16x252xbf16> -> vector<256x252xbf16>
    %60 = tpu.concatenate %50, %51, %52, %53, %54, %55, %56, %57, %58 in 0 : vector<16x252xbf16>, vector<16x252xbf16>, vector<16x252xbf16>, vector<16x252xbf16>, vector<16x252xbf16>, vector<16x252xbf16>, vector<16x252xbf16>, vector<16x252xbf16>, vector<16x252xbf16> -> vector<144x252xbf16>
    %61 = tpu.concatenate %59, %60 in 0 : vector<256x252xbf16>, vector<144x252xbf16> -> vector<400x252xbf16>
    %cst_6 = arith.constant dense<0.000000e+00> : vector<32x252xf32>
    %62 = tpu.matmul %0, %61, %cst_6 {dimension_numbers = #tpu.dot_dimension_numbers<[1], [0], [0], [1], [0, 0, 1, 1], [], []>} : vector<32x400xbf16>, vector<400x252xbf16>, vector<32x252xf32> -> vector<32x252xf32>
    %63 = vector.shape_cast %31 : vector<32x252xf32> to vector<1x32x252xf32>
    %64 = vector.shape_cast %62 : vector<32x252xf32> to vector<1x32x252xf32>
    %65 = tpu.concatenate %63, %64 in 0 : vector<1x32x252xf32>, vector<1x32x252xf32> -> vector<2x32x252xf32>
    %c0_7 = arith.constant 0 : index
    %c0_8 = arith.constant 0 : index
    %66 = vector.load %arg3[%c0_7, %c0_8] : memref<32x1xf32, #tpu.memory_space<vmem>>, vector<32x1xf32>
    %67 = vector.shape_cast %66 : vector<32x1xf32> to vector<1x32x1xf32>
    %68 = vector.broadcast %67 : vector<1x32x1xf32> to vector<2x32x252xf32>
    %69 = arith.addf %65, %68 : vector<2x32x252xf32>
    %cst_9 = arith.constant 0.000000e+00 : f32
    %70 = vector.broadcast %cst_9 : f32 to vector<2x32x252xf32>
    %71 = arith.maximumf %69, %70 : vector<2x32x252xf32>
    %72 = vector.extract_strided_slice %71 {offsets = [0, 0, 0], sizes = [2, 32, 251], strides = [1, 1, 1]} : vector<2x32x252xf32> to vector<2x32x251xf32>
    %73 = vector.extract_strided_slice %71 {offsets = [0, 0, 1], sizes = [2, 32, 251], strides = [1, 1, 1]} : vector<2x32x252xf32> to vector<2x32x251xf32>
    %74 = arith.maximumf %72, %73 : vector<2x32x251xf32>
    %75 = vector.extract_strided_slice %74 {offsets = [0, 0, 0], sizes = [2, 32, 233], strides = [1, 1, 1]} : vector<2x32x251xf32> to vector<2x32x233xf32>
    %76 = vector.extract_strided_slice %74 {offsets = [0, 0, 18], sizes = [2, 32, 233], strides = [1, 1, 1]} : vector<2x32x251xf32> to vector<2x32x233xf32>
    %77 = arith.maximumf %75, %76 : vector<2x32x233xf32>
    %78 = vector.shape_cast %77 : vector<2x32x233xf32> to vector<64x233xf32>
    %79 = arith.truncf %78 : vector<64x233xf32> to vector<64x233xbf16>
    %c0_10 = arith.constant 0 : index
    %c0_11 = arith.constant 0 : index
    %80 = vector.load %arg4[%c0_10, %c0_11] : memref<233x128xbf16, #tpu.memory_space<vmem>>, vector<233x128xbf16>
    %cst_12 = arith.constant dense<0.000000e+00> : vector<64x128xf32>
    %81 = tpu.matmul %79, %80, %cst_12 {dimension_numbers = #tpu.dot_dimension_numbers<[1], [0], [0], [1], [0, 0, 1, 1], [], []>} : vector<64x233xbf16>, vector<233x128xbf16>, vector<64x128xf32> -> vector<64x128xf32>
    %82 = vector.shape_cast %81 : vector<64x128xf32> to vector<2x32x128xf32>
    %83 = arith.truncf %82 : vector<2x32x128xf32> to vector<2x32x128xbf16>
    %c0_13 = arith.constant 0 : index
    %c0_14 = arith.constant 0 : index
    %c0_15 = arith.constant 0 : index
    %84 = vector.load %arg5[%c0_13, %c0_14, %c0_15] : memref<2x32x128xbf16, #tpu.memory_space<vmem>>, vector<2x32x128xbf16>
    tpu.vector_store %arg5[%c0_13, %c0_14, %c0_15], %83 {strides = array<i32>} : memref<2x32x128xbf16, #tpu.memory_space<vmem>>, vector<2x32x128xbf16>,
    return
  }
  func.func @transform_0(%arg0: i32) -> (i32, i32, i32) {
    %c0_i32 = arith.constant 0 : i32
    %c0_i32_0 = arith.constant 0 : i32
    %c0_i32_1 = arith.constant 0 : i32
    return %arg0, %c0_i32, %c0_i32_0 : i32, i32, i32
  }
  func.func @transform_1(%arg0: i32) -> (i32, i32) {
    %c0_i32 = arith.constant 0 : i32
    %c0_i32_0 = arith.constant 0 : i32
    %c0_i32_1 = arith.constant 0 : i32
    return %c0_i32, %c0_i32_0 : i32, i32
  }
  func.func @transform_2(%arg0: i32) -> (i32, i32) {
    %c0_i32 = arith.constant 0 : i32
    %c0_i32_0 = arith.constant 0 : i32
    %c0_i32_1 = arith.constant 0 : i32
    return %c0_i32, %c0_i32_0 : i32, i32
  }
  func.func @transform_3(%arg0: i32) -> (i32, i32) {
    %c0_i32 = arith.constant 0 : i32
    %c0_i32_0 = arith.constant 0 : i32
    %c0_i32_1 = arith.constant 0 : i32
    return %c0_i32, %c0_i32_0 : i32, i32
  }
  func.func @transform_4(%arg0: i32) -> (i32, i32, i32) {
    %c0_i32 = arith.constant 0 : i32
    %c0_i32_0 = arith.constant 0 : i32
    %c0_i32_1 = arith.constant 0 : i32
    return %arg0, %c0_i32, %c0_i32_0 : i32, i32, i32
  }
}

</mosaic_0001>

<llo_original>
// kernel: mnist_net_forward.4
$region0: #{mnist_net_forward.4}
  #allocation0 [shape = 'u32[]', space=smem, size = 0x4, offset = 0x4, fixed_abs, tag = 'smem constant byte address 0x4 - core index']
  #allocation1 [shape = 'u32[144,128]{1,0:T(1,128)}', space=vmem, size = 0x12000, scoped, tag = 'internal scratch']
  %s0 = inlined_call_operand.vmem [shape: bf16[2,16,384], index: 0, kind: input, shape index: {}]
  %s1 = inlined_call_operand.vmem [shape: bf16[32,400], index: 1, kind: input, shape index: {}]
  %s2 = inlined_call_operand.vmem [shape: f32[32,1], index: 2, kind: input, shape index: {}]
  %s3 = inlined_call_operand.vmem [shape: bf16[233,128], index: 3, kind: input, shape index: {}]
  %s4 = inlined_call_operand.vmem [shape: bf16[2,32,128], index: 4, kind: output, shape index: {}]
  %s5 = sld [smem:[#allocation0]]
  $region26: #{mnist_net_forward.4} parent=0
    _
  %s7 = ssub.s32 1, %s5
  %s8 = scalar_select 0, %s7, %s5
  // Predicated region
  $region2: #{mnist_net_forward.4} parent=0 // pred_check
    _
  $region3: #{mnist_net_forward.4} parent=0 // pred_check_branch
    %10 = sbr.rel (0) target = $region5
  $region4: #{mnist_net_forward.4} parent=0 // pred_region
    _
  $region5: #{mnist_net_forward.4} parent=0 // pred_fallthru
    _
  // Predicated region
  $region6: #{mnist_net_forward.4} parent=0 // pred_check
    _
  $region7: #{mnist_net_forward.4} parent=0 // pred_check_branch
    %12 = sbr.rel (0) target = $region9
  $region8: #{mnist_net_forward.4} parent=0 // pred_region
    _
  $region9: #{mnist_net_forward.4} parent=0 // pred_fallthru
    _
  // Predicated region
  $region10: #{mnist_net_forward.4} parent=0 // pred_check
    _
  $region11: #{mnist_net_forward.4} parent=0 // pred_check_branch
    %14 = sbr.rel (0) target = $region13
  $region12: #{mnist_net_forward.4} parent=0 // pred_region
    _
  $region13: #{mnist_net_forward.4} parent=0 // pred_fallthru
    _
  // Predicated region
  $region14: #{mnist_net_forward.4} parent=0 // pred_check
    _
  $region15: #{mnist_net_forward.4} parent=0 // pred_check_branch
    %16 = sbr.rel (0) target = $region17
  $region16: #{mnist_net_forward.4} parent=0 // pred_region
    _
  $region17: #{mnist_net_forward.4} parent=0 // pred_fallthru
    _
  %v18 = vld [vmem:[%s1] sm:$0xff]
  %v19 = vld [vmem:[%s1 + $0x8] sm:$0xff]
  %v20 = vld [vmem:[%s1 + $0x10] sm:$0xff]
  %v21 = vld [vmem:[%s1 + $0x18] sm:$0xff]
  %v22 = vld [vmem:[%s1 + $0x20] sm:$0xff]
  %v23 = vld [vmem:[%s1 + $0x28] sm:$0xff]
  %v24 = vld [vmem:[%s1 + $0x30] sm:$0xff]
  %v25 = vld [vmem:[%s1 + $0x38] sm:$0xff]
  %v26 = vld [vmem:[%s0] sm:$0xff]
  %v27 = vld [vmem:[%s0 + $0x8] sm:$0xf]
  %v28 = vld [vmem:[%s0 + $0xc] sm:$0xff]
  %v29 = vld [vmem:[%s0 + $0x14] sm:$0xf]
  %v32 = vunpack.c.l.b16 %v26
  %v33 = vunpack.c.h.b16 %v26
  %v34 = vunpack.c.l.b16 %v28
  %v35 = vunpack.c.h.b16 %v28
  %v36 = vpack.c.b16 %v34, %v32
  %v37 = vpack.c.b16 %v35, %v33
  %40 = vrot.lane.b32.xlu0 %v36, 127
  %v41 = vpop.permute.xlu0 %40
  %42 = vrot.lane.b32.xlu0 %v37, 127
  %v43 = vpop.permute.xlu0 %42
  %vm44 = vcmask 1039360
  %v45 = vsel %vm44, %v41, %v43
  %48 = vrot.lane.b32.xlu0 %v36, 126
  %v49 = vpop.permute.xlu0 %48
  %50 = vrot.lane.b32.xlu0 %v37, 126
  %v51 = vpop.permute.xlu0 %50
  %vm52 = vcmask 1031168
  %v53 = vsel %vm52, %v49, %v51
  %56 = vrot.lane.b32.xlu0 %v36, 125
  %v57 = vpop.permute.xlu0 %56
  %58 = vrot.lane.b32.xlu0 %v37, 125
  %v59 = vpop.permute.xlu0 %58
  %vm60 = vcmask 1022976
  %v61 = vsel %vm60, %v57, %v59
  %64 = vrot.lane.b32.xlu0 %v36, 124
  %v65 = vpop.permute.xlu0 %64
  %66 = vrot.lane.b32.xlu0 %v37, 124
  %v67 = vpop.permute.xlu0 %66
  %vm68 = vcmask 1014784
  %v69 = vsel %vm68, %v65, %v67
  %v74 = vunpack.c.l.b16 %v27
  %v75 = vunpack.c.l.b16 %v29
  %v76 = vpack.c.b16 %v75, %v74
  %77 = vrot.lane.b32.xlu0 %v36, 110
  %v78 = vpop.permute.xlu0 %77
  %79 = vrot.lane.b32.xlu0 %v37, 110
  %v80 = vpop.permute.xlu0 %79
  %81 = vrot.lane.b32.xlu0 %v76, 110
  %v82 = vpop.permute.xlu0 %81
  %vm83 = vcmask 900096
  %v84 = vsel %vm83, %v78, %v80
  %v85 = vsel %vm83, %v80, %v82
  %88 = vrot.lane.b32.xlu0 %v36, 109
  %v89 = vpop.permute.xlu0 %88
  %90 = vrot.lane.b32.xlu0 %v37, 109
  %v91 = vpop.permute.xlu0 %90
  %92 = vrot.lane.b32.xlu0 %v76, 109
  %v93 = vpop.permute.xlu0 %92
  %vm94 = vcmask 891904
  %v95 = vsel %vm94, %v89, %v91
  %v96 = vsel %vm94, %v91, %v93
  %99 = vrot.lane.b32.xlu0 %v36, 108
  %v100 = vpop.permute.xlu0 %99
  %101 = vrot.lane.b32.xlu0 %v37, 108
  %v102 = vpop.permute.xlu0 %101
  %103 = vrot.lane.b32.xlu0 %v76, 108
  %v104 = vpop.permute.xlu0 %103
  %vm105 = vcmask 883712
  %v106 = vsel %vm105, %v100, %v102
  %v107 = vsel %vm105, %v102, %v104
  %110 = vrot.lane.b32.xlu0 %v36, 107
  %v111 = vpop.permute.xlu0 %110
  %112 = vrot.lane.b32.xlu0 %v37, 107
  %v113 = vpop.permute.xlu0 %112
  %114 = vrot.lane.b32.xlu0 %v76, 107
  %v115 = vpop.permute.xlu0 %114
  %vm116 = vcmask 875520
  %v117 = vsel %vm116, %v111, %v113
  %v118 = vsel %vm116, %v113, %v115
  %121 = vrot.lane.b32.xlu0 %v36, 106
  %v122 = vpop.permute.xlu0 %121
  %123 = vrot.lane.b32.xlu0 %v37, 106
  %v124 = vpop.permute.xlu0 %123
  %125 = vrot.lane.b32.xlu0 %v76, 106
  %v126 = vpop.permute.xlu0 %125
  %vm127 = vcmask 867328
  %v128 = vsel %vm127, %v122, %v124
  %v129 = vsel %vm127, %v124, %v126
  %132 = vrot.lane.b32.xlu0 %v36, 92
  %v133 = vpop.permute.xlu0 %132
  %134 = vrot.lane.b32.xlu0 %v37, 92
  %v135 = vpop.permute.xlu0 %134
  %136 = vrot.lane.b32.xlu0 %v76, 92
  %v137 = vpop.permute.xlu0 %136
  %vm138 = vcmask 752640
  %v139 = vsel %vm138, %v133, %v135
  %v140 = vsel %vm138, %v135, %v137
  %143 = vrot.lane.b32.xlu0 %v36, 91
  %v144 = vpop.permute.xlu0 %143
  %145 = vrot.lane.b32.xlu0 %v37, 91
  %v146 = vpop.permute.xlu0 %145
  %147 = vrot.lane.b32.xlu0 %v76, 91
  %v148 = vpop.permute.xlu0 %147
  %vm149 = vcmask 744448
  %v150 = vsel %vm149, %v144, %v146
  %v151 = vsel %vm149, %v146, %v148
  %154 = vrot.lane.b32.xlu0 %v36, 90
  %v155 = vpop.permute.xlu0 %154
  %156 = vrot.lane.b32.xlu0 %v37, 90
  %v157 = vpop.permute.xlu0 %156
  %158 = vrot.lane.b32.xlu0 %v76, 90
  %v159 = vpop.permute.xlu0 %158
  %vm160 = vcmask 736256
  %v161 = vsel %vm160, %v155, %v157
  %v162 = vsel %vm160, %v157, %v159
  %165 = vrot.lane.b32.xlu0 %v36, 89
  %v166 = vpop.permute.xlu0 %165
  %167 = vrot.lane.b32.xlu0 %v37, 89
  %v168 = vpop.permute.xlu0 %167
  %169 = vrot.lane.b32.xlu0 %v76, 89
  %v170 = vpop.permute.xlu0 %169
  %vm171 = vcmask 728064
  %v172 = vsel %vm171, %v166, %v168
  %v173 = vsel %vm171, %v168, %v170
  %176 = vrot.lane.b32.xlu0 %v36, 88
  %v177 = vpop.permute.xlu0 %176
  %178 = vrot.lane.b32.xlu0 %v37, 88
  %v179 = vpop.permute.xlu0 %178
  %180 = vrot.lane.b32.xlu0 %v76, 88
  %v181 = vpop.permute.xlu0 %180
  %vm182 = vcmask 719872
  %v183 = vsel %vm182, %v177, %v179
  %v184 = vsel %vm182, %v179, %v181
  %187 = vrot.lane.b32.xlu0 %v36, 74
  %v188 = vpop.permute.xlu0 %187
  %189 = vrot.lane.b32.xlu0 %v37, 74
  %v190 = vpop.permute.xlu0 %189
  %191 = vrot.lane.b32.xlu0 %v76, 74
  %v192 = vpop.permute.xlu0 %191
  %vm193 = vcmask 605184
  %v194 = vsel %vm193, %v188, %v190
  %v195 = vsel %vm193, %v190, %v192
  %198 = vrot.lane.b32.xlu0 %v76, 127
  %v199 = vpop.permute.xlu0 %198
  %v200 = vsel %vm44, %v43, %v199
  %201 = vrot.lane.b32.xlu0 %v76, 126
  %v202 = vpop.permute.xlu0 %201
  %v203 = vsel %vm52, %v51, %v202
  %204 = vrot.lane.b32.xlu0 %v76, 125
  %v205 = vpop.permute.xlu0 %204
  %v206 = vsel %vm60, %v59, %v205
  %207 = vrot.lane.b32.xlu0 %v36, 111
  %v208 = vpop.permute.xlu0 %207
  %209 = vrot.lane.b32.xlu0 %v37, 111
  %v210 = vpop.permute.xlu0 %209
  %211 = vrot.lane.b32.xlu0 %v76, 111
  %v212 = vpop.permute.xlu0 %211
  %vm213 = vcmask 908288
  %v214 = vsel %vm213, %v208, %v210
  %v215 = vsel %vm213, %v210, %v212
  %216 = vrot.lane.b32.xlu0 %v36, 73
  %v217 = vpop.permute.xlu0 %216
  %218 = vrot.lane.b32.xlu0 %v37, 73
  %v219 = vpop.permute.xlu0 %218
  %220 = vrot.lane.b32.xlu0 %v76, 73
  %v221 = vpop.permute.xlu0 %220
  %222 = vrot.lane.b32.xlu0 %v45, 73
  %v223 = vpop.permute.xlu0 %222
  %224 = vrot.lane.b32.xlu0 %v200, 73
  %v225 = vpop.permute.xlu0 %224
  %226 = vrot.lane.b32.xlu0 %v199, 73
  %v227 = vpop.permute.xlu0 %226
  %228 = vrot.lane.b32.xlu0 %v53, 73
  %v229 = vpop.permute.xlu0 %228
  %230 = vrot.lane.b32.xlu0 %v203, 73
  %v231 = vpop.permute.xlu0 %230
  %232 = vrot.lane.b32.xlu0 %v202, 73
  %v233 = vpop.permute.xlu0 %232
  %234 = vrot.lane.b32.xlu0 %v61, 73
  %v235 = vpop.permute.xlu0 %234
  %236 = vrot.lane.b32.xlu0 %v206, 73
  %v237 = vpop.permute.xlu0 %236
  %238 = vrot.lane.b32.xlu0 %v205, 73
  %v239 = vpop.permute.xlu0 %238
  %240 = vrot.lane.b32.xlu0 %v214, 73
  %v241 = vpop.permute.xlu0 %240
  %242 = vrot.lane.b32.xlu0 %v215, 73
  %v243 = vpop.permute.xlu0 %242
  %244 = vrot.lane.b32.xlu0 %v212, 73
  %v245 = vpop.permute.xlu0 %244
  %246 = vrot.lane.b32.xlu0 %v84, 73
  %v247 = vpop.permute.xlu0 %246
  %248 = vrot.lane.b32.xlu0 %v85, 73
  %v249 = vpop.permute.xlu0 %248
  %250 = vrot.lane.b32.xlu0 %v82, 73
  %v251 = vpop.permute.xlu0 %250
  %252 = vrot.lane.b32.xlu0 %v95, 73
  %v253 = vpop.permute.xlu0 %252
  %254 = vrot.lane.b32.xlu0 %v96, 73
  %v255 = vpop.permute.xlu0 %254
  %256 = vrot.lane.b32.xlu0 %v93, 73
  %v257 = vpop.permute.xlu0 %256
  %258 = vrot.lane.b32.xlu0 %v106, 73
  %v259 = vpop.permute.xlu0 %258
  %260 = vrot.lane.b32.xlu0 %v107, 73
  %v261 = vpop.permute.xlu0 %260
  %262 = vrot.lane.b32.xlu0 %v104, 73
  %v263 = vpop.permute.xlu0 %262
  %264 = vrot.lane.b32.xlu0 %v117, 73
  %v265 = vpop.permute.xlu0 %264
  %266 = vrot.lane.b32.xlu0 %v118, 73
  %v267 = vpop.permute.xlu0 %266
  %268 = vrot.lane.b32.xlu0 %v115, 73
  %v269 = vpop.permute.xlu0 %268
  %vm270 = vcmask 596992
  %v271 = vsel %vm270, %v217, %v219
  %v272 = vsel %vm270, %v219, %v221
  %v273 = vsel %vm270, %v223, %v225
  %v274 = vsel %vm270, %v225, %v227
  %v275 = vsel %vm270, %v229, %v231
  %v276 = vsel %vm270, %v231, %v233
  %v277 = vsel %vm270, %v235, %v237
  %v278 = vsel %vm270, %v237, %v239
  %v279 = vsel %vm270, %v241, %v243
  %v280 = vsel %vm270, %v243, %v245
  %v281 = vsel %vm270, %v247, %v249
  %v282 = vsel %vm270, %v249, %v251
  %v283 = vsel %vm270, %v253, %v255
  %v284 = vsel %vm270, %v255, %v257
  %v285 = vsel %vm270, %v259, %v261
  %v286 = vsel %vm270, %v261, %v263
  %v287 = vsel %vm270, %v265, %v267
  %v288 = vsel %vm270, %v267, %v269
  %v315 = vunpack.c.l.b16 %v18
  %v316 = vunpack.c.h.b16 %v18
  %v317 = vunpack.c.l.b16 %v19
  %v318 = vunpack.c.h.b16 %v19
  %v319 = vunpack.c.l.b16 %v20
  %v320 = vunpack.c.h.b16 %v20
  %v321 = vunpack.c.l.b16 %v21
  %v322 = vunpack.c.h.b16 %v21
  %v323 = vunpack.c.l.b16 %v22
  %v324 = vunpack.c.h.b16 %v22
  %v325 = vunpack.c.l.b16 %v23
  %v326 = vunpack.c.h.b16 %v23
  %v327 = vunpack.c.l.b16 %v24
  %v328 = vunpack.c.h.b16 %v24
  %v329 = vunpack.c.l.b16 %v25
  %v330 = vunpack.c.h.b16 %v25
  %v331 = vpack.c.b16 %v319, %v315
  %v332 = vpack.c.b16 %v320, %v316
  %v333 = vpack.c.b16 %v321, %v317
  %v334 = vpack.c.b16 %v322, %v318
  %v335 = vpack.c.b16 %v327, %v323
  %v336 = vpack.c.b16 %v328, %v324
  %v337 = vpack.c.b16 %v329, %v325
  %v338 = vpack.c.b16 %v330, %v326
  %vm345 = vcmask 130048
  %v347 = vsel %vm345, %v334, 0
  %v350 = vsel %vm345, %v338, 0
  %352 = vmatprep.subr.bf16.mxu0 %v37
  %353 = vmatpush1.bf16.msra.mxu0 %v36
  %354 = vmatprep.subr.bf16.mxu0 %v43
  %355 = vmatpush1.bf16.msra.mxu0 %v45
  %356 = vmatprep.subr.bf16.mxu0 %v51
  %357 = vmatpush1.bf16.msra.mxu0 %v53
  %358 = vmatprep.subr.bf16.mxu0 %v59
  %359 = vmatpush1.bf16.msra.mxu0 %v61
  %360 = vmatprep.subr.bf16.mxu0 %v67
  %361 = vmatpush1.bf16.msra.mxu0 %v69
  %362 = vmatprep.subr.bf16.mxu0 %v85
  %363 = vmatpush1.bf16.msra.mxu0 %v84
  %364 = vmatprep.subr.bf16.mxu0 %v96
  %365 = vmatpush1.bf16.msra.mxu0 %v95
  %366 = vmatprep.subr.bf16.mxu0 %v107
  %367 = vmatpush1.bf16.msra.mxu0 %v106
  %368 = vmatprep.subr.bf16.mxu0 %v118
  %369 = vmatpush1.bf16.msra.mxu0 %v117
  %370 = vmatprep.subr.bf16.mxu0 %v129
  %371 = vmatpush1.bf16.msra.mxu0 %v128
  %372 = vmatprep.subr.bf16.mxu0 %v140
  %373 = vmatpush1.bf16.msra.mxu0 %v139
  %374 = vmatprep.subr.bf16.mxu0 %v151
  %375 = vmatpush1.bf16.msra.mxu0 %v150
  %376 = vmatprep.subr.bf16.mxu0 %v162
  %377 = vmatpush1.bf16.msra.mxu0 %v161
  %378 = vmatprep.subr.bf16.mxu0 %v173
  %379 = vmatpush1.bf16.msra.mxu0 %v172
  %380 = vmatprep.subr.bf16.mxu0 %v184
  %381 = vmatpush1.bf16.msra.mxu0 %v183
  %382 = vmatprep.subr.bf16.mxu0 %v195
  %383 = vmatpush1.bf16.msra.mxu0 %v194
  %384 = vmatprep.mubr.bf16.mxu0 %v332
  %385 = vmatmul.mubr.bf16.gmra.mrb[0].mxu0 %v331
  %v386 = vpop.f32.mrb[0].mxu0
  %v387 = vadd.f32 0.0, %v386
  %v388 = vpop.f32.mrb[0].mxu0
  %v389 = vadd.f32 0.0, %v388
  %v390 = vpop.f32.mrb[0].mxu0
  %v391 = vadd.f32 0.0, %v390
  %v392 = vpop.f32.mrb[0].mxu0
  %v393 = vadd.f32 0.0, %v392
  %394 = vmatprep.mubr.bf16.mxu0 %v336
  %395 = vmatmul.mubr.bf16.gmra.mrb[0].mxu0 %v335
  %v396 = vpop.f32.mrb[0].mxu0
  %v397 = vadd.f32 0.0, %v396
  %v398 = vpop.f32.mrb[0].mxu0
  %v399 = vadd.f32 0.0, %v398
  %v400 = vpop.f32.mrb[0].mxu0
  %v401 = vadd.f32 0.0, %v400
  %v402 = vpop.f32.mrb[0].mxu0
  %v403 = vadd.f32 0.0, %v402
  %404 = vdwg.mxu0
  %405 = vmatprep.subr.bf16.mxu0 %v272
  %406 = vmatpush1.bf16.msra.mxu0 %v271
  %407 = vmatprep.subr.bf16.mxu0 %v274
  %408 = vmatpush1.bf16.msra.mxu0 %v273
  %409 = vmatprep.subr.bf16.mxu0 %v276
  %410 = vmatpush1.bf16.msra.mxu0 %v275
  %411 = vmatprep.subr.bf16.mxu0 %v278
  %412 = vmatpush1.bf16.msra.mxu0 %v277
  %413 = vmatprep.subr.bf16.mxu0 %v280
  %414 = vmatpush1.bf16.msra.mxu0 %v279
  %415 = vmatprep.subr.bf16.mxu0 %v282
  %416 = vmatpush1.bf16.msra.mxu0 %v281
  %417 = vmatprep.subr.bf16.mxu0 %v284
  %418 = vmatpush1.bf16.msra.mxu0 %v283
  %419 = vmatprep.subr.bf16.mxu0 %v286
  %420 = vmatpush1.bf16.msra.mxu0 %v285
  %421 = vmatprep.subr.bf16.mxu0 %v288
  %422 = vmatpush1.bf16.msra.mxu0 %v287
  %423 = vmatprep.subr.bf16.mxu0 0
  %424 = vmatpush1.bf16.msra.mxu0 0
  %425 = vmatprep.subr.bf16.mxu0 0
  %426 = vmatpush1.bf16.msra.mxu0 0
  %427 = vmatprep.subr.bf16.mxu0 0
  %428 = vmatpush1.bf16.msra.mxu0 0
  %429 = vmatprep.subr.bf16.mxu0 0
  %430 = vmatpush1.bf16.msra.mxu0 0
  %431 = vmatprep.subr.bf16.mxu0 0
  %432 = vmatpush1.bf16.msra.mxu0 0
  %433 = vmatprep.subr.bf16.mxu0 0
  %434 = vmatpush1.bf16.msra.mxu0 0
  %435 = vmatprep.subr.bf16.mxu0 0
  %436 = vmatpush1.bf16.msra.mxu0 0
  %437 = vmatprep.mubr.bf16.mxu0 %v347
  %438 = vmatmul.mubr.bf16.gmra.mrb[0].mxu0 %v333
  %v439 = vpop.f32.mrb[0].mxu0
  %v440 = vadd.f32 %v387, %v439
  %v441 = vpop.f32.mrb[0].mxu0
  %v442 = vadd.f32 %v389, %v441
  %v443 = vpop.f32.mrb[0].mxu0
  %v444 = vadd.f32 %v391, %v443
  %v445 = vpop.f32.mrb[0].mxu0
  %v446 = vadd.f32 %v393, %v445
  %447 = vmatprep.mubr.bf16.mxu0 %v350
  %448 = vmatmul.mubr.bf16.gmra.mrb[0].mxu0 %v337
  %v449 = vpop.f32.mrb[0].mxu0
  %v450 = vadd.f32 %v397, %v449
  %v451 = vpop.f32.mrb[0].mxu0
  %v452 = vadd.f32 %v399, %v451
  %v453 = vpop.f32.mrb[0].mxu0
  %v454 = vadd.f32 %v401, %v453
  %v455 = vpop.f32.mrb[0].mxu0
  %v456 = vadd.f32 %v403, %v455
  %457 = vdwg.mxu0
  %s458 = scalar_lea.vmem %s0, 24
  %v459 = vld [vmem:[%s458] sm:$0xff]
  %v460 = vld [vmem:[%s458 + $0x8] sm:$0xf]
  %v461 = vld [vmem:[%s458 + $0xc] sm:$0xff]
  %v462 = vld [vmem:[%s458 + $0x14] sm:$0xf]
  %v465 = vunpack.c.l.b16 %v459
  %v466 = vunpack.c.h.b16 %v459
  %v467 = vunpack.c.l.b16 %v461
  %v468 = vunpack.c.h.b16 %v461
  %v469 = vpack.c.b16 %v467, %v465
  %v470 = vpack.c.b16 %v468, %v466
  %473 = vrot.lane.b32.xlu0 %v469, 127
  %v474 = vpop.permute.xlu0 %473
  %475 = vrot.lane.b32.xlu0 %v470, 127
  %v476 = vpop.permute.xlu0 %475
  %v477 = vsel %vm44, %v474, %v476
  %480 = vrot.lane.b32.xlu0 %v469, 126
  %v481 = vpop.permute.xlu0 %480
  %482 = vrot.lane.b32.xlu0 %v470, 126
  %v483 = vpop.permute.xlu0 %482
  %v484 = vsel %vm52, %v481, %v483
  %487 = vrot.lane.b32.xlu0 %v469, 125
  %v488 = vpop.permute.xlu0 %487
  %489 = vrot.lane.b32.xlu0 %v470, 125
  %v490 = vpop.permute.xlu0 %489
  %v491 = vsel %vm60, %v488, %v490
  %494 = vrot.lane.b32.xlu0 %v469, 124
  %v495 = vpop.permute.xlu0 %494
  %496 = vrot.lane.b32.xlu0 %v470, 124
  %v497 = vpop.permute.xlu0 %496
  %v498 = vsel %vm68, %v495, %v497
  %v503 = vunpack.c.l.b16 %v460
  %v504 = vunpack.c.l.b16 %v462
  %v505 = vpack.c.b16 %v504, %v503
  %506 = vrot.lane.b32.xlu0 %v469, 110
  %v507 = vpop.permute.xlu0 %506
  %508 = vrot.lane.b32.xlu0 %v470, 110
  %v509 = vpop.permute.xlu0 %508
  %510 = vrot.lane.b32.xlu0 %v505, 110
  %v511 = vpop.permute.xlu0 %510
  %v512 = vsel %vm83, %v507, %v509
  %v513 = vsel %vm83, %v509, %v511
  %516 = vrot.lane.b32.xlu0 %v469, 109
  %v517 = vpop.permute.xlu0 %516
  %518 = vrot.lane.b32.xlu0 %v470, 109
  %v519 = vpop.permute.xlu0 %518
  %520 = vrot.lane.b32.xlu0 %v505, 109
  %v521 = vpop.permute.xlu0 %520
  %v522 = vsel %vm94, %v517, %v519
  %v523 = vsel %vm94, %v519, %v521
  %526 = vrot.lane.b32.xlu0 %v469, 108
  %v527 = vpop.permute.xlu0 %526
  %528 = vrot.lane.b32.xlu0 %v470, 108
  %v529 = vpop.permute.xlu0 %528
  %530 = vrot.lane.b32.xlu0 %v505, 108
  %v531 = vpop.permute.xlu0 %530
  %v532 = vsel %vm105, %v527, %v529
  %v533 = vsel %vm105, %v529, %v531
  %536 = vrot.lane.b32.xlu0 %v469, 107
  %v537 = vpop.permute.xlu0 %536
  %538 = vrot.lane.b32.xlu0 %v470, 107
  %v539 = vpop.permute.xlu0 %538
  %540 = vrot.lane.b32.xlu0 %v505, 107
  %v541 = vpop.permute.xlu0 %540
  %v542 = vsel %vm116, %v537, %v539
  %v543 = vsel %vm116, %v539, %v541
  %546 = vrot.lane.b32.xlu0 %v469, 106
  %v547 = vpop.permute.xlu0 %546
  %548 = vrot.lane.b32.xlu0 %v470, 106
  %v549 = vpop.permute.xlu0 %548
  %550 = vrot.lane.b32.xlu0 %v505, 106
  %v551 = vpop.permute.xlu0 %550
  %v552 = vsel %vm127, %v547, %v549
  %v553 = vsel %vm127, %v549, %v551
  %556 = vrot.lane.b32.xlu0 %v469, 92
  %v557 = vpop.permute.xlu0 %556
  %558 = vrot.lane.b32.xlu0 %v470, 92
  %v559 = vpop.permute.xlu0 %558
  %560 = vrot.lane.b32.xlu0 %v505, 92
  %v561 = vpop.permute.xlu0 %560
  %v562 = vsel %vm138, %v557, %v559
  %v563 = vsel %vm138, %v559, %v561
  %566 = vrot.lane.b32.xlu0 %v469, 91
  %v567 = vpop.permute.xlu0 %566
  %568 = vrot.lane.b32.xlu0 %v470, 91
  %v569 = vpop.permute.xlu0 %568
  %570 = vrot.lane.b32.xlu0 %v505, 91
  %v571 = vpop.permute.xlu0 %570
  %v572 = vsel %vm149, %v567, %v569
  %v573 = vsel %vm149, %v569, %v571
  %576 = vrot.lane.b32.xlu0 %v469, 90
  %v577 = vpop.permute.xlu0 %576
  %578 = vrot.lane.b32.xlu0 %v470, 90
  %v579 = vpop.permute.xlu0 %578
  %580 = vrot.lane.b32.xlu0 %v505, 90
  %v581 = vpop.permute.xlu0 %580
  %v582 = vsel %vm160, %v577, %v579
  %v583 = vsel %vm160, %v579, %v581
  %586 = vrot.lane.b32.xlu0 %v469, 89
  %v587 = vpop.permute.xlu0 %586
  %588 = vrot.lane.b32.xlu0 %v470, 89
  %v589 = vpop.permute.xlu0 %588
  %590 = vrot.lane.b32.xlu0 %v505, 89
  %v591 = vpop.permute.xlu0 %590
  %v592 = vsel %vm171, %v587, %v589
  %v593 = vsel %vm171, %v589, %v591
  %596 = vrot.lane.b32.xlu0 %v469, 88
  %v597 = vpop.permute.xlu0 %596
  %598 = vrot.lane.b32.xlu0 %v470, 88
  %v599 = vpop.permute.xlu0 %598
  %600 = vrot.lane.b32.xlu0 %v505, 88
  %v601 = vpop.permute.xlu0 %600
  %v602 = vsel %vm182, %v597, %v599
  %v603 = vsel %vm182, %v599, %v601
  %606 = vrot.lane.b32.xlu0 %v469, 74
  %v607 = vpop.permute.xlu0 %606
  %608 = vrot.lane.b32.xlu0 %v470, 74
  %v609 = vpop.permute.xlu0 %608
  %610 = vrot.lane.b32.xlu0 %v505, 74
  %v611 = vpop.permute.xlu0 %610
  %v612 = vsel %vm193, %v607, %v609
  %v613 = vsel %vm193, %v609, %v611
  %616 = vrot.lane.b32.xlu0 %v505, 127
  %v617 = vpop.permute.xlu0 %616
  %v618 = vsel %vm44, %v476, %v617
  %619 = vrot.lane.b32.xlu0 %v505, 126
  %v620 = vpop.permute.xlu0 %619
  %v621 = vsel %vm52, %v483, %v620
  %622 = vrot.lane.b32.xlu0 %v505, 125
  %v623 = vpop.permute.xlu0 %622
  %v624 = vsel %vm60, %v490, %v623
  %625 = vrot.lane.b32.xlu0 %v469, 111
  %v626 = vpop.permute.xlu0 %625
  %627 = vrot.lane.b32.xlu0 %v470, 111
  %v628 = vpop.permute.xlu0 %627
  %629 = vrot.lane.b32.xlu0 %v505, 111
  %v630 = vpop.permute.xlu0 %629
  %v631 = vsel %vm213, %v626, %v628
  %v632 = vsel %vm213, %v628, %v630
  %633 = vrot.lane.b32.xlu0 %v469, 73
  %v634 = vpop.permute.xlu0 %633
  %635 = vrot.lane.b32.xlu0 %v470, 73
  %v636 = vpop.permute.xlu0 %635
  %637 = vrot.lane.b32.xlu0 %v505, 73
  %v638 = vpop.permute.xlu0 %637
  %639 = vrot.lane.b32.xlu0 %v477, 73
  %v640 = vpop.permute.xlu0 %639
  %641 = vrot.lane.b32.xlu0 %v618, 73
  %v642 = vpop.permute.xlu0 %641
  %643 = vrot.lane.b32.xlu0 %v617, 73
  %v644 = vpop.permute.xlu0 %643
  %645 = vrot.lane.b32.xlu0 %v484, 73
  %v646 = vpop.permute.xlu0 %645
  %647 = vrot.lane.b32.xlu0 %v621, 73
  %v648 = vpop.permute.xlu0 %647
  %649 = vrot.lane.b32.xlu0 %v620, 73
  %v650 = vpop.permute.xlu0 %649
  %651 = vrot.lane.b32.xlu0 %v491, 73
  %v652 = vpop.permute.xlu0 %651
  %653 = vrot.lane.b32.xlu0 %v624, 73
  %v654 = vpop.permute.xlu0 %653
  %655 = vrot.lane.b32.xlu0 %v623, 73
  %v656 = vpop.permute.xlu0 %655
  %657 = vrot.lane.b32.xlu0 %v631, 73
  %v658 = vpop.permute.xlu0 %657
  %659 = vrot.lane.b32.xlu0 %v632, 73
  %v660 = vpop.permute.xlu0 %659
  %661 = vrot.lane.b32.xlu0 %v630, 73
  %v662 = vpop.permute.xlu0 %661
  %663 = vrot.lane.b32.xlu0 %v512, 73
  %v664 = vpop.permute.xlu0 %663
  %665 = vrot.lane.b32.xlu0 %v513, 73
  %v666 = vpop.permute.xlu0 %665
  %667 = vrot.lane.b32.xlu0 %v511, 73
  %v668 = vpop.permute.xlu0 %667
  %669 = vrot.lane.b32.xlu0 %v522, 73
  %v670 = vpop.permute.xlu0 %669
  %671 = vrot.lane.b32.xlu0 %v523, 73
  %v672 = vpop.permute.xlu0 %671
  %673 = vrot.lane.b32.xlu0 %v521, 73
  %v674 = vpop.permute.xlu0 %673
  %675 = vrot.lane.b32.xlu0 %v532, 73
  %v676 = vpop.permute.xlu0 %675
  %677 = vrot.lane.b32.xlu0 %v533, 73
  %v678 = vpop.permute.xlu0 %677
  %679 = vrot.lane.b32.xlu0 %v531, 73
  %v680 = vpop.permute.xlu0 %679
  %681 = vrot.lane.b32.xlu0 %v542, 73
  %v682 = vpop.permute.xlu0 %681
  %683 = vrot.lane.b32.xlu0 %v543, 73
  %v684 = vpop.permute.xlu0 %683
  %685 = vrot.lane.b32.xlu0 %v541, 73
  %v686 = vpop.permute.xlu0 %685
  %v687 = vsel %vm270, %v634, %v636
  %v688 = vsel %vm270, %v636, %v638
  %v689 = vsel %vm270, %v640, %v642
  %v690 = vsel %vm270, %v642, %v644
  %v691 = vsel %vm270, %v646, %v648
  %v692 = vsel %vm270, %v648, %v650
  %v693 = vsel %vm270, %v652, %v654
  %v694 = vsel %vm270, %v654, %v656
  %v695 = vsel %vm270, %v658, %v660
  %v696 = vsel %vm270, %v660, %v662
  %v697 = vsel %vm270, %v664, %v666
  %v698 = vsel %vm270, %v666, %v668
  %v699 = vsel %vm270, %v670, %v672
  %v700 = vsel %vm270, %v672, %v674
  %v701 = vsel %vm270, %v676, %v678
  %v702 = vsel %vm270, %v678, %v680
  %v703 = vsel %vm270, %v682, %v684
  %v704 = vsel %vm270, %v684, %v686
  %723 = vmatprep.subr.bf16.mxu0 %v470
  %724 = vmatpush1.bf16.msra.mxu0 %v469
  %725 = vmatprep.subr.bf16.mxu0 %v476
  %726 = vmatpush1.bf16.msra.mxu0 %v477
  %727 = vmatprep.subr.bf16.mxu0 %v483
  %728 = vmatpush1.bf16.msra.mxu0 %v484
  %729 = vmatprep.subr.bf16.mxu0 %v490
  %730 = vmatpush1.bf16.msra.mxu0 %v491
  %731 = vmatprep.subr.bf16.mxu0 %v497
  %732 = vmatpush1.bf16.msra.mxu0 %v498
  %733 = vmatprep.subr.bf16.mxu0 %v513
  %734 = vmatpush1.bf16.msra.mxu0 %v512
  %735 = vmatprep.subr.bf16.mxu0 %v523
  %736 = vmatpush1.bf16.msra.mxu0 %v522
  %737 = vmatprep.subr.bf16.mxu0 %v533
  %738 = vmatpush1.bf16.msra.mxu0 %v532
  %739 = vmatprep.subr.bf16.mxu0 %v543
  %740 = vmatpush1.bf16.msra.mxu0 %v542
  %741 = vmatprep.subr.bf16.mxu0 %v553
  %742 = vmatpush1.bf16.msra.mxu0 %v552
  %743 = vmatprep.subr.bf16.mxu0 %v563
  %744 = vmatpush1.bf16.msra.mxu0 %v562
  %745 = vmatprep.subr.bf16.mxu0 %v573
  %746 = vmatpush1.bf16.msra.mxu0 %v572
  %747 = vmatprep.subr.bf16.mxu0 %v583
  %748 = vmatpush1.bf16.msra.mxu0 %v582
  %749 = vmatprep.subr.bf16.mxu0 %v593
  %750 = vmatpush1.bf16.msra.mxu0 %v592
  %751 = vmatprep.subr.bf16.mxu0 %v603
  %752 = vmatpush1.bf16.msra.mxu0 %v602
  %753 = vmatprep.subr.bf16.mxu0 %v613
  %754 = vmatpush1.bf16.msra.mxu0 %v612
  %755 = vmatprep.mubr.bf16.mxu0 %v332
  %756 = vmatmul.mubr.bf16.gmra.mrb[0].mxu0 %v331
  %v757 = vpop.f32.mrb[0].mxu0
  %v758 = vadd.f32 0.0, %v757
  %v759 = vpop.f32.mrb[0].mxu0
  %v760 = vadd.f32 0.0, %v759
  %v761 = vpop.f32.mrb[0].mxu0
  %v762 = vadd.f32 0.0, %v761
  %v763 = vpop.f32.mrb[0].mxu0
  %v764 = vadd.f32 0.0, %v763
  %765 = vmatprep.mubr.bf16.mxu0 %v336
  %766 = vmatmul.mubr.bf16.gmra.mrb[0].mxu0 %v335
  %v767 = vpop.f32.mrb[0].mxu0
  %v768 = vadd.f32 0.0, %v767
  %v769 = vpop.f32.mrb[0].mxu0
  %v770 = vadd.f32 0.0, %v769
  %v771 = vpop.f32.mrb[0].mxu0
  %v772 = vadd.f32 0.0, %v771
  %v773 = vpop.f32.mrb[0].mxu0
  %v774 = vadd.f32 0.0, %v773
  %775 = vdwg.mxu0
  %776 = vmatprep.subr.bf16.mxu0 %v688
  %777 = vmatpush1.bf16.msra.mxu0 %v687
  %778 = vmatprep.subr.bf16.mxu0 %v690
  %779 = vmatpush1.bf16.msra.mxu0 %v689
  %780 = vmatprep.subr.bf16.mxu0 %v692
  %781 = vmatpush1.bf16.msra.mxu0 %v691
  %782 = vmatprep.subr.bf16.mxu0 %v694
  %783 = vmatpush1.bf16.msra.mxu0 %v693
  %784 = vmatprep.subr.bf16.mxu0 %v696
  %785 = vmatpush1.bf16.msra.mxu0 %v695
  %786 = vmatprep.subr.bf16.mxu0 %v698
  %787 = vmatpush1.bf16.msra.mxu0 %v697
  %788 = vmatprep.subr.bf16.mxu0 %v700
  %789 = vmatpush1.bf16.msra.mxu0 %v699
  %790 = vmatprep.subr.bf16.mxu0 %v702
  %791 = vmatpush1.bf16.msra.mxu0 %v701
  %792 = vmatprep.subr.bf16.mxu0 %v704
  %793 = vmatpush1.bf16.msra.mxu0 %v703
  %794 = vmatprep.subr.bf16.mxu0 0
  %795 = vmatpush1.bf16.msra.mxu0 0
  %796 = vmatprep.subr.bf16.mxu0 0
  %797 = vmatpush1.bf16.msra.mxu0 0
  %798 = vmatprep.subr.bf16.mxu0 0
  %799 = vmatpush1.bf16.msra.mxu0 0
  %800 = vmatprep.subr.bf16.mxu0 0
  %801 = vmatpush1.bf16.msra.mxu0 0
  %802 = vmatprep.subr.bf16.mxu0 0
  %803 = vmatpush1.bf16.msra.mxu0 0
  %804 = vmatprep.subr.bf16.mxu0 0
  %805 = vmatpush1.bf16.msra.mxu0 0
  %806 = vmatprep.subr.bf16.mxu0 0
  %807 = vmatpush1.bf16.msra.mxu0 0
  %808 = vmatprep.mubr.bf16.mxu0 %v347
  %809 = vmatmul.mubr.bf16.gmra.mrb[0].mxu0 %v333
  %v810 = vpop.f32.mrb[0].mxu0
  %v811 = vadd.f32 %v758, %v810
  %v812 = vpop.f32.mrb[0].mxu0
  %v813 = vadd.f32 %v760, %v812
  %v814 = vpop.f32.mrb[0].mxu0
  %v815 = vadd.f32 %v762, %v814
  %v816 = vpop.f32.mrb[0].mxu0
  %v817 = vadd.f32 %v764, %v816
  %818 = vmatprep.mubr.bf16.mxu0 %v350
  %819 = vmatmul.mubr.bf16.gmra.mrb[0].mxu0 %v337
  %v820 = vpop.f32.mrb[0].mxu0
  %v821 = vadd.f32 %v768, %v820
  %v822 = vpop.f32.mrb[0].mxu0
  %v823 = vadd.f32 %v770, %v822
  %v824 = vpop.f32.mrb[0].mxu0
  %v825 = vadd.f32 %v772, %v824
  %v826 = vpop.f32.mrb[0].mxu0
  %v827 = vadd.f32 %v774, %v826
  %828 = vdwg.mxu0
  %v829 = vld [vmem:[%s2] sm:$0xff]
  %v830 = vld [vmem:[%s2 + $0x8] sm:$0xff]
  %v831 = vld [vmem:[%s2 + $0x10] sm:$0xff]
  %v832 = vld [vmem:[%s2 + $0x18] sm:$0xff]
  %834 = vset.pattern.permute.xlu0 0
  %835 = vperm.xlu0 %834, %v829
  %v836 = vpop.permute.xlu0 %835
  %839 = vset.pattern.permute.xlu0 0
  %840 = vperm.xlu0 %839, %v830
  %v841 = vpop.permute.xlu0 %840
  %844 = vset.pattern.permute.xlu0 0
  %845 = vperm.xlu0 %844, %v831
  %v846 = vpop.permute.xlu0 %845
  %849 = vset.pattern.permute.xlu0 0
  %850 = vperm.xlu0 %849, %v832
  %v851 = vpop.permute.xlu0 %850
  %v853 = vadd.f32 %v440, %v836
  %v854 = vadd.f32 %v442, %v836
  %v855 = vadd.f32 %v444, %v841
  %v856 = vadd.f32 %v446, %v841
  %v857 = vadd.f32 %v450, %v846
  %v858 = vadd.f32 %v452, %v846
  %v859 = vadd.f32 %v454, %v851
  %v860 = vadd.f32 %v456, %v851
  %v861 = vadd.f32 %v811, %v836
  %v862 = vadd.f32 %v813, %v836
  %v863 = vadd.f32 %v815, %v841
  %v864 = vadd.f32 %v817, %v841
  %v865 = vadd.f32 %v821, %v846
  %v866 = vadd.f32 %v823, %v846
  %v867 = vadd.f32 %v825, %v851
  %v868 = vadd.f32 %v827, %v851
  %v869 = vmax.f32 %v853, 0.0
  %v870 = vmax.f32 %v854, 0.0
  %v871 = vmax.f32 %v855, 0.0
  %v872 = vmax.f32 %v856, 0.0
  %v873 = vmax.f32 %v857, 0.0
  %v874 = vmax.f32 %v858, 0.0
  %v875 = vmax.f32 %v859, 0.0
  %v876 = vmax.f32 %v860, 0.0
  %v877 = vmax.f32 %v861, 0.0
  %v878 = vmax.f32 %v862, 0.0
  %v879 = vmax.f32 %v863, 0.0
  %v880 = vmax.f32 %v864, 0.0
  %v881 = vmax.f32 %v865, 0.0
  %v882 = vmax.f32 %v866, 0.0
  %v883 = vmax.f32 %v867, 0.0
  %v884 = vmax.f32 %v868, 0.0
  %901 = vrot.lane.b32.xlu0 %v869, 127
  %v902 = vpop.permute.xlu0 %901
  %903 = vrot.lane.b32.xlu0 %v870, 127
  %v904 = vpop.permute.xlu0 %903
  %905 = vrot.lane.b32.xlu0 %v871, 127
  %v906 = vpop.permute.xlu0 %905
  %907 = vrot.lane.b32.xlu0 %v872, 127
  %v908 = vpop.permute.xlu0 %907
  %909 = vrot.lane.b32.xlu0 %v873, 127
  %v910 = vpop.permute.xlu0 %909
  %911 = vrot.lane.b32.xlu0 %v874, 127
  %v912 = vpop.permute.xlu0 %911
  %913 = vrot.lane.b32.xlu0 %v875, 127
  %v914 = vpop.permute.xlu0 %913
  %915 = vrot.lane.b32.xlu0 %v876, 127
  %v916 = vpop.permute.xlu0 %915
  %917 = vrot.lane.b32.xlu0 %v877, 127
  %v918 = vpop.permute.xlu0 %917
  %919 = vrot.lane.b32.xlu0 %v878, 127
  %v920 = vpop.permute.xlu0 %919
  %921 = vrot.lane.b32.xlu0 %v879, 127
  %v922 = vpop.permute.xlu0 %921
  %923 = vrot.lane.b32.xlu0 %v880, 127
  %v924 = vpop.permute.xlu0 %923
  %925 = vrot.lane.b32.xlu0 %v881, 127
  %v926 = vpop.permute.xlu0 %925
  %927 = vrot.lane.b32.xlu0 %v882, 127
  %v928 = vpop.permute.xlu0 %927
  %929 = vrot.lane.b32.xlu0 %v883, 127
  %v930 = vpop.permute.xlu0 %929
  %931 = vrot.lane.b32.xlu0 %v884, 127
  %v932 = vpop.permute.xlu0 %931
  %vm933 = vcmask 1039360
  %v934 = vsel %vm933, %v902, %v904
  %v935 = vsel %vm933, %v906, %v908
  %v936 = vsel %vm933, %v910, %v912
  %v937 = vsel %vm933, %v914, %v916
  %v938 = vsel %vm933, %v918, %v920
  %v939 = vsel %vm933, %v922, %v924
  %v940 = vsel %vm933, %v926, %v928
  %v941 = vsel %vm933, %v930, %v932
  %v958 = vmax.f32 %v869, %v934
  %v959 = vmax.f32 %v870, %v904
  %v960 = vmax.f32 %v871, %v935
  %v961 = vmax.f32 %v872, %v908
  %v962 = vmax.f32 %v873, %v936
  %v963 = vmax.f32 %v874, %v912
  %v964 = vmax.f32 %v875, %v937
  %v965 = vmax.f32 %v876, %v916
  %v966 = vmax.f32 %v877, %v938
  %v967 = vmax.f32 %v878, %v920
  %v968 = vmax.f32 %v879, %v939
  %v969 = vmax.f32 %v880, %v924
  %v970 = vmax.f32 %v881, %v940
  %v971 = vmax.f32 %v882, %v928
  %v972 = vmax.f32 %v883, %v941
  %v973 = vmax.f32 %v884, %v932
  %990 = vrot.lane.b32.xlu0 %v958, 110
  %v991 = vpop.permute.xlu0 %990
  %992 = vrot.lane.b32.xlu0 %v959, 110
  %v993 = vpop.permute.xlu0 %992
  %994 = vrot.lane.b32.xlu0 %v960, 110
  %v995 = vpop.permute.xlu0 %994
  %996 = vrot.lane.b32.xlu0 %v961, 110
  %v997 = vpop.permute.xlu0 %996
  %998 = vrot.lane.b32.xlu0 %v962, 110
  %v999 = vpop.permute.xlu0 %998
  %1000 = vrot.lane.b32.xlu0 %v963, 110
  %v1001 = vpop.permute.xlu0 %1000
  %1002 = vrot.lane.b32.xlu0 %v964, 110
  %v1003 = vpop.permute.xlu0 %1002
  %1004 = vrot.lane.b32.xlu0 %v965, 110
  %v1005 = vpop.permute.xlu0 %1004
  %1006 = vrot.lane.b32.xlu0 %v966, 110
  %v1007 = vpop.permute.xlu0 %1006
  %1008 = vrot.lane.b32.xlu0 %v967, 110
  %v1009 = vpop.permute.xlu0 %1008
  %1010 = vrot.lane.b32.xlu0 %v968, 110
  %v1011 = vpop.permute.xlu0 %1010
  %1012 = vrot.lane.b32.xlu0 %v969, 110
  %v1013 = vpop.permute.xlu0 %1012
  %1014 = vrot.lane.b32.xlu0 %v970, 110
  %v1015 = vpop.permute.xlu0 %1014
  %1016 = vrot.lane.b32.xlu0 %v971, 110
  %v1017 = vpop.permute.xlu0 %1016
  %1018 = vrot.lane.b32.xlu0 %v972, 110
  %v1019 = vpop.permute.xlu0 %1018
  %1020 = vrot.lane.b32.xlu0 %v973, 110
  %v1021 = vpop.permute.xlu0 %1020
  %vm1022 = vcmask 900096
  %v1023 = vsel %vm1022, %v991, %v993
  %v1024 = vsel %vm1022, %v995, %v997
  %v1025 = vsel %vm1022, %v999, %v1001
  %v1026 = vsel %vm1022, %v1003, %v1005
  %v1027 = vsel %vm1022, %v1007, %v1009
  %v1028 = vsel %vm1022, %v1011, %v1013
  %v1029 = vsel %vm1022, %v1015, %v1017
  %v1030 = vsel %vm1022, %v1019, %v1021
  %v1047 = vmax.f32 %v958, %v1023
  %v1048 = vmax.f32 %v959, %v993
  %v1049 = vmax.f32 %v960, %v1024
  %v1050 = vmax.f32 %v961, %v997
  %v1051 = vmax.f32 %v962, %v1025
  %v1052 = vmax.f32 %v963, %v1001
  %v1053 = vmax.f32 %v964, %v1026
  %v1054 = vmax.f32 %v965, %v1005
  %v1055 = vmax.f32 %v966, %v1027
  %v1056 = vmax.f32 %v967, %v1009
  %v1057 = vmax.f32 %v968, %v1028
  %v1058 = vmax.f32 %v969, %v1013
  %v1059 = vmax.f32 %v970, %v1029
  %v1060 = vmax.f32 %v971, %v1017
  %v1061 = vmax.f32 %v972, %v1030
  %v1062 = vmax.f32 %v973, %v1021
  %v1063 = vpack.c.bf16 %v1049, %v1047
  %v1064 = vpack.c.bf16 %v1050, %v1048
  %v1065 = vpack.c.bf16 %v1053, %v1051
  %v1066 = vpack.c.bf16 %v1054, %v1052
  %v1067 = vpack.c.bf16 %v1057, %v1055
  %v1068 = vpack.c.bf16 %v1058, %v1056
  %v1069 = vpack.c.bf16 %v1061, %v1059
  %v1070 = vpack.c.bf16 %v1062, %v1060
  %v1071 = vld [vmem:[%s3] sm:$0xf]
  %v1072 = vld [vmem:[%s3 + $0x4] sm:$0xf]
  %v1073 = vld [vmem:[%s3 + $0x8] sm:$0xf]
  %v1074 = vld [vmem:[%s3 + $0xc] sm:$0xf]
  %v1075 = vld [vmem:[%s3 + $0x10] sm:$0xf]
  %v1076 = vld [vmem:[%s3 + $0x14] sm:$0xf]
  %v1077 = vld [vmem:[%s3 + $0x18] sm:$0xf]
  %v1078 = vld [vmem:[%s3 + $0x1c] sm:$0xf]
  %v1079 = vld [vmem:[%s3 + $0x20] sm:$0xf]
  %v1080 = vld [vmem:[%s3 + $0x24] sm:$0xf]
  %v1081 = vld [vmem:[%s3 + $0x28] sm:$0xf]
  %v1082 = vld [vmem:[%s3 + $0x2c] sm:$0xf]
  %v1083 = vld [vmem:[%s3 + $0x30] sm:$0xf]
  %v1084 = vld [vmem:[%s3 + $0x34] sm:$0xf]
  %v1085 = vld [vmem:[%s3 + $0x38] sm:$0xf]
  %v1086 = vld [vmem:[%s3 + $0x3c] sm:$0xf]
  %v1087 = vld [vmem:[%s3 + $0x40] sm:$0xf]
  %v1088 = vld [vmem:[%s3 + $0x44] sm:$0xf]
  %v1089 = vld [vmem:[%s3 + $0x48] sm:$0xf]
  %v1090 = vld [vmem:[%s3 + $0x4c] sm:$0xf]
  %v1091 = vld [vmem:[%s3 + $0x50] sm:$0xf]
  %v1092 = vld [vmem:[%s3 + $0x54] sm:$0xf]
  %v1093 = vld [vmem:[%s3 + $0x58] sm:$0xf]
  %v1094 = vld [vmem:[%s3 + $0x5c] sm:$0xf]
  %v1095 = vld [vmem:[%s3 + $0x60] sm:$0xf]
  %v1096 = vld [vmem:[%s3 + $0x64] sm:$0xf]
  %v1097 = vld [vmem:[%s3 + $0x68] sm:$0xf]
  %v1098 = vld [vmem:[%s3 + $0x6c] sm:$0xf]
  %v1099 = vld [vmem:[%s3 + $0x70] sm:$0xf]
  %v1100 = vld [vmem:[%s3 + $0x74] sm:$0x1]
  %v1131 = vunpack.c.l.b16 %v1071
  %v1132 = vunpack.c.l.b16 %v1072
  %v1133 = vunpack.c.l.b16 %v1073
  %v1134 = vunpack.c.l.b16 %v1074
  %v1135 = vunpack.c.l.b16 %v1075
  %v1136 = vunpack.c.l.b16 %v1076
  %v1137 = vunpack.c.l.b16 %v1077
  %v1138 = vunpack.c.l.b16 %v1078
  %v1139 = vunpack.c.l.b16 %v1079
  %v1140 = vunpack.c.l.b16 %v1080
  %v1141 = vunpack.c.l.b16 %v1081
  %v1142 = vunpack.c.l.b16 %v1082
  %v1143 = vunpack.c.l.b16 %v1083
  %v1144 = vunpack.c.l.b16 %v1084
  %v1145 = vunpack.c.l.b16 %v1085
  %v1146 = vunpack.c.l.b16 %v1086
  %v1147 = vunpack.c.l.b16 %v1087
  %v1148 = vunpack.c.l.b16 %v1088
  %v1149 = vunpack.c.l.b16 %v1089
  %v1150 = vunpack.c.l.b16 %v1090
  %v1151 = vunpack.c.l.b16 %v1091
  %v1152 = vunpack.c.l.b16 %v1092
  %v1153 = vunpack.c.l.b16 %v1093
  %v1154 = vunpack.c.l.b16 %v1094
  %v1155 = vunpack.c.l.b16 %v1095
  %v1156 = vunpack.c.l.b16 %v1096
  %v1157 = vunpack.c.l.b16 %v1097
  %v1158 = vunpack.c.l.b16 %v1098
  %v1159 = vunpack.c.l.b16 %v1099
  %v1160 = vunpack.c.l.b16 %v1100
  %v1161 = vpack.c.b16 %v1132, %v1131
  %v1162 = vpack.c.b16 %v1134, %v1133
  %v1163 = vpack.c.b16 %v1136, %v1135
  %v1164 = vpack.c.b16 %v1138, %v1137
  %v1165 = vpack.c.b16 %v1140, %v1139
  %v1166 = vpack.c.b16 %v1142, %v1141
  %v1167 = vpack.c.b16 %v1144, %v1143
  %v1168 = vpack.c.b16 %v1146, %v1145
  %v1169 = vpack.c.b16 %v1148, %v1147
  %v1170 = vpack.c.b16 %v1150, %v1149
  %v1171 = vpack.c.b16 %v1152, %v1151
  %v1172 = vpack.c.b16 %v1154, %v1153
  %v1173 = vpack.c.b16 %v1156, %v1155
  %v1174 = vpack.c.b16 %v1158, %v1157
  %v1175 = vpack.c.b16 %v1160, %v1159
  %vm1190 = vcmask 859136
  %v1192 = vsel %vm1190, %v1064, 0
  %v1195 = vsel %vm1190, %v1066, 0
  %v1198 = vsel %vm1190, %v1068, 0
  %v1201 = vsel %vm1190, %v1070, 0
  %vm1203 = vcmask 1043456
  %vm1204 = vcmask 1044480
  %v1205 = vsel %vm1203, 4294967295, 65535
  %v1206 = vsel %vm1204, %v1205, 0
  %v1208 = vand.u32 %v1175, %v1206
  %1210 = vmatprep.subr.bf16.mxu0 0
  %1211 = vmatpush1.bf16.msra.mxu0 %v1161
  %1212 = vmatprep.subr.bf16.mxu0 0
  %1213 = vmatpush1.bf16.msra.mxu0 %v1162
  %1214 = vmatprep.subr.bf16.mxu0 0
  %1215 = vmatpush1.bf16.msra.mxu0 %v1163
  %1216 = vmatprep.subr.bf16.mxu0 0
  %1217 = vmatpush1.bf16.msra.mxu0 %v1164
  %1218 = vmatprep.subr.bf16.mxu0 0
  %1219 = vmatpush1.bf16.msra.mxu0 %v1165
  %1220 = vmatprep.subr.bf16.mxu0 0
  %1221 = vmatpush1.bf16.msra.mxu0 %v1166
  %1222 = vmatprep.subr.bf16.mxu0 0
  %1223 = vmatpush1.bf16.msra.mxu0 %v1167
  %1224 = vmatprep.subr.bf16.mxu0 0
  %1225 = vmatpush1.bf16.msra.mxu0 %v1168
  %1226 = vmatprep.subr.bf16.mxu0 0
  %1227 = vmatpush1.bf16.msra.mxu0 %v1169
  %1228 = vmatprep.subr.bf16.mxu0 0
  %1229 = vmatpush1.bf16.msra.mxu0 %v1170
  %1230 = vmatprep.subr.bf16.mxu0 0
  %1231 = vmatpush1.bf16.msra.mxu0 %v1171
  %1232 = vmatprep.subr.bf16.mxu0 0
  %1233 = vmatpush1.bf16.msra.mxu0 %v1172
  %1234 = vmatprep.subr.bf16.mxu0 0
  %1235 = vmatpush1.bf16.msra.mxu0 %v1173
  %1236 = vmatprep.subr.bf16.mxu0 0
  %1237 = vmatpush1.bf16.msra.mxu0 %v1174
  %1238 = vmatprep.subr.bf16.mxu0 0
  %1239 = vmatpush1.bf16.msra.mxu0 %v1208
  %1240 = vmatprep.subr.bf16.mxu0 0
  %1241 = vmatpush1.bf16.msra.mxu0 0
  %1242 = vmatprep.mubr.bf16.mxu0 %v1192
  %1243 = vmatmul.mubr.bf16.gmra.mrb[0].mxu0 %v1063
  %v1244 = vpop.f32.mrb[0].mxu0
  %v1245 = vadd.f32 0.0, %v1244
  %v1246 = vpop.f32.mrb[0].mxu0
  %v1247 = vpop.f32.mrb[0].mxu0
  %v1248 = vadd.f32 0.0, %v1247
  %v1249 = vpop.f32.mrb[0].mxu0
  %1250 = vmatprep.mubr.bf16.mxu0 %v1195
  %1251 = vmatmul.mubr.bf16.gmra.mrb[0].mxu0 %v1065
  %v1252 = vpop.f32.mrb[0].mxu0
  %v1253 = vadd.f32 0.0, %v1252
  %v1254 = vpop.f32.mrb[0].mxu0
  %v1255 = vpop.f32.mrb[0].mxu0
  %v1256 = vadd.f32 0.0, %v1255
  %v1257 = vpop.f32.mrb[0].mxu0
  %1258 = vmatprep.mubr.bf16.mxu0 %v1198
  %1259 = vmatmul.mubr.bf16.gmra.mrb[0].mxu0 %v1067
  %v1260 = vpop.f32.mrb[0].mxu0
  %v1261 = vadd.f32 0.0, %v1260
  %v1262 = vpop.f32.mrb[0].mxu0
  %v1263 = vpop.f32.mrb[0].mxu0
  %v1264 = vadd.f32 0.0, %v1263
  %v1265 = vpop.f32.mrb[0].mxu0
  %1266 = vmatprep.mubr.bf16.mxu0 %v1201
  %1267 = vmatmul.mubr.bf16.gmra.mrb[0].mxu0 %v1069
  %v1268 = vpop.f32.mrb[0].mxu0
  %v1269 = vadd.f32 0.0, %v1268
  %v1270 = vpop.f32.mrb[0].mxu0
  %v1271 = vpop.f32.mrb[0].mxu0
  %v1272 = vadd.f32 0.0, %v1271
  %v1273 = vpop.f32.mrb[0].mxu0
  %1274 = vdwg.mxu0
  %v1275 = vpack.c.bf16 %v1248, %v1245
  %v1276 = vpack.c.bf16 %v1256, %v1253
  %v1277 = vpack.c.bf16 %v1264, %v1261
  %v1278 = vpack.c.bf16 %v1272, %v1269
  %v1283 = vunpack.c.l.b16 %v1275
  %v1284 = vunpack.c.h.b16 %v1275
  %v1285 = vunpack.c.l.b16 %v1276
  %v1286 = vunpack.c.h.b16 %v1276
  %v1287 = vunpack.c.l.b16 %v1277
  %v1288 = vunpack.c.h.b16 %v1277
  %v1289 = vunpack.c.l.b16 %v1278
  %v1290 = vunpack.c.h.b16 %v1278
  %v1291 = vpack.c.b16 %v1283, %v1283
  %v1292 = vpack.c.b16 %v1284, %v1284
  %v1293 = vpack.c.b16 %v1285, %v1285
  %v1294 = vpack.c.b16 %v1286, %v1286
  %v1295 = vpack.c.b16 %v1287, %v1287
  %v1296 = vpack.c.b16 %v1288, %v1288
  %v1297 = vpack.c.b16 %v1289, %v1289
  %v1298 = vpack.c.b16 %v1290, %v1290
  %1307 = vst [vmem:[%s4] sm:$0xf] %v1291
  %1308 = vst [vmem:[%s4 + $0x4] sm:$0xf] %v1292
  %1309 = vst [vmem:[%s4 + $0x8] sm:$0xf] %v1293
  %1310 = vst [vmem:[%s4 + $0xc] sm:$0xf] %v1294
  %1311 = vst [vmem:[%s4 + $0x10] sm:$0xf] %v1295
  %1312 = vst [vmem:[%s4 + $0x14] sm:$0xf] %v1296
  %1313 = vst [vmem:[%s4 + $0x18] sm:$0xf] %v1297
  %1314 = vst [vmem:[%s4 + $0x1c] sm:$0xf] %v1298
  // Predicated region
  $region18: #{mnist_net_forward.4} parent=0 // pred_check
    _
  $region19: #{mnist_net_forward.4} parent=0 // pred_check_branch
    %1316 = sbr.rel (0) target = $region21
  $region20: #{mnist_net_forward.4} parent=0 // pred_region
    _
  $region21: #{mnist_net_forward.4} parent=0 // pred_fallthru
    _
  // Predicated region
  $region22: #{mnist_net_forward.4} parent=0 // pred_check
    _
  $region23: #{mnist_net_forward.4} parent=0 // pred_check_branch
    %1318 = sbr.rel (0) target = $region25
  $region24: #{mnist_net_forward.4} parent=0 // pred_region
    _
  $region25: #{mnist_net_forward.4} parent=0 // pred_fallthru
    _

// kernel: mnist_net_forward.5
$region0: #{mnist_net_forward.5}
  #allocation0 [shape = 'u32[]', space=smem, size = 0x4, offset = 0x4, fixed_abs, tag = 'smem constant byte address 0x4 - core index']
  #allocation1 [shape = 'u32[144,128]{1,0:T(1,128)}', space=vmem, size = 0x12000, scoped, tag = 'internal scratch']
  %s0 = inlined_call_operand.vmem [shape: bf16[2,4096], index: 0, kind: input, shape index: {}]
  %s1 = inlined_call_operand.vmem [shape: bf16[4096,10], index: 1, kind: input, shape index: {}]
  %s2 = inlined_call_operand.vmem [shape: f32[1,10], index: 2, kind: input, shape index: {}]
  %s3 = inlined_call_operand.hbm [shape: f32[2,10], index: 3, kind: output, shape index: {}]
  %s4 = sld [smem:[#allocation0]]
  $region22: #{mnist_net_forward.5} parent=0
    _
  %s6 = ssub.s32 1, %s4
  %s7 = scalar_select 0, %s6, %s4
  $region1: #{mnist_net_forward.5} parent=0
    #allocation2 [shape = 'u8[1024]{0}', space=vmem, size = 0x400, scoped, tag = 'output window, operand 0, single buffered']
    #allocation3 [shape = 's32[1]{0}', space=sflag, size = 0x4, scoped, tag = 'scoped memory for mnist_net_forward.5']
    %8 = vsyncpa [#allocation3], 0
    // Predicated region
    $region2: #{mnist_net_forward.5} parent=1 // pred_check
      _
    $region3: #{mnist_net_forward.5} parent=1 // pred_check_branch
      %10 = sbr.rel (0) target = $region5
    $region4: #{mnist_net_forward.5} parent=1 // pred_region
      _
    $region5: #{mnist_net_forward.5} parent=1 // pred_fallthru
      _
    // Predicated region
    $region6: #{mnist_net_forward.5} parent=1 // pred_check
      _
    $region7: #{mnist_net_forward.5} parent=1 // pred_check_branch
      %12 = sbr.rel (0) target = $region9
    $region8: #{mnist_net_forward.5} parent=1 // pred_region
      _
    $region9: #{mnist_net_forward.5} parent=1 // pred_fallthru
      _
    // Predicated region
    $region10: #{mnist_net_forward.5} parent=1 // pred_check
      _
    $region11: #{mnist_net_forward.5} parent=1 // pred_check_branch
      %14 = sbr.rel (0) target = $region13
    $region12: #{mnist_net_forward.5} parent=1 // pred_region
      _
    $region13: #{mnist_net_forward.5} parent=1 // pred_fallthru
      _
    %v16 = vld [vmem:[%s0] sm:$0xff]
    %v17 = vld [vmem:[%s0 + $0x8] sm:$0xff]
    %v18 = vld [vmem:[%s0 + $0x10] sm:$0xff]
    %v19 = vld [vmem:[%s0 + $0x18] sm:$0xff]
    %v20 = vld [vmem:[%s1] sm:$0xf]
    %v21 = vld [vmem:[%s1 + $0x4] sm:$0xf]
    %v22 = vld [vmem:[%s1 + $0x8] sm:$0xf]
    %v23 = vld [vmem:[%s1 + $0xc] sm:$0xf]
    %v24 = vld [vmem:[%s1 + $0x10] sm:$0xf]
    %v25 = vld [vmem:[%s1 + $0x14] sm:$0xf]
    %v26 = vld [vmem:[%s1 + $0x18] sm:$0xf]
    %v27 = vld [vmem:[%s1 + $0x1c] sm:$0xf]
    %v28 = vld [vmem:[%s1 + $0x20] sm:$0xf]
    %v29 = vld [vmem:[%s1 + $0x24] sm:$0xf]
    %v30 = vld [vmem:[%s1 + $0x28] sm:$0xf]
    %v31 = vld [vmem:[%s1 + $0x2c] sm:$0xf]
    %v32 = vld [vmem:[%s1 + $0x30] sm:$0xf]
    %v33 = vld [vmem:[%s1 + $0x34] sm:$0xf]
    %v34 = vld [vmem:[%s1 + $0x38] sm:$0xf]
    %v35 = vld [vmem:[%s1 + $0x3c] sm:$0xf]
    %v36 = vld [vmem:[%s1 + $0x40] sm:$0xf]
    %v37 = vld [vmem:[%s1 + $0x44] sm:$0xf]
    %v38 = vld [vmem:[%s1 + $0x48] sm:$0xf]
    %v39 = vld [vmem:[%s1 + $0x4c] sm:$0xf]
    %v40 = vld [vmem:[%s1 + $0x50] sm:$0xf]
    %v41 = vld [vmem:[%s1 + $0x54] sm:$0xf]
    %v42 = vld [vmem:[%s1 + $0x58] sm:$0xf]
    %v43 = vld [vmem:[%s1 + $0x5c] sm:$0xf]
    %v44 = vld [vmem:[%s1 + $0x60] sm:$0xf]
    %v45 = vld [vmem:[%s1 + $0x64] sm:$0xf]
    %v46 = vld [vmem:[%s1 + $0x68] sm:$0xf]
    %v47 = vld [vmem:[%s1 + $0x6c] sm:$0xf]
    %v48 = vld [vmem:[%s1 + $0x70] sm:$0xf]
    %v49 = vld [vmem:[%s1 + $0x74] sm:$0xf]
    %v50 = vld [vmem:[%s1 + $0x78] sm:$0xf]
    %v51 = vld [vmem:[%s1 + $0x7c] sm:$0xf]
    %v52 = vld [vmem:[%s1 + $0x80] sm:$0xf]
    %v53 = vld [vmem:[%s1 + $0x84] sm:$0xf]
    %v54 = vld [vmem:[%s1 + $0x88] sm:$0xf]
    %v55 = vld [vmem:[%s1 + $0x8c] sm:$0xf]
    %v56 = vld [vmem:[%s1 + $0x90] sm:$0xf]
    %v57 = vld [vmem:[%s1 + $0x94] sm:$0xf]
    %v58 = vld [vmem:[%s1 + $0x98] sm:$0xf]
    %v59 = vld [vmem:[%s1 + $0x9c] sm:$0xf]
    %v60 = vld [vmem:[%s1 + $0xa0] sm:$0xf]
    %v61 = vld [vmem:[%s1 + $0xa4] sm:$0xf]
    %v62 = vld [vmem:[%s1 + $0xa8] sm:$0xf]
    %v63 = vld [vmem:[%s1 + $0xac] sm:$0xf]
    %v64 = vld [vmem:[%s1 + $0xb0] sm:$0xf]
    %v65 = vld [vmem:[%s1 + $0xb4] sm:$0xf]
    %v66 = vld [vmem:[%s1 + $0xb8] sm:$0xf]
    %v67 = vld [vmem:[%s1 + $0xbc] sm:$0xf]
    %v68 = vld [vmem:[%s1 + $0xc0] sm:$0xf]
    %v69 = vld [vmem:[%s1 + $0xc4] sm:$0xf]
    %v70 = vld [vmem:[%s1 + $0xc8] sm:$0xf]
    %v71 = vld [vmem:[%s1 + $0xcc] sm:$0xf]
    %v72 = vld [vmem:[%s1 + $0xd0] sm:$0xf]
    %v73 = vld [vmem:[%s1 + $0xd4] sm:$0xf]
    %v74 = vld [vmem:[%s1 + $0xd8] sm:$0xf]
    %v75 = vld [vmem:[%s1 + $0xdc] sm:$0xf]
    %v76 = vld [vmem:[%s1 + $0xe0] sm:$0xf]
    %v77 = vld [vmem:[%s1 + $0xe4] sm:$0xf]
    %v78 = vld [vmem:[%s1 + $0xe8] sm:$0xf]
    %v79 = vld [vmem:[%s1 + $0xec] sm:$0xf]
    %v80 = vld [vmem:[%s1 + $0xf0] sm:$0xf]
    %v81 = vld [vmem:[%s1 + $0xf4] sm:$0xf]
    %v82 = vld [vmem:[%s1 + $0xf8] sm:$0xf]
    %v83 = vld [vmem:[%s1 + $0xfc] sm:$0xf]
    %v84 = vld [vmem:[%s1 + $0x100] sm:$0xf]
    %v85 = vld [vmem:[%s1 + $0x104] sm:$0xf]
    %v86 = vld [vmem:[%s1 + $0x108] sm:$0xf]
    %v87 = vld [vmem:[%s1 + $0x10c] sm:$0xf]
    %v88 = vld [vmem:[%s1 + $0x110] sm:$0xf]
    %v89 = vld [vmem:[%s1 + $0x114] sm:$0xf]
    %v90 = vld [vmem:[%s1 + $0x118] sm:$0xf]
    %v91 = vld [vmem:[%s1 + $0x11c] sm:$0xf]
    %v92 = vld [vmem:[%s1 + $0x120] sm:$0xf]
    %v93 = vld [vmem:[%s1 + $0x124] sm:$0xf]
    %v94 = vld [vmem:[%s1 + $0x128] sm:$0xf]
    %v95 = vld [vmem:[%s1 + $0x12c] sm:$0xf]
    %v96 = vld [vmem:[%s1 + $0x130] sm:$0xf]
    %v97 = vld [vmem:[%s1 + $0x134] sm:$0xf]
    %v98 = vld [vmem:[%s1 + $0x138] sm:$0xf]
    %v99 = vld [vmem:[%s1 + $0x13c] sm:$0xf]
    %v100 = vld [vmem:[%s1 + $0x140] sm:$0xf]
    %v101 = vld [vmem:[%s1 + $0x144] sm:$0xf]
    %v102 = vld [vmem:[%s1 + $0x148] sm:$0xf]
    %v103 = vld [vmem:[%s1 + $0x14c] sm:$0xf]
    %v104 = vld [vmem:[%s1 + $0x150] sm:$0xf]
    %v105 = vld [vmem:[%s1 + $0x154] sm:$0xf]
    %v106 = vld [vmem:[%s1 + $0x158] sm:$0xf]
    %v107 = vld [vmem:[%s1 + $0x15c] sm:$0xf]
    %v108 = vld [vmem:[%s1 + $0x160] sm:$0xf]
    %v109 = vld [vmem:[%s1 + $0x164] sm:$0xf]
    %v110 = vld [vmem:[%s1 + $0x168] sm:$0xf]
    %v111 = vld [vmem:[%s1 + $0x16c] sm:$0xf]
    %v112 = vld [vmem:[%s1 + $0x170] sm:$0xf]
    %v113 = vld [vmem:[%s1 + $0x174] sm:$0xf]
    %v114 = vld [vmem:[%s1 + $0x178] sm:$0xf]
    %v115 = vld [vmem:[%s1 + $0x17c] sm:$0xf]
    %v116 = vld [vmem:[%s1 + $0x180] sm:$0xf]
    %v117 = vld [vmem:[%s1 + $0x184] sm:$0xf]
    %v118 = vld [vmem:[%s1 + $0x188] sm:$0xf]
    %v119 = vld [vmem:[%s1 + $0x18c] sm:$0xf]
    %v120 = vld [vmem:[%s1 + $0x190] sm:$0xf]
    %v121 = vld [vmem:[%s1 + $0x194] sm:$0xf]
    %v122 = vld [vmem:[%s1 + $0x198] sm:$0xf]
    %v123 = vld [vmem:[%s1 + $0x19c] sm:$0xf]
    %v124 = vld [vmem:[%s1 + $0x1a0] sm:$0xf]
    %v125 = vld [vmem:[%s1 + $0x1a4] sm:$0xf]
    %v126 = vld [vmem:[%s1 + $0x1a8] sm:$0xf]
    %v127 = vld [vmem:[%s1 + $0x1ac] sm:$0xf]
    %v128 = vld [vmem:[%s1 + $0x1b0] sm:$0xf]
    %v129 = vld [vmem:[%s1 + $0x1b4] sm:$0xf]
    %v130 = vld [vmem:[%s1 + $0x1b8] sm:$0xf]
    %v131 = vld [vmem:[%s1 + $0x1bc] sm:$0xf]
    %v132 = vld [vmem:[%s1 + $0x1c0] sm:$0xf]
    %v133 = vld [vmem:[%s1 + $0x1c4] sm:$0xf]
    %v134 = vld [vmem:[%s1 + $0x1c8] sm:$0xf]
    %v135 = vld [vmem:[%s1 + $0x1cc] sm:$0xf]
    %v136 = vld [vmem:[%s1 + $0x1d0] sm:$0xf]
    %v137 = vld [vmem:[%s1 + $0x1d4] sm:$0xf]
    %v138 = vld [vmem:[%s1 + $0x1d8] sm:$0xf]
    %v139 = vld [vmem:[%s1 + $0x1dc] sm:$0xf]
    %v140 = vld [vmem:[%s1 + $0x1e0] sm:$0xf]
    %v141 = vld [vmem:[%s1 + $0x1e4] sm:$0xf]
    %v142 = vld [vmem:[%s1 + $0x1e8] sm:$0xf]
    %v143 = vld [vmem:[%s1 + $0x1ec] sm:$0xf]
    %v144 = vld [vmem:[%s1 + $0x1f0] sm:$0xf]
    %v145 = vld [vmem:[%s1 + $0x1f4] sm:$0xf]
    %v146 = vld [vmem:[%s1 + $0x1f8] sm:$0xf]
    %v147 = vld [vmem:[%s1 + $0x1fc] sm:$0xf]
    %v148 = vld [vmem:[%s1 + $0x200] sm:$0xf]
    %v149 = vld [vmem:[%s1 + $0x204] sm:$0xf]
    %v150 = vld [vmem:[%s1 + $0x208] sm:$0xf]
    %v151 = vld [vmem:[%s1 + $0x20c] sm:$0xf]
    %v152 = vld [vmem:[%s1 + $0x210] sm:$0xf]
    %v153 = vld [vmem:[%s1 + $0x214] sm:$0xf]
    %v154 = vld [vmem:[%s1 + $0x218] sm:$0xf]
    %v155 = vld [vmem:[%s1 + $0x21c] sm:$0xf]
    %v156 = vld [vmem:[%s1 + $0x220] sm:$0xf]
    %v157 = vld [vmem:[%s1 + $0x224] sm:$0xf]
    %v158 = vld [vmem:[%s1 + $0x228] sm:$0xf]
    %v159 = vld [vmem:[%s1 + $0x22c] sm:$0xf]
    %v160 = vld [vmem:[%s1 + $0x230] sm:$0xf]
    %v161 = vld [vmem:[%s1 + $0x234] sm:$0xf]
    %v162 = vld [vmem:[%s1 + $0x238] sm:$0xf]
    %v163 = vld [vmem:[%s1 + $0x23c] sm:$0xf]
    %v164 = vld [vmem:[%s1 + $0x240] sm:$0xf]
    %v165 = vld [vmem:[%s1 + $0x244] sm:$0xf]
    %v166 = vld [vmem:[%s1 + $0x248] sm:$0xf]
    %v167 = vld [vmem:[%s1 + $0x24c] sm:$0xf]
    %v168 = vld [vmem:[%s1 + $0x250] sm:$0xf]
    %v169 = vld [vmem:[%s1 + $0x254] sm:$0xf]
    %v170 = vld [vmem:[%s1 + $0x258] sm:$0xf]
    %v171 = vld [vmem:[%s1 + $0x25c] sm:$0xf]
    %v172 = vld [vmem:[%s1 + $0x260] sm:$0xf]
    %v173 = vld [vmem:[%s1 + $0x264] sm:$0xf]
    %v174 = vld [vmem:[%s1 + $0x268] sm:$0xf]
    %v175 = vld [vmem:[%s1 + $0x26c] sm:$0xf]
    %v176 = vld [vmem:[%s1 + $0x270] sm:$0xf]
    %v177 = vld [vmem:[%s1 + $0x274] sm:$0xf]
    %v178 = vld [vmem:[%s1 + $0x278] sm:$0xf]
    %v179 = vld [vmem:[%s1 + $0x27c] sm:$0xf]
    %v180 = vld [vmem:[%s1 + $0x280] sm:$0xf]
    %v181 = vld [vmem:[%s1 + $0x284] sm:$0xf]
    %v182 = vld [vmem:[%s1 + $0x288] sm:$0xf]
    %v183 = vld [vmem:[%s1 + $0x28c] sm:$0xf]
    %v184 = vld [vmem:[%s1 + $0x290] sm:$0xf]
    %v185 = vld [vmem:[%s1 + $0x294] sm:$0xf]
    %v186 = vld [vmem:[%s1 + $0x298] sm:$0xf]
    %v187 = vld [vmem:[%s1 + $0x29c] sm:$0xf]
    %v188 = vld [vmem:[%s1 + $0x2a0] sm:$0xf]
    %v189 = vld [vmem:[%s1 + $0x2a4] sm:$0xf]
    %v190 = vld [vmem:[%s1 + $0x2a8] sm:$0xf]
    %v191 = vld [vmem:[%s1 + $0x2ac] sm:$0xf]
    %v192 = vld [vmem:[%s1 + $0x2b0] sm:$0xf]
    %v193 = vld [vmem:[%s1 + $0x2b4] sm:$0xf]
    %v194 = vld [vmem:[%s1 + $0x2b8] sm:$0xf]
    %v195 = vld [vmem:[%s1 + $0x2bc] sm:$0xf]
    %v196 = vld [vmem:[%s1 + $0x2c0] sm:$0xf]
    %v197 = vld [vmem:[%s1 + $0x2c4] sm:$0xf]
    %v198 = vld [vmem:[%s1 + $0x2c8] sm:$0xf]
    %v199 = vld [vmem:[%s1 + $0x2cc] sm:$0xf]
    %v200 = vld [vmem:[%s1 + $0x2d0] sm:$0xf]
    %v201 = vld [vmem:[%s1 + $0x2d4] sm:$0xf]
    %v202 = vld [vmem:[%s1 + $0x2d8] sm:$0xf]
    %v203 = vld [vmem:[%s1 + $0x2dc] sm:$0xf]
    %v204 = vld [vmem:[%s1 + $0x2e0] sm:$0xf]
    %v205 = vld [vmem:[%s1 + $0x2e4] sm:$0xf]
    %v206 = vld [vmem:[%s1 + $0x2e8] sm:$0xf]
    %v207 = vld [vmem:[%s1 + $0x2ec] sm:$0xf]
    %v208 = vld [vmem:[%s1 + $0x2f0] sm:$0xf]
    %v209 = vld [vmem:[%s1 + $0x2f4] sm:$0xf]
    %v210 = vld [vmem:[%s1 + $0x2f8] sm:$0xf]
    %v211 = vld [vmem:[%s1 + $0x2fc] sm:$0xf]
    %v212 = vld [vmem:[%s1 + $0x300] sm:$0xf]
    %v213 = vld [vmem:[%s1 + $0x304] sm:$0xf]
    %v214 = vld [vmem:[%s1 + $0x308] sm:$0xf]
    %v215 = vld [vmem:[%s1 + $0x30c] sm:$0xf]
    %v216 = vld [vmem:[%s1 + $0x310] sm:$0xf]
    %v217 = vld [vmem:[%s1 + $0x314] sm:$0xf]
    %v218 = vld [vmem:[%s1 + $0x318] sm:$0xf]
    %v219 = vld [vmem:[%s1 + $0x31c] sm:$0xf]
    %v220 = vld [vmem:[%s1 + $0x320] sm:$0xf]
    %v221 = vld [vmem:[%s1 + $0x324] sm:$0xf]
    %v222 = vld [vmem:[%s1 + $0x328] sm:$0xf]
    %v223 = vld [vmem:[%s1 + $0x32c] sm:$0xf]
    %v224 = vld [vmem:[%s1 + $0x330] sm:$0xf]
    %v225 = vld [vmem:[%s1 + $0x334] sm:$0xf]
    %v226 = vld [vmem:[%s1 + $0x338] sm:$0xf]
    %v227 = vld [vmem:[%s1 + $0x33c] sm:$0xf]
    %v228 = vld [vmem:[%s1 + $0x340] sm:$0xf]
    %v229 = vld [vmem:[%s1 + $0x344] sm:$0xf]
    %v230 = vld [vmem:[%s1 + $0x348] sm:$0xf]
    %v231 = vld [vmem:[%s1 + $0x34c] sm:$0xf]
    %v232 = vld [vmem:[%s1 + $0x350] sm:$0xf]
    %v233 = vld [vmem:[%s1 + $0x354] sm:$0xf]
    %v234 = vld [vmem:[%s1 + $0x358] sm:$0xf]
    %v235 = vld [vmem:[%s1 + $0x35c] sm:$0xf]
    %v236 = vld [vmem:[%s1 + $0x360] sm:$0xf]
    %v237 = vld [vmem:[%s1 + $0x364] sm:$0xf]
    %v238 = vld [vmem:[%s1 + $0x368] sm:$0xf]
    %v239 = vld [vmem:[%s1 + $0x36c] sm:$0xf]
    %v240 = vld [vmem:[%s1 + $0x370] sm:$0xf]
    %v241 = vld [vmem:[%s1 + $0x374] sm:$0xf]
    %v242 = vld [vmem:[%s1 + $0x378] sm:$0xf]
    %v243 = vld [vmem:[%s1 + $0x37c] sm:$0xf]
    %v244 = vld [vmem:[%s1 + $0x380] sm:$0xf]
    %v245 = vld [vmem:[%s1 + $0x384] sm:$0xf]
    %v246 = vld [vmem:[%s1 + $0x388] sm:$0xf]
    %v247 = vld [vmem:[%s1 + $0x38c] sm:$0xf]
    %v248 = vld [vmem:[%s1 + $0x390] sm:$0xf]
    %v249 = vld [vmem:[%s1 + $0x394] sm:$0xf]
    %v250 = vld [vmem:[%s1 + $0x398] sm:$0xf]
    %v251 = vld [vmem:[%s1 + $0x39c] sm:$0xf]
    %v252 = vld [vmem:[%s1 + $0x3a0] sm:$0xf]
    %v253 = vld [vmem:[%s1 + $0x3a4] sm:$0xf]
    %v254 = vld [vmem:[%s1 + $0x3a8] sm:$0xf]
    %v255 = vld [vmem:[%s1 + $0x3ac] sm:$0xf]
    %v256 = vld [vmem:[%s1 + $0x3b0] sm:$0xf]
    %v257 = vld [vmem:[%s1 + $0x3b4] sm:$0xf]
    %v258 = vld [vmem:[%s1 + $0x3b8] sm:$0xf]
    %v259 = vld [vmem:[%s1 + $0x3bc] sm:$0xf]
    %v260 = vld [vmem:[%s1 + $0x3c0] sm:$0xf]
    %v261 = vld [vmem:[%s1 + $0x3c4] sm:$0xf]
    %v262 = vld [vmem:[%s1 + $0x3c8] sm:$0xf]
    %v263 = vld [vmem:[%s1 + $0x3cc] sm:$0xf]
    %v264 = vld [vmem:[%s1 + $0x3d0] sm:$0xf]
    %v265 = vld [vmem:[%s1 + $0x3d4] sm:$0xf]
    %v266 = vld [vmem:[%s1 + $0x3d8] sm:$0xf]
    %v267 = vld [vmem:[%s1 + $0x3dc] sm:$0xf]
    %v268 = vld [vmem:[%s1 + $0x3e0] sm:$0xf]
    %v269 = vld [vmem:[%s1 + $0x3e4] sm:$0xf]
    %v270 = vld [vmem:[%s1 + $0x3e8] sm:$0xf]
    %v271 = vld [vmem:[%s1 + $0x3ec] sm:$0xf]
    %v272 = vld [vmem:[%s1 + $0x3f0] sm:$0xf]
    %v273 = vld [vmem:[%s1 + $0x3f4] sm:$0xf]
    %v274 = vld [vmem:[%s1 + $0x3f8] sm:$0xf]
    %v275 = vld [vmem:[%s1 + $0x3fc] sm:$0xf]
    %v276 = vld [vmem:[%s1 + $0x400] sm:$0xf]
    %v277 = vld [vmem:[%s1 + $0x404] sm:$0xf]
    %v278 = vld [vmem:[%s1 + $0x408] sm:$0xf]
    %v279 = vld [vmem:[%s1 + $0x40c] sm:$0xf]
    %v280 = vld [vmem:[%s1 + $0x410] sm:$0xf]
    %v281 = vld [vmem:[%s1 + $0x414] sm:$0xf]
    %v282 = vld [vmem:[%s1 + $0x418] sm:$0xf]
    %v283 = vld [vmem:[%s1 + $0x41c] sm:$0xf]
    %v284 = vld [vmem:[%s1 + $0x420] sm:$0xf]
    %v285 = vld [vmem:[%s1 + $0x424] sm:$0xf]
    %v286 = vld [vmem:[%s1 + $0x428] sm:$0xf]
    %v287 = vld [vmem:[%s1 + $0x42c] sm:$0xf]
    %v288 = vld [vmem:[%s1 + $0x430] sm:$0xf]
    %v289 = vld [vmem:[%s1 + $0x434] sm:$0xf]
    %v290 = vld [vmem:[%s1 + $0x438] sm:$0xf]
    %v291 = vld [vmem:[%s1 + $0x43c] sm:$0xf]
    %v292 = vld [vmem:[%s1 + $0x440] sm:$0xf]
    %v293 = vld [vmem:[%s1 + $0x444] sm:$0xf]
    %v294 = vld [vmem:[%s1 + $0x448] sm:$0xf]
    %v295 = vld [vmem:[%s1 + $0x44c] sm:$0xf]
    %v296 = vld [vmem:[%s1 + $0x450] sm:$0xf]
    %v297 = vld [vmem:[%s1 + $0x454] sm:$0xf]
    %v298 = vld [vmem:[%s1 + $0x458] sm:$0xf]
    %v299 = vld [vmem:[%s1 + $0x45c] sm:$0xf]
    %v300 = vld [vmem:[%s1 + $0x460] sm:$0xf]
    %v301 = vld [vmem:[%s1 + $0x464] sm:$0xf]
    %v302 = vld [vmem:[%s1 + $0x468] sm:$0xf]
    %v303 = vld [vmem:[%s1 + $0x46c] sm:$0xf]
    %v304 = vld [vmem:[%s1 + $0x470] sm:$0xf]
    %v305 = vld [vmem:[%s1 + $0x474] sm:$0xf]
    %v306 = vld [vmem:[%s1 + $0x478] sm:$0xf]
    %v307 = vld [vmem:[%s1 + $0x47c] sm:$0xf]
    %v308 = vld [vmem:[%s1 + $0x480] sm:$0xf]
    %v309 = vld [vmem:[%s1 + $0x484] sm:$0xf]
    %v310 = vld [vmem:[%s1 + $0x488] sm:$0xf]
    %v311 = vld [vmem:[%s1 + $0x48c] sm:$0xf]
    %v312 = vld [vmem:[%s1 + $0x490] sm:$0xf]
    %v313 = vld [vmem:[%s1 + $0x494] sm:$0xf]
    %v314 = vld [vmem:[%s1 + $0x498] sm:$0xf]
    %v315 = vld [vmem:[%s1 + $0x49c] sm:$0xf]
    %v316 = vld [vmem:[%s1 + $0x4a0] sm:$0xf]
    %v317 = vld [vmem:[%s1 + $0x4a4] sm:$0xf]
    %v318 = vld [vmem:[%s1 + $0x4a8] sm:$0xf]
    %v319 = vld [vmem:[%s1 + $0x4ac] sm:$0xf]
    %v320 = vld [vmem:[%s1 + $0x4b0] sm:$0xf]
    %v321 = vld [vmem:[%s1 + $0x4b4] sm:$0xf]
    %v322 = vld [vmem:[%s1 + $0x4b8] sm:$0xf]
    %v323 = vld [vmem:[%s1 + $0x4bc] sm:$0xf]
    %v324 = vld [vmem:[%s1 + $0x4c0] sm:$0xf]
    %v325 = vld [vmem:[%s1 + $0x4c4] sm:$0xf]
    %v326 = vld [vmem:[%s1 + $0x4c8] sm:$0xf]
    %v327 = vld [vmem:[%s1 + $0x4cc] sm:$0xf]
    %v328 = vld [vmem:[%s1 + $0x4d0] sm:$0xf]
    %v329 = vld [vmem:[%s1 + $0x4d4] sm:$0xf]
    %v330 = vld [vmem:[%s1 + $0x4d8] sm:$0xf]
    %v331 = vld [vmem:[%s1 + $0x4dc] sm:$0xf]
    %v332 = vld [vmem:[%s1 + $0x4e0] sm:$0xf]
    %v333 = vld [vmem:[%s1 + $0x4e4] sm:$0xf]
    %v334 = vld [vmem:[%s1 + $0x4e8] sm:$0xf]
    %v335 = vld [vmem:[%s1 + $0x4ec] sm:$0xf]
    %v336 = vld [vmem:[%s1 + $0x4f0] sm:$0xf]
    %v337 = vld [vmem:[%s1 + $0x4f4] sm:$0xf]
    %v338 = vld [vmem:[%s1 + $0x4f8] sm:$0xf]
    %v339 = vld [vmem:[%s1 + $0x4fc] sm:$0xf]
    %v340 = vld [vmem:[%s1 + $0x500] sm:$0xf]
    %v341 = vld [vmem:[%s1 + $0x504] sm:$0xf]
    %v342 = vld [vmem:[%s1 + $0x508] sm:$0xf]
    %v343 = vld [vmem:[%s1 + $0x50c] sm:$0xf]
    %v344 = vld [vmem:[%s1 + $0x510] sm:$0xf]
    %v345 = vld [vmem:[%s1 + $0x514] sm:$0xf]
    %v346 = vld [vmem:[%s1 + $0x518] sm:$0xf]
    %v347 = vld [vmem:[%s1 + $0x51c] sm:$0xf]
    %v348 = vld [vmem:[%s1 + $0x520] sm:$0xf]
    %v349 = vld [vmem:[%s1 + $0x524] sm:$0xf]
    %v350 = vld [vmem:[%s1 + $0x528] sm:$0xf]
    %v351 = vld [vmem:[%s1 + $0x52c] sm:$0xf]
    %v352 = vld [vmem:[%s1 + $0x530] sm:$0xf]
    %v353 = vld [vmem:[%s1 + $0x534] sm:$0xf]
    %v354 = vld [vmem:[%s1 + $0x538] sm:$0xf]
    %v355 = vld [vmem:[%s1 + $0x53c] sm:$0xf]
    %v356 = vld [vmem:[%s1 + $0x540] sm:$0xf]
    %v357 = vld [vmem:[%s1 + $0x544] sm:$0xf]
    %v358 = vld [vmem:[%s1 + $0x548] sm:$0xf]
    %v359 = vld [vmem:[%s1 + $0x54c] sm:$0xf]
    %v360 = vld [vmem:[%s1 + $0x550] sm:$0xf]
    %v361 = vld [vmem:[%s1 + $0x554] sm:$0xf]
    %v362 = vld [vmem:[%s1 + $0x558] sm:$0xf]
    %v363 = vld [vmem:[%s1 + $0x55c] sm:$0xf]
    %v364 = vld [vmem:[%s1 + $0x560] sm:$0xf]
    %v365 = vld [vmem:[%s1 + $0x564] sm:$0xf]
    %v366 = vld [vmem:[%s1 + $0x568] sm:$0xf]
    %v367 = vld [vmem:[%s1 + $0x56c] sm:$0xf]
    %v368 = vld [vmem:[%s1 + $0x570] sm:$0xf]
    %v369 = vld [vmem:[%s1 + $0x574] sm:$0xf]
    %v370 = vld [vmem:[%s1 + $0x578] sm:$0xf]
    %v371 = vld [vmem:[%s1 + $0x57c] sm:$0xf]
    %v372 = vld [vmem:[%s1 + $0x580] sm:$0xf]
    %v373 = vld [vmem:[%s1 + $0x584] sm:$0xf]
    %v374 = vld [vmem:[%s1 + $0x588] sm:$0xf]
    %v375 = vld [vmem:[%s1 + $0x58c] sm:$0xf]
    %v376 = vld [vmem:[%s1 + $0x590] sm:$0xf]
    %v377 = vld [vmem:[%s1 + $0x594] sm:$0xf]
    %v378 = vld [vmem:[%s1 + $0x598] sm:$0xf]
    %v379 = vld [vmem:[%s1 + $0x59c] sm:$0xf]
    %v380 = vld [vmem:[%s1 + $0x5a0] sm:$0xf]
    %v381 = vld [vmem:[%s1 + $0x5a4] sm:$0xf]
    %v382 = vld [vmem:[%s1 + $0x5a8] sm:$0xf]
    %v383 = vld [vmem:[%s1 + $0x5ac] sm:$0xf]
    %v384 = vld [vmem:[%s1 + $0x5b0] sm:$0xf]
    %v385 = vld [vmem:[%s1 + $0x5b4] sm:$0xf]
    %v386 = vld [vmem:[%s1 + $0x5b8] sm:$0xf]
    %v387 = vld [vmem:[%s1 + $0x5bc] sm:$0xf]
    %v388 = vld [vmem:[%s1 + $0x5c0] sm:$0xf]
    %v389 = vld [vmem:[%s1 + $0x5c4] sm:$0xf]
    %v390 = vld [vmem:[%s1 + $0x5c8] sm:$0xf]
    %v391 = vld [vmem:[%s1 + $0x5cc] sm:$0xf]
    %v392 = vld [vmem:[%s1 + $0x5d0] sm:$0xf]
    %v393 = vld [vmem:[%s1 + $0x5d4] sm:$0xf]
    %v394 = vld [vmem:[%s1 + $0x5d8] sm:$0xf]
    %v395 = vld [vmem:[%s1 + $0x5dc] sm:$0xf]
    %v396 = vld [vmem:[%s1 + $0x5e0] sm:$0xf]
    %v397 = vld [vmem:[%s1 + $0x5e4] sm:$0xf]
    %v398 = vld [vmem:[%s1 + $0x5e8] sm:$0xf]
    %v399 = vld [vmem:[%s1 + $0x5ec] sm:$0xf]
    %v400 = vld [vmem:[%s1 + $0x5f0] sm:$0xf]
    %v401 = vld [vmem:[%s1 + $0x5f4] sm:$0xf]
    %v402 = vld [vmem:[%s1 + $0x5f8] sm:$0xf]
    %v403 = vld [vmem:[%s1 + $0x5fc] sm:$0xf]
    %v404 = vld [vmem:[%s1 + $0x600] sm:$0xf]
    %v405 = vld [vmem:[%s1 + $0x604] sm:$0xf]
    %v406 = vld [vmem:[%s1 + $0x608] sm:$0xf]
    %v407 = vld [vmem:[%s1 + $0x60c] sm:$0xf]
    %v408 = vld [vmem:[%s1 + $0x610] sm:$0xf]
    %v409 = vld [vmem:[%s1 + $0x614] sm:$0xf]
    %v410 = vld [vmem:[%s1 + $0x618] sm:$0xf]
    %v411 = vld [vmem:[%s1 + $0x61c] sm:$0xf]
    %v412 = vld [vmem:[%s1 + $0x620] sm:$0xf]
    %v413 = vld [vmem:[%s1 + $0x624] sm:$0xf]
    %v414 = vld [vmem:[%s1 + $0x628] sm:$0xf]
    %v415 = vld [vmem:[%s1 + $0x62c] sm:$0xf]
    %v416 = vld [vmem:[%s1 + $0x630] sm:$0xf]
    %v417 = vld [vmem:[%s1 + $0x634] sm:$0xf]
    %v418 = vld [vmem:[%s1 + $0x638] sm:$0xf]
    %v419 = vld [vmem:[%s1 + $0x63c] sm:$0xf]
    %v420 = vld [vmem:[%s1 + $0x640] sm:$0xf]
    %v421 = vld [vmem:[%s1 + $0x644] sm:$0xf]
    %v422 = vld [vmem:[%s1 + $0x648] sm:$0xf]
    %v423 = vld [vmem:[%s1 + $0x64c] sm:$0xf]
    %v424 = vld [vmem:[%s1 + $0x650] sm:$0xf]
    %v425 = vld [vmem:[%s1 + $0x654] sm:$0xf]
    %v426 = vld [vmem:[%s1 + $0x658] sm:$0xf]
    %v427 = vld [vmem:[%s1 + $0x65c] sm:$0xf]
    %v428 = vld [vmem:[%s1 + $0x660] sm:$0xf]
    %v429 = vld [vmem:[%s1 + $0x664] sm:$0xf]
    %v430 = vld [vmem:[%s1 + $0x668] sm:$0xf]
    %v431 = vld [vmem:[%s1 + $0x66c] sm:$0xf]
    %v432 = vld [vmem:[%s1 + $0x670] sm:$0xf]
    %v433 = vld [vmem:[%s1 + $0x674] sm:$0xf]
    %v434 = vld [vmem:[%s1 + $0x678] sm:$0xf]
    %v435 = vld [vmem:[%s1 + $0x67c] sm:$0xf]
    %v436 = vld [vmem:[%s1 + $0x680] sm:$0xf]
    %v437 = vld [vmem:[%s1 + $0x684] sm:$0xf]
    %v438 = vld [vmem:[%s1 + $0x688] sm:$0xf]
    %v439 = vld [vmem:[%s1 + $0x68c] sm:$0xf]
    %v440 = vld [vmem:[%s1 + $0x690] sm:$0xf]
    %v441 = vld [vmem:[%s1 + $0x694] sm:$0xf]
    %v442 = vld [vmem:[%s1 + $0x698] sm:$0xf]
    %v443 = vld [vmem:[%s1 + $0x69c] sm:$0xf]
    %v444 = vld [vmem:[%s1 + $0x6a0] sm:$0xf]
    %v445 = vld [vmem:[%s1 + $0x6a4] sm:$0xf]
    %v446 = vld [vmem:[%s1 + $0x6a8] sm:$0xf]
    %v447 = vld [vmem:[%s1 + $0x6ac] sm:$0xf]
    %v448 = vld [vmem:[%s1 + $0x6b0] sm:$0xf]
    %v449 = vld [vmem:[%s1 + $0x6b4] sm:$0xf]
    %v450 = vld [vmem:[%s1 + $0x6b8] sm:$0xf]
    %v451 = vld [vmem:[%s1 + $0x6bc] sm:$0xf]
    %v452 = vld [vmem:[%s1 + $0x6c0] sm:$0xf]
    %v453 = vld [vmem:[%s1 + $0x6c4] sm:$0xf]
    %v454 = vld [vmem:[%s1 + $0x6c8] sm:$0xf]
    %v455 = vld [vmem:[%s1 + $0x6cc] sm:$0xf]
    %v456 = vld [vmem:[%s1 + $0x6d0] sm:$0xf]
    %v457 = vld [vmem:[%s1 + $0x6d4] sm:$0xf]
    %v458 = vld [vmem:[%s1 + $0x6d8] sm:$0xf]
    %v459 = vld [vmem:[%s1 + $0x6dc] sm:$0xf]
    %v460 = vld [vmem:[%s1 + $0x6e0] sm:$0xf]
    %v461 = vld [vmem:[%s1 + $0x6e4] sm:$0xf]
    %v462 = vld [vmem:[%s1 + $0x6e8] sm:$0xf]
    %v463 = vld [vmem:[%s1 + $0x6ec] sm:$0xf]
    %v464 = vld [vmem:[%s1 + $0x6f0] sm:$0xf]
    %v465 = vld [vmem:[%s1 + $0x6f4] sm:$0xf]
    %v466 = vld [vmem:[%s1 + $0x6f8] sm:$0xf]
    %v467 = vld [vmem:[%s1 + $0x6fc] sm:$0xf]
    %v468 = vld [vmem:[%s1 + $0x700] sm:$0xf]
    %v469 = vld [vmem:[%s1 + $0x704] sm:$0xf]
    %v470 = vld [vmem:[%s1 + $0x708] sm:$0xf]
    %v471 = vld [vmem:[%s1 + $0x70c] sm:$0xf]
    %v472 = vld [vmem:[%s1 + $0x710] sm:$0xf]
    %v473 = vld [vmem:[%s1 + $0x714] sm:$0xf]
    %v474 = vld [vmem:[%s1 + $0x718] sm:$0xf]
    %v475 = vld [vmem:[%s1 + $0x71c] sm:$0xf]
    %v476 = vld [vmem:[%s1 + $0x720] sm:$0xf]
    %v477 = vld [vmem:[%s1 + $0x724] sm:$0xf]
    %v478 = vld [vmem:[%s1 + $0x728] sm:$0xf]
    %v479 = vld [vmem:[%s1 + $0x72c] sm:$0xf]
    %v480 = vld [vmem:[%s1 + $0x730] sm:$0xf]
    %v481 = vld [vmem:[%s1 + $0x734] sm:$0xf]
    %v482 = vld [vmem:[%s1 + $0x738] sm:$0xf]
    %v483 = vld [vmem:[%s1 + $0x73c] sm:$0xf]
    %v484 = vld [vmem:[%s1 + $0x740] sm:$0xf]
    %v485 = vld [vmem:[%s1 + $0x744] sm:$0xf]
    %v486 = vld [vmem:[%s1 + $0x748] sm:$0xf]
    %v487 = vld [vmem:[%s1 + $0x74c] sm:$0xf]
    %v488 = vld [vmem:[%s1 + $0x750] sm:$0xf]
    %v489 = vld [vmem:[%s1 + $0x754] sm:$0xf]
    %v490 = vld [vmem:[%s1 + $0x758] sm:$0xf]
    %v491 = vld [vmem:[%s1 + $0x75c] sm:$0xf]
    %v492 = vld [vmem:[%s1 + $0x760] sm:$0xf]
    %v493 = vld [vmem:[%s1 + $0x764] sm:$0xf]
    %v494 = vld [vmem:[%s1 + $0x768] sm:$0xf]
    %v495 = vld [vmem:[%s1 + $0x76c] sm:$0xf]
    %v496 = vld [vmem:[%s1 + $0x770] sm:$0xf]
    %v497 = vld [vmem:[%s1 + $0x774] sm:$0xf]
    %v498 = vld [vmem:[%s1 + $0x778] sm:$0xf]
    %v499 = vld [vmem:[%s1 + $0x77c] sm:$0xf]
    %v500 = vld [vmem:[%s1 + $0x780] sm:$0xf]
    %v501 = vld [vmem:[%s1 + $0x784] sm:$0xf]
    %v502 = vld [vmem:[%s1 + $0x788] sm:$0xf]
    %v503 = vld [vmem:[%s1 + $0x78c] sm:$0xf]
    %v504 = vld [vmem:[%s1 + $0x790] sm:$0xf]
    %v505 = vld [vmem:[%s1 + $0x794] sm:$0xf]
    %v506 = vld [vmem:[%s1 + $0x798] sm:$0xf]
    %v507 = vld [vmem:[%s1 + $0x79c] sm:$0xf]
    %v508 = vld [vmem:[%s1 + $0x7a0] sm:$0xf]
    %v509 = vld [vmem:[%s1 + $0x7a4] sm:$0xf]
    %v510 = vld [vmem:[%s1 + $0x7a8] sm:$0xf]
    %v511 = vld [vmem:[%s1 + $0x7ac] sm:$0xf]
    %v512 = vld [vmem:[%s1 + $0x7b0] sm:$0xf]
    %v513 = vld [vmem:[%s1 + $0x7b4] sm:$0xf]
    %v514 = vld [vmem:[%s1 + $0x7b8] sm:$0xf]
    %v515 = vld [vmem:[%s1 + $0x7bc] sm:$0xf]
    %v516 = vld [vmem:[%s1 + $0x7c0] sm:$0xf]
    %v517 = vld [vmem:[%s1 + $0x7c4] sm:$0xf]
    %v518 = vld [vmem:[%s1 + $0x7c8] sm:$0xf]
    %v519 = vld [vmem:[%s1 + $0x7cc] sm:$0xf]
    %v520 = vld [vmem:[%s1 + $0x7d0] sm:$0xf]
    %v521 = vld [vmem:[%s1 + $0x7d4] sm:$0xf]
    %v522 = vld [vmem:[%s1 + $0x7d8] sm:$0xf]
    %v523 = vld [vmem:[%s1 + $0x7dc] sm:$0xf]
    %v524 = vld [vmem:[%s1 + $0x7e0] sm:$0xf]
    %v525 = vld [vmem:[%s1 + $0x7e4] sm:$0xf]
    %v526 = vld [vmem:[%s1 + $0x7e8] sm:$0xf]
    %v527 = vld [vmem:[%s1 + $0x7ec] sm:$0xf]
    %v528 = vld [vmem:[%s1 + $0x7f0] sm:$0xf]
    %v529 = vld [vmem:[%s1 + $0x7f4] sm:$0xf]
    %v530 = vld [vmem:[%s1 + $0x7f8] sm:$0xf]
    %v531 = vld [vmem:[%s1 + $0x7fc] sm:$0xf]
    %v532 = vld [vmem:[%s2] sm:$0x1]
    %v534 = vlaneseq
    %v535 = vshrl.u32 %v534, 7
    %v536 = vsub.s32 0, %v535
    %v537 = vrot.slane %v532, %v536
    %v543 = vcombine.high %v16, %v16
    %v545 = vunpack.c.l.s4 1966171168
    %v546 = vunpack.c.0.s8 %v545
    %v547 = vlaneseq
    %v548 = vshrl.u32 %v547, 7
    %v549 = vsub.s32 %v546, %v548
    %v550 = vrot.slane %v16, %v549
    %v552 = vunpack.c.l.s4 1966171168
    %v553 = vunpack.c.0.s8 %v552
    %v554 = vlaneseq
    %v555 = vshrl.u32 %v554, 7
    %v556 = vsub.s32 %v553, %v555
    %v557 = vrot.slane %v543, %v556
    %v558 = vcombine.high %v550, %v550
    %v559 = vcombine.high %v557, %v557
    %v561 = vunpack.c.l.s4 1966171168
    %v562 = vunpack.c.0.s8 %v561
    %v563 = vlaneseq
    %v564 = vshrl.u32 %v563, 7
    %v565 = vsub.s32 %v562, %v564
    %v566 = vrot.slane %v550, %v565
    %v568 = vunpack.c.l.s4 1966171168
    %v569 = vunpack.c.0.s8 %v568
    %v570 = vlaneseq
    %v571 = vshrl.u32 %v570, 7
    %v572 = vsub.s32 %v569, %v571
    %v573 = vrot.slane %v557, %v572
    %v575 = vunpack.c.l.s4 1966171168
    %v576 = vunpack.c.0.s8 %v575
    %v577 = vlaneseq
    %v578 = vshrl.u32 %v577, 7
    %v579 = vsub.s32 %v576, %v578
    %v580 = vrot.slane %v558, %v579
    %v582 = vunpack.c.l.s4 1966171168
    %v583 = vunpack.c.0.s8 %v582
    %v584 = vlaneseq
    %v585 = vshrl.u32 %v584, 7
    %v586 = vsub.s32 %v583, %v585
    %v587 = vrot.slane %v559, %v586
    %v588 = vcombine.high %v566, %v566
    %v589 = vcombine.high %v573, %v573
    %v590 = vcombine.high %v580, %v580
    %v591 = vcombine.high %v587, %v587
    %v592 = vcombine.high %v17, %v17
    %v594 = vunpack.c.l.s4 1966171168
    %v595 = vunpack.c.0.s8 %v594
    %v596 = vlaneseq
    %v597 = vshrl.u32 %v596, 7
    %v598 = vsub.s32 %v595, %v597
    %v599 = vrot.slane %v17, %v598
    %v601 = vunpack.c.l.s4 1966171168
    %v602 = vunpack.c.0.s8 %v601
    %v603 = vlaneseq
    %v604 = vshrl.u32 %v603, 7
    %v605 = vsub.s32 %v602, %v604
    %v606 = vrot.slane %v592, %v605
    %v607 = vcombine.high %v599, %v599
    %v608 = vcombine.high %v606, %v606
    %v610 = vunpack.c.l.s4 1966171168
    %v611 = vunpack.c.0.s8 %v610
    %v612 = vlaneseq
    %v613 = vshrl.u32 %v612, 7
    %v614 = vsub.s32 %v611, %v613
    %v615 = vrot.slane %v599, %v614
    %v617 = vunpack.c.l.s4 1966171168
    %v618 = vunpack.c.0.s8 %v617
    %v619 = vlaneseq
    %v620 = vshrl.u32 %v619, 7
    %v621 = vsub.s32 %v618, %v620
    %v622 = vrot.slane %v606, %v621
    %v624 = vunpack.c.l.s4 1966171168
    %v625 = vunpack.c.0.s8 %v624
    %v626 = vlaneseq
    %v627 = vshrl.u32 %v626, 7
    %v628 = vsub.s32 %v625, %v627
    %v629 = vrot.slane %v607, %v628
    %v631 = vunpack.c.l.s4 1966171168
    %v632 = vunpack.c.0.s8 %v631
    %v633 = vlaneseq
    %v634 = vshrl.u32 %v633, 7
    %v635 = vsub.s32 %v632, %v634
    %v636 = vrot.slane %v608, %v635
    %v637 = vcombine.high %v615, %v615
    %v638 = vcombine.high %v622, %v622
    %v639 = vcombine.high %v629, %v629
    %v640 = vcombine.high %v636, %v636
    %v641 = vcombine.high %v18, %v18
    %v643 = vunpack.c.l.s4 1966171168
    %v644 = vunpack.c.0.s8 %v643
    %v645 = vlaneseq
    %v646 = vshrl.u32 %v645, 7
    %v647 = vsub.s32 %v644, %v646
    %v648 = vrot.slane %v18, %v647
    %v650 = vunpack.c.l.s4 1966171168
    %v651 = vunpack.c.0.s8 %v650
    %v652 = vlaneseq
    %v653 = vshrl.u32 %v652, 7
    %v654 = vsub.s32 %v651, %v653
    %v655 = vrot.slane %v641, %v654
    %v656 = vcombine.high %v648, %v648
    %v657 = vcombine.high %v655, %v655
    %v659 = vunpack.c.l.s4 1966171168
    %v660 = vunpack.c.0.s8 %v659
    %v661 = vlaneseq
    %v662 = vshrl.u32 %v661, 7
    %v663 = vsub.s32 %v660, %v662
    %v664 = vrot.slane %v648, %v663
    %v666 = vunpack.c.l.s4 1966171168
    %v667 = vunpack.c.0.s8 %v666
    %v668 = vlaneseq
    %v669 = vshrl.u32 %v668, 7
    %v670 = vsub.s32 %v667, %v669
    %v671 = vrot.slane %v655, %v670
    %v673 = vunpack.c.l.s4 1966171168
    %v674 = vunpack.c.0.s8 %v673
    %v675 = vlaneseq
    %v676 = vshrl.u32 %v675, 7
    %v677 = vsub.s32 %v674, %v676
    %v678 = vrot.slane %v656, %v677
    %v680 = vunpack.c.l.s4 1966171168
    %v681 = vunpack.c.0.s8 %v680
    %v682 = vlaneseq
    %v683 = vshrl.u32 %v682, 7
    %v684 = vsub.s32 %v681, %v683
    %v685 = vrot.slane %v657, %v684
    %v686 = vcombine.high %v664, %v664
    %v687 = vcombine.high %v671, %v671
    %v688 = vcombine.high %v678, %v678
    %v689 = vcombine.high %v685, %v685
    %v690 = vcombine.high %v19, %v19
    %v692 = vunpack.c.l.s4 1966171168
    %v693 = vunpack.c.0.s8 %v692
    %v694 = vlaneseq
    %v695 = vshrl.u32 %v694, 7
    %v696 = vsub.s32 %v693, %v695
    %v697 = vrot.slane %v19, %v696
    %v699 = vunpack.c.l.s4 1966171168
    %v700 = vunpack.c.0.s8 %v699
    %v701 = vlaneseq
    %v702 = vshrl.u32 %v701, 7
    %v703 = vsub.s32 %v700, %v702
    %v704 = vrot.slane %v690, %v703
    %v705 = vcombine.high %v697, %v697
    %v706 = vcombine.high %v704, %v704
    %v708 = vunpack.c.l.s4 1966171168
    %v709 = vunpack.c.0.s8 %v708
    %v710 = vlaneseq
    %v711 = vshrl.u32 %v710, 7
    %v712 = vsub.s32 %v709, %v711
    %v713 = vrot.slane %v697, %v712
    %v715 = vunpack.c.l.s4 1966171168
    %v716 = vunpack.c.0.s8 %v715
    %v717 = vlaneseq
    %v718 = vshrl.u32 %v717, 7
    %v719 = vsub.s32 %v716, %v718
    %v720 = vrot.slane %v704, %v719
    %v722 = vunpack.c.l.s4 1966171168
    %v723 = vunpack.c.0.s8 %v722
    %v724 = vlaneseq
    %v725 = vshrl.u32 %v724, 7
    %v726 = vsub.s32 %v723, %v725
    %v727 = vrot.slane %v705, %v726
    %v729 = vunpack.c.l.s4 1966171168
    %v730 = vunpack.c.0.s8 %v729
    %v731 = vlaneseq
    %v732 = vshrl.u32 %v731, 7
    %v733 = vsub.s32 %v730, %v732
    %v734 = vrot.slane %v706, %v733
    %v735 = vcombine.high %v713, %v713
    %v736 = vcombine.high %v720, %v720
    %v737 = vcombine.high %v727, %v727
    %v738 = vcombine.high %v734, %v734
    %v1283 = vunpack.c.l.b16 %v20
    %v1284 = vunpack.c.l.b16 %v21
    %v1285 = vunpack.c.l.b16 %v22
    %v1286 = vunpack.c.l.b16 %v23
    %v1287 = vunpack.c.l.b16 %v24
    %v1288 = vunpack.c.l.b16 %v25
    %v1289 = vunpack.c.l.b16 %v26
    %v1290 = vunpack.c.l.b16 %v27
    %v1291 = vunpack.c.l.b16 %v28
    %v1292 = vunpack.c.l.b16 %v29
    %v1293 = vunpack.c.l.b16 %v30
    %v1294 = vunpack.c.l.b16 %v31
    %v1295 = vunpack.c.l.b16 %v32
    %v1296 = vunpack.c.l.b16 %v33
    %v1297 = vunpack.c.l.b16 %v34
    %v1298 = vunpack.c.l.b16 %v35
    %v1299 = vunpack.c.l.b16 %v36
    %v1300 = vunpack.c.l.b16 %v37
    %v1301 = vunpack.c.l.b16 %v38
    %v1302 = vunpack.c.l.b16 %v39
    %v1303 = vunpack.c.l.b16 %v40
    %v1304 = vunpack.c.l.b16 %v41
    %v1305 = vunpack.c.l.b16 %v42
    %v1306 = vunpack.c.l.b16 %v43
    %v1307 = vunpack.c.l.b16 %v44
    %v1308 = vunpack.c.l.b16 %v45
    %v1309 = vunpack.c.l.b16 %v46
    %v1310 = vunpack.c.l.b16 %v47
    %v1311 = vunpack.c.l.b16 %v48
    %v1312 = vunpack.c.l.b16 %v49
    %v1313 = vunpack.c.l.b16 %v50
    %v1314 = vunpack.c.l.b16 %v51
    %v1315 = vunpack.c.l.b16 %v52
    %v1316 = vunpack.c.l.b16 %v53
    %v1317 = vunpack.c.l.b16 %v54
    %v1318 = vunpack.c.l.b16 %v55
    %v1319 = vunpack.c.l.b16 %v56
    %v1320 = vunpack.c.l.b16 %v57
    %v1321 = vunpack.c.l.b16 %v58
    %v1322 = vunpack.c.l.b16 %v59
    %v1323 = vunpack.c.l.b16 %v60
    %v1324 = vunpack.c.l.b16 %v61
    %v1325 = vunpack.c.l.b16 %v62
    %v1326 = vunpack.c.l.b16 %v63
    %v1327 = vunpack.c.l.b16 %v64
    %v1328 = vunpack.c.l.b16 %v65
    %v1329 = vunpack.c.l.b16 %v66
    %v1330 = vunpack.c.l.b16 %v67
    %v1331 = vunpack.c.l.b16 %v68
    %v1332 = vunpack.c.l.b16 %v69
    %v1333 = vunpack.c.l.b16 %v70
    %v1334 = vunpack.c.l.b16 %v71
    %v1335 = vunpack.c.l.b16 %v72
    %v1336 = vunpack.c.l.b16 %v73
    %v1337 = vunpack.c.l.b16 %v74
    %v1338 = vunpack.c.l.b16 %v75
    %v1339 = vunpack.c.l.b16 %v76
    %v1340 = vunpack.c.l.b16 %v77
    %v1341 = vunpack.c.l.b16 %v78
    %v1342 = vunpack.c.l.b16 %v79
    %v1343 = vunpack.c.l.b16 %v80
    %v1344 = vunpack.c.l.b16 %v81
    %v1345 = vunpack.c.l.b16 %v82
    %v1346 = vunpack.c.l.b16 %v83
    %v1347 = vunpack.c.l.b16 %v84
    %v1348 = vunpack.c.l.b16 %v85
    %v1349 = vunpack.c.l.b16 %v86
    %v1350 = vunpack.c.l.b16 %v87
    %v1351 = vunpack.c.l.b16 %v88
    %v1352 = vunpack.c.l.b16 %v89
    %v1353 = vunpack.c.l.b16 %v90
    %v1354 = vunpack.c.l.b16 %v91
    %v1355 = vunpack.c.l.b16 %v92
    %v1356 = vunpack.c.l.b16 %v93
    %v1357 = vunpack.c.l.b16 %v94
    %v1358 = vunpack.c.l.b16 %v95
    %v1359 = vunpack.c.l.b16 %v96
    %v1360 = vunpack.c.l.b16 %v97
    %v1361 = vunpack.c.l.b16 %v98
    %v1362 = vunpack.c.l.b16 %v99
    %v1363 = vunpack.c.l.b16 %v100
    %v1364 = vunpack.c.l.b16 %v101
    %v1365 = vunpack.c.l.b16 %v102
    %v1366 = vunpack.c.l.b16 %v103
    %v1367 = vunpack.c.l.b16 %v104
    %v1368 = vunpack.c.l.b16 %v105
    %v1369 = vunpack.c.l.b16 %v106
    %v1370 = vunpack.c.l.b16 %v107
    %v1371 = vunpack.c.l.b16 %v108
    %v1372 = vunpack.c.l.b16 %v109
    %v1373 = vunpack.c.l.b16 %v110
    %v1374 = vunpack.c.l.b16 %v111
    %v1375 = vunpack.c.l.b16 %v112
    %v1376 = vunpack.c.l.b16 %v113
    %v1377 = vunpack.c.l.b16 %v114
    %v1378 = vunpack.c.l.b16 %v115
    %v1379 = vunpack.c.l.b16 %v116
    %v1380 = vunpack.c.l.b16 %v117
    %v1381 = vunpack.c.l.b16 %v118
    %v1382 = vunpack.c.l.b16 %v119
    %v1383 = vunpack.c.l.b16 %v120
    %v1384 = vunpack.c.l.b16 %v121
    %v1385 = vunpack.c.l.b16 %v122
    %v1386 = vunpack.c.l.b16 %v123
    %v1387 = vunpack.c.l.b16 %v124
    %v1388 = vunpack.c.l.b16 %v125
    %v1389 = vunpack.c.l.b16 %v126
    %v1390 = vunpack.c.l.b16 %v127
    %v1391 = vunpack.c.l.b16 %v128
    %v1392 = vunpack.c.l.b16 %v129
    %v1393 = vunpack.c.l.b16 %v130
    %v1394 = vunpack.c.l.b16 %v131
    %v1395 = vunpack.c.l.b16 %v132
    %v1396 = vunpack.c.l.b16 %v133
    %v1397 = vunpack.c.l.b16 %v134
    %v1398 = vunpack.c.l.b16 %v135
    %v1399 = vunpack.c.l.b16 %v136
    %v1400 = vunpack.c.l.b16 %v137
    %v1401 = vunpack.c.l.b16 %v138
    %v1402 = vunpack.c.l.b16 %v139
    %v1403 = vunpack.c.l.b16 %v140
    %v1404 = vunpack.c.l.b16 %v141
    %v1405 = vunpack.c.l.b16 %v142
    %v1406 = vunpack.c.l.b16 %v143
    %v1407 = vunpack.c.l.b16 %v144
    %v1408 = vunpack.c.l.b16 %v145
    %v1409 = vunpack.c.l.b16 %v146
    %v1410 = vunpack.c.l.b16 %v147
    %v1411 = vunpack.c.l.b16 %v148
    %v1412 = vunpack.c.l.b16 %v149
    %v1413 = vunpack.c.l.b16 %v150
    %v1414 = vunpack.c.l.b16 %v151
    %v1415 = vunpack.c.l.b16 %v152
    %v1416 = vunpack.c.l.b16 %v153
    %v1417 = vunpack.c.l.b16 %v154
    %v1418 = vunpack.c.l.b16 %v155
    %v1419 = vunpack.c.l.b16 %v156
    %v1420 = vunpack.c.l.b16 %v157
    %v1421 = vunpack.c.l.b16 %v158
    %v1422 = vunpack.c.l.b16 %v159
    %v1423 = vunpack.c.l.b16 %v160
    %v1424 = vunpack.c.l.b16 %v161
    %v1425 = vunpack.c.l.b16 %v162
    %v1426 = vunpack.c.l.b16 %v163
    %v1427 = vunpack.c.l.b16 %v164
    %v1428 = vunpack.c.l.b16 %v165
    %v1429 = vunpack.c.l.b16 %v166
    %v1430 = vunpack.c.l.b16 %v167
    %v1431 = vunpack.c.l.b16 %v168
    %v1432 = vunpack.c.l.b16 %v169
    %v1433 = vunpack.c.l.b16 %v170
    %v1434 = vunpack.c.l.b16 %v171
    %v1435 = vunpack.c.l.b16 %v172
    %v1436 = vunpack.c.l.b16 %v173
    %v1437 = vunpack.c.l.b16 %v174
    %v1438 = vunpack.c.l.b16 %v175
    %v1439 = vunpack.c.l.b16 %v176
    %v1440 = vunpack.c.l.b16 %v177
    %v1441 = vunpack.c.l.b16 %v178
    %v1442 = vunpack.c.l.b16 %v179
    %v1443 = vunpack.c.l.b16 %v180
    %v1444 = vunpack.c.l.b16 %v181
    %v1445 = vunpack.c.l.b16 %v182
    %v1446 = vunpack.c.l.b16 %v183
    %v1447 = vunpack.c.l.b16 %v184
    %v1448 = vunpack.c.l.b16 %v185
    %v1449 = vunpack.c.l.b16 %v186
    %v1450 = vunpack.c.l.b16 %v187
    %v1451 = vunpack.c.l.b16 %v188
    %v1452 = vunpack.c.l.b16 %v189
    %v1453 = vunpack.c.l.b16 %v190
    %v1454 = vunpack.c.l.b16 %v191
    %v1455 = vunpack.c.l.b16 %v192
    %v1456 = vunpack.c.l.b16 %v193
    %v1457 = vunpack.c.l.b16 %v194
    %v1458 = vunpack.c.l.b16 %v195
    %v1459 = vunpack.c.l.b16 %v196
    %v1460 = vunpack.c.l.b16 %v197
    %v1461 = vunpack.c.l.b16 %v198
    %v1462 = vunpack.c.l.b16 %v199
    %v1463 = vunpack.c.l.b16 %v200
    %v1464 = vunpack.c.l.b16 %v201
    %v1465 = vunpack.c.l.b16 %v202
    %v1466 = vunpack.c.l.b16 %v203
    %v1467 = vunpack.c.l.b16 %v204
    %v1468 = vunpack.c.l.b16 %v205
    %v1469 = vunpack.c.l.b16 %v206
    %v1470 = vunpack.c.l.b16 %v207
    %v1471 = vunpack.c.l.b16 %v208
    %v1472 = vunpack.c.l.b16 %v209
    %v1473 = vunpack.c.l.b16 %v210
    %v1474 = vunpack.c.l.b16 %v211
    %v1475 = vunpack.c.l.b16 %v212
    %v1476 = vunpack.c.l.b16 %v213
    %v1477 = vunpack.c.l.b16 %v214
    %v1478 = vunpack.c.l.b16 %v215
    %v1479 = vunpack.c.l.b16 %v216
    %v1480 = vunpack.c.l.b16 %v217
    %v1481 = vunpack.c.l.b16 %v218
    %v1482 = vunpack.c.l.b16 %v219
    %v1483 = vunpack.c.l.b16 %v220
    %v1484 = vunpack.c.l.b16 %v221
    %v1485 = vunpack.c.l.b16 %v222
    %v1486 = vunpack.c.l.b16 %v223
    %v1487 = vunpack.c.l.b16 %v224
    %v1488 = vunpack.c.l.b16 %v225
    %v1489 = vunpack.c.l.b16 %v226
    %v1490 = vunpack.c.l.b16 %v227
    %v1491 = vunpack.c.l.b16 %v228
    %v1492 = vunpack.c.l.b16 %v229
    %v1493 = vunpack.c.l.b16 %v230
    %v1494 = vunpack.c.l.b16 %v231
    %v1495 = vunpack.c.l.b16 %v232
    %v1496 = vunpack.c.l.b16 %v233
    %v1497 = vunpack.c.l.b16 %v234
    %v1498 = vunpack.c.l.b16 %v235
    %v1499 = vunpack.c.l.b16 %v236
    %v1500 = vunpack.c.l.b16 %v237
    %v1501 = vunpack.c.l.b16 %v238
    %v1502 = vunpack.c.l.b16 %v239
    %v1503 = vunpack.c.l.b16 %v240
    %v1504 = vunpack.c.l.b16 %v241
    %v1505 = vunpack.c.l.b16 %v242
    %v1506 = vunpack.c.l.b16 %v243
    %v1507 = vunpack.c.l.b16 %v244
    %v1508 = vunpack.c.l.b16 %v245
    %v1509 = vunpack.c.l.b16 %v246
    %v1510 = vunpack.c.l.b16 %v247
    %v1511 = vunpack.c.l.b16 %v248
    %v1512 = vunpack.c.l.b16 %v249
    %v1513 = vunpack.c.l.b16 %v250
    %v1514 = vunpack.c.l.b16 %v251
    %v1515 = vunpack.c.l.b16 %v252
    %v1516 = vunpack.c.l.b16 %v253
    %v1517 = vunpack.c.l.b16 %v254
    %v1518 = vunpack.c.l.b16 %v255
    %v1519 = vunpack.c.l.b16 %v256
    %v1520 = vunpack.c.l.b16 %v257
    %v1521 = vunpack.c.l.b16 %v258
    %v1522 = vunpack.c.l.b16 %v259
    %v1523 = vunpack.c.l.b16 %v260
    %v1524 = vunpack.c.l.b16 %v261
    %v1525 = vunpack.c.l.b16 %v262
    %v1526 = vunpack.c.l.b16 %v263
    %v1527 = vunpack.c.l.b16 %v264
    %v1528 = vunpack.c.l.b16 %v265
    %v1529 = vunpack.c.l.b16 %v266
    %v1530 = vunpack.c.l.b16 %v267
    %v1531 = vunpack.c.l.b16 %v268
    %v1532 = vunpack.c.l.b16 %v269
    %v1533 = vunpack.c.l.b16 %v270
    %v1534 = vunpack.c.l.b16 %v271
    %v1535 = vunpack.c.l.b16 %v272
    %v1536 = vunpack.c.l.b16 %v273
    %v1537 = vunpack.c.l.b16 %v274
    %v1538 = vunpack.c.l.b16 %v275
    %v1539 = vunpack.c.l.b16 %v276
    %v1540 = vunpack.c.l.b16 %v277
    %v1541 = vunpack.c.l.b16 %v278
    %v1542 = vunpack.c.l.b16 %v279
    %v1543 = vunpack.c.l.b16 %v280
    %v1544 = vunpack.c.l.b16 %v281
    %v1545 = vunpack.c.l.b16 %v282
    %v1546 = vunpack.c.l.b16 %v283
    %v1547 = vunpack.c.l.b16 %v284
    %v1548 = vunpack.c.l.b16 %v285
    %v1549 = vunpack.c.l.b16 %v286
    %v1550 = vunpack.c.l.b16 %v287
    %v1551 = vunpack.c.l.b16 %v288
    %v1552 = vunpack.c.l.b16 %v289
    %v1553 = vunpack.c.l.b16 %v290
    %v1554 = vunpack.c.l.b16 %v291
    %v1555 = vunpack.c.l.b16 %v292
    %v1556 = vunpack.c.l.b16 %v293
    %v1557 = vunpack.c.l.b16 %v294
    %v1558 = vunpack.c.l.b16 %v295
    %v1559 = vunpack.c.l.b16 %v296
    %v1560 = vunpack.c.l.b16 %v297
    %v1561 = vunpack.c.l.b16 %v298
    %v1562 = vunpack.c.l.b16 %v299
    %v1563 = vunpack.c.l.b16 %v300
    %v1564 = vunpack.c.l.b16 %v301
    %v1565 = vunpack.c.l.b16 %v302
    %v1566 = vunpack.c.l.b16 %v303
    %v1567 = vunpack.c.l.b16 %v304
    %v1568 = vunpack.c.l.b16 %v305
    %v1569 = vunpack.c.l.b16 %v306
    %v1570 = vunpack.c.l.b16 %v307
    %v1571 = vunpack.c.l.b16 %v308
    %v1572 = vunpack.c.l.b16 %v309
    %v1573 = vunpack.c.l.b16 %v310
    %v1574 = vunpack.c.l.b16 %v311
    %v1575 = vunpack.c.l.b16 %v312
    %v1576 = vunpack.c.l.b16 %v313
    %v1577 = vunpack.c.l.b16 %v314
    %v1578 = vunpack.c.l.b16 %v315
    %v1579 = vunpack.c.l.b16 %v316
    %v1580 = vunpack.c.l.b16 %v317
    %v1581 = vunpack.c.l.b16 %v318
    %v1582 = vunpack.c.l.b16 %v319
    %v1583 = vunpack.c.l.b16 %v320
    %v1584 = vunpack.c.l.b16 %v321
    %v1585 = vunpack.c.l.b16 %v322
    %v1586 = vunpack.c.l.b16 %v323
    %v1587 = vunpack.c.l.b16 %v324
    %v1588 = vunpack.c.l.b16 %v325
    %v1589 = vunpack.c.l.b16 %v326
    %v1590 = vunpack.c.l.b16 %v327
    %v1591 = vunpack.c.l.b16 %v328
    %v1592 = vunpack.c.l.b16 %v329
    %v1593 = vunpack.c.l.b16 %v330
    %v1594 = vunpack.c.l.b16 %v331
    %v1595 = vunpack.c.l.b16 %v332
    %v1596 = vunpack.c.l.b16 %v333
    %v1597 = vunpack.c.l.b16 %v334
    %v1598 = vunpack.c.l.b16 %v335
    %v1599 = vunpack.c.l.b16 %v336
    %v1600 = vunpack.c.l.b16 %v337
    %v1601 = vunpack.c.l.b16 %v338
    %v1602 = vunpack.c.l.b16 %v339
    %v1603 = vunpack.c.l.b16 %v340
    %v1604 = vunpack.c.l.b16 %v341
    %v1605 = vunpack.c.l.b16 %v342
    %v1606 = vunpack.c.l.b16 %v343
    %v1607 = vunpack.c.l.b16 %v344
    %v1608 = vunpack.c.l.b16 %v345
    %v1609 = vunpack.c.l.b16 %v346
    %v1610 = vunpack.c.l.b16 %v347
    %v1611 = vunpack.c.l.b16 %v348
    %v1612 = vunpack.c.l.b16 %v349
    %v1613 = vunpack.c.l.b16 %v350
    %v1614 = vunpack.c.l.b16 %v351
    %v1615 = vunpack.c.l.b16 %v352
    %v1616 = vunpack.c.l.b16 %v353
    %v1617 = vunpack.c.l.b16 %v354
    %v1618 = vunpack.c.l.b16 %v355
    %v1619 = vunpack.c.l.b16 %v356
    %v1620 = vunpack.c.l.b16 %v357
    %v1621 = vunpack.c.l.b16 %v358
    %v1622 = vunpack.c.l.b16 %v359
    %v1623 = vunpack.c.l.b16 %v360
    %v1624 = vunpack.c.l.b16 %v361
    %v1625 = vunpack.c.l.b16 %v362
    %v1626 = vunpack.c.l.b16 %v363
    %v1627 = vunpack.c.l.b16 %v364
    %v1628 = vunpack.c.l.b16 %v365
    %v1629 = vunpack.c.l.b16 %v366
    %v1630 = vunpack.c.l.b16 %v367
    %v1631 = vunpack.c.l.b16 %v368
    %v1632 = vunpack.c.l.b16 %v369
    %v1633 = vunpack.c.l.b16 %v370
    %v1634 = vunpack.c.l.b16 %v371
    %v1635 = vunpack.c.l.b16 %v372
    %v1636 = vunpack.c.l.b16 %v373
    %v1637 = vunpack.c.l.b16 %v374
    %v1638 = vunpack.c.l.b16 %v375
    %v1639 = vunpack.c.l.b16 %v376
    %v1640 = vunpack.c.l.b16 %v377
    %v1641 = vunpack.c.l.b16 %v378
    %v1642 = vunpack.c.l.b16 %v379
    %v1643 = vunpack.c.l.b16 %v380
    %v1644 = vunpack.c.l.b16 %v381
    %v1645 = vunpack.c.l.b16 %v382
    %v1646 = vunpack.c.l.b16 %v383
    %v1647 = vunpack.c.l.b16 %v384
    %v1648 = vunpack.c.l.b16 %v385
    %v1649 = vunpack.c.l.b16 %v386
    %v1650 = vunpack.c.l.b16 %v387
    %v1651 = vunpack.c.l.b16 %v388
    %v1652 = vunpack.c.l.b16 %v389
    %v1653 = vunpack.c.l.b16 %v390
    %v1654 = vunpack.c.l.b16 %v391
    %v1655 = vunpack.c.l.b16 %v392
    %v1656 = vunpack.c.l.b16 %v393
    %v1657 = vunpack.c.l.b16 %v394
    %v1658 = vunpack.c.l.b16 %v395
    %v1659 = vunpack.c.l.b16 %v396
    %v1660 = vunpack.c.l.b16 %v397
    %v1661 = vunpack.c.l.b16 %v398
    %v1662 = vunpack.c.l.b16 %v399
    %v1663 = vunpack.c.l.b16 %v400
    %v1664 = vunpack.c.l.b16 %v401
    %v1665 = vunpack.c.l.b16 %v402
    %v1666 = vunpack.c.l.b16 %v403
    %v1667 = vunpack.c.l.b16 %v404
    %v1668 = vunpack.c.l.b16 %v405
    %v1669 = vunpack.c.l.b16 %v406
    %v1670 = vunpack.c.l.b16 %v407
    %v1671 = vunpack.c.l.b16 %v408
    %v1672 = vunpack.c.l.b16 %v409
    %v1673 = vunpack.c.l.b16 %v410
    %v1674 = vunpack.c.l.b16 %v411
    %v1675 = vunpack.c.l.b16 %v412
    %v1676 = vunpack.c.l.b16 %v413
    %v1677 = vunpack.c.l.b16 %v414
    %v1678 = vunpack.c.l.b16 %v415
    %v1679 = vunpack.c.l.b16 %v416
    %v1680 = vunpack.c.l.b16 %v417
    %v1681 = vunpack.c.l.b16 %v418
    %v1682 = vunpack.c.l.b16 %v419
    %v1683 = vunpack.c.l.b16 %v420
    %v1684 = vunpack.c.l.b16 %v421
    %v1685 = vunpack.c.l.b16 %v422
    %v1686 = vunpack.c.l.b16 %v423
    %v1687 = vunpack.c.l.b16 %v424
    %v1688 = vunpack.c.l.b16 %v425
    %v1689 = vunpack.c.l.b16 %v426
    %v1690 = vunpack.c.l.b16 %v427
    %v1691 = vunpack.c.l.b16 %v428
    %v1692 = vunpack.c.l.b16 %v429
    %v1693 = vunpack.c.l.b16 %v430
    %v1694 = vunpack.c.l.b16 %v431
    %v1695 = vunpack.c.l.b16 %v432
    %v1696 = vunpack.c.l.b16 %v433
    %v1697 = vunpack.c.l.b16 %v434
    %v1698 = vunpack.c.l.b16 %v435
    %v1699 = vunpack.c.l.b16 %v436
    %v1700 = vunpack.c.l.b16 %v437
    %v1701 = vunpack.c.l.b16 %v438
    %v1702 = vunpack.c.l.b16 %v439
    %v1703 = vunpack.c.l.b16 %v440
    %v1704 = vunpack.c.l.b16 %v441
    %v1705 = vunpack.c.l.b16 %v442
    %v1706 = vunpack.c.l.b16 %v443
    %v1707 = vunpack.c.l.b16 %v444
    %v1708 = vunpack.c.l.b16 %v445
    %v1709 = vunpack.c.l.b16 %v446
    %v1710 = vunpack.c.l.b16 %v447
    %v1711 = vunpack.c.l.b16 %v448
    %v1712 = vunpack.c.l.b16 %v449
    %v1713 = vunpack.c.l.b16 %v450
    %v1714 = vunpack.c.l.b16 %v451
    %v1715 = vunpack.c.l.b16 %v452
    %v1716 = vunpack.c.l.b16 %v453
    %v1717 = vunpack.c.l.b16 %v454
    %v1718 = vunpack.c.l.b16 %v455
    %v1719 = vunpack.c.l.b16 %v456
    %v1720 = vunpack.c.l.b16 %v457
    %v1721 = vunpack.c.l.b16 %v458
    %v1722 = vunpack.c.l.b16 %v459
    %v1723 = vunpack.c.l.b16 %v460
    %v1724 = vunpack.c.l.b16 %v461
    %v1725 = vunpack.c.l.b16 %v462
    %v1726 = vunpack.c.l.b16 %v463
    %v1727 = vunpack.c.l.b16 %v464
    %v1728 = vunpack.c.l.b16 %v465
    %v1729 = vunpack.c.l.b16 %v466
    %v1730 = vunpack.c.l.b16 %v467
    %v1731 = vunpack.c.l.b16 %v468
    %v1732 = vunpack.c.l.b16 %v469
    %v1733 = vunpack.c.l.b16 %v470
    %v1734 = vunpack.c.l.b16 %v471
    %v1735 = vunpack.c.l.b16 %v472
    %v1736 = vunpack.c.l.b16 %v473
    %v1737 = vunpack.c.l.b16 %v474
    %v1738 = vunpack.c.l.b16 %v475
    %v1739 = vunpack.c.l.b16 %v476
    %v1740 = vunpack.c.l.b16 %v477
    %v1741 = vunpack.c.l.b16 %v478
    %v1742 = vunpack.c.l.b16 %v479
    %v1743 = vunpack.c.l.b16 %v480
    %v1744 = vunpack.c.l.b16 %v481
    %v1745 = vunpack.c.l.b16 %v482
    %v1746 = vunpack.c.l.b16 %v483
    %v1747 = vunpack.c.l.b16 %v484
    %v1748 = vunpack.c.l.b16 %v485
    %v1749 = vunpack.c.l.b16 %v486
    %v1750 = vunpack.c.l.b16 %v487
    %v1751 = vunpack.c.l.b16 %v488
    %v1752 = vunpack.c.l.b16 %v489
    %v1753 = vunpack.c.l.b16 %v490
    %v1754 = vunpack.c.l.b16 %v491
    %v1755 = vunpack.c.l.b16 %v492
    %v1756 = vunpack.c.l.b16 %v493
    %v1757 = vunpack.c.l.b16 %v494
    %v1758 = vunpack.c.l.b16 %v495
    %v1759 = vunpack.c.l.b16 %v496
    %v1760 = vunpack.c.l.b16 %v497
    %v1761 = vunpack.c.l.b16 %v498
    %v1762 = vunpack.c.l.b16 %v499
    %v1763 = vunpack.c.l.b16 %v500
    %v1764 = vunpack.c.l.b16 %v501
    %v1765 = vunpack.c.l.b16 %v502
    %v1766 = vunpack.c.l.b16 %v503
    %v1767 = vunpack.c.l.b16 %v504
    %v1768 = vunpack.c.l.b16 %v505
    %v1769 = vunpack.c.l.b16 %v506
    %v1770 = vunpack.c.l.b16 %v507
    %v1771 = vunpack.c.l.b16 %v508
    %v1772 = vunpack.c.l.b16 %v509
    %v1773 = vunpack.c.l.b16 %v510
    %v1774 = vunpack.c.l.b16 %v511
    %v1775 = vunpack.c.l.b16 %v512
    %v1776 = vunpack.c.l.b16 %v513
    %v1777 = vunpack.c.l.b16 %v514
    %v1778 = vunpack.c.l.b16 %v515
    %v1779 = vunpack.c.l.b16 %v516
    %v1780 = vunpack.c.l.b16 %v517
    %v1781 = vunpack.c.l.b16 %v518
    %v1782 = vunpack.c.l.b16 %v519
    %v1783 = vunpack.c.l.b16 %v520
    %v1784 = vunpack.c.l.b16 %v521
    %v1785 = vunpack.c.l.b16 %v522
    %v1786 = vunpack.c.l.b16 %v523
    %v1787 = vunpack.c.l.b16 %v524
    %v1788 = vunpack.c.l.b16 %v525
    %v1789 = vunpack.c.l.b16 %v526
    %v1790 = vunpack.c.l.b16 %v527
    %v1791 = vunpack.c.l.b16 %v528
    %v1792 = vunpack.c.l.b16 %v529
    %v1793 = vunpack.c.l.b16 %v530
    %v1794 = vunpack.c.l.b16 %v531
    %v1795 = vpack.c.b16 %v1284, %v1283
    %v1796 = vpack.c.b16 %v1286, %v1285
    %v1797 = vpack.c.b16 %v1288, %v1287
    %v1798 = vpack.c.b16 %v1290, %v1289
    %v1799 = vpack.c.b16 %v1292, %v1291
    %v1800 = vpack.c.b16 %v1294, %v1293
    %v1801 = vpack.c.b16 %v1296, %v1295
    %v1802 = vpack.c.b16 %v1298, %v1297
    %v1803 = vpack.c.b16 %v1300, %v1299
    %v1804 = vpack.c.b16 %v1302, %v1301
    %v1805 = vpack.c.b16 %v1304, %v1303
    %v1806 = vpack.c.b16 %v1306, %v1305
    %v1807 = vpack.c.b16 %v1308, %v1307
    %v1808 = vpack.c.b16 %v1310, %v1309
    %v1809 = vpack.c.b16 %v1312, %v1311
    %v1810 = vpack.c.b16 %v1314, %v1313
    %v1811 = vpack.c.b16 %v1316, %v1315
    %v1812 = vpack.c.b16 %v1318, %v1317
    %v1813 = vpack.c.b16 %v1320, %v1319
    %v1814 = vpack.c.b16 %v1322, %v1321
    %v1815 = vpack.c.b16 %v1324, %v1323
    %v1816 = vpack.c.b16 %v1326, %v1325
    %v1817 = vpack.c.b16 %v1328, %v1327
    %v1818 = vpack.c.b16 %v1330, %v1329
    %v1819 = vpack.c.b16 %v1332, %v1331
    %v1820 = vpack.c.b16 %v1334, %v1333
    %v1821 = vpack.c.b16 %v1336, %v1335
    %v1822 = vpack.c.b16 %v1338, %v1337
    %v1823 = vpack.c.b16 %v1340, %v1339
    %v1824 = vpack.c.b16 %v1342, %v1341
    %v1825 = vpack.c.b16 %v1344, %v1343
    %v1826 = vpack.c.b16 %v1346, %v1345
    %v1827 = vpack.c.b16 %v1348, %v1347
    %v1828 = vpack.c.b16 %v1350, %v1349
    %v1829 = vpack.c.b16 %v1352, %v1351
    %v1830 = vpack.c.b16 %v1354, %v1353
    %v1831 = vpack.c.b16 %v1356, %v1355
    %v1832 = vpack.c.b16 %v1358, %v1357
    %v1833 = vpack.c.b16 %v1360, %v1359
    %v1834 = vpack.c.b16 %v1362, %v1361
    %v1835 = vpack.c.b16 %v1364, %v1363
    %v1836 = vpack.c.b16 %v1366, %v1365
    %v1837 = vpack.c.b16 %v1368, %v1367
    %v1838 = vpack.c.b16 %v1370, %v1369
    %v1839 = vpack.c.b16 %v1372, %v1371
    %v1840 = vpack.c.b16 %v1374, %v1373
    %v1841 = vpack.c.b16 %v1376, %v1375
    %v1842 = vpack.c.b16 %v1378, %v1377
    %v1843 = vpack.c.b16 %v1380, %v1379
    %v1844 = vpack.c.b16 %v1382, %v1381
    %v1845 = vpack.c.b16 %v1384, %v1383
    %v1846 = vpack.c.b16 %v1386, %v1385
    %v1847 = vpack.c.b16 %v1388, %v1387
    %v1848 = vpack.c.b16 %v1390, %v1389
    %v1849 = vpack.c.b16 %v1392, %v1391
    %v1850 = vpack.c.b16 %v1394, %v1393
    %v1851 = vpack.c.b16 %v1396, %v1395
    %v1852 = vpack.c.b16 %v1398, %v1397
    %v1853 = vpack.c.b16 %v1400, %v1399
    %v1854 = vpack.c.b16 %v1402, %v1401
    %v1855 = vpack.c.b16 %v1404, %v1403
    %v1856 = vpack.c.b16 %v1406, %v1405
    %v1857 = vpack.c.b16 %v1408, %v1407
    %v1858 = vpack.c.b16 %v1410, %v1409
    %v1859 = vpack.c.b16 %v1412, %v1411
    %v1860 = vpack.c.b16 %v1414, %v1413
    %v1861 = vpack.c.b16 %v1416, %v1415
    %v1862 = vpack.c.b16 %v1418, %v1417
    %v1863 = vpack.c.b16 %v1420, %v1419
    %v1864 = vpack.c.b16 %v1422, %v1421
    %v1865 = vpack.c.b16 %v1424, %v1423
    %v1866 = vpack.c.b16 %v1426, %v1425
    %v1867 = vpack.c.b16 %v1428, %v1427
    %v1868 = vpack.c.b16 %v1430, %v1429
    %v1869 = vpack.c.b16 %v1432, %v1431
    %v1870 = vpack.c.b16 %v1434, %v1433
    %v1871 = vpack.c.b16 %v1436, %v1435
    %v1872 = vpack.c.b16 %v1438, %v1437
    %v1873 = vpack.c.b16 %v1440, %v1439
    %v1874 = vpack.c.b16 %v1442, %v1441
    %v1875 = vpack.c.b16 %v1444, %v1443
    %v1876 = vpack.c.b16 %v1446, %v1445
    %v1877 = vpack.c.b16 %v1448, %v1447
    %v1878 = vpack.c.b16 %v1450, %v1449
    %v1879 = vpack.c.b16 %v1452, %v1451
    %v1880 = vpack.c.b16 %v1454, %v1453
    %v1881 = vpack.c.b16 %v1456, %v1455
    %v1882 = vpack.c.b16 %v1458, %v1457
    %v1883 = vpack.c.b16 %v1460, %v1459
    %v1884 = vpack.c.b16 %v1462, %v1461
    %v1885 = vpack.c.b16 %v1464, %v1463
    %v1886 = vpack.c.b16 %v1466, %v1465
    %v1887 = vpack.c.b16 %v1468, %v1467
    %v1888 = vpack.c.b16 %v1470, %v1469
    %v1889 = vpack.c.b16 %v1472, %v1471
    %v1890 = vpack.c.b16 %v1474, %v1473
    %v1891 = vpack.c.b16 %v1476, %v1475
    %v1892 = vpack.c.b16 %v1478, %v1477
    %v1893 = vpack.c.b16 %v1480, %v1479
    %v1894 = vpack.c.b16 %v1482, %v1481
    %v1895 = vpack.c.b16 %v1484, %v1483
    %v1896 = vpack.c.b16 %v1486, %v1485
    %v1897 = vpack.c.b16 %v1488, %v1487
    %v1898 = vpack.c.b16 %v1490, %v1489
    %v1899 = vpack.c.b16 %v1492, %v1491
    %v1900 = vpack.c.b16 %v1494, %v1493
    %v1901 = vpack.c.b16 %v1496, %v1495
    %v1902 = vpack.c.b16 %v1498, %v1497
    %v1903 = vpack.c.b16 %v1500, %v1499
    %v1904 = vpack.c.b16 %v1502, %v1501
    %v1905 = vpack.c.b16 %v1504, %v1503
    %v1906 = vpack.c.b16 %v1506, %v1505
    %v1907 = vpack.c.b16 %v1508, %v1507
    %v1908 = vpack.c.b16 %v1510, %v1509
    %v1909 = vpack.c.b16 %v1512, %v1511
    %v1910 = vpack.c.b16 %v1514, %v1513
    %v1911 = vpack.c.b16 %v1516, %v1515
    %v1912 = vpack.c.b16 %v1518, %v1517
    %v1913 = vpack.c.b16 %v1520, %v1519
    %v1914 = vpack.c.b16 %v1522, %v1521
    %v1915 = vpack.c.b16 %v1524, %v1523
    %v1916 = vpack.c.b16 %v1526, %v1525
    %v1917 = vpack.c.b16 %v1528, %v1527
    %v1918 = vpack.c.b16 %v1530, %v1529
    %v1919 = vpack.c.b16 %v1532, %v1531
    %v1920 = vpack.c.b16 %v1534, %v1533
    %v1921 = vpack.c.b16 %v1536, %v1535
    %v1922 = vpack.c.b16 %v1538, %v1537
    %v1923 = vpack.c.b16 %v1540, %v1539
    %v1924 = vpack.c.b16 %v1542, %v1541
    %v1925 = vpack.c.b16 %v1544, %v1543
    %v1926 = vpack.c.b16 %v1546, %v1545
    %v1927 = vpack.c.b16 %v1548, %v1547
    %v1928 = vpack.c.b16 %v1550, %v1549
    %v1929 = vpack.c.b16 %v1552, %v1551
    %v1930 = vpack.c.b16 %v1554, %v1553
    %v1931 = vpack.c.b16 %v1556, %v1555
    %v1932 = vpack.c.b16 %v1558, %v1557
    %v1933 = vpack.c.b16 %v1560, %v1559
    %v1934 = vpack.c.b16 %v1562, %v1561
    %v1935 = vpack.c.b16 %v1564, %v1563
    %v1936 = vpack.c.b16 %v1566, %v1565
    %v1937 = vpack.c.b16 %v1568, %v1567
    %v1938 = vpack.c.b16 %v1570, %v1569
    %v1939 = vpack.c.b16 %v1572, %v1571
    %v1940 = vpack.c.b16 %v1574, %v1573
    %v1941 = vpack.c.b16 %v1576, %v1575
    %v1942 = vpack.c.b16 %v1578, %v1577
    %v1943 = vpack.c.b16 %v1580, %v1579
    %v1944 = vpack.c.b16 %v1582, %v1581
    %v1945 = vpack.c.b16 %v1584, %v1583
    %v1946 = vpack.c.b16 %v1586, %v1585
    %v1947 = vpack.c.b16 %v1588, %v1587
    %v1948 = vpack.c.b16 %v1590, %v1589
    %v1949 = vpack.c.b16 %v1592, %v1591
    %v1950 = vpack.c.b16 %v1594, %v1593
    %v1951 = vpack.c.b16 %v1596, %v1595
    %v1952 = vpack.c.b16 %v1598, %v1597
    %v1953 = vpack.c.b16 %v1600, %v1599
    %v1954 = vpack.c.b16 %v1602, %v1601
    %v1955 = vpack.c.b16 %v1604, %v1603
    %v1956 = vpack.c.b16 %v1606, %v1605
    %v1957 = vpack.c.b16 %v1608, %v1607
    %v1958 = vpack.c.b16 %v1610, %v1609
    %v1959 = vpack.c.b16 %v1612, %v1611
    %v1960 = vpack.c.b16 %v1614, %v1613
    %v1961 = vpack.c.b16 %v1616, %v1615
    %v1962 = vpack.c.b16 %v1618, %v1617
    %v1963 = vpack.c.b16 %v1620, %v1619
    %v1964 = vpack.c.b16 %v1622, %v1621
    %v1965 = vpack.c.b16 %v1624, %v1623
    %v1966 = vpack.c.b16 %v1626, %v1625
    %v1967 = vpack.c.b16 %v1628, %v1627
    %v1968 = vpack.c.b16 %v1630, %v1629
    %v1969 = vpack.c.b16 %v1632, %v1631
    %v1970 = vpack.c.b16 %v1634, %v1633
    %v1971 = vpack.c.b16 %v1636, %v1635
    %v1972 = vpack.c.b16 %v1638, %v1637
    %v1973 = vpack.c.b16 %v1640, %v1639
    %v1974 = vpack.c.b16 %v1642, %v1641
    %v1975 = vpack.c.b16 %v1644, %v1643
    %v1976 = vpack.c.b16 %v1646, %v1645
    %v1977 = vpack.c.b16 %v1648, %v1647
    %v1978 = vpack.c.b16 %v1650, %v1649
    %v1979 = vpack.c.b16 %v1652, %v1651
    %v1980 = vpack.c.b16 %v1654, %v1653
    %v1981 = vpack.c.b16 %v1656, %v1655
    %v1982 = vpack.c.b16 %v1658, %v1657
    %v1983 = vpack.c.b16 %v1660, %v1659
    %v1984 = vpack.c.b16 %v1662, %v1661
    %v1985 = vpack.c.b16 %v1664, %v1663
    %v1986 = vpack.c.b16 %v1666, %v1665
    %v1987 = vpack.c.b16 %v1668, %v1667
    %v1988 = vpack.c.b16 %v1670, %v1669
    %v1989 = vpack.c.b16 %v1672, %v1671
    %v1990 = vpack.c.b16 %v1674, %v1673
    %v1991 = vpack.c.b16 %v1676, %v1675
    %v1992 = vpack.c.b16 %v1678, %v1677
    %v1993 = vpack.c.b16 %v1680, %v1679
    %v1994 = vpack.c.b16 %v1682, %v1681
    %v1995 = vpack.c.b16 %v1684, %v1683
    %v1996 = vpack.c.b16 %v1686, %v1685
    %v1997 = vpack.c.b16 %v1688, %v1687
    %v1998 = vpack.c.b16 %v1690, %v1689
    %v1999 = vpack.c.b16 %v1692, %v1691
    %v2000 = vpack.c.b16 %v1694, %v1693
    %v2001 = vpack.c.b16 %v1696, %v1695
    %v2002 = vpack.c.b16 %v1698, %v1697
    %v2003 = vpack.c.b16 %v1700, %v1699
    %v2004 = vpack.c.b16 %v1702, %v1701
    %v2005 = vpack.c.b16 %v1704, %v1703
    %v2006 = vpack.c.b16 %v1706, %v1705
    %v2007 = vpack.c.b16 %v1708, %v1707
    %v2008 = vpack.c.b16 %v1710, %v1709
    %v2009 = vpack.c.b16 %v1712, %v1711
    %v2010 = vpack.c.b16 %v1714, %v1713
    %v2011 = vpack.c.b16 %v1716, %v1715
    %v2012 = vpack.c.b16 %v1718, %v1717
    %v2013 = vpack.c.b16 %v1720, %v1719
    %v2014 = vpack.c.b16 %v1722, %v1721
    %v2015 = vpack.c.b16 %v1724, %v1723
    %v2016 = vpack.c.b16 %v1726, %v1725
    %v2017 = vpack.c.b16 %v1728, %v1727
    %v2018 = vpack.c.b16 %v1730, %v1729
    %v2019 = vpack.c.b16 %v1732, %v1731
    %v2020 = vpack.c.b16 %v1734, %v1733
    %v2021 = vpack.c.b16 %v1736, %v1735
    %v2022 = vpack.c.b16 %v1738, %v1737
    %v2023 = vpack.c.b16 %v1740, %v1739
    %v2024 = vpack.c.b16 %v1742, %v1741
    %v2025 = vpack.c.b16 %v1744, %v1743
    %v2026 = vpack.c.b16 %v1746, %v1745
    %v2027 = vpack.c.b16 %v1748, %v1747
    %v2028 = vpack.c.b16 %v1750, %v1749
    %v2029 = vpack.c.b16 %v1752, %v1751
    %v2030 = vpack.c.b16 %v1754, %v1753
    %v2031 = vpack.c.b16 %v1756, %v1755
    %v2032 = vpack.c.b16 %v1758, %v1757
    %v2033 = vpack.c.b16 %v1760, %v1759
    %v2034 = vpack.c.b16 %v1762, %v1761
    %v2035 = vpack.c.b16 %v1764, %v1763
    %v2036 = vpack.c.b16 %v1766, %v1765
    %v2037 = vpack.c.b16 %v1768, %v1767
    %v2038 = vpack.c.b16 %v1770, %v1769
    %v2039 = vpack.c.b16 %v1772, %v1771
    %v2040 = vpack.c.b16 %v1774, %v1773
    %v2041 = vpack.c.b16 %v1776, %v1775
    %v2042 = vpack.c.b16 %v1778, %v1777
    %v2043 = vpack.c.b16 %v1780, %v1779
    %v2044 = vpack.c.b16 %v1782, %v1781
    %v2045 = vpack.c.b16 %v1784, %v1783
    %v2046 = vpack.c.b16 %v1786, %v1785
    %v2047 = vpack.c.b16 %v1788, %v1787
    %v2048 = vpack.c.b16 %v1790, %v1789
    %v2049 = vpack.c.b16 %v1792, %v1791
    %v2050 = vpack.c.b16 %v1794, %v1793
    %2307 = vmatprep.subr.bf16.mxu0 0
    %2308 = vmatpush1.bf16.msra.mxu0 %v1795
    %2309 = vmatprep.subr.bf16.mxu0 0
    %2310 = vmatpush1.bf16.msra.mxu0 %v1796
    %2311 = vmatprep.subr.bf16.mxu0 0
    %2312 = vmatpush1.bf16.msra.mxu0 %v1797
    %2313 = vmatprep.subr.bf16.mxu0 0
    %2314 = vmatpush1.bf16.msra.mxu0 %v1798
    %2315 = vmatprep.subr.bf16.mxu0 0
    %2316 = vmatpush1.bf16.msra.mxu0 %v1799
    %2317 = vmatprep.subr.bf16.mxu0 0
    %2318 = vmatpush1.bf16.msra.mxu0 %v1800
    %2319 = vmatprep.subr.bf16.mxu0 0
    %2320 = vmatpush1.bf16.msra.mxu0 %v1801
    %2321 = vmatprep.subr.bf16.mxu0 0
    %2322 = vmatpush1.bf16.msra.mxu0 %v1802
    %2323 = vmatprep.subr.bf16.mxu0 0
    %2324 = vmatpush1.bf16.msra.mxu0 %v1803
    %2325 = vmatprep.subr.bf16.mxu0 0
    %2326 = vmatpush1.bf16.msra.mxu0 %v1804
    %2327 = vmatprep.subr.bf16.mxu0 0
    %2328 = vmatpush1.bf16.msra.mxu0 %v1805
    %2329 = vmatprep.subr.bf16.mxu0 0
    %2330 = vmatpush1.bf16.msra.mxu0 %v1806
    %2331 = vmatprep.subr.bf16.mxu0 0
    %2332 = vmatpush1.bf16.msra.mxu0 %v1807
    %2333 = vmatprep.subr.bf16.mxu0 0
    %2334 = vmatpush1.bf16.msra.mxu0 %v1808
    %2335 = vmatprep.subr.bf16.mxu0 0
    %2336 = vmatpush1.bf16.msra.mxu0 %v1809
    %2337 = vmatprep.subr.bf16.mxu0 0
    %2338 = vmatpush1.bf16.msra.mxu0 %v1810
    %2339 = vmatprep.mubr.bf16.mxu0 %v580
    %2340 = vmatmul.mubr.bf16.gmra.mrb[0].mxu0 %v566
    %v2341 = vpop.f32.mrb[0].mxu0
    %v2342 = vadd.f32 %v537, %v2341
    %v2343 = vpop.f32.mrb[0].mxu0
    %v2344 = vpop.f32.mrb[0].mxu0
    %v2345 = vpop.f32.mrb[0].mxu0
    %2346 = vdwg.mxu0
    %2347 = vmatprep.subr.bf16.mxu0 0
    %2348 = vmatpush1.bf16.msra.mxu0 %v1811
    %2349 = vmatprep.subr.bf16.mxu0 0
    %2350 = vmatpush1.bf16.msra.mxu0 %v1812
    %2351 = vmatprep.subr.bf16.mxu0 0
    %2352 = vmatpush1.bf16.msra.mxu0 %v1813
    %2353 = vmatprep.subr.bf16.mxu0 0
    %2354 = vmatpush1.bf16.msra.mxu0 %v1814
    %2355 = vmatprep.subr.bf16.mxu0 0
    %2356 = vmatpush1.bf16.msra.mxu0 %v1815
    %2357 = vmatprep.subr.bf16.mxu0 0
    %2358 = vmatpush1.bf16.msra.mxu0 %v1816
    %2359 = vmatprep.subr.bf16.mxu0 0
    %2360 = vmatpush1.bf16.msra.mxu0 %v1817
    %2361 = vmatprep.subr.bf16.mxu0 0
    %2362 = vmatpush1.bf16.msra.mxu0 %v1818
    %2363 = vmatprep.subr.bf16.mxu0 0
    %2364 = vmatpush1.bf16.msra.mxu0 %v1819
    %2365 = vmatprep.subr.bf16.mxu0 0
    %2366 = vmatpush1.bf16.msra.mxu0 %v1820
    %2367 = vmatprep.subr.bf16.mxu0 0
    %2368 = vmatpush1.bf16.msra.mxu0 %v1821
    %2369 = vmatprep.subr.bf16.mxu0 0
    %2370 = vmatpush1.bf16.msra.mxu0 %v1822
    %2371 = vmatprep.subr.bf16.mxu0 0
    %2372 = vmatpush1.bf16.msra.mxu0 %v1823
    %2373 = vmatprep.subr.bf16.mxu0 0
    %2374 = vmatpush1.bf16.msra.mxu0 %v1824
    %2375 = vmatprep.subr.bf16.mxu0 0
    %2376 = vmatpush1.bf16.msra.mxu0 %v1825
    %2377 = vmatprep.subr.bf16.mxu0 0
    %2378 = vmatpush1.bf16.msra.mxu0 %v1826
    %2379 = vmatprep.mubr.bf16.mxu0 %v590
    %2380 = vmatmul.mubr.bf16.gmra.mrb[0].mxu0 %v588
    %v2381 = vpop.f32.mrb[0].mxu0
    %v2382 = vadd.f32 %v2342, %v2381
    %v2383 = vpop.f32.mrb[0].mxu0
    %v2384 = vpop.f32.mrb[0].mxu0
    %v2385 = vpop.f32.mrb[0].mxu0
    %2386 = vdwg.mxu0
    %2387 = vmatprep.subr.bf16.mxu0 0
    %2388 = vmatpush1.bf16.msra.mxu0 %v1827
    %2389 = vmatprep.subr.bf16.mxu0 0
    %2390 = vmatpush1.bf16.msra.mxu0 %v1828
    %2391 = vmatprep.subr.bf16.mxu0 0
    %2392 = vmatpush1.bf16.msra.mxu0 %v1829
    %2393 = vmatprep.subr.bf16.mxu0 0
    %2394 = vmatpush1.bf16.msra.mxu0 %v1830
    %2395 = vmatprep.subr.bf16.mxu0 0
    %2396 = vmatpush1.bf16.msra.mxu0 %v1831
    %2397 = vmatprep.subr.bf16.mxu0 0
    %2398 = vmatpush1.bf16.msra.mxu0 %v1832
    %2399 = vmatprep.subr.bf16.mxu0 0
    %2400 = vmatpush1.bf16.msra.mxu0 %v1833
    %2401 = vmatprep.subr.bf16.mxu0 0
    %2402 = vmatpush1.bf16.msra.mxu0 %v1834
    %2403 = vmatprep.subr.bf16.mxu0 0
    %2404 = vmatpush1.bf16.msra.mxu0 %v1835
    %2405 = vmatprep.subr.bf16.mxu0 0
    %2406 = vmatpush1.bf16.msra.mxu0 %v1836
    %2407 = vmatprep.subr.bf16.mxu0 0
    %2408 = vmatpush1.bf16.msra.mxu0 %v1837
    %2409 = vmatprep.subr.bf16.mxu0 0
    %2410 = vmatpush1.bf16.msra.mxu0 %v1838
    %2411 = vmatprep.subr.bf16.mxu0 0
    %2412 = vmatpush1.bf16.msra.mxu0 %v1839
    %2413 = vmatprep.subr.bf16.mxu0 0
    %2414 = vmatpush1.bf16.msra.mxu0 %v1840
    %2415 = vmatprep.subr.bf16.mxu0 0
    %2416 = vmatpush1.bf16.msra.mxu0 %v1841
    %2417 = vmatprep.subr.bf16.mxu0 0
    %2418 = vmatpush1.bf16.msra.mxu0 %v1842
    %2419 = vmatprep.mubr.bf16.mxu0 %v587
    %2420 = vmatmul.mubr.bf16.gmra.mrb[0].mxu0 %v573
    %v2421 = vpop.f32.mrb[0].mxu0
    %v2422 = vadd.f32 %v2382, %v2421
    %v2423 = vpop.f32.mrb[0].mxu0
    %v2424 = vpop.f32.mrb[0].mxu0
    %v2425 = vpop.f32.mrb[0].mxu0
    %2426 = vdwg.mxu0
    %2427 = vmatprep.subr.bf16.mxu0 0
    %2428 = vmatpush1.bf16.msra.mxu0 %v1843
    %2429 = vmatprep.subr.bf16.mxu0 0
    %2430 = vmatpush1.bf16.msra.mxu0 %v1844
    %2431 = vmatprep.subr.bf16.mxu0 0
    %2432 = vmatpush1.bf16.msra.mxu0 %v1845
    %2433 = vmatprep.subr.bf16.mxu0 0
    %2434 = vmatpush1.bf16.msra.mxu0 %v1846
    %2435 = vmatprep.subr.bf16.mxu0 0
    %2436 = vmatpush1.bf16.msra.mxu0 %v1847
    %2437 = vmatprep.subr.bf16.mxu0 0
    %2438 = vmatpush1.bf16.msra.mxu0 %v1848
    %2439 = vmatprep.subr.bf16.mxu0 0
    %2440 = vmatpush1.bf16.msra.mxu0 %v1849
    %2441 = vmatprep.subr.bf16.mxu0 0
    %2442 = vmatpush1.bf16.msra.mxu0 %v1850
    %2443 = vmatprep.subr.bf16.mxu0 0
    %2444 = vmatpush1.bf16.msra.mxu0 %v1851
    %2445 = vmatprep.subr.bf16.mxu0 0
    %2446 = vmatpush1.bf16.msra.mxu0 %v1852
    %2447 = vmatprep.subr.bf16.mxu0 0
    %2448 = vmatpush1.bf16.msra.mxu0 %v1853
    %2449 = vmatprep.subr.bf16.mxu0 0
    %2450 = vmatpush1.bf16.msra.mxu0 %v1854
    %2451 = vmatprep.subr.bf16.mxu0 0
    %2452 = vmatpush1.bf16.msra.mxu0 %v1855
    %2453 = vmatprep.subr.bf16.mxu0 0
    %2454 = vmatpush1.bf16.msra.mxu0 %v1856
    %2455 = vmatprep.subr.bf16.mxu0 0
    %2456 = vmatpush1.bf16.msra.mxu0 %v1857
    %2457 = vmatprep.subr.bf16.mxu0 0
    %2458 = vmatpush1.bf16.msra.mxu0 %v1858
    %2459 = vmatprep.mubr.bf16.mxu0 %v591
    %2460 = vmatmul.mubr.bf16.gmra.mrb[0].mxu0 %v589
    %v2461 = vpop.f32.mrb[0].mxu0
    %v2462 = vadd.f32 %v2422, %v2461
    %v2463 = vpop.f32.mrb[0].mxu0
    %v2464 = vpop.f32.mrb[0].mxu0
    %v2465 = vpop.f32.mrb[0].mxu0
    %2466 = vdwg.mxu0
    %2467 = vmatprep.subr.bf16.mxu0 0
    %2468 = vmatpush1.bf16.msra.mxu0 %v1859
    %2469 = vmatprep.subr.bf16.mxu0 0
    %2470 = vmatpush1.bf16.msra.mxu0 %v1860
    %2471 = vmatprep.subr.bf16.mxu0 0
    %2472 = vmatpush1.bf16.msra.mxu0 %v1861
    %2473 = vmatprep.subr.bf16.mxu0 0
    %2474 = vmatpush1.bf16.msra.mxu0 %v1862
    %2475 = vmatprep.subr.bf16.mxu0 0
    %2476 = vmatpush1.bf16.msra.mxu0 %v1863
    %2477 = vmatprep.subr.bf16.mxu0 0
    %2478 = vmatpush1.bf16.msra.mxu0 %v1864
    %2479 = vmatprep.subr.bf16.mxu0 0
    %2480 = vmatpush1.bf16.msra.mxu0 %v1865
    %2481 = vmatprep.subr.bf16.mxu0 0
    %2482 = vmatpush1.bf16.msra.mxu0 %v1866
    %2483 = vmatprep.subr.bf16.mxu0 0
    %2484 = vmatpush1.bf16.msra.mxu0 %v1867
    %2485 = vmatprep.subr.bf16.mxu0 0
    %2486 = vmatpush1.bf16.msra.mxu0 %v1868
    %2487 = vmatprep.subr.bf16.mxu0 0
    %2488 = vmatpush1.bf16.msra.mxu0 %v1869
    %2489 = vmatprep.subr.bf16.mxu0 0
    %2490 = vmatpush1.bf16.msra.mxu0 %v1870
    %2491 = vmatprep.subr.bf16.mxu0 0
    %2492 = vmatpush1.bf16.msra.mxu0 %v1871
    %2493 = vmatprep.subr.bf16.mxu0 0
    %2494 = vmatpush1.bf16.msra.mxu0 %v1872
    %2495 = vmatprep.subr.bf16.mxu0 0
    %2496 = vmatpush1.bf16.msra.mxu0 %v1873
    %2497 = vmatprep.subr.bf16.mxu0 0
    %2498 = vmatpush1.bf16.msra.mxu0 %v1874
    %2499 = vmatprep.mubr.bf16.mxu0 %v629
    %2500 = vmatmul.mubr.bf16.gmra.mrb[0].mxu0 %v615
    %v2501 = vpop.f32.mrb[0].mxu0
    %v2502 = vadd.f32 %v2462, %v2501
    %v2503 = vpop.f32.mrb[0].mxu0
    %v2504 = vpop.f32.mrb[0].mxu0
    %v2505 = vpop.f32.mrb[0].mxu0
    %2506 = vdwg.mxu0
    %2507 = vmatprep.subr.bf16.mxu0 0
    %2508 = vmatpush1.bf16.msra.mxu0 %v1875
    %2509 = vmatprep.subr.bf16.mxu0 0
    %2510 = vmatpush1.bf16.msra.mxu0 %v1876
    %2511 = vmatprep.subr.bf16.mxu0 0
    %2512 = vmatpush1.bf16.msra.mxu0 %v1877
    %2513 = vmatprep.subr.bf16.mxu0 0
    %2514 = vmatpush1.bf16.msra.mxu0 %v1878
    %2515 = vmatprep.subr.bf16.mxu0 0
    %2516 = vmatpush1.bf16.msra.mxu0 %v1879
    %2517 = vmatprep.subr.bf16.mxu0 0
    %2518 = vmatpush1.bf16.msra.mxu0 %v1880
    %2519 = vmatprep.subr.bf16.mxu0 0
    %2520 = vmatpush1.bf16.msra.mxu0 %v1881
    %2521 = vmatprep.subr.bf16.mxu0 0
    %2522 = vmatpush1.bf16.msra.mxu0 %v1882
    %2523 = vmatprep.subr.bf16.mxu0 0
    %2524 = vmatpush1.bf16.msra.mxu0 %v1883
    %2525 = vmatprep.subr.bf16.mxu0 0
    %2526 = vmatpush1.bf16.msra.mxu0 %v1884
    %2527 = vmatprep.subr.bf16.mxu0 0
    %2528 = vmatpush1.bf16.msra.mxu0 %v1885
    %2529 = vmatprep.subr.bf16.mxu0 0
    %2530 = vmatpush1.bf16.msra.mxu0 %v1886
    %2531 = vmatprep.subr.bf16.mxu0 0
    %2532 = vmatpush1.bf16.msra.mxu0 %v1887
    %2533 = vmatprep.subr.bf16.mxu0 0
    %2534 = vmatpush1.bf16.msra.mxu0 %v1888
    %2535 = vmatprep.subr.bf16.mxu0 0
    %2536 = vmatpush1.bf16.msra.mxu0 %v1889
    %2537 = vmatprep.subr.bf16.mxu0 0
    %2538 = vmatpush1.bf16.msra.mxu0 %v1890
    %2539 = vmatprep.mubr.bf16.mxu0 %v639
    %2540 = vmatmul.mubr.bf16.gmra.mrb[0].mxu0 %v637
    %v2541 = vpop.f32.mrb[0].mxu0
    %v2542 = vadd.f32 %v2502, %v2541
    %v2543 = vpop.f32.mrb[0].mxu0
    %v2544 = vpop.f32.mrb[0].mxu0
    %v2545 = vpop.f32.mrb[0].mxu0
    %2546 = vdwg.mxu0
    %2547 = vmatprep.subr.bf16.mxu0 0
    %2548 = vmatpush1.bf16.msra.mxu0 %v1891
    %2549 = vmatprep.subr.bf16.mxu0 0
    %2550 = vmatpush1.bf16.msra.mxu0 %v1892
    %2551 = vmatprep.subr.bf16.mxu0 0
    %2552 = vmatpush1.bf16.msra.mxu0 %v1893
    %2553 = vmatprep.subr.bf16.mxu0 0
    %2554 = vmatpush1.bf16.msra.mxu0 %v1894
    %2555 = vmatprep.subr.bf16.mxu0 0
    %2556 = vmatpush1.bf16.msra.mxu0 %v1895
    %2557 = vmatprep.subr.bf16.mxu0 0
    %2558 = vmatpush1.bf16.msra.mxu0 %v1896
    %2559 = vmatprep.subr.bf16.mxu0 0
    %2560 = vmatpush1.bf16.msra.mxu0 %v1897
    %2561 = vmatprep.subr.bf16.mxu0 0
    %2562 = vmatpush1.bf16.msra.mxu0 %v1898
    %2563 = vmatprep.subr.bf16.mxu0 0
    %2564 = vmatpush1.bf16.msra.mxu0 %v1899
    %2565 = vmatprep.subr.bf16.mxu0 0
    %2566 = vmatpush1.bf16.msra.mxu0 %v1900
    %2567 = vmatprep.subr.bf16.mxu0 0
    %2568 = vmatpush1.bf16.msra.mxu0 %v1901
    %2569 = vmatprep.subr.bf16.mxu0 0
    %2570 = vmatpush1.bf16.msra.mxu0 %v1902
    %2571 = vmatprep.subr.bf16.mxu0 0
    %2572 = vmatpush1.bf16.msra.mxu0 %v1903
    %2573 = vmatprep.subr.bf16.mxu0 0
    %2574 = vmatpush1.bf16.msra.mxu0 %v1904
    %2575 = vmatprep.subr.bf16.mxu0 0
    %2576 = vmatpush1.bf16.msra.mxu0 %v1905
    %2577 = vmatprep.subr.bf16.mxu0 0
    %2578 = vmatpush1.bf16.msra.mxu0 %v1906
    %2579 = vmatprep.mubr.bf16.mxu0 %v636
    %2580 = vmatmul.mubr.bf16.gmra.mrb[0].mxu0 %v622
    %v2581 = vpop.f32.mrb[0].mxu0
    %v2582 = vadd.f32 %v2542, %v2581
    %v2583 = vpop.f32.mrb[0].mxu0
    %v2584 = vpop.f32.mrb[0].mxu0
    %v2585 = vpop.f32.mrb[0].mxu0
    %2586 = vdwg.mxu0
    %2587 = vmatprep.subr.bf16.mxu0 0
    %2588 = vmatpush1.bf16.msra.mxu0 %v1907
    %2589 = vmatprep.subr.bf16.mxu0 0
    %2590 = vmatpush1.bf16.msra.mxu0 %v1908
    %2591 = vmatprep.subr.bf16.mxu0 0
    %2592 = vmatpush1.bf16.msra.mxu0 %v1909
    %2593 = vmatprep.subr.bf16.mxu0 0
    %2594 = vmatpush1.bf16.msra.mxu0 %v1910
    %2595 = vmatprep.subr.bf16.mxu0 0
    %2596 = vmatpush1.bf16.msra.mxu0 %v1911
    %2597 = vmatprep.subr.bf16.mxu0 0
    %2598 = vmatpush1.bf16.msra.mxu0 %v1912
    %2599 = vmatprep.subr.bf16.mxu0 0
    %2600 = vmatpush1.bf16.msra.mxu0 %v1913
    %2601 = vmatprep.subr.bf16.mxu0 0
    %2602 = vmatpush1.bf16.msra.mxu0 %v1914
    %2603 = vmatprep.subr.bf16.mxu0 0
    %2604 = vmatpush1.bf16.msra.mxu0 %v1915
    %2605 = vmatprep.subr.bf16.mxu0 0
    %2606 = vmatpush1.bf16.msra.mxu0 %v1916
    %2607 = vmatprep.subr.bf16.mxu0 0
    %2608 = vmatpush1.bf16.msra.mxu0 %v1917
    %2609 = vmatprep.subr.bf16.mxu0 0
    %2610 = vmatpush1.bf16.msra.mxu0 %v1918
    %2611 = vmatprep.subr.bf16.mxu0 0
    %2612 = vmatpush1.bf16.msra.mxu0 %v1919
    %2613 = vmatprep.subr.bf16.mxu0 0
    %2614 = vmatpush1.bf16.msra.mxu0 %v1920
    %2615 = vmatprep.subr.bf16.mxu0 0
    %2616 = vmatpush1.bf16.msra.mxu0 %v1921
    %2617 = vmatprep.subr.bf16.mxu0 0
    %2618 = vmatpush1.bf16.msra.mxu0 %v1922
    %2619 = vmatprep.mubr.bf16.mxu0 %v640
    %2620 = vmatmul.mubr.bf16.gmra.mrb[0].mxu0 %v638
    %v2621 = vpop.f32.mrb[0].mxu0
    %v2622 = vadd.f32 %v2582, %v2621
    %v2623 = vpop.f32.mrb[0].mxu0
    %v2624 = vpop.f32.mrb[0].mxu0
    %v2625 = vpop.f32.mrb[0].mxu0
    %2626 = vdwg.mxu0
    %2627 = vmatprep.subr.bf16.mxu0 0
    %2628 = vmatpush1.bf16.msra.mxu0 %v1923
    %2629 = vmatprep.subr.bf16.mxu0 0
    %2630 = vmatpush1.bf16.msra.mxu0 %v1924
    %2631 = vmatprep.subr.bf16.mxu0 0
    %2632 = vmatpush1.bf16.msra.mxu0 %v1925
    %2633 = vmatprep.subr.bf16.mxu0 0
    %2634 = vmatpush1.bf16.msra.mxu0 %v1926
    %2635 = vmatprep.subr.bf16.mxu0 0
    %2636 = vmatpush1.bf16.msra.mxu0 %v1927
    %2637 = vmatprep.subr.bf16.mxu0 0
    %2638 = vmatpush1.bf16.msra.mxu0 %v1928
    %2639 = vmatprep.subr.bf16.mxu0 0
    %2640 = vmatpush1.bf16.msra.mxu0 %v1929
    %2641 = vmatprep.subr.bf16.mxu0 0
    %2642 = vmatpush1.bf16.msra.mxu0 %v1930
    %2643 = vmatprep.subr.bf16.mxu0 0
    %2644 = vmatpush1.bf16.msra.mxu0 %v1931
    %2645 = vmatprep.subr.bf16.mxu0 0
    %2646 = vmatpush1.bf16.msra.mxu0 %v1932
    %2647 = vmatprep.subr.bf16.mxu0 0
    %2648 = vmatpush1.bf16.msra.mxu0 %v1933
    %2649 = vmatprep.subr.bf16.mxu0 0
    %2650 = vmatpush1.bf16.msra.mxu0 %v1934
    %2651 = vmatprep.subr.bf16.mxu0 0
    %2652 = vmatpush1.bf16.msra.mxu0 %v1935
    %2653 = vmatprep.subr.bf16.mxu0 0
    %2654 = vmatpush1.bf16.msra.mxu0 %v1936
    %2655 = vmatprep.subr.bf16.mxu0 0
    %2656 = vmatpush1.bf16.msra.mxu0 %v1937
    %2657 = vmatprep.subr.bf16.mxu0 0
    %2658 = vmatpush1.bf16.msra.mxu0 %v1938
    %2659 = vmatprep.mubr.bf16.mxu0 %v678
    %2660 = vmatmul.mubr.bf16.gmra.mrb[0].mxu0 %v664
    %v2661 = vpop.f32.mrb[0].mxu0
    %v2662 = vadd.f32 %v2622, %v2661
    %v2663 = vpop.f32.mrb[0].mxu0
    %v2664 = vpop.f32.mrb[0].mxu0
    %v2665 = vpop.f32.mrb[0].mxu0
    %2666 = vdwg.mxu0
    %2667 = vmatprep.subr.bf16.mxu0 0
    %2668 = vmatpush1.bf16.msra.mxu0 %v1939
    %2669 = vmatprep.subr.bf16.mxu0 0
    %2670 = vmatpush1.bf16.msra.mxu0 %v1940
    %2671 = vmatprep.subr.bf16.mxu0 0
    %2672 = vmatpush1.bf16.msra.mxu0 %v1941
    %2673 = vmatprep.subr.bf16.mxu0 0
    %2674 = vmatpush1.bf16.msra.mxu0 %v1942
    %2675 = vmatprep.subr.bf16.mxu0 0
    %2676 = vmatpush1.bf16.msra.mxu0 %v1943
    %2677 = vmatprep.subr.bf16.mxu0 0
    %2678 = vmatpush1.bf16.msra.mxu0 %v1944
    %2679 = vmatprep.subr.bf16.mxu0 0
    %2680 = vmatpush1.bf16.msra.mxu0 %v1945
    %2681 = vmatprep.subr.bf16.mxu0 0
    %2682 = vmatpush1.bf16.msra.mxu0 %v1946
    %2683 = vmatprep.subr.bf16.mxu0 0
    %2684 = vmatpush1.bf16.msra.mxu0 %v1947
    %2685 = vmatprep.subr.bf16.mxu0 0
    %2686 = vmatpush1.bf16.msra.mxu0 %v1948
    %2687 = vmatprep.subr.bf16.mxu0 0
    %2688 = vmatpush1.bf16.msra.mxu0 %v1949
    %2689 = vmatprep.subr.bf16.mxu0 0
    %2690 = vmatpush1.bf16.msra.mxu0 %v1950
    %2691 = vmatprep.subr.bf16.mxu0 0
    %2692 = vmatpush1.bf16.msra.mxu0 %v1951
    %2693 = vmatprep.subr.bf16.mxu0 0
    %2694 = vmatpush1.bf16.msra.mxu0 %v1952
    %2695 = vmatprep.subr.bf16.mxu0 0
    %2696 = vmatpush1.bf16.msra.mxu0 %v1953
    %2697 = vmatprep.subr.bf16.mxu0 0
    %2698 = vmatpush1.bf16.msra.mxu0 %v1954
    %2699 = vmatprep.mubr.bf16.mxu0 %v688
    %2700 = vmatmul.mubr.bf16.gmra.mrb[0].mxu0 %v686
    %v2701 = vpop.f32.mrb[0].mxu0
    %v2702 = vadd.f32 %v2662, %v2701
    %v2703 = vpop.f32.mrb[0].mxu0
    %v2704 = vpop.f32.mrb[0].mxu0
    %v2705 = vpop.f32.mrb[0].mxu0
    %2706 = vdwg.mxu0
    %2707 = vmatprep.subr.bf16.mxu0 0
    %2708 = vmatpush1.bf16.msra.mxu0 %v1955
    %2709 = vmatprep.subr.bf16.mxu0 0
    %2710 = vmatpush1.bf16.msra.mxu0 %v1956
    %2711 = vmatprep.subr.bf16.mxu0 0
    %2712 = vmatpush1.bf16.msra.mxu0 %v1957
    %2713 = vmatprep.subr.bf16.mxu0 0
    %2714 = vmatpush1.bf16.msra.mxu0 %v1958
    %2715 = vmatprep.subr.bf16.mxu0 0
    %2716 = vmatpush1.bf16.msra.mxu0 %v1959
    %2717 = vmatprep.subr.bf16.mxu0 0
    %2718 = vmatpush1.bf16.msra.mxu0 %v1960
    %2719 = vmatprep.subr.bf16.mxu0 0
    %2720 = vmatpush1.bf16.msra.mxu0 %v1961
    %2721 = vmatprep.subr.bf16.mxu0 0
    %2722 = vmatpush1.bf16.msra.mxu0 %v1962
    %2723 = vmatprep.subr.bf16.mxu0 0
    %2724 = vmatpush1.bf16.msra.mxu0 %v1963
    %2725 = vmatprep.subr.bf16.mxu0 0
    %2726 = vmatpush1.bf16.msra.mxu0 %v1964
    %2727 = vmatprep.subr.bf16.mxu0 0
    %2728 = vmatpush1.bf16.msra.mxu0 %v1965
    %2729 = vmatprep.subr.bf16.mxu0 0
    %2730 = vmatpush1.bf16.msra.mxu0 %v1966
    %2731 = vmatprep.subr.bf16.mxu0 0
    %2732 = vmatpush1.bf16.msra.mxu0 %v1967
    %2733 = vmatprep.subr.bf16.mxu0 0
    %2734 = vmatpush1.bf16.msra.mxu0 %v1968
    %2735 = vmatprep.subr.bf16.mxu0 0
    %2736 = vmatpush1.bf16.msra.mxu0 %v1969
    %2737 = vmatprep.subr.bf16.mxu0 0
    %2738 = vmatpush1.bf16.msra.mxu0 %v1970
    %2739 = vmatprep.mubr.bf16.mxu0 %v685
    %2740 = vmatmul.mubr.bf16.gmra.mrb[0].mxu0 %v671
    %v2741 = vpop.f32.mrb[0].mxu0
    %v2742 = vadd.f32 %v2702, %v2741
    %v2743 = vpop.f32.mrb[0].mxu0
    %v2744 = vpop.f32.mrb[0].mxu0
    %v2745 = vpop.f32.mrb[0].mxu0
    %2746 = vdwg.mxu0
    %2747 = vmatprep.subr.bf16.mxu0 0
    %2748 = vmatpush1.bf16.msra.mxu0 %v1971
    %2749 = vmatprep.subr.bf16.mxu0 0
    %2750 = vmatpush1.bf16.msra.mxu0 %v1972
    %2751 = vmatprep.subr.bf16.mxu0 0
    %2752 = vmatpush1.bf16.msra.mxu0 %v1973
    %2753 = vmatprep.subr.bf16.mxu0 0
    %2754 = vmatpush1.bf16.msra.mxu0 %v1974
    %2755 = vmatprep.subr.bf16.mxu0 0
    %2756 = vmatpush1.bf16.msra.mxu0 %v1975
    %2757 = vmatprep.subr.bf16.mxu0 0
    %2758 = vmatpush1.bf16.msra.mxu0 %v1976
    %2759 = vmatprep.subr.bf16.mxu0 0
    %2760 = vmatpush1.bf16.msra.mxu0 %v1977
    %2761 = vmatprep.subr.bf16.mxu0 0
    %2762 = vmatpush1.bf16.msra.mxu0 %v1978
    %2763 = vmatprep.subr.bf16.mxu0 0
    %2764 = vmatpush1.bf16.msra.mxu0 %v1979
    %2765 = vmatprep.subr.bf16.mxu0 0
    %2766 = vmatpush1.bf16.msra.mxu0 %v1980
    %2767 = vmatprep.subr.bf16.mxu0 0
    %2768 = vmatpush1.bf16.msra.mxu0 %v1981
    %2769 = vmatprep.subr.bf16.mxu0 0
    %2770 = vmatpush1.bf16.msra.mxu0 %v1982
    %2771 = vmatprep.subr.bf16.mxu0 0
    %2772 = vmatpush1.bf16.msra.mxu0 %v1983
    %2773 = vmatprep.subr.bf16.mxu0 0
    %2774 = vmatpush1.bf16.msra.mxu0 %v1984
    %2775 = vmatprep.subr.bf16.mxu0 0
    %2776 = vmatpush1.bf16.msra.mxu0 %v1985
    %2777 = vmatprep.subr.bf16.mxu0 0
    %2778 = vmatpush1.bf16.msra.mxu0 %v1986
    %2779 = vmatprep.mubr.bf16.mxu0 %v689
    %2780 = vmatmul.mubr.bf16.gmra.mrb[0].mxu0 %v687
    %v2781 = vpop.f32.mrb[0].mxu0
    %v2782 = vadd.f32 %v2742, %v2781
    %v2783 = vpop.f32.mrb[0].mxu0
    %v2784 = vpop.f32.mrb[0].mxu0
    %v2785 = vpop.f32.mrb[0].mxu0
    %2786 = vdwg.mxu0
    %2787 = vmatprep.subr.bf16.mxu0 0
    %2788 = vmatpush1.bf16.msra.mxu0 %v1987
    %2789 = vmatprep.subr.bf16.mxu0 0
    %2790 = vmatpush1.bf16.msra.mxu0 %v1988
    %2791 = vmatprep.subr.bf16.mxu0 0
    %2792 = vmatpush1.bf16.msra.mxu0 %v1989
    %2793 = vmatprep.subr.bf16.mxu0 0
    %2794 = vmatpush1.bf16.msra.mxu0 %v1990
    %2795 = vmatprep.subr.bf16.mxu0 0
    %2796 = vmatpush1.bf16.msra.mxu0 %v1991
    %2797 = vmatprep.subr.bf16.mxu0 0
    %2798 = vmatpush1.bf16.msra.mxu0 %v1992
    %2799 = vmatprep.subr.bf16.mxu0 0
    %2800 = vmatpush1.bf16.msra.mxu0 %v1993
    %2801 = vmatprep.subr.bf16.mxu0 0
    %2802 = vmatpush1.bf16.msra.mxu0 %v1994
    %2803 = vmatprep.subr.bf16.mxu0 0
    %2804 = vmatpush1.bf16.msra.mxu0 %v1995
    %2805 = vmatprep.subr.bf16.mxu0 0
    %2806 = vmatpush1.bf16.msra.mxu0 %v1996
    %2807 = vmatprep.subr.bf16.mxu0 0
    %2808 = vmatpush1.bf16.msra.mxu0 %v1997
    %2809 = vmatprep.subr.bf16.mxu0 0
    %2810 = vmatpush1.bf16.msra.mxu0 %v1998
    %2811 = vmatprep.subr.bf16.mxu0 0
    %2812 = vmatpush1.bf16.msra.mxu0 %v1999
    %2813 = vmatprep.subr.bf16.mxu0 0
    %2814 = vmatpush1.bf16.msra.mxu0 %v2000
    %2815 = vmatprep.subr.bf16.mxu0 0
    %2816 = vmatpush1.bf16.msra.mxu0 %v2001
    %2817 = vmatprep.subr.bf16.mxu0 0
    %2818 = vmatpush1.bf16.msra.mxu0 %v2002
    %2819 = vmatprep.mubr.bf16.mxu0 %v727
    %2820 = vmatmul.mubr.bf16.gmra.mrb[0].mxu0 %v713
    %v2821 = vpop.f32.mrb[0].mxu0
    %v2822 = vadd.f32 %v2782, %v2821
    %v2823 = vpop.f32.mrb[0].mxu0
    %v2824 = vpop.f32.mrb[0].mxu0
    %v2825 = vpop.f32.mrb[0].mxu0
    %2826 = vdwg.mxu0
    %2827 = vmatprep.subr.bf16.mxu0 0
    %2828 = vmatpush1.bf16.msra.mxu0 %v2003
    %2829 = vmatprep.subr.bf16.mxu0 0
    %2830 = vmatpush1.bf16.msra.mxu0 %v2004
    %2831 = vmatprep.subr.bf16.mxu0 0
    %2832 = vmatpush1.bf16.msra.mxu0 %v2005
    %2833 = vmatprep.subr.bf16.mxu0 0
    %2834 = vmatpush1.bf16.msra.mxu0 %v2006
    %2835 = vmatprep.subr.bf16.mxu0 0
    %2836 = vmatpush1.bf16.msra.mxu0 %v2007
    %2837 = vmatprep.subr.bf16.mxu0 0
    %2838 = vmatpush1.bf16.msra.mxu0 %v2008
    %2839 = vmatprep.subr.bf16.mxu0 0
    %2840 = vmatpush1.bf16.msra.mxu0 %v2009
    %2841 = vmatprep.subr.bf16.mxu0 0
    %2842 = vmatpush1.bf16.msra.mxu0 %v2010
    %2843 = vmatprep.subr.bf16.mxu0 0
    %2844 = vmatpush1.bf16.msra.mxu0 %v2011
    %2845 = vmatprep.subr.bf16.mxu0 0
    %2846 = vmatpush1.bf16.msra.mxu0 %v2012
    %2847 = vmatprep.subr.bf16.mxu0 0
    %2848 = vmatpush1.bf16.msra.mxu0 %v2013
    %2849 = vmatprep.subr.bf16.mxu0 0
    %2850 = vmatpush1.bf16.msra.mxu0 %v2014
    %2851 = vmatprep.subr.bf16.mxu0 0
    %2852 = vmatpush1.bf16.msra.mxu0 %v2015
    %2853 = vmatprep.subr.bf16.mxu0 0
    %2854 = vmatpush1.bf16.msra.mxu0 %v2016
    %2855 = vmatprep.subr.bf16.mxu0 0
    %2856 = vmatpush1.bf16.msra.mxu0 %v2017
    %2857 = vmatprep.subr.bf16.mxu0 0
    %2858 = vmatpush1.bf16.msra.mxu0 %v2018
    %2859 = vmatprep.mubr.bf16.mxu0 %v737
    %2860 = vmatmul.mubr.bf16.gmra.mrb[0].mxu0 %v735
    %v2861 = vpop.f32.mrb[0].mxu0
    %v2862 = vadd.f32 %v2822, %v2861
    %v2863 = vpop.f32.mrb[0].mxu0
    %v2864 = vpop.f32.mrb[0].mxu0
    %v2865 = vpop.f32.mrb[0].mxu0
    %2866 = vdwg.mxu0
    %2867 = vmatprep.subr.bf16.mxu0 0
    %2868 = vmatpush1.bf16.msra.mxu0 %v2019
    %2869 = vmatprep.subr.bf16.mxu0 0
    %2870 = vmatpush1.bf16.msra.mxu0 %v2020
    %2871 = vmatprep.subr.bf16.mxu0 0
    %2872 = vmatpush1.bf16.msra.mxu0 %v2021
    %2873 = vmatprep.subr.bf16.mxu0 0
    %2874 = vmatpush1.bf16.msra.mxu0 %v2022
    %2875 = vmatprep.subr.bf16.mxu0 0
    %2876 = vmatpush1.bf16.msra.mxu0 %v2023
    %2877 = vmatprep.subr.bf16.mxu0 0
    %2878 = vmatpush1.bf16.msra.mxu0 %v2024
    %2879 = vmatprep.subr.bf16.mxu0 0
    %2880 = vmatpush1.bf16.msra.mxu0 %v2025
    %2881 = vmatprep.subr.bf16.mxu0 0
    %2882 = vmatpush1.bf16.msra.mxu0 %v2026
    %2883 = vmatprep.subr.bf16.mxu0 0
    %2884 = vmatpush1.bf16.msra.mxu0 %v2027
    %2885 = vmatprep.subr.bf16.mxu0 0
    %2886 = vmatpush1.bf16.msra.mxu0 %v2028
    %2887 = vmatprep.subr.bf16.mxu0 0
    %2888 = vmatpush1.bf16.msra.mxu0 %v2029
    %2889 = vmatprep.subr.bf16.mxu0 0
    %2890 = vmatpush1.bf16.msra.mxu0 %v2030
    %2891 = vmatprep.subr.bf16.mxu0 0
    %2892 = vmatpush1.bf16.msra.mxu0 %v2031
    %2893 = vmatprep.subr.bf16.mxu0 0
    %2894 = vmatpush1.bf16.msra.mxu0 %v2032
    %2895 = vmatprep.subr.bf16.mxu0 0
    %2896 = vmatpush1.bf16.msra.mxu0 %v2033
    %2897 = vmatprep.subr.bf16.mxu0 0
    %2898 = vmatpush1.bf16.msra.mxu0 %v2034
    %2899 = vmatprep.mubr.bf16.mxu0 %v734
    %2900 = vmatmul.mubr.bf16.gmra.mrb[0].mxu0 %v720
    %v2901 = vpop.f32.mrb[0].mxu0
    %v2902 = vadd.f32 %v2862, %v2901
    %v2903 = vpop.f32.mrb[0].mxu0
    %v2904 = vpop.f32.mrb[0].mxu0
    %v2905 = vpop.f32.mrb[0].mxu0
    %2906 = vdwg.mxu0
    %2907 = vmatprep.subr.bf16.mxu0 0
    %2908 = vmatpush1.bf16.msra.mxu0 %v2035
    %2909 = vmatprep.subr.bf16.mxu0 0
    %2910 = vmatpush1.bf16.msra.mxu0 %v2036
    %2911 = vmatprep.subr.bf16.mxu0 0
    %2912 = vmatpush1.bf16.msra.mxu0 %v2037
    %2913 = vmatprep.subr.bf16.mxu0 0
    %2914 = vmatpush1.bf16.msra.mxu0 %v2038
    %2915 = vmatprep.subr.bf16.mxu0 0
    %2916 = vmatpush1.bf16.msra.mxu0 %v2039
    %2917 = vmatprep.subr.bf16.mxu0 0
    %2918 = vmatpush1.bf16.msra.mxu0 %v2040
    %2919 = vmatprep.subr.bf16.mxu0 0
    %2920 = vmatpush1.bf16.msra.mxu0 %v2041
    %2921 = vmatprep.subr.bf16.mxu0 0
    %2922 = vmatpush1.bf16.msra.mxu0 %v2042
    %2923 = vmatprep.subr.bf16.mxu0 0
    %2924 = vmatpush1.bf16.msra.mxu0 %v2043
    %2925 = vmatprep.subr.bf16.mxu0 0
    %2926 = vmatpush1.bf16.msra.mxu0 %v2044
    %2927 = vmatprep.subr.bf16.mxu0 0
    %2928 = vmatpush1.bf16.msra.mxu0 %v2045
    %2929 = vmatprep.subr.bf16.mxu0 0
    %2930 = vmatpush1.bf16.msra.mxu0 %v2046
    %2931 = vmatprep.subr.bf16.mxu0 0
    %2932 = vmatpush1.bf16.msra.mxu0 %v2047
    %2933 = vmatprep.subr.bf16.mxu0 0
    %2934 = vmatpush1.bf16.msra.mxu0 %v2048
    %2935 = vmatprep.subr.bf16.mxu0 0
    %2936 = vmatpush1.bf16.msra.mxu0 %v2049
    %2937 = vmatprep.subr.bf16.mxu0 0
    %2938 = vmatpush1.bf16.msra.mxu0 %v2050
    %2939 = vmatprep.mubr.bf16.mxu0 %v738
    %2940 = vmatmul.mubr.bf16.gmra.mrb[0].mxu0 %v736
    %v2941 = vpop.f32.mrb[0].mxu0
    %v2942 = vadd.f32 %v2902, %v2941
    %v2943 = vpop.f32.mrb[0].mxu0
    %v2944 = vpop.f32.mrb[0].mxu0
    %v2945 = vpop.f32.mrb[0].mxu0
    %2946 = vdwg.mxu0
    %vm2947 = vcmask 74752
    %2948 = vst.msk [vmem:[#allocation2] sm:$0x3] %vm2947, %v2942
    // Predicated region
    $region14: #{mnist_net_forward.5} parent=1 // pred_check
      _
    $region15: #{mnist_net_forward.5} parent=1 // pred_check_branch
      %2950 = sbr.rel (0) target = $region17
    $region16: #{mnist_net_forward.5} parent=1 // pred_region
      %s2952 = ssub.s32 32, 32
      %2953 = vsyncadd [#allocation3], %s2952
      %s2955 = sshll.u32 [#allocation2], 4
      %s2956 = int_to_ptr.vmem [resolvable:$true] %s2955
      %2958 = dma.vmem_to_hbm [thread:$0]  %s2956, 32, %s3, [#allocation3]
    $region17: #{mnist_net_forward.5} parent=1 // pred_fallthru
      _
    // Predicated region
    $region18: #{mnist_net_forward.5} parent=1 // pred_check
      _
    $region19: #{mnist_net_forward.5} parent=1 // pred_check_branch
      %2960 = sbr.rel (0) target = $region21
    $region20: #{mnist_net_forward.5} parent=1 // pred_region
      %2961 = dma.done [#allocation3], 32
    $region21: #{mnist_net_forward.5} parent=1 // pred_fallthru
      _
    %2962 = vsyncpa [#allocation3], 1

// kernel: mnist_net_forward.3
$region0: #{mnist_net_forward.3}
  #allocation0 [shape = 'u32[]', space=smem, size = 0x4, offset = 0x4, fixed_abs, tag = 'smem constant byte address 0x4 - core index']
  #allocation1 [shape = 'u32[144,128]{1,0:T(1,128)}', space=vmem, size = 0x12000, scoped, tag = 'internal scratch']
  %s0 = inlined_call_operand.vmem [shape: f32[2,1056], index: 0, kind: input, shape index: {}]
  %s1 = inlined_call_operand.vmem [shape: f32[16,25], index: 1, kind: input, shape index: {}]
  %s2 = inlined_call_operand.vmem [shape: f32[16,1], index: 2, kind: input, shape index: {}]
  %s3 = inlined_call_operand.hbm [shape: bf16[863,384], index: 3, kind: input, shape index: {}]
  %s4 = inlined_call_operand.vmem [shape: bf16[2,16,384], index: 4, kind: output, shape index: {}]
  %s5 = sld [smem:[#allocation0]]
  $region30: #{mnist_net_forward.3} parent=0
    _
  %s7 = ssub.s32 1, %s5
  %s8 = scalar_select 0, %s7, %s5
  $region1: #{mnist_net_forward.3} parent=0
    #allocation2 [shape = 'u8[663552]{0}', space=vmem, size = 0xa2000, scoped, tag = 'input window, operand 3, single buffered']
    #allocation3 [shape = 's32[1]{0}', space=sflag, size = 0x4, scoped, tag = 'scoped memory for mnist_net_forward.3']
    %9 = vsyncpa [#allocation3], 0
    // Predicated region
    $region2: #{mnist_net_forward.3} parent=1 // pred_check
      _
    $region3: #{mnist_net_forward.3} parent=1 // pred_check_branch
      %11 = sbr.rel (0) target = $region5
    $region4: #{mnist_net_forward.3} parent=1 // pred_region
      _
    $region5: #{mnist_net_forward.3} parent=1 // pred_fallthru
      _
    // Predicated region
    $region6: #{mnist_net_forward.3} parent=1 // pred_check
      _
    $region7: #{mnist_net_forward.3} parent=1 // pred_check_branch
      %13 = sbr.rel (0) target = $region9
    $region8: #{mnist_net_forward.3} parent=1 // pred_region
      _
    $region9: #{mnist_net_forward.3} parent=1 // pred_fallthru
      _
    // Predicated region
    $region10: #{mnist_net_forward.3} parent=1 // pred_check
      _
    $region11: #{mnist_net_forward.3} parent=1 // pred_check_branch
      %15 = sbr.rel (0) target = $region13
    $region12: #{mnist_net_forward.3} parent=1 // pred_region
      _
    $region13: #{mnist_net_forward.3} parent=1 // pred_fallthru
      _
    // Predicated region
    $region14: #{mnist_net_forward.3} parent=1 // pred_check
      _
    $region15: #{mnist_net_forward.3} parent=1 // pred_check_branch
      %17 = sbr.rel (0) target = $region17
    $region16: #{mnist_net_forward.3} parent=1 // pred_region
      %s19 = ssub.s32 20736, 20736
      %20 = vsyncadd [#allocation3], %s19
      %s21 = sshll.u32 [#allocation2], 4
      %s22 = int_to_ptr.vmem [resolvable:$true] %s21
      %27 = dma.hbm_to_vmem [thread:$0]  %s3, 20736, %s22, [#allocation3], 192, 192, 12
    $region17: #{mnist_net_forward.3} parent=1 // pred_fallthru
      _
    // Predicated region
    $region18: #{mnist_net_forward.3} parent=1 // pred_check
      _
    $region19: #{mnist_net_forward.3} parent=1 // pred_check_branch
      %29 = sbr.rel (0) target = $region21
    $region20: #{mnist_net_forward.3} parent=1 // pred_region
      %30 = dma.done [#allocation3], 20736
    $region21: #{mnist_net_forward.3} parent=1 // pred_fallthru
      _
    %v32 = vld [vmem:[%s0] sm:$0xff]
    %v33 = vld [vmem:[%s0 + $0x8] sm:$0xff]
    %v34 = vld [vmem:[%s0 + $0x10] sm:$0x3]
    %v35 = vld [vmem:[%s1] sm:$0xff]
    %v36 = vld [vmem:[%s1 + $0x8] sm:$0xff]
    %v40 = vunpack.c.l.s4 1966171168
    %v41 = vunpack.c.0.s8 %v40
    %v42 = vlaneseq
    %v43 = vshrl.u32 %v42, 7
    %v44 = vsub.s32 %v41, %v43
    %v45 = vrot.slane %v32, %v44
    %v47 = vunpack.c.l.s4 1966171168
    %v48 = vunpack.c.0.s8 %v47
    %v49 = vlaneseq
    %v50 = vshrl.u32 %v49, 7
    %v51 = vsub.s32 %v48, %v50
    %v52 = vrot.slane %v33, %v51
    %v53 = vcombine.low %v45, %v52
    %v54 = vcombine.high %v45, %v52
    %56 = vset.pattern.permute.xlu0 0
    %57 = vperm.xlu0 %56, %v35
    %v58 = vpop.permute.xlu0 %57
    %61 = vset.pattern.permute.xlu0 0
    %62 = vperm.xlu0 %61, %v36
    %v63 = vpop.permute.xlu0 %62
    %v65 = vlaneseq
    %v66 = vshrl.u32 %v65, 7
    %v67 = vsub.s32 0, %v66
    %v68 = vrot.slane %v53, %v67
    %v69 = vlaneseq
    %v70 = vshrl.u32 %v69, 7
    %v71 = vsub.s32 1, %v70
    %v72 = vrot.slane %v53, %v71
    %v73 = vlaneseq
    %v74 = vshrl.u32 %v73, 7
    %v75 = vsub.s32 2, %v74
    %v76 = vrot.slane %v53, %v75
    %v77 = vlaneseq
    %v78 = vshrl.u32 %v77, 7
    %v79 = vsub.s32 3, %v78
    %v80 = vrot.slane %v53, %v79
    %v81 = vlaneseq
    %v82 = vshrl.u32 %v81, 7
    %v83 = vsub.s32 4, %v82
    %v84 = vrot.slane %v53, %v83
    %v85 = vlaneseq
    %v86 = vshrl.u32 %v85, 7
    %v87 = vsub.s32 5, %v86
    %v88 = vrot.slane %v53, %v87
    %v89 = vlaneseq
    %v90 = vshrl.u32 %v89, 7
    %v91 = vsub.s32 6, %v90
    %v92 = vrot.slane %v53, %v91
    %v93 = vlaneseq
    %v94 = vshrl.u32 %v93, 7
    %v95 = vsub.s32 0, %v94
    %v96 = vrot.slane %v54, %v95
    %v97 = vlaneseq
    %v98 = vshrl.u32 %v97, 7
    %v99 = vsub.s32 1, %v98
    %v100 = vrot.slane %v54, %v99
    %v101 = vlaneseq
    %v102 = vshrl.u32 %v101, 7
    %v103 = vsub.s32 2, %v102
    %v104 = vrot.slane %v54, %v103
    %v105 = vlaneseq
    %v106 = vshrl.u32 %v105, 7
    %v107 = vsub.s32 3, %v106
    %v108 = vrot.slane %v54, %v107
    %v109 = vlaneseq
    %v110 = vshrl.u32 %v109, 7
    %v111 = vsub.s32 4, %v110
    %v112 = vrot.slane %v54, %v111
    %v113 = vlaneseq
    %v114 = vshrl.u32 %v113, 7
    %v115 = vsub.s32 5, %v114
    %v116 = vrot.slane %v54, %v115
    %v117 = vlaneseq
    %v118 = vshrl.u32 %v117, 7
    %v119 = vsub.s32 6, %v118
    %v120 = vrot.slane %v54, %v119
    %v135 = vmul.f32 %v58, %v68
    %v136 = vmul.f32 %v58, %v72
    %v137 = vmul.f32 %v58, %v76
    %v138 = vmul.f32 %v58, %v80
    %v139 = vmul.f32 %v58, %v84
    %v140 = vmul.f32 %v58, %v88
    %v141 = vmul.f32 %v58, %v92
    %v142 = vmul.f32 %v63, %v68
    %v143 = vmul.f32 %v63, %v72
    %v144 = vmul.f32 %v63, %v76
    %v145 = vmul.f32 %v63, %v80
    %v146 = vmul.f32 %v63, %v84
    %v147 = vmul.f32 %v63, %v88
    %v148 = vmul.f32 %v63, %v92
    %v149 = vmul.f32 %v58, %v96
    %v150 = vmul.f32 %v58, %v100
    %v151 = vmul.f32 %v58, %v104
    %v152 = vmul.f32 %v58, %v108
    %v153 = vmul.f32 %v58, %v112
    %v154 = vmul.f32 %v58, %v116
    %v155 = vmul.f32 %v58, %v120
    %v156 = vmul.f32 %v63, %v96
    %v157 = vmul.f32 %v63, %v100
    %v158 = vmul.f32 %v63, %v104
    %v159 = vmul.f32 %v63, %v108
    %v160 = vmul.f32 %v63, %v112
    %v161 = vmul.f32 %v63, %v116
    %v162 = vmul.f32 %v63, %v120
    %v163 = vadd.f32 %v135, 0.0
    %v164 = vadd.f32 %v136, 0.0
    %v165 = vadd.f32 %v137, 0.0
    %v166 = vadd.f32 %v138, 0.0
    %v167 = vadd.f32 %v139, 0.0
    %v168 = vadd.f32 %v140, 0.0
    %v169 = vadd.f32 %v141, 0.0
    %v170 = vadd.f32 %v142, 0.0
    %v171 = vadd.f32 %v143, 0.0
    %v172 = vadd.f32 %v144, 0.0
    %v173 = vadd.f32 %v145, 0.0
    %v174 = vadd.f32 %v146, 0.0
    %v175 = vadd.f32 %v147, 0.0
    %v176 = vadd.f32 %v148, 0.0
    %v177 = vadd.f32 %v149, 0.0
    %v178 = vadd.f32 %v150, 0.0
    %v179 = vadd.f32 %v151, 0.0
    %v180 = vadd.f32 %v152, 0.0
    %v181 = vadd.f32 %v153, 0.0
    %v182 = vadd.f32 %v154, 0.0
    %v183 = vadd.f32 %v155, 0.0
    %v184 = vadd.f32 %v156, 0.0
    %v185 = vadd.f32 %v157, 0.0
    %v186 = vadd.f32 %v158, 0.0
    %v187 = vadd.f32 %v159, 0.0
    %v188 = vadd.f32 %v160, 0.0
    %v189 = vadd.f32 %v161, 0.0
    %v190 = vadd.f32 %v162, 0.0
    %191 = vset.pattern.permute.xlu0 1
    %192 = vperm.xlu0 %191, %v35
    %v193 = vpop.permute.xlu0 %192
    %195 = vset.pattern.permute.xlu0 1
    %196 = vperm.xlu0 %195, %v36
    %v197 = vpop.permute.xlu0 %196
    %v199 = vlaneseq
    %v200 = vshrl.u32 %v199, 7
    %v201 = vsub.s32 7, %v200
    %v202 = vrot.slane %v53, %v201
    %v203 = vlaneseq
    %v204 = vshrl.u32 %v203, 7
    %v205 = vsub.s32 7, %v204
    %v206 = vrot.slane %v54, %v205
    %v209 = vmul.f32 %v193, %v68
    %v210 = vmul.f32 %v193, %v72
    %v211 = vmul.f32 %v193, %v76
    %v212 = vmul.f32 %v193, %v80
    %v213 = vmul.f32 %v193, %v84
    %v214 = vmul.f32 %v193, %v88
    %v215 = vmul.f32 %v193, %v92
    %v216 = vmul.f32 %v193, %v202
    %v217 = vmul.f32 %v197, %v68
    %v218 = vmul.f32 %v197, %v72
    %v219 = vmul.f32 %v197, %v76
    %v220 = vmul.f32 %v197, %v80
    %v221 = vmul.f32 %v197, %v84
    %v222 = vmul.f32 %v197, %v88
    %v223 = vmul.f32 %v197, %v92
    %v224 = vmul.f32 %v197, %v202
    %v225 = vmul.f32 %v193, %v96
    %v226 = vmul.f32 %v193, %v100
    %v227 = vmul.f32 %v193, %v104
    %v228 = vmul.f32 %v193, %v108
    %v229 = vmul.f32 %v193, %v112
    %v230 = vmul.f32 %v193, %v116
    %v231 = vmul.f32 %v193, %v120
    %v232 = vmul.f32 %v193, %v206
    %v233 = vmul.f32 %v197, %v96
    %v234 = vmul.f32 %v197, %v100
    %v235 = vmul.f32 %v197, %v104
    %v236 = vmul.f32 %v197, %v108
    %v237 = vmul.f32 %v197, %v112
    %v238 = vmul.f32 %v197, %v116
    %v239 = vmul.f32 %v197, %v120
    %v240 = vmul.f32 %v197, %v206
    %273 = vrot.lane.b32.xlu0 %v209, 127
    %v274 = vpop.permute.xlu0 %273
    %275 = vrot.lane.b32.xlu0 %v210, 127
    %v276 = vpop.permute.xlu0 %275
    %277 = vrot.lane.b32.xlu0 %v211, 127
    %v278 = vpop.permute.xlu0 %277
    %279 = vrot.lane.b32.xlu0 %v212, 127
    %v280 = vpop.permute.xlu0 %279
    %281 = vrot.lane.b32.xlu0 %v213, 127
    %v282 = vpop.permute.xlu0 %281
    %283 = vrot.lane.b32.xlu0 %v214, 127
    %v284 = vpop.permute.xlu0 %283
    %285 = vrot.lane.b32.xlu0 %v215, 127
    %v286 = vpop.permute.xlu0 %285
    %287 = vrot.lane.b32.xlu0 %v216, 127
    %v288 = vpop.permute.xlu0 %287
    %289 = vrot.lane.b32.xlu0 %v217, 127
    %v290 = vpop.permute.xlu0 %289
    %291 = vrot.lane.b32.xlu0 %v218, 127
    %v292 = vpop.permute.xlu0 %291
    %293 = vrot.lane.b32.xlu0 %v219, 127
    %v294 = vpop.permute.xlu0 %293
    %295 = vrot.lane.b32.xlu0 %v220, 127
    %v296 = vpop.permute.xlu0 %295
    %297 = vrot.lane.b32.xlu0 %v221, 127
    %v298 = vpop.permute.xlu0 %297
    %299 = vrot.lane.b32.xlu0 %v222, 127
    %v300 = vpop.permute.xlu0 %299
    %301 = vrot.lane.b32.xlu0 %v223, 127
    %v302 = vpop.permute.xlu0 %301
    %303 = vrot.lane.b32.xlu0 %v224, 127
    %v304 = vpop.permute.xlu0 %303
    %305 = vrot.lane.b32.xlu0 %v225, 127
    %v306 = vpop.permute.xlu0 %305
    %307 = vrot.lane.b32.xlu0 %v226, 127
    %v308 = vpop.permute.xlu0 %307
    %309 = vrot.lane.b32.xlu0 %v227, 127
    %v310 = vpop.permute.xlu0 %309
    %311 = vrot.lane.b32.xlu0 %v228, 127
    %v312 = vpop.permute.xlu0 %311
    %313 = vrot.lane.b32.xlu0 %v229, 127
    %v314 = vpop.permute.xlu0 %313
    %315 = vrot.lane.b32.xlu0 %v230, 127
    %v316 = vpop.permute.xlu0 %315
    %317 = vrot.lane.b32.xlu0 %v231, 127
    %v318 = vpop.permute.xlu0 %317
    %319 = vrot.lane.b32.xlu0 %v232, 127
    %v320 = vpop.permute.xlu0 %319
    %321 = vrot.lane.b32.xlu0 %v233, 127
    %v322 = vpop.permute.xlu0 %321
    %323 = vrot.lane.b32.xlu0 %v234, 127
    %v324 = vpop.permute.xlu0 %323
    %325 = vrot.lane.b32.xlu0 %v235, 127
    %v326 = vpop.permute.xlu0 %325
    %327 = vrot.lane.b32.xlu0 %v236, 127
    %v328 = vpop.permute.xlu0 %327
    %329 = vrot.lane.b32.xlu0 %v237, 127
    %v330 = vpop.permute.xlu0 %329
    %331 = vrot.lane.b32.xlu0 %v238, 127
    %v332 = vpop.permute.xlu0 %331
    %333 = vrot.lane.b32.xlu0 %v239, 127
    %v334 = vpop.permute.xlu0 %333
    %335 = vrot.lane.b32.xlu0 %v240, 127
    %v336 = vpop.permute.xlu0 %335
    %vm337 = vcmask 1039360
    %v338 = vsel %vm337, %v274, %v276
    %v339 = vsel %vm337, %v276, %v278
    %v340 = vsel %vm337, %v278, %v280
    %v341 = vsel %vm337, %v280, %v282
    %v342 = vsel %vm337, %v282, %v284
    %v343 = vsel %vm337, %v284, %v286
    %v344 = vsel %vm337, %v286, %v288
    %v345 = vsel %vm337, %v290, %v292
    %v346 = vsel %vm337, %v292, %v294
    %v347 = vsel %vm337, %v294, %v296
    %v348 = vsel %vm337, %v296, %v298
    %v349 = vsel %vm337, %v298, %v300
    %v350 = vsel %vm337, %v300, %v302
    %v351 = vsel %vm337, %v302, %v304
    %v352 = vsel %vm337, %v306, %v308
    %v353 = vsel %vm337, %v308, %v310
    %v354 = vsel %vm337, %v310, %v312
    %v355 = vsel %vm337, %v312, %v314
    %v356 = vsel %vm337, %v314, %v316
    %v357 = vsel %vm337, %v316, %v318
    %v358 = vsel %vm337, %v318, %v320
    %v359 = vsel %vm337, %v322, %v324
    %v360 = vsel %vm337, %v324, %v326
    %v361 = vsel %vm337, %v326, %v328
    %v362 = vsel %vm337, %v328, %v330
    %v363 = vsel %vm337, %v330, %v332
    %v364 = vsel %vm337, %v332, %v334
    %v365 = vsel %vm337, %v334, %v336
    %v394 = vadd.f32 %v163, %v338
    %v395 = vadd.f32 %v164, %v339
    %v396 = vadd.f32 %v165, %v340
    %v397 = vadd.f32 %v166, %v341
    %v398 = vadd.f32 %v167, %v342
    %v399 = vadd.f32 %v168, %v343
    %v400 = vadd.f32 %v169, %v344
    %v401 = vadd.f32 %v170, %v345
    %v402 = vadd.f32 %v171, %v346
    %v403 = vadd.f32 %v172, %v347
    %v404 = vadd.f32 %v173, %v348
    %v405 = vadd.f32 %v174, %v349
    %v406 = vadd.f32 %v175, %v350
    %v407 = vadd.f32 %v176, %v351
    %v408 = vadd.f32 %v177, %v352
    %v409 = vadd.f32 %v178, %v353
    %v410 = vadd.f32 %v179, %v354
    %v411 = vadd.f32 %v180, %v355
    %v412 = vadd.f32 %v181, %v356
    %v413 = vadd.f32 %v182, %v357
    %v414 = vadd.f32 %v183, %v358
    %v415 = vadd.f32 %v184, %v359
    %v416 = vadd.f32 %v185, %v360
    %v417 = vadd.f32 %v186, %v361
    %v418 = vadd.f32 %v187, %v362
    %v419 = vadd.f32 %v188, %v363
    %v420 = vadd.f32 %v189, %v364
    %v421 = vadd.f32 %v190, %v365
    %422 = vset.pattern.permute.xlu0 2
    %423 = vperm.xlu0 %422, %v35
    %v424 = vpop.permute.xlu0 %423
    %426 = vset.pattern.permute.xlu0 2
    %427 = vperm.xlu0 %426, %v36
    %v428 = vpop.permute.xlu0 %427
    %v430 = vmul.f32 %v424, %v68
    %v431 = vmul.f32 %v424, %v72
    %v432 = vmul.f32 %v424, %v76
    %v433 = vmul.f32 %v424, %v80
    %v434 = vmul.f32 %v424, %v84
    %v435 = vmul.f32 %v424, %v88
    %v436 = vmul.f32 %v424, %v92
    %v437 = vmul.f32 %v424, %v202
    %v438 = vmul.f32 %v428, %v68
    %v439 = vmul.f32 %v428, %v72
    %v440 = vmul.f32 %v428, %v76
    %v441 = vmul.f32 %v428, %v80
    %v442 = vmul.f32 %v428, %v84
    %v443 = vmul.f32 %v428, %v88
    %v444 = vmul.f32 %v428, %v92
    %v445 = vmul.f32 %v428, %v202
    %v446 = vmul.f32 %v424, %v96
    %v447 = vmul.f32 %v424, %v100
    %v448 = vmul.f32 %v424, %v104
    %v449 = vmul.f32 %v424, %v108
    %v450 = vmul.f32 %v424, %v112
    %v451 = vmul.f32 %v424, %v116
    %v452 = vmul.f32 %v424, %v120
    %v453 = vmul.f32 %v424, %v206
    %v454 = vmul.f32 %v428, %v96
    %v455 = vmul.f32 %v428, %v100
    %v456 = vmul.f32 %v428, %v104
    %v457 = vmul.f32 %v428, %v108
    %v458 = vmul.f32 %v428, %v112
    %v459 = vmul.f32 %v428, %v116
    %v460 = vmul.f32 %v428, %v120
    %v461 = vmul.f32 %v428, %v206
    %494 = vrot.lane.b32.xlu0 %v430, 126
    %v495 = vpop.permute.xlu0 %494
    %496 = vrot.lane.b32.xlu0 %v431, 126
    %v497 = vpop.permute.xlu0 %496
    %498 = vrot.lane.b32.xlu0 %v432, 126
    %v499 = vpop.permute.xlu0 %498
    %500 = vrot.lane.b32.xlu0 %v433, 126
    %v501 = vpop.permute.xlu0 %500
    %502 = vrot.lane.b32.xlu0 %v434, 126
    %v503 = vpop.permute.xlu0 %502
    %504 = vrot.lane.b32.xlu0 %v435, 126
    %v505 = vpop.permute.xlu0 %504
    %506 = vrot.lane.b32.xlu0 %v436, 126
    %v507 = vpop.permute.xlu0 %506
    %508 = vrot.lane.b32.xlu0 %v437, 126
    %v509 = vpop.permute.xlu0 %508
    %510 = vrot.lane.b32.xlu0 %v438, 126
    %v511 = vpop.permute.xlu0 %510
    %512 = vrot.lane.b32.xlu0 %v439, 126
    %v513 = vpop.permute.xlu0 %512
    %514 = vrot.lane.b32.xlu0 %v440, 126
    %v515 = vpop.permute.xlu0 %514
    %516 = vrot.lane.b32.xlu0 %v441, 126
    %v517 = vpop.permute.xlu0 %516
    %518 = vrot.lane.b32.xlu0 %v442, 126
    %v519 = vpop.permute.xlu0 %518
    %520 = vrot.lane.b32.xlu0 %v443, 126
    %v521 = vpop.permute.xlu0 %520
    %522 = vrot.lane.b32.xlu0 %v444, 126
    %v523 = vpop.permute.xlu0 %522
    %524 = vrot.lane.b32.xlu0 %v445, 126
    %v525 = vpop.permute.xlu0 %524
    %526 = vrot.lane.b32.xlu0 %v446, 126
    %v527 = vpop.permute.xlu0 %526
    %528 = vrot.lane.b32.xlu0 %v447, 126
    %v529 = vpop.permute.xlu0 %528
    %530 = vrot.lane.b32.xlu0 %v448, 126
    %v531 = vpop.permute.xlu0 %530
    %532 = vrot.lane.b32.xlu0 %v449, 126
    %v533 = vpop.permute.xlu0 %532
    %534 = vrot.lane.b32.xlu0 %v450, 126
    %v535 = vpop.permute.xlu0 %534
    %536 = vrot.lane.b32.xlu0 %v451, 126
    %v537 = vpop.permute.xlu0 %536
    %538 = vrot.lane.b32.xlu0 %v452, 126
    %v539 = vpop.permute.xlu0 %538
    %540 = vrot.lane.b32.xlu0 %v453, 126
    %v541 = vpop.permute.xlu0 %540
    %542 = vrot.lane.b32.xlu0 %v454, 126
    %v543 = vpop.permute.xlu0 %542
    %544 = vrot.lane.b32.xlu0 %v455, 126
    %v545 = vpop.permute.xlu0 %544
    %546 = vrot.lane.b32.xlu0 %v456, 126
    %v547 = vpop.permute.xlu0 %546
    %548 = vrot.lane.b32.xlu0 %v457, 126
    %v549 = vpop.permute.xlu0 %548
    %550 = vrot.lane.b32.xlu0 %v458, 126
    %v551 = vpop.permute.xlu0 %550
    %552 = vrot.lane.b32.xlu0 %v459, 126
    %v553 = vpop.permute.xlu0 %552
    %554 = vrot.lane.b32.xlu0 %v460, 126
    %v555 = vpop.permute.xlu0 %554
    %556 = vrot.lane.b32.xlu0 %v461, 126
    %v557 = vpop.permute.xlu0 %556
    %vm558 = vcmask 1031168
    %v559 = vsel %vm558, %v495, %v497
    %v560 = vsel %vm558, %v497, %v499
    %v561 = vsel %vm558, %v499, %v501
    %v562 = vsel %vm558, %v501, %v503
    %v563 = vsel %vm558, %v503, %v505
    %v564 = vsel %vm558, %v505, %v507
    %v565 = vsel %vm558, %v507, %v509
    %v566 = vsel %vm558, %v511, %v513
    %v567 = vsel %vm558, %v513, %v515
    %v568 = vsel %vm558, %v515, %v517
    %v569 = vsel %vm558, %v517, %v519
    %v570 = vsel %vm558, %v519, %v521
    %v571 = vsel %vm558, %v521, %v523
    %v572 = vsel %vm558, %v523, %v525
    %v573 = vsel %vm558, %v527, %v529
    %v574 = vsel %vm558, %v529, %v531
    %v575 = vsel %vm558, %v531, %v533
    %v576 = vsel %vm558, %v533, %v535
    %v577 = vsel %vm558, %v535, %v537
    %v578 = vsel %vm558, %v537, %v539
    %v579 = vsel %vm558, %v539, %v541
    %v580 = vsel %vm558, %v543, %v545
    %v581 = vsel %vm558, %v545, %v547
    %v582 = vsel %vm558, %v547, %v549
    %v583 = vsel %vm558, %v549, %v551
    %v584 = vsel %vm558, %v551, %v553
    %v585 = vsel %vm558, %v553, %v555
    %v586 = vsel %vm558, %v555, %v557
    %v615 = vadd.f32 %v394, %v559
    %v616 = vadd.f32 %v395, %v560
    %v617 = vadd.f32 %v396, %v561
    %v618 = vadd.f32 %v397, %v562
    %v619 = vadd.f32 %v398, %v563
    %v620 = vadd.f32 %v399, %v564
    %v621 = vadd.f32 %v400, %v565
    %v622 = vadd.f32 %v401, %v566
    %v623 = vadd.f32 %v402, %v567
    %v624 = vadd.f32 %v403, %v568
    %v625 = vadd.f32 %v404, %v569
    %v626 = vadd.f32 %v405, %v570
    %v627 = vadd.f32 %v406, %v571
    %v628 = vadd.f32 %v407, %v572
    %v629 = vadd.f32 %v408, %v573
    %v630 = vadd.f32 %v409, %v574
    %v631 = vadd.f32 %v410, %v575
    %v632 = vadd.f32 %v411, %v576
    %v633 = vadd.f32 %v412, %v577
    %v634 = vadd.f32 %v413, %v578
    %v635 = vadd.f32 %v414, %v579
    %v636 = vadd.f32 %v415, %v580
    %v637 = vadd.f32 %v416, %v581
    %v638 = vadd.f32 %v417, %v582
    %v639 = vadd.f32 %v418, %v583
    %v640 = vadd.f32 %v419, %v584
    %v641 = vadd.f32 %v420, %v585
    %v642 = vadd.f32 %v421, %v586
    %643 = vset.pattern.permute.xlu0 3
    %644 = vperm.xlu0 %643, %v35
    %v645 = vpop.permute.xlu0 %644
    %647 = vset.pattern.permute.xlu0 3
    %648 = vperm.xlu0 %647, %v36
    %v649 = vpop.permute.xlu0 %648
    %v651 = vmul.f32 %v645, %v68
    %v652 = vmul.f32 %v645, %v72
    %v653 = vmul.f32 %v645, %v76
    %v654 = vmul.f32 %v645, %v80
    %v655 = vmul.f32 %v645, %v84
    %v656 = vmul.f32 %v645, %v88
    %v657 = vmul.f32 %v645, %v92
    %v658 = vmul.f32 %v645, %v202
    %v659 = vmul.f32 %v649, %v68
    %v660 = vmul.f32 %v649, %v72
    %v661 = vmul.f32 %v649, %v76
    %v662 = vmul.f32 %v649, %v80
    %v663 = vmul.f32 %v649, %v84
    %v664 = vmul.f32 %v649, %v88
    %v665 = vmul.f32 %v649, %v92
    %v666 = vmul.f32 %v649, %v202
    %v667 = vmul.f32 %v645, %v96
    %v668 = vmul.f32 %v645, %v100
    %v669 = vmul.f32 %v645, %v104
    %v670 = vmul.f32 %v645, %v108
    %v671 = vmul.f32 %v645, %v112
    %v672 = vmul.f32 %v645, %v116
    %v673 = vmul.f32 %v645, %v120
    %v674 = vmul.f32 %v645, %v206
    %v675 = vmul.f32 %v649, %v96
    %v676 = vmul.f32 %v649, %v100
    %v677 = vmul.f32 %v649, %v104
    %v678 = vmul.f32 %v649, %v108
    %v679 = vmul.f32 %v649, %v112
    %v680 = vmul.f32 %v649, %v116
    %v681 = vmul.f32 %v649, %v120
    %v682 = vmul.f32 %v649, %v206
    %715 = vrot.lane.b32.xlu0 %v651, 125
    %v716 = vpop.permute.xlu0 %715
    %717 = vrot.lane.b32.xlu0 %v652, 125
    %v718 = vpop.permute.xlu0 %717
    %719 = vrot.lane.b32.xlu0 %v653, 125
    %v720 = vpop.permute.xlu0 %719
    %721 = vrot.lane.b32.xlu0 %v654, 125
    %v722 = vpop.permute.xlu0 %721
    %723 = vrot.lane.b32.xlu0 %v655, 125
    %v724 = vpop.permute.xlu0 %723
    %725 = vrot.lane.b32.xlu0 %v656, 125
    %v726 = vpop.permute.xlu0 %725
    %727 = vrot.lane.b32.xlu0 %v657, 125
    %v728 = vpop.permute.xlu0 %727
    %729 = vrot.lane.b32.xlu0 %v658, 125
    %v730 = vpop.permute.xlu0 %729
    %731 = vrot.lane.b32.xlu0 %v659, 125
    %v732 = vpop.permute.xlu0 %731
    %733 = vrot.lane.b32.xlu0 %v660, 125
    %v734 = vpop.permute.xlu0 %733
    %735 = vrot.lane.b32.xlu0 %v661, 125
    %v736 = vpop.permute.xlu0 %735
    %737 = vrot.lane.b32.xlu0 %v662, 125
    %v738 = vpop.permute.xlu0 %737
    %739 = vrot.lane.b32.xlu0 %v663, 125
    %v740 = vpop.permute.xlu0 %739
    %741 = vrot.lane.b32.xlu0 %v664, 125
    %v742 = vpop.permute.xlu0 %741
    %743 = vrot.lane.b32.xlu0 %v665, 125
    %v744 = vpop.permute.xlu0 %743
    %745 = vrot.lane.b32.xlu0 %v666, 125
    %v746 = vpop.permute.xlu0 %745
    %747 = vrot.lane.b32.xlu0 %v667, 125
    %v748 = vpop.permute.xlu0 %747
    %749 = vrot.lane.b32.xlu0 %v668, 125
    %v750 = vpop.permute.xlu0 %749
    %751 = vrot.lane.b32.xlu0 %v669, 125
    %v752 = vpop.permute.xlu0 %751
    %753 = vrot.lane.b32.xlu0 %v670, 125
    %v754 = vpop.permute.xlu0 %753
    %755 = vrot.lane.b32.xlu0 %v671, 125
    %v756 = vpop.permute.xlu0 %755
    %757 = vrot.lane.b32.xlu0 %v672, 125
    %v758 = vpop.permute.xlu0 %757
    %759 = vrot.lane.b32.xlu0 %v673, 125
    %v760 = vpop.permute.xlu0 %759
    %761 = vrot.lane.b32.xlu0 %v674, 125
    %v762 = vpop.permute.xlu0 %761
    %763 = vrot.lane.b32.xlu0 %v675, 125
    %v764 = vpop.permute.xlu0 %763
    %765 = vrot.lane.b32.xlu0 %v676, 125
    %v766 = vpop.permute.xlu0 %765
    %767 = vrot.lane.b32.xlu0 %v677, 125
    %v768 = vpop.permute.xlu0 %767
    %769 = vrot.lane.b32.xlu0 %v678, 125
    %v770 = vpop.permute.xlu0 %769
    %771 = vrot.lane.b32.xlu0 %v679, 125
    %v772 = vpop.permute.xlu0 %771
    %773 = vrot.lane.b32.xlu0 %v680, 125
    %v774 = vpop.permute.xlu0 %773
    %775 = vrot.lane.b32.xlu0 %v681, 125
    %v776 = vpop.permute.xlu0 %775
    %777 = vrot.lane.b32.xlu0 %v682, 125
    %v778 = vpop.permute.xlu0 %777
    %vm779 = vcmask 1022976
    %v780 = vsel %vm779, %v716, %v718
    %v781 = vsel %vm779, %v718, %v720
    %v782 = vsel %vm779, %v720, %v722
    %v783 = vsel %vm779, %v722, %v724
    %v784 = vsel %vm779, %v724, %v726
    %v785 = vsel %vm779, %v726, %v728
    %v786 = vsel %vm779, %v728, %v730
    %v787 = vsel %vm779, %v732, %v734
    %v788 = vsel %vm779, %v734, %v736
    %v789 = vsel %vm779, %v736, %v738
    %v790 = vsel %vm779, %v738, %v740
    %v791 = vsel %vm779, %v740, %v742
    %v792 = vsel %vm779, %v742, %v744
    %v793 = vsel %vm779, %v744, %v746
    %v794 = vsel %vm779, %v748, %v750
    %v795 = vsel %vm779, %v750, %v752
    %v796 = vsel %vm779, %v752, %v754
    %v797 = vsel %vm779, %v754, %v756
    %v798 = vsel %vm779, %v756, %v758
    %v799 = vsel %vm779, %v758, %v760
    %v800 = vsel %vm779, %v760, %v762
    %v801 = vsel %vm779, %v764, %v766
    %v802 = vsel %vm779, %v766, %v768
    %v803 = vsel %vm779, %v768, %v770
    %v804 = vsel %vm779, %v770, %v772
    %v805 = vsel %vm779, %v772, %v774
    %v806 = vsel %vm779, %v774, %v776
    %v807 = vsel %vm779, %v776, %v778
    %v836 = vadd.f32 %v615, %v780
    %v837 = vadd.f32 %v616, %v781
    %v838 = vadd.f32 %v617, %v782
    %v839 = vadd.f32 %v618, %v783
    %v840 = vadd.f32 %v619, %v784
    %v841 = vadd.f32 %v620, %v785
    %v842 = vadd.f32 %v621, %v786
    %v843 = vadd.f32 %v622, %v787
    %v844 = vadd.f32 %v623, %v788
    %v845 = vadd.f32 %v624, %v789
    %v846 = vadd.f32 %v625, %v790
    %v847 = vadd.f32 %v626, %v791
    %v848 = vadd.f32 %v627, %v792
    %v849 = vadd.f32 %v628, %v793
    %v850 = vadd.f32 %v629, %v794
    %v851 = vadd.f32 %v630, %v795
    %v852 = vadd.f32 %v631, %v796
    %v853 = vadd.f32 %v632, %v797
    %v854 = vadd.f32 %v633, %v798
    %v855 = vadd.f32 %v634, %v799
    %v856 = vadd.f32 %v635, %v800
    %v857 = vadd.f32 %v636, %v801
    %v858 = vadd.f32 %v637, %v802
    %v859 = vadd.f32 %v638, %v803
    %v860 = vadd.f32 %v639, %v804
    %v861 = vadd.f32 %v640, %v805
    %v862 = vadd.f32 %v641, %v806
    %v863 = vadd.f32 %v642, %v807
    %864 = vset.pattern.permute.xlu0 4
    %865 = vperm.xlu0 %864, %v35
    %v866 = vpop.permute.xlu0 %865
    %868 = vset.pattern.permute.xlu0 4
    %869 = vperm.xlu0 %868, %v36
    %v870 = vpop.permute.xlu0 %869
    %v872 = vmul.f32 %v866, %v68
    %v873 = vmul.f32 %v866, %v72
    %v874 = vmul.f32 %v866, %v76
    %v875 = vmul.f32 %v866, %v80
    %v876 = vmul.f32 %v866, %v84
    %v877 = vmul.f32 %v866, %v88
    %v878 = vmul.f32 %v866, %v92
    %v879 = vmul.f32 %v866, %v202
    %v880 = vmul.f32 %v870, %v68
    %v881 = vmul.f32 %v870, %v72
    %v882 = vmul.f32 %v870, %v76
    %v883 = vmul.f32 %v870, %v80
    %v884 = vmul.f32 %v870, %v84
    %v885 = vmul.f32 %v870, %v88
    %v886 = vmul.f32 %v870, %v92
    %v887 = vmul.f32 %v870, %v202
    %v888 = vmul.f32 %v866, %v96
    %v889 = vmul.f32 %v866, %v100
    %v890 = vmul.f32 %v866, %v104
    %v891 = vmul.f32 %v866, %v108
    %v892 = vmul.f32 %v866, %v112
    %v893 = vmul.f32 %v866, %v116
    %v894 = vmul.f32 %v866, %v120
    %v895 = vmul.f32 %v866, %v206
    %v896 = vmul.f32 %v870, %v96
    %v897 = vmul.f32 %v870, %v100
    %v898 = vmul.f32 %v870, %v104
    %v899 = vmul.f32 %v870, %v108
    %v900 = vmul.f32 %v870, %v112
    %v901 = vmul.f32 %v870, %v116
    %v902 = vmul.f32 %v870, %v120
    %v903 = vmul.f32 %v870, %v206
    %936 = vrot.lane.b32.xlu0 %v872, 124
    %v937 = vpop.permute.xlu0 %936
    %938 = vrot.lane.b32.xlu0 %v873, 124
    %v939 = vpop.permute.xlu0 %938
    %940 = vrot.lane.b32.xlu0 %v874, 124
    %v941 = vpop.permute.xlu0 %940
    %942 = vrot.lane.b32.xlu0 %v875, 124
    %v943 = vpop.permute.xlu0 %942
    %944 = vrot.lane.b32.xlu0 %v876, 124
    %v945 = vpop.permute.xlu0 %944
    %946 = vrot.lane.b32.xlu0 %v877, 124
    %v947 = vpop.permute.xlu0 %946
    %948 = vrot.lane.b32.xlu0 %v878, 124
    %v949 = vpop.permute.xlu0 %948
    %950 = vrot.lane.b32.xlu0 %v879, 124
    %v951 = vpop.permute.xlu0 %950
    %952 = vrot.lane.b32.xlu0 %v880, 124
    %v953 = vpop.permute.xlu0 %952
    %954 = vrot.lane.b32.xlu0 %v881, 124
    %v955 = vpop.permute.xlu0 %954
    %956 = vrot.lane.b32.xlu0 %v882, 124
    %v957 = vpop.permute.xlu0 %956
    %958 = vrot.lane.b32.xlu0 %v883, 124
    %v959 = vpop.permute.xlu0 %958
    %960 = vrot.lane.b32.xlu0 %v884, 124
    %v961 = vpop.permute.xlu0 %960
    %962 = vrot.lane.b32.xlu0 %v885, 124
    %v963 = vpop.permute.xlu0 %962
    %964 = vrot.lane.b32.xlu0 %v886, 124
    %v965 = vpop.permute.xlu0 %964
    %966 = vrot.lane.b32.xlu0 %v887, 124
    %v967 = vpop.permute.xlu0 %966
    %968 = vrot.lane.b32.xlu0 %v888, 124
    %v969 = vpop.permute.xlu0 %968
    %970 = vrot.lane.b32.xlu0 %v889, 124
    %v971 = vpop.permute.xlu0 %970
    %972 = vrot.lane.b32.xlu0 %v890, 124
    %v973 = vpop.permute.xlu0 %972
    %974 = vrot.lane.b32.xlu0 %v891, 124
    %v975 = vpop.permute.xlu0 %974
    %976 = vrot.lane.b32.xlu0 %v892, 124
    %v977 = vpop.permute.xlu0 %976
    %978 = vrot.lane.b32.xlu0 %v893, 124
    %v979 = vpop.permute.xlu0 %978
    %980 = vrot.lane.b32.xlu0 %v894, 124
    %v981 = vpop.permute.xlu0 %980
    %982 = vrot.lane.b32.xlu0 %v895, 124
    %v983 = vpop.permute.xlu0 %982
    %984 = vrot.lane.b32.xlu0 %v896, 124
    %v985 = vpop.permute.xlu0 %984
    %986 = vrot.lane.b32.xlu0 %v897, 124
    %v987 = vpop.permute.xlu0 %986
    %988 = vrot.lane.b32.xlu0 %v898, 124
    %v989 = vpop.permute.xlu0 %988
    %990 = vrot.lane.b32.xlu0 %v899, 124
    %v991 = vpop.permute.xlu0 %990
    %992 = vrot.lane.b32.xlu0 %v900, 124
    %v993 = vpop.permute.xlu0 %992
    %994 = vrot.lane.b32.xlu0 %v901, 124
    %v995 = vpop.permute.xlu0 %994
    %996 = vrot.lane.b32.xlu0 %v902, 124
    %v997 = vpop.permute.xlu0 %996
    %998 = vrot.lane.b32.xlu0 %v903, 124
    %v999 = vpop.permute.xlu0 %998
    %vm1000 = vcmask 1014784
    %v1001 = vsel %vm1000, %v937, %v939
    %v1002 = vsel %vm1000, %v939, %v941
    %v1003 = vsel %vm1000, %v941, %v943
    %v1004 = vsel %vm1000, %v943, %v945
    %v1005 = vsel %vm1000, %v945, %v947
    %v1006 = vsel %vm1000, %v947, %v949
    %v1007 = vsel %vm1000, %v949, %v951
    %v1008 = vsel %vm1000, %v953, %v955
    %v1009 = vsel %vm1000, %v955, %v957
    %v1010 = vsel %vm1000, %v957, %v959
    %v1011 = vsel %vm1000, %v959, %v961
    %v1012 = vsel %vm1000, %v961, %v963
    %v1013 = vsel %vm1000, %v963, %v965
    %v1014 = vsel %vm1000, %v965, %v967
    %v1015 = vsel %vm1000, %v969, %v971
    %v1016 = vsel %vm1000, %v971, %v973
    %v1017 = vsel %vm1000, %v973, %v975
    %v1018 = vsel %vm1000, %v975, %v977
    %v1019 = vsel %vm1000, %v977, %v979
    %v1020 = vsel %vm1000, %v979, %v981
    %v1021 = vsel %vm1000, %v981, %v983
    %v1022 = vsel %vm1000, %v985, %v987
    %v1023 = vsel %vm1000, %v987, %v989
    %v1024 = vsel %vm1000, %v989, %v991
    %v1025 = vsel %vm1000, %v991, %v993
    %v1026 = vsel %vm1000, %v993, %v995
    %v1027 = vsel %vm1000, %v995, %v997
    %v1028 = vsel %vm1000, %v997, %v999
    %v1057 = vadd.f32 %v836, %v1001
    %v1058 = vadd.f32 %v837, %v1002
    %v1059 = vadd.f32 %v838, %v1003
    %v1060 = vadd.f32 %v839, %v1004
    %v1061 = vadd.f32 %v840, %v1005
    %v1062 = vadd.f32 %v841, %v1006
    %v1063 = vadd.f32 %v842, %v1007
    %v1064 = vadd.f32 %v843, %v1008
    %v1065 = vadd.f32 %v844, %v1009
    %v1066 = vadd.f32 %v845, %v1010
    %v1067 = vadd.f32 %v846, %v1011
    %v1068 = vadd.f32 %v847, %v1012
    %v1069 = vadd.f32 %v848, %v1013
    %v1070 = vadd.f32 %v849, %v1014
    %v1071 = vadd.f32 %v850, %v1015
    %v1072 = vadd.f32 %v851, %v1016
    %v1073 = vadd.f32 %v852, %v1017
    %v1074 = vadd.f32 %v853, %v1018
    %v1075 = vadd.f32 %v854, %v1019
    %v1076 = vadd.f32 %v855, %v1020
    %v1077 = vadd.f32 %v856, %v1021
    %v1078 = vadd.f32 %v857, %v1022
    %v1079 = vadd.f32 %v858, %v1023
    %v1080 = vadd.f32 %v859, %v1024
    %v1081 = vadd.f32 %v860, %v1025
    %v1082 = vadd.f32 %v861, %v1026
    %v1083 = vadd.f32 %v862, %v1027
    %v1084 = vadd.f32 %v863, %v1028
    %1085 = vset.pattern.permute.xlu0 5
    %1086 = vperm.xlu0 %1085, %v35
    %v1087 = vpop.permute.xlu0 %1086
    %1089 = vset.pattern.permute.xlu0 5
    %1090 = vperm.xlu0 %1089, %v36
    %v1091 = vpop.permute.xlu0 %1090
    %v1093 = vmul.f32 %v1087, %v68
    %v1094 = vmul.f32 %v1087, %v72
    %v1095 = vmul.f32 %v1087, %v76
    %v1096 = vmul.f32 %v1087, %v80
    %v1097 = vmul.f32 %v1087, %v84
    %v1098 = vmul.f32 %v1087, %v88
    %v1099 = vmul.f32 %v1087, %v92
    %v1100 = vmul.f32 %v1087, %v202
    %v1101 = vmul.f32 %v1091, %v68
    %v1102 = vmul.f32 %v1091, %v72
    %v1103 = vmul.f32 %v1091, %v76
    %v1104 = vmul.f32 %v1091, %v80
    %v1105 = vmul.f32 %v1091, %v84
    %v1106 = vmul.f32 %v1091, %v88
    %v1107 = vmul.f32 %v1091, %v92
    %v1108 = vmul.f32 %v1091, %v202
    %v1109 = vmul.f32 %v1087, %v96
    %v1110 = vmul.f32 %v1087, %v100
    %v1111 = vmul.f32 %v1087, %v104
    %v1112 = vmul.f32 %v1087, %v108
    %v1113 = vmul.f32 %v1087, %v112
    %v1114 = vmul.f32 %v1087, %v116
    %v1115 = vmul.f32 %v1087, %v120
    %v1116 = vmul.f32 %v1087, %v206
    %v1117 = vmul.f32 %v1091, %v96
    %v1118 = vmul.f32 %v1091, %v100
    %v1119 = vmul.f32 %v1091, %v104
    %v1120 = vmul.f32 %v1091, %v108
    %v1121 = vmul.f32 %v1091, %v112
    %v1122 = vmul.f32 %v1091, %v116
    %v1123 = vmul.f32 %v1091, %v120
    %v1124 = vmul.f32 %v1091, %v206
    %1157 = vrot.lane.b32.xlu0 %v1093, 96
    %v1158 = vpop.permute.xlu0 %1157
    %1159 = vrot.lane.b32.xlu0 %v1094, 96
    %v1160 = vpop.permute.xlu0 %1159
    %1161 = vrot.lane.b32.xlu0 %v1095, 96
    %v1162 = vpop.permute.xlu0 %1161
    %1163 = vrot.lane.b32.xlu0 %v1096, 96
    %v1164 = vpop.permute.xlu0 %1163
    %1165 = vrot.lane.b32.xlu0 %v1097, 96
    %v1166 = vpop.permute.xlu0 %1165
    %1167 = vrot.lane.b32.xlu0 %v1098, 96
    %v1168 = vpop.permute.xlu0 %1167
    %1169 = vrot.lane.b32.xlu0 %v1099, 96
    %v1170 = vpop.permute.xlu0 %1169
    %1171 = vrot.lane.b32.xlu0 %v1100, 96
    %v1172 = vpop.permute.xlu0 %1171
    %1173 = vrot.lane.b32.xlu0 %v1101, 96
    %v1174 = vpop.permute.xlu0 %1173
    %1175 = vrot.lane.b32.xlu0 %v1102, 96
    %v1176 = vpop.permute.xlu0 %1175
    %1177 = vrot.lane.b32.xlu0 %v1103, 96
    %v1178 = vpop.permute.xlu0 %1177
    %1179 = vrot.lane.b32.xlu0 %v1104, 96
    %v1180 = vpop.permute.xlu0 %1179
    %1181 = vrot.lane.b32.xlu0 %v1105, 96
    %v1182 = vpop.permute.xlu0 %1181
    %1183 = vrot.lane.b32.xlu0 %v1106, 96
    %v1184 = vpop.permute.xlu0 %1183
    %1185 = vrot.lane.b32.xlu0 %v1107, 96
    %v1186 = vpop.permute.xlu0 %1185
    %1187 = vrot.lane.b32.xlu0 %v1108, 96
    %v1188 = vpop.permute.xlu0 %1187
    %1189 = vrot.lane.b32.xlu0 %v1109, 96
    %v1190 = vpop.permute.xlu0 %1189
    %1191 = vrot.lane.b32.xlu0 %v1110, 96
    %v1192 = vpop.permute.xlu0 %1191
    %1193 = vrot.lane.b32.xlu0 %v1111, 96
    %v1194 = vpop.permute.xlu0 %1193
    %1195 = vrot.lane.b32.xlu0 %v1112, 96
    %v1196 = vpop.permute.xlu0 %1195
    %1197 = vrot.lane.b32.xlu0 %v1113, 96
    %v1198 = vpop.permute.xlu0 %1197
    %1199 = vrot.lane.b32.xlu0 %v1114, 96
    %v1200 = vpop.permute.xlu0 %1199
    %1201 = vrot.lane.b32.xlu0 %v1115, 96
    %v1202 = vpop.permute.xlu0 %1201
    %1203 = vrot.lane.b32.xlu0 %v1116, 96
    %v1204 = vpop.permute.xlu0 %1203
    %1205 = vrot.lane.b32.xlu0 %v1117, 96
    %v1206 = vpop.permute.xlu0 %1205
    %1207 = vrot.lane.b32.xlu0 %v1118, 96
    %v1208 = vpop.permute.xlu0 %1207
    %1209 = vrot.lane.b32.xlu0 %v1119, 96
    %v1210 = vpop.permute.xlu0 %1209
    %1211 = vrot.lane.b32.xlu0 %v1120, 96
    %v1212 = vpop.permute.xlu0 %1211
    %1213 = vrot.lane.b32.xlu0 %v1121, 96
    %v1214 = vpop.permute.xlu0 %1213
    %1215 = vrot.lane.b32.xlu0 %v1122, 96
    %v1216 = vpop.permute.xlu0 %1215
    %1217 = vrot.lane.b32.xlu0 %v1123, 96
    %v1218 = vpop.permute.xlu0 %1217
    %1219 = vrot.lane.b32.xlu0 %v1124, 96
    %v1220 = vpop.permute.xlu0 %1219
    %vm1221 = vcmask 785408
    %v1222 = vsel %vm1221, %v1158, %v1160
    %v1223 = vsel %vm1221, %v1160, %v1162
    %v1224 = vsel %vm1221, %v1162, %v1164
    %v1225 = vsel %vm1221, %v1164, %v1166
    %v1226 = vsel %vm1221, %v1166, %v1168
    %v1227 = vsel %vm1221, %v1168, %v1170
    %v1228 = vsel %vm1221, %v1170, %v1172
    %v1229 = vsel %vm1221, %v1174, %v1176
    %v1230 = vsel %vm1221, %v1176, %v1178
    %v1231 = vsel %vm1221, %v1178, %v1180
    %v1232 = vsel %vm1221, %v1180, %v1182
    %v1233 = vsel %vm1221, %v1182, %v1184
    %v1234 = vsel %vm1221, %v1184, %v1186
    %v1235 = vsel %vm1221, %v1186, %v1188
    %v1236 = vsel %vm1221, %v1190, %v1192
    %v1237 = vsel %vm1221, %v1192, %v1194
    %v1238 = vsel %vm1221, %v1194, %v1196
    %v1239 = vsel %vm1221, %v1196, %v1198
    %v1240 = vsel %vm1221, %v1198, %v1200
    %v1241 = vsel %vm1221, %v1200, %v1202
    %v1242 = vsel %vm1221, %v1202, %v1204
    %v1243 = vsel %vm1221, %v1206, %v1208
    %v1244 = vsel %vm1221, %v1208, %v1210
    %v1245 = vsel %vm1221, %v1210, %v1212
    %v1246 = vsel %vm1221, %v1212, %v1214
    %v1247 = vsel %vm1221, %v1214, %v1216
    %v1248 = vsel %vm1221, %v1216, %v1218
    %v1249 = vsel %vm1221, %v1218, %v1220
    %v1278 = vadd.f32 %v1057, %v1222
    %v1279 = vadd.f32 %v1058, %v1223
    %v1280 = vadd.f32 %v1059, %v1224
    %v1281 = vadd.f32 %v1060, %v1225
    %v1282 = vadd.f32 %v1061, %v1226
    %v1283 = vadd.f32 %v1062, %v1227
    %v1284 = vadd.f32 %v1063, %v1228
    %v1285 = vadd.f32 %v1064, %v1229
    %v1286 = vadd.f32 %v1065, %v1230
    %v1287 = vadd.f32 %v1066, %v1231
    %v1288 = vadd.f32 %v1067, %v1232
    %v1289 = vadd.f32 %v1068, %v1233
    %v1290 = vadd.f32 %v1069, %v1234
    %v1291 = vadd.f32 %v1070, %v1235
    %v1292 = vadd.f32 %v1071, %v1236
    %v1293 = vadd.f32 %v1072, %v1237
    %v1294 = vadd.f32 %v1073, %v1238
    %v1295 = vadd.f32 %v1074, %v1239
    %v1296 = vadd.f32 %v1075, %v1240
    %v1297 = vadd.f32 %v1076, %v1241
    %v1298 = vadd.f32 %v1077, %v1242
    %v1299 = vadd.f32 %v1078, %v1243
    %v1300 = vadd.f32 %v1079, %v1244
    %v1301 = vadd.f32 %v1080, %v1245
    %v1302 = vadd.f32 %v1081, %v1246
    %v1303 = vadd.f32 %v1082, %v1247
    %v1304 = vadd.f32 %v1083, %v1248
    %v1305 = vadd.f32 %v1084, %v1249
    %1306 = vset.pattern.permute.xlu0 6
    %1307 = vperm.xlu0 %1306, %v35
    %v1308 = vpop.permute.xlu0 %1307
    %1310 = vset.pattern.permute.xlu0 6
    %1311 = vperm.xlu0 %1310, %v36
    %v1312 = vpop.permute.xlu0 %1311
    %v1314 = vmul.f32 %v1308, %v68
    %v1315 = vmul.f32 %v1308, %v72
    %v1316 = vmul.f32 %v1308, %v76
    %v1317 = vmul.f32 %v1308, %v80
    %v1318 = vmul.f32 %v1308, %v84
    %v1319 = vmul.f32 %v1308, %v88
    %v1320 = vmul.f32 %v1308, %v92
    %v1321 = vmul.f32 %v1308, %v202
    %v1322 = vmul.f32 %v1312, %v68
    %v1323 = vmul.f32 %v1312, %v72
    %v1324 = vmul.f32 %v1312, %v76
    %v1325 = vmul.f32 %v1312, %v80
    %v1326 = vmul.f32 %v1312, %v84
    %v1327 = vmul.f32 %v1312, %v88
    %v1328 = vmul.f32 %v1312, %v92
    %v1329 = vmul.f32 %v1312, %v202
    %v1330 = vmul.f32 %v1308, %v96
    %v1331 = vmul.f32 %v1308, %v100
    %v1332 = vmul.f32 %v1308, %v104
    %v1333 = vmul.f32 %v1308, %v108
    %v1334 = vmul.f32 %v1308, %v112
    %v1335 = vmul.f32 %v1308, %v116
    %v1336 = vmul.f32 %v1308, %v120
    %v1337 = vmul.f32 %v1308, %v206
    %v1338 = vmul.f32 %v1312, %v96
    %v1339 = vmul.f32 %v1312, %v100
    %v1340 = vmul.f32 %v1312, %v104
    %v1341 = vmul.f32 %v1312, %v108
    %v1342 = vmul.f32 %v1312, %v112
    %v1343 = vmul.f32 %v1312, %v116
    %v1344 = vmul.f32 %v1312, %v120
    %v1345 = vmul.f32 %v1312, %v206
    %1378 = vrot.lane.b32.xlu0 %v1314, 95
    %v1379 = vpop.permute.xlu0 %1378
    %1380 = vrot.lane.b32.xlu0 %v1315, 95
    %v1381 = vpop.permute.xlu0 %1380
    %1382 = vrot.lane.b32.xlu0 %v1316, 95
    %v1383 = vpop.permute.xlu0 %1382
    %1384 = vrot.lane.b32.xlu0 %v1317, 95
    %v1385 = vpop.permute.xlu0 %1384
    %1386 = vrot.lane.b32.xlu0 %v1318, 95
    %v1387 = vpop.permute.xlu0 %1386
    %1388 = vrot.lane.b32.xlu0 %v1319, 95
    %v1389 = vpop.permute.xlu0 %1388
    %1390 = vrot.lane.b32.xlu0 %v1320, 95
    %v1391 = vpop.permute.xlu0 %1390
    %1392 = vrot.lane.b32.xlu0 %v1321, 95
    %v1393 = vpop.permute.xlu0 %1392
    %1394 = vrot.lane.b32.xlu0 %v1322, 95
    %v1395 = vpop.permute.xlu0 %1394
    %1396 = vrot.lane.b32.xlu0 %v1323, 95
    %v1397 = vpop.permute.xlu0 %1396
    %1398 = vrot.lane.b32.xlu0 %v1324, 95
    %v1399 = vpop.permute.xlu0 %1398
    %1400 = vrot.lane.b32.xlu0 %v1325, 95
    %v1401 = vpop.permute.xlu0 %1400
    %1402 = vrot.lane.b32.xlu0 %v1326, 95
    %v1403 = vpop.permute.xlu0 %1402
    %1404 = vrot.lane.b32.xlu0 %v1327, 95
    %v1405 = vpop.permute.xlu0 %1404
    %1406 = vrot.lane.b32.xlu0 %v1328, 95
    %v1407 = vpop.permute.xlu0 %1406
    %1408 = vrot.lane.b32.xlu0 %v1329, 95
    %v1409 = vpop.permute.xlu0 %1408
    %1410 = vrot.lane.b32.xlu0 %v1330, 95
    %v1411 = vpop.permute.xlu0 %1410
    %1412 = vrot.lane.b32.xlu0 %v1331, 95
    %v1413 = vpop.permute.xlu0 %1412
    %1414 = vrot.lane.b32.xlu0 %v1332, 95
    %v1415 = vpop.permute.xlu0 %1414
    %1416 = vrot.lane.b32.xlu0 %v1333, 95
    %v1417 = vpop.permute.xlu0 %1416
    %1418 = vrot.lane.b32.xlu0 %v1334, 95
    %v1419 = vpop.permute.xlu0 %1418
    %1420 = vrot.lane.b32.xlu0 %v1335, 95
    %v1421 = vpop.permute.xlu0 %1420
    %1422 = vrot.lane.b32.xlu0 %v1336, 95
    %v1423 = vpop.permute.xlu0 %1422
    %1424 = vrot.lane.b32.xlu0 %v1337, 95
    %v1425 = vpop.permute.xlu0 %1424
    %1426 = vrot.lane.b32.xlu0 %v1338, 95
    %v1427 = vpop.permute.xlu0 %1426
    %1428 = vrot.lane.b32.xlu0 %v1339, 95
    %v1429 = vpop.permute.xlu0 %1428
    %1430 = vrot.lane.b32.xlu0 %v1340, 95
    %v1431 = vpop.permute.xlu0 %1430
    %1432 = vrot.lane.b32.xlu0 %v1341, 95
    %v1433 = vpop.permute.xlu0 %1432
    %1434 = vrot.lane.b32.xlu0 %v1342, 95
    %v1435 = vpop.permute.xlu0 %1434
    %1436 = vrot.lane.b32.xlu0 %v1343, 95
    %v1437 = vpop.permute.xlu0 %1436
    %1438 = vrot.lane.b32.xlu0 %v1344, 95
    %v1439 = vpop.permute.xlu0 %1438
    %1440 = vrot.lane.b32.xlu0 %v1345, 95
    %v1441 = vpop.permute.xlu0 %1440
    %vm1442 = vcmask 777216
    %v1443 = vsel %vm1442, %v1379, %v1381
    %v1444 = vsel %vm1442, %v1381, %v1383
    %v1445 = vsel %vm1442, %v1383, %v1385
    %v1446 = vsel %vm1442, %v1385, %v1387
    %v1447 = vsel %vm1442, %v1387, %v1389
    %v1448 = vsel %vm1442, %v1389, %v1391
    %v1449 = vsel %vm1442, %v1391, %v1393
    %v1450 = vsel %vm1442, %v1395, %v1397
    %v1451 = vsel %vm1442, %v1397, %v1399
    %v1452 = vsel %vm1442, %v1399, %v1401
    %v1453 = vsel %vm1442, %v1401, %v1403
    %v1454 = vsel %vm1442, %v1403, %v1405
    %v1455 = vsel %vm1442, %v1405, %v1407
    %v1456 = vsel %vm1442, %v1407, %v1409
    %v1457 = vsel %vm1442, %v1411, %v1413
    %v1458 = vsel %vm1442, %v1413, %v1415
    %v1459 = vsel %vm1442, %v1415, %v1417
    %v1460 = vsel %vm1442, %v1417, %v1419
    %v1461 = vsel %vm1442, %v1419, %v1421
    %v1462 = vsel %vm1442, %v1421, %v1423
    %v1463 = vsel %vm1442, %v1423, %v1425
    %v1464 = vsel %vm1442, %v1427, %v1429
    %v1465 = vsel %vm1442, %v1429, %v1431
    %v1466 = vsel %vm1442, %v1431, %v1433
    %v1467 = vsel %vm1442, %v1433, %v1435
    %v1468 = vsel %vm1442, %v1435, %v1437
    %v1469 = vsel %vm1442, %v1437, %v1439
    %v1470 = vsel %vm1442, %v1439, %v1441
    %v1499 = vadd.f32 %v1278, %v1443
    %v1500 = vadd.f32 %v1279, %v1444
    %v1501 = vadd.f32 %v1280, %v1445
    %v1502 = vadd.f32 %v1281, %v1446
    %v1503 = vadd.f32 %v1282, %v1447
    %v1504 = vadd.f32 %v1283, %v1448
    %v1505 = vadd.f32 %v1284, %v1449
    %v1506 = vadd.f32 %v1285, %v1450
    %v1507 = vadd.f32 %v1286, %v1451
    %v1508 = vadd.f32 %v1287, %v1452
    %v1509 = vadd.f32 %v1288, %v1453
    %v1510 = vadd.f32 %v1289, %v1454
    %v1511 = vadd.f32 %v1290, %v1455
    %v1512 = vadd.f32 %v1291, %v1456
    %v1513 = vadd.f32 %v1292, %v1457
    %v1514 = vadd.f32 %v1293, %v1458
    %v1515 = vadd.f32 %v1294, %v1459
    %v1516 = vadd.f32 %v1295, %v1460
    %v1517 = vadd.f32 %v1296, %v1461
    %v1518 = vadd.f32 %v1297, %v1462
    %v1519 = vadd.f32 %v1298, %v1463
    %v1520 = vadd.f32 %v1299, %v1464
    %v1521 = vadd.f32 %v1300, %v1465
    %v1522 = vadd.f32 %v1301, %v1466
    %v1523 = vadd.f32 %v1302, %v1467
    %v1524 = vadd.f32 %v1303, %v1468
    %v1525 = vadd.f32 %v1304, %v1469
    %v1526 = vadd.f32 %v1305, %v1470
    %1527 = vset.pattern.permute.xlu0 7
    %1528 = vperm.xlu0 %1527, %v35
    %v1529 = vpop.permute.xlu0 %1528
    %1531 = vset.pattern.permute.xlu0 7
    %1532 = vperm.xlu0 %1531, %v36
    %v1533 = vpop.permute.xlu0 %1532
    %v1535 = vmul.f32 %v1529, %v68
    %v1536 = vmul.f32 %v1529, %v72
    %v1537 = vmul.f32 %v1529, %v76
    %v1538 = vmul.f32 %v1529, %v80
    %v1539 = vmul.f32 %v1529, %v84
    %v1540 = vmul.f32 %v1529, %v88
    %v1541 = vmul.f32 %v1529, %v92
    %v1542 = vmul.f32 %v1529, %v202
    %v1543 = vmul.f32 %v1533, %v68
    %v1544 = vmul.f32 %v1533, %v72
    %v1545 = vmul.f32 %v1533, %v76
    %v1546 = vmul.f32 %v1533, %v80
    %v1547 = vmul.f32 %v1533, %v84
    %v1548 = vmul.f32 %v1533, %v88
    %v1549 = vmul.f32 %v1533, %v92
    %v1550 = vmul.f32 %v1533, %v202
    %v1551 = vmul.f32 %v1529, %v96
    %v1552 = vmul.f32 %v1529, %v100
    %v1553 = vmul.f32 %v1529, %v104
    %v1554 = vmul.f32 %v1529, %v108
    %v1555 = vmul.f32 %v1529, %v112
    %v1556 = vmul.f32 %v1529, %v116
    %v1557 = vmul.f32 %v1529, %v120
    %v1558 = vmul.f32 %v1529, %v206
    %v1559 = vmul.f32 %v1533, %v96
    %v1560 = vmul.f32 %v1533, %v100
    %v1561 = vmul.f32 %v1533, %v104
    %v1562 = vmul.f32 %v1533, %v108
    %v1563 = vmul.f32 %v1533, %v112
    %v1564 = vmul.f32 %v1533, %v116
    %v1565 = vmul.f32 %v1533, %v120
    %v1566 = vmul.f32 %v1533, %v206
    %1599 = vrot.lane.b32.xlu0 %v1535, 94
    %v1600 = vpop.permute.xlu0 %1599
    %1601 = vrot.lane.b32.xlu0 %v1536, 94
    %v1602 = vpop.permute.xlu0 %1601
    %1603 = vrot.lane.b32.xlu0 %v1537, 94
    %v1604 = vpop.permute.xlu0 %1603
    %1605 = vrot.lane.b32.xlu0 %v1538, 94
    %v1606 = vpop.permute.xlu0 %1605
    %1607 = vrot.lane.b32.xlu0 %v1539, 94
    %v1608 = vpop.permute.xlu0 %1607
    %1609 = vrot.lane.b32.xlu0 %v1540, 94
    %v1610 = vpop.permute.xlu0 %1609
    %1611 = vrot.lane.b32.xlu0 %v1541, 94
    %v1612 = vpop.permute.xlu0 %1611
    %1613 = vrot.lane.b32.xlu0 %v1542, 94
    %v1614 = vpop.permute.xlu0 %1613
    %1615 = vrot.lane.b32.xlu0 %v1543, 94
    %v1616 = vpop.permute.xlu0 %1615
    %1617 = vrot.lane.b32.xlu0 %v1544, 94
    %v1618 = vpop.permute.xlu0 %1617
    %1619 = vrot.lane.b32.xlu0 %v1545, 94
    %v1620 = vpop.permute.xlu0 %1619
    %1621 = vrot.lane.b32.xlu0 %v1546, 94
    %v1622 = vpop.permute.xlu0 %1621
    %1623 = vrot.lane.b32.xlu0 %v1547, 94
    %v1624 = vpop.permute.xlu0 %1623
    %1625 = vrot.lane.b32.xlu0 %v1548, 94
    %v1626 = vpop.permute.xlu0 %1625
    %1627 = vrot.lane.b32.xlu0 %v1549, 94
    %v1628 = vpop.permute.xlu0 %1627
    %1629 = vrot.lane.b32.xlu0 %v1550, 94
    %v1630 = vpop.permute.xlu0 %1629
    %1631 = vrot.lane.b32.xlu0 %v1551, 94
    %v1632 = vpop.permute.xlu0 %1631
    %1633 = vrot.lane.b32.xlu0 %v1552, 94
    %v1634 = vpop.permute.xlu0 %1633
    %1635 = vrot.lane.b32.xlu0 %v1553, 94
    %v1636 = vpop.permute.xlu0 %1635
    %1637 = vrot.lane.b32.xlu0 %v1554, 94
    %v1638 = vpop.permute.xlu0 %1637
    %1639 = vrot.lane.b32.xlu0 %v1555, 94
    %v1640 = vpop.permute.xlu0 %1639
    %1641 = vrot.lane.b32.xlu0 %v1556, 94
    %v1642 = vpop.permute.xlu0 %1641
    %1643 = vrot.lane.b32.xlu0 %v1557, 94
    %v1644 = vpop.permute.xlu0 %1643
    %1645 = vrot.lane.b32.xlu0 %v1558, 94
    %v1646 = vpop.permute.xlu0 %1645
    %1647 = vrot.lane.b32.xlu0 %v1559, 94
    %v1648 = vpop.permute.xlu0 %1647
    %1649 = vrot.lane.b32.xlu0 %v1560, 94
    %v1650 = vpop.permute.xlu0 %1649
    %1651 = vrot.lane.b32.xlu0 %v1561, 94
    %v1652 = vpop.permute.xlu0 %1651
    %1653 = vrot.lane.b32.xlu0 %v1562, 94
    %v1654 = vpop.permute.xlu0 %1653
    %1655 = vrot.lane.b32.xlu0 %v1563, 94
    %v1656 = vpop.permute.xlu0 %1655
    %1657 = vrot.lane.b32.xlu0 %v1564, 94
    %v1658 = vpop.permute.xlu0 %1657
    %1659 = vrot.lane.b32.xlu0 %v1565, 94
    %v1660 = vpop.permute.xlu0 %1659
    %1661 = vrot.lane.b32.xlu0 %v1566, 94
    %v1662 = vpop.permute.xlu0 %1661
    %vm1663 = vcmask 769024
    %v1664 = vsel %vm1663, %v1600, %v1602
    %v1665 = vsel %vm1663, %v1602, %v1604
    %v1666 = vsel %vm1663, %v1604, %v1606
    %v1667 = vsel %vm1663, %v1606, %v1608
    %v1668 = vsel %vm1663, %v1608, %v1610
    %v1669 = vsel %vm1663, %v1610, %v1612
    %v1670 = vsel %vm1663, %v1612, %v1614
    %v1671 = vsel %vm1663, %v1616, %v1618
    %v1672 = vsel %vm1663, %v1618, %v1620
    %v1673 = vsel %vm1663, %v1620, %v1622
    %v1674 = vsel %vm1663, %v1622, %v1624
    %v1675 = vsel %vm1663, %v1624, %v1626
    %v1676 = vsel %vm1663, %v1626, %v1628
    %v1677 = vsel %vm1663, %v1628, %v1630
    %v1678 = vsel %vm1663, %v1632, %v1634
    %v1679 = vsel %vm1663, %v1634, %v1636
    %v1680 = vsel %vm1663, %v1636, %v1638
    %v1681 = vsel %vm1663, %v1638, %v1640
    %v1682 = vsel %vm1663, %v1640, %v1642
    %v1683 = vsel %vm1663, %v1642, %v1644
    %v1684 = vsel %vm1663, %v1644, %v1646
    %v1685 = vsel %vm1663, %v1648, %v1650
    %v1686 = vsel %vm1663, %v1650, %v1652
    %v1687 = vsel %vm1663, %v1652, %v1654
    %v1688 = vsel %vm1663, %v1654, %v1656
    %v1689 = vsel %vm1663, %v1656, %v1658
    %v1690 = vsel %vm1663, %v1658, %v1660
    %v1691 = vsel %vm1663, %v1660, %v1662
    %v1720 = vadd.f32 %v1499, %v1664
    %v1721 = vadd.f32 %v1500, %v1665
    %v1722 = vadd.f32 %v1501, %v1666
    %v1723 = vadd.f32 %v1502, %v1667
    %v1724 = vadd.f32 %v1503, %v1668
    %v1725 = vadd.f32 %v1504, %v1669
    %v1726 = vadd.f32 %v1505, %v1670
    %v1727 = vadd.f32 %v1506, %v1671
    %v1728 = vadd.f32 %v1507, %v1672
    %v1729 = vadd.f32 %v1508, %v1673
    %v1730 = vadd.f32 %v1509, %v1674
    %v1731 = vadd.f32 %v1510, %v1675
    %v1732 = vadd.f32 %v1511, %v1676
    %v1733 = vadd.f32 %v1512, %v1677
    %v1734 = vadd.f32 %v1513, %v1678
    %v1735 = vadd.f32 %v1514, %v1679
    %v1736 = vadd.f32 %v1515, %v1680
    %v1737 = vadd.f32 %v1516, %v1681
    %v1738 = vadd.f32 %v1517, %v1682
    %v1739 = vadd.f32 %v1518, %v1683
    %v1740 = vadd.f32 %v1519, %v1684
    %v1741 = vadd.f32 %v1520, %v1685
    %v1742 = vadd.f32 %v1521, %v1686
    %v1743 = vadd.f32 %v1522, %v1687
    %v1744 = vadd.f32 %v1523, %v1688
    %v1745 = vadd.f32 %v1524, %v1689
    %v1746 = vadd.f32 %v1525, %v1690
    %v1747 = vadd.f32 %v1526, %v1691
    %1748 = vset.pattern.permute.xlu0 8
    %1749 = vperm.xlu0 %1748, %v35
    %v1750 = vpop.permute.xlu0 %1749
    %1752 = vset.pattern.permute.xlu0 8
    %1753 = vperm.xlu0 %1752, %v36
    %v1754 = vpop.permute.xlu0 %1753
    %v1756 = vmul.f32 %v1750, %v68
    %v1757 = vmul.f32 %v1750, %v72
    %v1758 = vmul.f32 %v1750, %v76
    %v1759 = vmul.f32 %v1750, %v80
    %v1760 = vmul.f32 %v1750, %v84
    %v1761 = vmul.f32 %v1750, %v88
    %v1762 = vmul.f32 %v1750, %v92
    %v1763 = vmul.f32 %v1750, %v202
    %v1764 = vmul.f32 %v1754, %v68
    %v1765 = vmul.f32 %v1754, %v72
    %v1766 = vmul.f32 %v1754, %v76
    %v1767 = vmul.f32 %v1754, %v80
    %v1768 = vmul.f32 %v1754, %v84
    %v1769 = vmul.f32 %v1754, %v88
    %v1770 = vmul.f32 %v1754, %v92
    %v1771 = vmul.f32 %v1754, %v202
    %v1772 = vmul.f32 %v1750, %v96
    %v1773 = vmul.f32 %v1750, %v100
    %v1774 = vmul.f32 %v1750, %v104
    %v1775 = vmul.f32 %v1750, %v108
    %v1776 = vmul.f32 %v1750, %v112
    %v1777 = vmul.f32 %v1750, %v116
    %v1778 = vmul.f32 %v1750, %v120
    %v1779 = vmul.f32 %v1750, %v206
    %v1780 = vmul.f32 %v1754, %v96
    %v1781 = vmul.f32 %v1754, %v100
    %v1782 = vmul.f32 %v1754, %v104
    %v1783 = vmul.f32 %v1754, %v108
    %v1784 = vmul.f32 %v1754, %v112
    %v1785 = vmul.f32 %v1754, %v116
    %v1786 = vmul.f32 %v1754, %v120
    %v1787 = vmul.f32 %v1754, %v206
    %1820 = vrot.lane.b32.xlu0 %v1756, 93
    %v1821 = vpop.permute.xlu0 %1820
    %1822 = vrot.lane.b32.xlu0 %v1757, 93
    %v1823 = vpop.permute.xlu0 %1822
    %1824 = vrot.lane.b32.xlu0 %v1758, 93
    %v1825 = vpop.permute.xlu0 %1824
    %1826 = vrot.lane.b32.xlu0 %v1759, 93
    %v1827 = vpop.permute.xlu0 %1826
    %1828 = vrot.lane.b32.xlu0 %v1760, 93
    %v1829 = vpop.permute.xlu0 %1828
    %1830 = vrot.lane.b32.xlu0 %v1761, 93
    %v1831 = vpop.permute.xlu0 %1830
    %1832 = vrot.lane.b32.xlu0 %v1762, 93
    %v1833 = vpop.permute.xlu0 %1832
    %1834 = vrot.lane.b32.xlu0 %v1763, 93
    %v1835 = vpop.permute.xlu0 %1834
    %1836 = vrot.lane.b32.xlu0 %v1764, 93
    %v1837 = vpop.permute.xlu0 %1836
    %1838 = vrot.lane.b32.xlu0 %v1765, 93
    %v1839 = vpop.permute.xlu0 %1838
    %1840 = vrot.lane.b32.xlu0 %v1766, 93
    %v1841 = vpop.permute.xlu0 %1840
    %1842 = vrot.lane.b32.xlu0 %v1767, 93
    %v1843 = vpop.permute.xlu0 %1842
    %1844 = vrot.lane.b32.xlu0 %v1768, 93
    %v1845 = vpop.permute.xlu0 %1844
    %1846 = vrot.lane.b32.xlu0 %v1769, 93
    %v1847 = vpop.permute.xlu0 %1846
    %1848 = vrot.lane.b32.xlu0 %v1770, 93
    %v1849 = vpop.permute.xlu0 %1848
    %1850 = vrot.lane.b32.xlu0 %v1771, 93
    %v1851 = vpop.permute.xlu0 %1850
    %1852 = vrot.lane.b32.xlu0 %v1772, 93
    %v1853 = vpop.permute.xlu0 %1852
    %1854 = vrot.lane.b32.xlu0 %v1773, 93
    %v1855 = vpop.permute.xlu0 %1854
    %1856 = vrot.lane.b32.xlu0 %v1774, 93
    %v1857 = vpop.permute.xlu0 %1856
    %1858 = vrot.lane.b32.xlu0 %v1775, 93
    %v1859 = vpop.permute.xlu0 %1858
    %1860 = vrot.lane.b32.xlu0 %v1776, 93
    %v1861 = vpop.permute.xlu0 %1860
    %1862 = vrot.lane.b32.xlu0 %v1777, 93
    %v1863 = vpop.permute.xlu0 %1862
    %1864 = vrot.lane.b32.xlu0 %v1778, 93
    %v1865 = vpop.permute.xlu0 %1864
    %1866 = vrot.lane.b32.xlu0 %v1779, 93
    %v1867 = vpop.permute.xlu0 %1866
    %1868 = vrot.lane.b32.xlu0 %v1780, 93
    %v1869 = vpop.permute.xlu0 %1868
    %1870 = vrot.lane.b32.xlu0 %v1781, 93
    %v1871 = vpop.permute.xlu0 %1870
    %1872 = vrot.lane.b32.xlu0 %v1782, 93
    %v1873 = vpop.permute.xlu0 %1872
    %1874 = vrot.lane.b32.xlu0 %v1783, 93
    %v1875 = vpop.permute.xlu0 %1874
    %1876 = vrot.lane.b32.xlu0 %v1784, 93
    %v1877 = vpop.permute.xlu0 %1876
    %1878 = vrot.lane.b32.xlu0 %v1785, 93
    %v1879 = vpop.permute.xlu0 %1878
    %1880 = vrot.lane.b32.xlu0 %v1786, 93
    %v1881 = vpop.permute.xlu0 %1880
    %1882 = vrot.lane.b32.xlu0 %v1787, 93
    %v1883 = vpop.permute.xlu0 %1882
    %vm1884 = vcmask 760832
    %v1885 = vsel %vm1884, %v1821, %v1823
    %v1886 = vsel %vm1884, %v1823, %v1825
    %v1887 = vsel %vm1884, %v1825, %v1827
    %v1888 = vsel %vm1884, %v1827, %v1829
    %v1889 = vsel %vm1884, %v1829, %v1831
    %v1890 = vsel %vm1884, %v1831, %v1833
    %v1891 = vsel %vm1884, %v1833, %v1835
    %v1892 = vsel %vm1884, %v1837, %v1839
    %v1893 = vsel %vm1884, %v1839, %v1841
    %v1894 = vsel %vm1884, %v1841, %v1843
    %v1895 = vsel %vm1884, %v1843, %v1845
    %v1896 = vsel %vm1884, %v1845, %v1847
    %v1897 = vsel %vm1884, %v1847, %v1849
    %v1898 = vsel %vm1884, %v1849, %v1851
    %v1899 = vsel %vm1884, %v1853, %v1855
    %v1900 = vsel %vm1884, %v1855, %v1857
    %v1901 = vsel %vm1884, %v1857, %v1859
    %v1902 = vsel %vm1884, %v1859, %v1861
    %v1903 = vsel %vm1884, %v1861, %v1863
    %v1904 = vsel %vm1884, %v1863, %v1865
    %v1905 = vsel %vm1884, %v1865, %v1867
    %v1906 = vsel %vm1884, %v1869, %v1871
    %v1907 = vsel %vm1884, %v1871, %v1873
    %v1908 = vsel %vm1884, %v1873, %v1875
    %v1909 = vsel %vm1884, %v1875, %v1877
    %v1910 = vsel %vm1884, %v1877, %v1879
    %v1911 = vsel %vm1884, %v1879, %v1881
    %v1912 = vsel %vm1884, %v1881, %v1883
    %v1941 = vadd.f32 %v1720, %v1885
    %v1942 = vadd.f32 %v1721, %v1886
    %v1943 = vadd.f32 %v1722, %v1887
    %v1944 = vadd.f32 %v1723, %v1888
    %v1945 = vadd.f32 %v1724, %v1889
    %v1946 = vadd.f32 %v1725, %v1890
    %v1947 = vadd.f32 %v1726, %v1891
    %v1948 = vadd.f32 %v1727, %v1892
    %v1949 = vadd.f32 %v1728, %v1893
    %v1950 = vadd.f32 %v1729, %v1894
    %v1951 = vadd.f32 %v1730, %v1895
    %v1952 = vadd.f32 %v1731, %v1896
    %v1953 = vadd.f32 %v1732, %v1897
    %v1954 = vadd.f32 %v1733, %v1898
    %v1955 = vadd.f32 %v1734, %v1899
    %v1956 = vadd.f32 %v1735, %v1900
    %v1957 = vadd.f32 %v1736, %v1901
    %v1958 = vadd.f32 %v1737, %v1902
    %v1959 = vadd.f32 %v1738, %v1903
    %v1960 = vadd.f32 %v1739, %v1904
    %v1961 = vadd.f32 %v1740, %v1905
    %v1962 = vadd.f32 %v1741, %v1906
    %v1963 = vadd.f32 %v1742, %v1907
    %v1964 = vadd.f32 %v1743, %v1908
    %v1965 = vadd.f32 %v1744, %v1909
    %v1966 = vadd.f32 %v1745, %v1910
    %v1967 = vadd.f32 %v1746, %v1911
    %v1968 = vadd.f32 %v1747, %v1912
    %1969 = vset.pattern.permute.xlu0 9
    %1970 = vperm.xlu0 %1969, %v35
    %v1971 = vpop.permute.xlu0 %1970
    %1973 = vset.pattern.permute.xlu0 9
    %1974 = vperm.xlu0 %1973, %v36
    %v1975 = vpop.permute.xlu0 %1974
    %v1977 = vmul.f32 %v1971, %v68
    %v1978 = vmul.f32 %v1971, %v72
    %v1979 = vmul.f32 %v1971, %v76
    %v1980 = vmul.f32 %v1971, %v80
    %v1981 = vmul.f32 %v1971, %v84
    %v1982 = vmul.f32 %v1971, %v88
    %v1983 = vmul.f32 %v1971, %v92
    %v1984 = vmul.f32 %v1971, %v202
    %v1985 = vmul.f32 %v1975, %v68
    %v1986 = vmul.f32 %v1975, %v72
    %v1987 = vmul.f32 %v1975, %v76
    %v1988 = vmul.f32 %v1975, %v80
    %v1989 = vmul.f32 %v1975, %v84
    %v1990 = vmul.f32 %v1975, %v88
    %v1991 = vmul.f32 %v1975, %v92
    %v1992 = vmul.f32 %v1975, %v202
    %v1993 = vmul.f32 %v1971, %v96
    %v1994 = vmul.f32 %v1971, %v100
    %v1995 = vmul.f32 %v1971, %v104
    %v1996 = vmul.f32 %v1971, %v108
    %v1997 = vmul.f32 %v1971, %v112
    %v1998 = vmul.f32 %v1971, %v116
    %v1999 = vmul.f32 %v1971, %v120
    %v2000 = vmul.f32 %v1971, %v206
    %v2001 = vmul.f32 %v1975, %v96
    %v2002 = vmul.f32 %v1975, %v100
    %v2003 = vmul.f32 %v1975, %v104
    %v2004 = vmul.f32 %v1975, %v108
    %v2005 = vmul.f32 %v1975, %v112
    %v2006 = vmul.f32 %v1975, %v116
    %v2007 = vmul.f32 %v1975, %v120
    %v2008 = vmul.f32 %v1975, %v206
    %2041 = vrot.lane.b32.xlu0 %v1977, 92
    %v2042 = vpop.permute.xlu0 %2041
    %2043 = vrot.lane.b32.xlu0 %v1978, 92
    %v2044 = vpop.permute.xlu0 %2043
    %2045 = vrot.lane.b32.xlu0 %v1979, 92
    %v2046 = vpop.permute.xlu0 %2045
    %2047 = vrot.lane.b32.xlu0 %v1980, 92
    %v2048 = vpop.permute.xlu0 %2047
    %2049 = vrot.lane.b32.xlu0 %v1981, 92
    %v2050 = vpop.permute.xlu0 %2049
    %2051 = vrot.lane.b32.xlu0 %v1982, 92
    %v2052 = vpop.permute.xlu0 %2051
    %2053 = vrot.lane.b32.xlu0 %v1983, 92
    %v2054 = vpop.permute.xlu0 %2053
    %2055 = vrot.lane.b32.xlu0 %v1984, 92
    %v2056 = vpop.permute.xlu0 %2055
    %2057 = vrot.lane.b32.xlu0 %v1985, 92
    %v2058 = vpop.permute.xlu0 %2057
    %2059 = vrot.lane.b32.xlu0 %v1986, 92
    %v2060 = vpop.permute.xlu0 %2059
    %2061 = vrot.lane.b32.xlu0 %v1987, 92
    %v2062 = vpop.permute.xlu0 %2061
    %2063 = vrot.lane.b32.xlu0 %v1988, 92
    %v2064 = vpop.permute.xlu0 %2063
    %2065 = vrot.lane.b32.xlu0 %v1989, 92
    %v2066 = vpop.permute.xlu0 %2065
    %2067 = vrot.lane.b32.xlu0 %v1990, 92
    %v2068 = vpop.permute.xlu0 %2067
    %2069 = vrot.lane.b32.xlu0 %v1991, 92
    %v2070 = vpop.permute.xlu0 %2069
    %2071 = vrot.lane.b32.xlu0 %v1992, 92
    %v2072 = vpop.permute.xlu0 %2071
    %2073 = vrot.lane.b32.xlu0 %v1993, 92
    %v2074 = vpop.permute.xlu0 %2073
    %2075 = vrot.lane.b32.xlu0 %v1994, 92
    %v2076 = vpop.permute.xlu0 %2075
    %2077 = vrot.lane.b32.xlu0 %v1995, 92
    %v2078 = vpop.permute.xlu0 %2077
    %2079 = vrot.lane.b32.xlu0 %v1996, 92
    %v2080 = vpop.permute.xlu0 %2079
    %2081 = vrot.lane.b32.xlu0 %v1997, 92
    %v2082 = vpop.permute.xlu0 %2081
    %2083 = vrot.lane.b32.xlu0 %v1998, 92
    %v2084 = vpop.permute.xlu0 %2083
    %2085 = vrot.lane.b32.xlu0 %v1999, 92
    %v2086 = vpop.permute.xlu0 %2085
    %2087 = vrot.lane.b32.xlu0 %v2000, 92
    %v2088 = vpop.permute.xlu0 %2087
    %2089 = vrot.lane.b32.xlu0 %v2001, 92
    %v2090 = vpop.permute.xlu0 %2089
    %2091 = vrot.lane.b32.xlu0 %v2002, 92
    %v2092 = vpop.permute.xlu0 %2091
    %2093 = vrot.lane.b32.xlu0 %v2003, 92
    %v2094 = vpop.permute.xlu0 %2093
    %2095 = vrot.lane.b32.xlu0 %v2004, 92
    %v2096 = vpop.permute.xlu0 %2095
    %2097 = vrot.lane.b32.xlu0 %v2005, 92
    %v2098 = vpop.permute.xlu0 %2097
    %2099 = vrot.lane.b32.xlu0 %v2006, 92
    %v2100 = vpop.permute.xlu0 %2099
    %2101 = vrot.lane.b32.xlu0 %v2007, 92
    %v2102 = vpop.permute.xlu0 %2101
    %2103 = vrot.lane.b32.xlu0 %v2008, 92
    %v2104 = vpop.permute.xlu0 %2103
    %vm2105 = vcmask 752640
    %v2106 = vsel %vm2105, %v2042, %v2044
    %v2107 = vsel %vm2105, %v2044, %v2046
    %v2108 = vsel %vm2105, %v2046, %v2048
    %v2109 = vsel %vm2105, %v2048, %v2050
    %v2110 = vsel %vm2105, %v2050, %v2052
    %v2111 = vsel %vm2105, %v2052, %v2054
    %v2112 = vsel %vm2105, %v2054, %v2056
    %v2113 = vsel %vm2105, %v2058, %v2060
    %v2114 = vsel %vm2105, %v2060, %v2062
    %v2115 = vsel %vm2105, %v2062, %v2064
    %v2116 = vsel %vm2105, %v2064, %v2066
    %v2117 = vsel %vm2105, %v2066, %v2068
    %v2118 = vsel %vm2105, %v2068, %v2070
    %v2119 = vsel %vm2105, %v2070, %v2072
    %v2120 = vsel %vm2105, %v2074, %v2076
    %v2121 = vsel %vm2105, %v2076, %v2078
    %v2122 = vsel %vm2105, %v2078, %v2080
    %v2123 = vsel %vm2105, %v2080, %v2082
    %v2124 = vsel %vm2105, %v2082, %v2084
    %v2125 = vsel %vm2105, %v2084, %v2086
    %v2126 = vsel %vm2105, %v2086, %v2088
    %v2127 = vsel %vm2105, %v2090, %v2092
    %v2128 = vsel %vm2105, %v2092, %v2094
    %v2129 = vsel %vm2105, %v2094, %v2096
    %v2130 = vsel %vm2105, %v2096, %v2098
    %v2131 = vsel %vm2105, %v2098, %v2100
    %v2132 = vsel %vm2105, %v2100, %v2102
    %v2133 = vsel %vm2105, %v2102, %v2104
    %v2162 = vadd.f32 %v1941, %v2106
    %v2163 = vadd.f32 %v1942, %v2107
    %v2164 = vadd.f32 %v1943, %v2108
    %v2165 = vadd.f32 %v1944, %v2109
    %v2166 = vadd.f32 %v1945, %v2110
    %v2167 = vadd.f32 %v1946, %v2111
    %v2168 = vadd.f32 %v1947, %v2112
    %v2169 = vadd.f32 %v1948, %v2113
    %v2170 = vadd.f32 %v1949, %v2114
    %v2171 = vadd.f32 %v1950, %v2115
    %v2172 = vadd.f32 %v1951, %v2116
    %v2173 = vadd.f32 %v1952, %v2117
    %v2174 = vadd.f32 %v1953, %v2118
    %v2175 = vadd.f32 %v1954, %v2119
    %v2176 = vadd.f32 %v1955, %v2120
    %v2177 = vadd.f32 %v1956, %v2121
    %v2178 = vadd.f32 %v1957, %v2122
    %v2179 = vadd.f32 %v1958, %v2123
    %v2180 = vadd.f32 %v1959, %v2124
    %v2181 = vadd.f32 %v1960, %v2125
    %v2182 = vadd.f32 %v1961, %v2126
    %v2183 = vadd.f32 %v1962, %v2127
    %v2184 = vadd.f32 %v1963, %v2128
    %v2185 = vadd.f32 %v1964, %v2129
    %v2186 = vadd.f32 %v1965, %v2130
    %v2187 = vadd.f32 %v1966, %v2131
    %v2188 = vadd.f32 %v1967, %v2132
    %v2189 = vadd.f32 %v1968, %v2133
    %2190 = vset.pattern.permute.xlu0 10
    %2191 = vperm.xlu0 %2190, %v35
    %v2192 = vpop.permute.xlu0 %2191
    %2194 = vset.pattern.permute.xlu0 10
    %2195 = vperm.xlu0 %2194, %v36
    %v2196 = vpop.permute.xlu0 %2195
    %v2198 = vmul.f32 %v2192, %v68
    %v2199 = vmul.f32 %v2192, %v72
    %v2200 = vmul.f32 %v2192, %v76
    %v2201 = vmul.f32 %v2192, %v80
    %v2202 = vmul.f32 %v2192, %v84
    %v2203 = vmul.f32 %v2192, %v88
    %v2204 = vmul.f32 %v2192, %v92
    %v2205 = vmul.f32 %v2192, %v202
    %v2206 = vmul.f32 %v2196, %v68
    %v2207 = vmul.f32 %v2196, %v72
    %v2208 = vmul.f32 %v2196, %v76
    %v2209 = vmul.f32 %v2196, %v80
    %v2210 = vmul.f32 %v2196, %v84
    %v2211 = vmul.f32 %v2196, %v88
    %v2212 = vmul.f32 %v2196, %v92
    %v2213 = vmul.f32 %v2196, %v202
    %v2214 = vmul.f32 %v2192, %v96
    %v2215 = vmul.f32 %v2192, %v100
    %v2216 = vmul.f32 %v2192, %v104
    %v2217 = vmul.f32 %v2192, %v108
    %v2218 = vmul.f32 %v2192, %v112
    %v2219 = vmul.f32 %v2192, %v116
    %v2220 = vmul.f32 %v2192, %v120
    %v2221 = vmul.f32 %v2192, %v206
    %v2222 = vmul.f32 %v2196, %v96
    %v2223 = vmul.f32 %v2196, %v100
    %v2224 = vmul.f32 %v2196, %v104
    %v2225 = vmul.f32 %v2196, %v108
    %v2226 = vmul.f32 %v2196, %v112
    %v2227 = vmul.f32 %v2196, %v116
    %v2228 = vmul.f32 %v2196, %v120
    %v2229 = vmul.f32 %v2196, %v206
    %2262 = vrot.lane.b32.xlu0 %v2198, 64
    %v2263 = vpop.permute.xlu0 %2262
    %2264 = vrot.lane.b32.xlu0 %v2199, 64
    %v2265 = vpop.permute.xlu0 %2264
    %2266 = vrot.lane.b32.xlu0 %v2200, 64
    %v2267 = vpop.permute.xlu0 %2266
    %2268 = vrot.lane.b32.xlu0 %v2201, 64
    %v2269 = vpop.permute.xlu0 %2268
    %2270 = vrot.lane.b32.xlu0 %v2202, 64
    %v2271 = vpop.permute.xlu0 %2270
    %2272 = vrot.lane.b32.xlu0 %v2203, 64
    %v2273 = vpop.permute.xlu0 %2272
    %2274 = vrot.lane.b32.xlu0 %v2204, 64
    %v2275 = vpop.permute.xlu0 %2274
    %2276 = vrot.lane.b32.xlu0 %v2205, 64
    %v2277 = vpop.permute.xlu0 %2276
    %2278 = vrot.lane.b32.xlu0 %v2206, 64
    %v2279 = vpop.permute.xlu0 %2278
    %2280 = vrot.lane.b32.xlu0 %v2207, 64
    %v2281 = vpop.permute.xlu0 %2280
    %2282 = vrot.lane.b32.xlu0 %v2208, 64
    %v2283 = vpop.permute.xlu0 %2282
    %2284 = vrot.lane.b32.xlu0 %v2209, 64
    %v2285 = vpop.permute.xlu0 %2284
    %2286 = vrot.lane.b32.xlu0 %v2210, 64
    %v2287 = vpop.permute.xlu0 %2286
    %2288 = vrot.lane.b32.xlu0 %v2211, 64
    %v2289 = vpop.permute.xlu0 %2288
    %2290 = vrot.lane.b32.xlu0 %v2212, 64
    %v2291 = vpop.permute.xlu0 %2290
    %2292 = vrot.lane.b32.xlu0 %v2213, 64
    %v2293 = vpop.permute.xlu0 %2292
    %2294 = vrot.lane.b32.xlu0 %v2214, 64
    %v2295 = vpop.permute.xlu0 %2294
    %2296 = vrot.lane.b32.xlu0 %v2215, 64
    %v2297 = vpop.permute.xlu0 %2296
    %2298 = vrot.lane.b32.xlu0 %v2216, 64
    %v2299 = vpop.permute.xlu0 %2298
    %2300 = vrot.lane.b32.xlu0 %v2217, 64
    %v2301 = vpop.permute.xlu0 %2300
    %2302 = vrot.lane.b32.xlu0 %v2218, 64
    %v2303 = vpop.permute.xlu0 %2302
    %2304 = vrot.lane.b32.xlu0 %v2219, 64
    %v2305 = vpop.permute.xlu0 %2304
    %2306 = vrot.lane.b32.xlu0 %v2220, 64
    %v2307 = vpop.permute.xlu0 %2306
    %2308 = vrot.lane.b32.xlu0 %v2221, 64
    %v2309 = vpop.permute.xlu0 %2308
    %2310 = vrot.lane.b32.xlu0 %v2222, 64
    %v2311 = vpop.permute.xlu0 %2310
    %2312 = vrot.lane.b32.xlu0 %v2223, 64
    %v2313 = vpop.permute.xlu0 %2312
    %2314 = vrot.lane.b32.xlu0 %v2224, 64
    %v2315 = vpop.permute.xlu0 %2314
    %2316 = vrot.lane.b32.xlu0 %v2225, 64
    %v2317 = vpop.permute.xlu0 %2316
    %2318 = vrot.lane.b32.xlu0 %v2226, 64
    %v2319 = vpop.permute.xlu0 %2318
    %2320 = vrot.lane.b32.xlu0 %v2227, 64
    %v2321 = vpop.permute.xlu0 %2320
    %2322 = vrot.lane.b32.xlu0 %v2228, 64
    %v2323 = vpop.permute.xlu0 %2322
    %2324 = vrot.lane.b32.xlu0 %v2229, 64
    %v2325 = vpop.permute.xlu0 %2324
    %vm2326 = vcmask 523264
    %v2327 = vsel %vm2326, %v2263, %v2265
    %v2328 = vsel %vm2326, %v2265, %v2267
    %v2329 = vsel %vm2326, %v2267, %v2269
    %v2330 = vsel %vm2326, %v2269, %v2271
    %v2331 = vsel %vm2326, %v2271, %v2273
    %v2332 = vsel %vm2326, %v2273, %v2275
    %v2333 = vsel %vm2326, %v2275, %v2277
    %v2334 = vsel %vm2326, %v2279, %v2281
    %v2335 = vsel %vm2326, %v2281, %v2283
    %v2336 = vsel %vm2326, %v2283, %v2285
    %v2337 = vsel %vm2326, %v2285, %v2287
    %v2338 = vsel %vm2326, %v2287, %v2289
    %v2339 = vsel %vm2326, %v2289, %v2291
    %v2340 = vsel %vm2326, %v2291, %v2293
    %v2341 = vsel %vm2326, %v2295, %v2297
    %v2342 = vsel %vm2326, %v2297, %v2299
    %v2343 = vsel %vm2326, %v2299, %v2301
    %v2344 = vsel %vm2326, %v2301, %v2303
    %v2345 = vsel %vm2326, %v2303, %v2305
    %v2346 = vsel %vm2326, %v2305, %v2307
    %v2347 = vsel %vm2326, %v2307, %v2309
    %v2348 = vsel %vm2326, %v2311, %v2313
    %v2349 = vsel %vm2326, %v2313, %v2315
    %v2350 = vsel %vm2326, %v2315, %v2317
    %v2351 = vsel %vm2326, %v2317, %v2319
    %v2352 = vsel %vm2326, %v2319, %v2321
    %v2353 = vsel %vm2326, %v2321, %v2323
    %v2354 = vsel %vm2326, %v2323, %v2325
    %v2383 = vadd.f32 %v2162, %v2327
    %v2384 = vadd.f32 %v2163, %v2328
    %v2385 = vadd.f32 %v2164, %v2329
    %v2386 = vadd.f32 %v2165, %v2330
    %v2387 = vadd.f32 %v2166, %v2331
    %v2388 = vadd.f32 %v2167, %v2332
    %v2389 = vadd.f32 %v2168, %v2333
    %v2390 = vadd.f32 %v2169, %v2334
    %v2391 = vadd.f32 %v2170, %v2335
    %v2392 = vadd.f32 %v2171, %v2336
    %v2393 = vadd.f32 %v2172, %v2337
    %v2394 = vadd.f32 %v2173, %v2338
    %v2395 = vadd.f32 %v2174, %v2339
    %v2396 = vadd.f32 %v2175, %v2340
    %v2397 = vadd.f32 %v2176, %v2341
    %v2398 = vadd.f32 %v2177, %v2342
    %v2399 = vadd.f32 %v2178, %v2343
    %v2400 = vadd.f32 %v2179, %v2344
    %v2401 = vadd.f32 %v2180, %v2345
    %v2402 = vadd.f32 %v2181, %v2346
    %v2403 = vadd.f32 %v2182, %v2347
    %v2404 = vadd.f32 %v2183, %v2348
    %v2405 = vadd.f32 %v2184, %v2349
    %v2406 = vadd.f32 %v2185, %v2350
    %v2407 = vadd.f32 %v2186, %v2351
    %v2408 = vadd.f32 %v2187, %v2352
    %v2409 = vadd.f32 %v2188, %v2353
    %v2410 = vadd.f32 %v2189, %v2354
    %2411 = vset.pattern.permute.xlu0 11
    %2412 = vperm.xlu0 %2411, %v35
    %v2413 = vpop.permute.xlu0 %2412
    %2415 = vset.pattern.permute.xlu0 11
    %2416 = vperm.xlu0 %2415, %v36
    %v2417 = vpop.permute.xlu0 %2416
    %v2419 = vmul.f32 %v2413, %v68
    %v2420 = vmul.f32 %v2413, %v72
    %v2421 = vmul.f32 %v2413, %v76
    %v2422 = vmul.f32 %v2413, %v80
    %v2423 = vmul.f32 %v2413, %v84
    %v2424 = vmul.f32 %v2413, %v88
    %v2425 = vmul.f32 %v2413, %v92
    %v2426 = vmul.f32 %v2413, %v202
    %v2427 = vmul.f32 %v2417, %v68
    %v2428 = vmul.f32 %v2417, %v72
    %v2429 = vmul.f32 %v2417, %v76
    %v2430 = vmul.f32 %v2417, %v80
    %v2431 = vmul.f32 %v2417, %v84
    %v2432 = vmul.f32 %v2417, %v88
    %v2433 = vmul.f32 %v2417, %v92
    %v2434 = vmul.f32 %v2417, %v202
    %v2435 = vmul.f32 %v2413, %v96
    %v2436 = vmul.f32 %v2413, %v100
    %v2437 = vmul.f32 %v2413, %v104
    %v2438 = vmul.f32 %v2413, %v108
    %v2439 = vmul.f32 %v2413, %v112
    %v2440 = vmul.f32 %v2413, %v116
    %v2441 = vmul.f32 %v2413, %v120
    %v2442 = vmul.f32 %v2413, %v206
    %v2443 = vmul.f32 %v2417, %v96
    %v2444 = vmul.f32 %v2417, %v100
    %v2445 = vmul.f32 %v2417, %v104
    %v2446 = vmul.f32 %v2417, %v108
    %v2447 = vmul.f32 %v2417, %v112
    %v2448 = vmul.f32 %v2417, %v116
    %v2449 = vmul.f32 %v2417, %v120
    %v2450 = vmul.f32 %v2417, %v206
    %2483 = vrot.lane.b32.xlu0 %v2419, 63
    %v2484 = vpop.permute.xlu0 %2483
    %2485 = vrot.lane.b32.xlu0 %v2420, 63
    %v2486 = vpop.permute.xlu0 %2485
    %2487 = vrot.lane.b32.xlu0 %v2421, 63
    %v2488 = vpop.permute.xlu0 %2487
    %2489 = vrot.lane.b32.xlu0 %v2422, 63
    %v2490 = vpop.permute.xlu0 %2489
    %2491 = vrot.lane.b32.xlu0 %v2423, 63
    %v2492 = vpop.permute.xlu0 %2491
    %2493 = vrot.lane.b32.xlu0 %v2424, 63
    %v2494 = vpop.permute.xlu0 %2493
    %2495 = vrot.lane.b32.xlu0 %v2425, 63
    %v2496 = vpop.permute.xlu0 %2495
    %2497 = vrot.lane.b32.xlu0 %v2426, 63
    %v2498 = vpop.permute.xlu0 %2497
    %2499 = vrot.lane.b32.xlu0 %v2427, 63
    %v2500 = vpop.permute.xlu0 %2499
    %2501 = vrot.lane.b32.xlu0 %v2428, 63
    %v2502 = vpop.permute.xlu0 %2501
    %2503 = vrot.lane.b32.xlu0 %v2429, 63
    %v2504 = vpop.permute.xlu0 %2503
    %2505 = vrot.lane.b32.xlu0 %v2430, 63
    %v2506 = vpop.permute.xlu0 %2505
    %2507 = vrot.lane.b32.xlu0 %v2431, 63
    %v2508 = vpop.permute.xlu0 %2507
    %2509 = vrot.lane.b32.xlu0 %v2432, 63
    %v2510 = vpop.permute.xlu0 %2509
    %2511 = vrot.lane.b32.xlu0 %v2433, 63
    %v2512 = vpop.permute.xlu0 %2511
    %2513 = vrot.lane.b32.xlu0 %v2434, 63
    %v2514 = vpop.permute.xlu0 %2513
    %2515 = vrot.lane.b32.xlu0 %v2435, 63
    %v2516 = vpop.permute.xlu0 %2515
    %2517 = vrot.lane.b32.xlu0 %v2436, 63
    %v2518 = vpop.permute.xlu0 %2517
    %2519 = vrot.lane.b32.xlu0 %v2437, 63
    %v2520 = vpop.permute.xlu0 %2519
    %2521 = vrot.lane.b32.xlu0 %v2438, 63
    %v2522 = vpop.permute.xlu0 %2521
    %2523 = vrot.lane.b32.xlu0 %v2439, 63
    %v2524 = vpop.permute.xlu0 %2523
    %2525 = vrot.lane.b32.xlu0 %v2440, 63
    %v2526 = vpop.permute.xlu0 %2525
    %2527 = vrot.lane.b32.xlu0 %v2441, 63
    %v2528 = vpop.permute.xlu0 %2527
    %2529 = vrot.lane.b32.xlu0 %v2442, 63
    %v2530 = vpop.permute.xlu0 %2529
    %2531 = vrot.lane.b32.xlu0 %v2443, 63
    %v2532 = vpop.permute.xlu0 %2531
    %2533 = vrot.lane.b32.xlu0 %v2444, 63
    %v2534 = vpop.permute.xlu0 %2533
    %2535 = vrot.lane.b32.xlu0 %v2445, 63
    %v2536 = vpop.permute.xlu0 %2535
    %2537 = vrot.lane.b32.xlu0 %v2446, 63
    %v2538 = vpop.permute.xlu0 %2537
    %2539 = vrot.lane.b32.xlu0 %v2447, 63
    %v2540 = vpop.permute.xlu0 %2539
    %2541 = vrot.lane.b32.xlu0 %v2448, 63
    %v2542 = vpop.permute.xlu0 %2541
    %2543 = vrot.lane.b32.xlu0 %v2449, 63
    %v2544 = vpop.permute.xlu0 %2543
    %2545 = vrot.lane.b32.xlu0 %v2450, 63
    %v2546 = vpop.permute.xlu0 %2545
    %vm2547 = vcmask 515072
    %v2548 = vsel %vm2547, %v2484, %v2486
    %v2549 = vsel %vm2547, %v2486, %v2488
    %v2550 = vsel %vm2547, %v2488, %v2490
    %v2551 = vsel %vm2547, %v2490, %v2492
    %v2552 = vsel %vm2547, %v2492, %v2494
    %v2553 = vsel %vm2547, %v2494, %v2496
    %v2554 = vsel %vm2547, %v2496, %v2498
    %v2555 = vsel %vm2547, %v2500, %v2502
    %v2556 = vsel %vm2547, %v2502, %v2504
    %v2557 = vsel %vm2547, %v2504, %v2506
    %v2558 = vsel %vm2547, %v2506, %v2508
    %v2559 = vsel %vm2547, %v2508, %v2510
    %v2560 = vsel %vm2547, %v2510, %v2512
    %v2561 = vsel %vm2547, %v2512, %v2514
    %v2562 = vsel %vm2547, %v2516, %v2518
    %v2563 = vsel %vm2547, %v2518, %v2520
    %v2564 = vsel %vm2547, %v2520, %v2522
    %v2565 = vsel %vm2547, %v2522, %v2524
    %v2566 = vsel %vm2547, %v2524, %v2526
    %v2567 = vsel %vm2547, %v2526, %v2528
    %v2568 = vsel %vm2547, %v2528, %v2530
    %v2569 = vsel %vm2547, %v2532, %v2534
    %v2570 = vsel %vm2547, %v2534, %v2536
    %v2571 = vsel %vm2547, %v2536, %v2538
    %v2572 = vsel %vm2547, %v2538, %v2540
    %v2573 = vsel %vm2547, %v2540, %v2542
    %v2574 = vsel %vm2547, %v2542, %v2544
    %v2575 = vsel %vm2547, %v2544, %v2546
    %v2604 = vadd.f32 %v2383, %v2548
    %v2605 = vadd.f32 %v2384, %v2549
    %v2606 = vadd.f32 %v2385, %v2550
    %v2607 = vadd.f32 %v2386, %v2551
    %v2608 = vadd.f32 %v2387, %v2552
    %v2609 = vadd.f32 %v2388, %v2553
    %v2610 = vadd.f32 %v2389, %v2554
    %v2611 = vadd.f32 %v2390, %v2555
    %v2612 = vadd.f32 %v2391, %v2556
    %v2613 = vadd.f32 %v2392, %v2557
    %v2614 = vadd.f32 %v2393, %v2558
    %v2615 = vadd.f32 %v2394, %v2559
    %v2616 = vadd.f32 %v2395, %v2560
    %v2617 = vadd.f32 %v2396, %v2561
    %v2618 = vadd.f32 %v2397, %v2562
    %v2619 = vadd.f32 %v2398, %v2563
    %v2620 = vadd.f32 %v2399, %v2564
    %v2621 = vadd.f32 %v2400, %v2565
    %v2622 = vadd.f32 %v2401, %v2566
    %v2623 = vadd.f32 %v2402, %v2567
    %v2624 = vadd.f32 %v2403, %v2568
    %v2625 = vadd.f32 %v2404, %v2569
    %v2626 = vadd.f32 %v2405, %v2570
    %v2627 = vadd.f32 %v2406, %v2571
    %v2628 = vadd.f32 %v2407, %v2572
    %v2629 = vadd.f32 %v2408, %v2573
    %v2630 = vadd.f32 %v2409, %v2574
    %v2631 = vadd.f32 %v2410, %v2575
    %2632 = vset.pattern.permute.xlu0 12
    %2633 = vperm.xlu0 %2632, %v35
    %v2634 = vpop.permute.xlu0 %2633
    %2636 = vset.pattern.permute.xlu0 12
    %2637 = vperm.xlu0 %2636, %v36
    %v2638 = vpop.permute.xlu0 %2637
    %v2640 = vmul.f32 %v2634, %v68
    %v2641 = vmul.f32 %v2634, %v72
    %v2642 = vmul.f32 %v2634, %v76
    %v2643 = vmul.f32 %v2634, %v80
    %v2644 = vmul.f32 %v2634, %v84
    %v2645 = vmul.f32 %v2634, %v88
    %v2646 = vmul.f32 %v2634, %v92
    %v2647 = vmul.f32 %v2634, %v202
    %v2648 = vmul.f32 %v2638, %v68
    %v2649 = vmul.f32 %v2638, %v72
    %v2650 = vmul.f32 %v2638, %v76
    %v2651 = vmul.f32 %v2638, %v80
    %v2652 = vmul.f32 %v2638, %v84
    %v2653 = vmul.f32 %v2638, %v88
    %v2654 = vmul.f32 %v2638, %v92
    %v2655 = vmul.f32 %v2638, %v202
    %v2656 = vmul.f32 %v2634, %v96
    %v2657 = vmul.f32 %v2634, %v100
    %v2658 = vmul.f32 %v2634, %v104
    %v2659 = vmul.f32 %v2634, %v108
    %v2660 = vmul.f32 %v2634, %v112
    %v2661 = vmul.f32 %v2634, %v116
    %v2662 = vmul.f32 %v2634, %v120
    %v2663 = vmul.f32 %v2634, %v206
    %v2664 = vmul.f32 %v2638, %v96
    %v2665 = vmul.f32 %v2638, %v100
    %v2666 = vmul.f32 %v2638, %v104
    %v2667 = vmul.f32 %v2638, %v108
    %v2668 = vmul.f32 %v2638, %v112
    %v2669 = vmul.f32 %v2638, %v116
    %v2670 = vmul.f32 %v2638, %v120
    %v2671 = vmul.f32 %v2638, %v206
    %2704 = vrot.lane.b32.xlu0 %v2640, 62
    %v2705 = vpop.permute.xlu0 %2704
    %2706 = vrot.lane.b32.xlu0 %v2641, 62
    %v2707 = vpop.permute.xlu0 %2706
    %2708 = vrot.lane.b32.xlu0 %v2642, 62
    %v2709 = vpop.permute.xlu0 %2708
    %2710 = vrot.lane.b32.xlu0 %v2643, 62
    %v2711 = vpop.permute.xlu0 %2710
    %2712 = vrot.lane.b32.xlu0 %v2644, 62
    %v2713 = vpop.permute.xlu0 %2712
    %2714 = vrot.lane.b32.xlu0 %v2645, 62
    %v2715 = vpop.permute.xlu0 %2714
    %2716 = vrot.lane.b32.xlu0 %v2646, 62
    %v2717 = vpop.permute.xlu0 %2716
    %2718 = vrot.lane.b32.xlu0 %v2647, 62
    %v2719 = vpop.permute.xlu0 %2718
    %2720 = vrot.lane.b32.xlu0 %v2648, 62
    %v2721 = vpop.permute.xlu0 %2720
    %2722 = vrot.lane.b32.xlu0 %v2649, 62
    %v2723 = vpop.permute.xlu0 %2722
    %2724 = vrot.lane.b32.xlu0 %v2650, 62
    %v2725 = vpop.permute.xlu0 %2724
    %2726 = vrot.lane.b32.xlu0 %v2651, 62
    %v2727 = vpop.permute.xlu0 %2726
    %2728 = vrot.lane.b32.xlu0 %v2652, 62
    %v2729 = vpop.permute.xlu0 %2728
    %2730 = vrot.lane.b32.xlu0 %v2653, 62
    %v2731 = vpop.permute.xlu0 %2730
    %2732 = vrot.lane.b32.xlu0 %v2654, 62
    %v2733 = vpop.permute.xlu0 %2732
    %2734 = vrot.lane.b32.xlu0 %v2655, 62
    %v2735 = vpop.permute.xlu0 %2734
    %2736 = vrot.lane.b32.xlu0 %v2656, 62
    %v2737 = vpop.permute.xlu0 %2736
    %2738 = vrot.lane.b32.xlu0 %v2657, 62
    %v2739 = vpop.permute.xlu0 %2738
    %2740 = vrot.lane.b32.xlu0 %v2658, 62
    %v2741 = vpop.permute.xlu0 %2740
    %2742 = vrot.lane.b32.xlu0 %v2659, 62
    %v2743 = vpop.permute.xlu0 %2742
    %2744 = vrot.lane.b32.xlu0 %v2660, 62
    %v2745 = vpop.permute.xlu0 %2744
    %2746 = vrot.lane.b32.xlu0 %v2661, 62
    %v2747 = vpop.permute.xlu0 %2746
    %2748 = vrot.lane.b32.xlu0 %v2662, 62
    %v2749 = vpop.permute.xlu0 %2748
    %2750 = vrot.lane.b32.xlu0 %v2663, 62
    %v2751 = vpop.permute.xlu0 %2750
    %2752 = vrot.lane.b32.xlu0 %v2664, 62
    %v2753 = vpop.permute.xlu0 %2752
    %2754 = vrot.lane.b32.xlu0 %v2665, 62
    %v2755 = vpop.permute.xlu0 %2754
    %2756 = vrot.lane.b32.xlu0 %v2666, 62
    %v2757 = vpop.permute.xlu0 %2756
    %2758 = vrot.lane.b32.xlu0 %v2667, 62
    %v2759 = vpop.permute.xlu0 %2758
    %2760 = vrot.lane.b32.xlu0 %v2668, 62
    %v2761 = vpop.permute.xlu0 %2760
    %2762 = vrot.lane.b32.xlu0 %v2669, 62
    %v2763 = vpop.permute.xlu0 %2762
    %2764 = vrot.lane.b32.xlu0 %v2670, 62
    %v2765 = vpop.permute.xlu0 %2764
    %2766 = vrot.lane.b32.xlu0 %v2671, 62
    %v2767 = vpop.permute.xlu0 %2766
    %vm2768 = vcmask 506880
    %v2769 = vsel %vm2768, %v2705, %v2707
    %v2770 = vsel %vm2768, %v2707, %v2709
    %v2771 = vsel %vm2768, %v2709, %v2711
    %v2772 = vsel %vm2768, %v2711, %v2713
    %v2773 = vsel %vm2768, %v2713, %v2715
    %v2774 = vsel %vm2768, %v2715, %v2717
    %v2775 = vsel %vm2768, %v2717, %v2719
    %v2776 = vsel %vm2768, %v2721, %v2723
    %v2777 = vsel %vm2768, %v2723, %v2725
    %v2778 = vsel %vm2768, %v2725, %v2727
    %v2779 = vsel %vm2768, %v2727, %v2729
    %v2780 = vsel %vm2768, %v2729, %v2731
    %v2781 = vsel %vm2768, %v2731, %v2733
    %v2782 = vsel %vm2768, %v2733, %v2735
    %v2783 = vsel %vm2768, %v2737, %v2739
    %v2784 = vsel %vm2768, %v2739, %v2741
    %v2785 = vsel %vm2768, %v2741, %v2743
    %v2786 = vsel %vm2768, %v2743, %v2745
    %v2787 = vsel %vm2768, %v2745, %v2747
    %v2788 = vsel %vm2768, %v2747, %v2749
    %v2789 = vsel %vm2768, %v2749, %v2751
    %v2790 = vsel %vm2768, %v2753, %v2755
    %v2791 = vsel %vm2768, %v2755, %v2757
    %v2792 = vsel %vm2768, %v2757, %v2759
    %v2793 = vsel %vm2768, %v2759, %v2761
    %v2794 = vsel %vm2768, %v2761, %v2763
    %v2795 = vsel %vm2768, %v2763, %v2765
    %v2796 = vsel %vm2768, %v2765, %v2767
    %v2825 = vadd.f32 %v2604, %v2769
    %v2826 = vadd.f32 %v2605, %v2770
    %v2827 = vadd.f32 %v2606, %v2771
    %v2828 = vadd.f32 %v2607, %v2772
    %v2829 = vadd.f32 %v2608, %v2773
    %v2830 = vadd.f32 %v2609, %v2774
    %v2831 = vadd.f32 %v2610, %v2775
    %v2832 = vadd.f32 %v2611, %v2776
    %v2833 = vadd.f32 %v2612, %v2777
    %v2834 = vadd.f32 %v2613, %v2778
    %v2835 = vadd.f32 %v2614, %v2779
    %v2836 = vadd.f32 %v2615, %v2780
    %v2837 = vadd.f32 %v2616, %v2781
    %v2838 = vadd.f32 %v2617, %v2782
    %v2839 = vadd.f32 %v2618, %v2783
    %v2840 = vadd.f32 %v2619, %v2784
    %v2841 = vadd.f32 %v2620, %v2785
    %v2842 = vadd.f32 %v2621, %v2786
    %v2843 = vadd.f32 %v2622, %v2787
    %v2844 = vadd.f32 %v2623, %v2788
    %v2845 = vadd.f32 %v2624, %v2789
    %v2846 = vadd.f32 %v2625, %v2790
    %v2847 = vadd.f32 %v2626, %v2791
    %v2848 = vadd.f32 %v2627, %v2792
    %v2849 = vadd.f32 %v2628, %v2793
    %v2850 = vadd.f32 %v2629, %v2794
    %v2851 = vadd.f32 %v2630, %v2795
    %v2852 = vadd.f32 %v2631, %v2796
    %2853 = vset.pattern.permute.xlu0 13
    %2854 = vperm.xlu0 %2853, %v35
    %v2855 = vpop.permute.xlu0 %2854
    %2857 = vset.pattern.permute.xlu0 13
    %2858 = vperm.xlu0 %2857, %v36
    %v2859 = vpop.permute.xlu0 %2858
    %v2861 = vmul.f32 %v2855, %v68
    %v2862 = vmul.f32 %v2855, %v72
    %v2863 = vmul.f32 %v2855, %v76
    %v2864 = vmul.f32 %v2855, %v80
    %v2865 = vmul.f32 %v2855, %v84
    %v2866 = vmul.f32 %v2855, %v88
    %v2867 = vmul.f32 %v2855, %v92
    %v2868 = vmul.f32 %v2855, %v202
    %v2869 = vmul.f32 %v2859, %v68
    %v2870 = vmul.f32 %v2859, %v72
    %v2871 = vmul.f32 %v2859, %v76
    %v2872 = vmul.f32 %v2859, %v80
    %v2873 = vmul.f32 %v2859, %v84
    %v2874 = vmul.f32 %v2859, %v88
    %v2875 = vmul.f32 %v2859, %v92
    %v2876 = vmul.f32 %v2859, %v202
    %v2877 = vmul.f32 %v2855, %v96
    %v2878 = vmul.f32 %v2855, %v100
    %v2879 = vmul.f32 %v2855, %v104
    %v2880 = vmul.f32 %v2855, %v108
    %v2881 = vmul.f32 %v2855, %v112
    %v2882 = vmul.f32 %v2855, %v116
    %v2883 = vmul.f32 %v2855, %v120
    %v2884 = vmul.f32 %v2855, %v206
    %v2885 = vmul.f32 %v2859, %v96
    %v2886 = vmul.f32 %v2859, %v100
    %v2887 = vmul.f32 %v2859, %v104
    %v2888 = vmul.f32 %v2859, %v108
    %v2889 = vmul.f32 %v2859, %v112
    %v2890 = vmul.f32 %v2859, %v116
    %v2891 = vmul.f32 %v2859, %v120
    %v2892 = vmul.f32 %v2859, %v206
    %2925 = vrot.lane.b32.xlu0 %v2861, 61
    %v2926 = vpop.permute.xlu0 %2925
    %2927 = vrot.lane.b32.xlu0 %v2862, 61
    %v2928 = vpop.permute.xlu0 %2927
    %2929 = vrot.lane.b32.xlu0 %v2863, 61
    %v2930 = vpop.permute.xlu0 %2929
    %2931 = vrot.lane.b32.xlu0 %v2864, 61
    %v2932 = vpop.permute.xlu0 %2931
    %2933 = vrot.lane.b32.xlu0 %v2865, 61
    %v2934 = vpop.permute.xlu0 %2933
    %2935 = vrot.lane.b32.xlu0 %v2866, 61
    %v2936 = vpop.permute.xlu0 %2935
    %2937 = vrot.lane.b32.xlu0 %v2867, 61
    %v2938 = vpop.permute.xlu0 %2937
    %2939 = vrot.lane.b32.xlu0 %v2868, 61
    %v2940 = vpop.permute.xlu0 %2939
    %2941 = vrot.lane.b32.xlu0 %v2869, 61
    %v2942 = vpop.permute.xlu0 %2941
    %2943 = vrot.lane.b32.xlu0 %v2870, 61
    %v2944 = vpop.permute.xlu0 %2943
    %2945 = vrot.lane.b32.xlu0 %v2871, 61
    %v2946 = vpop.permute.xlu0 %2945
    %2947 = vrot.lane.b32.xlu0 %v2872, 61
    %v2948 = vpop.permute.xlu0 %2947
    %2949 = vrot.lane.b32.xlu0 %v2873, 61
    %v2950 = vpop.permute.xlu0 %2949
    %2951 = vrot.lane.b32.xlu0 %v2874, 61
    %v2952 = vpop.permute.xlu0 %2951
    %2953 = vrot.lane.b32.xlu0 %v2875, 61
    %v2954 = vpop.permute.xlu0 %2953
    %2955 = vrot.lane.b32.xlu0 %v2876, 61
    %v2956 = vpop.permute.xlu0 %2955
    %2957 = vrot.lane.b32.xlu0 %v2877, 61
    %v2958 = vpop.permute.xlu0 %2957
    %2959 = vrot.lane.b32.xlu0 %v2878, 61
    %v2960 = vpop.permute.xlu0 %2959
    %2961 = vrot.lane.b32.xlu0 %v2879, 61
    %v2962 = vpop.permute.xlu0 %2961
    %2963 = vrot.lane.b32.xlu0 %v2880, 61
    %v2964 = vpop.permute.xlu0 %2963
    %2965 = vrot.lane.b32.xlu0 %v2881, 61
    %v2966 = vpop.permute.xlu0 %2965
    %2967 = vrot.lane.b32.xlu0 %v2882, 61
    %v2968 = vpop.permute.xlu0 %2967
    %2969 = vrot.lane.b32.xlu0 %v2883, 61
    %v2970 = vpop.permute.xlu0 %2969
    %2971 = vrot.lane.b32.xlu0 %v2884, 61
    %v2972 = vpop.permute.xlu0 %2971
    %2973 = vrot.lane.b32.xlu0 %v2885, 61
    %v2974 = vpop.permute.xlu0 %2973
    %2975 = vrot.lane.b32.xlu0 %v2886, 61
    %v2976 = vpop.permute.xlu0 %2975
    %2977 = vrot.lane.b32.xlu0 %v2887, 61
    %v2978 = vpop.permute.xlu0 %2977
    %2979 = vrot.lane.b32.xlu0 %v2888, 61
    %v2980 = vpop.permute.xlu0 %2979
    %2981 = vrot.lane.b32.xlu0 %v2889, 61
    %v2982 = vpop.permute.xlu0 %2981
    %2983 = vrot.lane.b32.xlu0 %v2890, 61
    %v2984 = vpop.permute.xlu0 %2983
    %2985 = vrot.lane.b32.xlu0 %v2891, 61
    %v2986 = vpop.permute.xlu0 %2985
    %2987 = vrot.lane.b32.xlu0 %v2892, 61
    %v2988 = vpop.permute.xlu0 %2987
    %vm2989 = vcmask 498688
    %v2990 = vsel %vm2989, %v2926, %v2928
    %v2991 = vsel %vm2989, %v2928, %v2930
    %v2992 = vsel %vm2989, %v2930, %v2932
    %v2993 = vsel %vm2989, %v2932, %v2934
    %v2994 = vsel %vm2989, %v2934, %v2936
    %v2995 = vsel %vm2989, %v2936, %v2938
    %v2996 = vsel %vm2989, %v2938, %v2940
    %v2997 = vsel %vm2989, %v2942, %v2944
    %v2998 = vsel %vm2989, %v2944, %v2946
    %v2999 = vsel %vm2989, %v2946, %v2948
    %v3000 = vsel %vm2989, %v2948, %v2950
    %v3001 = vsel %vm2989, %v2950, %v2952
    %v3002 = vsel %vm2989, %v2952, %v2954
    %v3003 = vsel %vm2989, %v2954, %v2956
    %v3004 = vsel %vm2989, %v2958, %v2960
    %v3005 = vsel %vm2989, %v2960, %v2962
    %v3006 = vsel %vm2989, %v2962, %v2964
    %v3007 = vsel %vm2989, %v2964, %v2966
    %v3008 = vsel %vm2989, %v2966, %v2968
    %v3009 = vsel %vm2989, %v2968, %v2970
    %v3010 = vsel %vm2989, %v2970, %v2972
    %v3011 = vsel %vm2989, %v2974, %v2976
    %v3012 = vsel %vm2989, %v2976, %v2978
    %v3013 = vsel %vm2989, %v2978, %v2980
    %v3014 = vsel %vm2989, %v2980, %v2982
    %v3015 = vsel %vm2989, %v2982, %v2984
    %v3016 = vsel %vm2989, %v2984, %v2986
    %v3017 = vsel %vm2989, %v2986, %v2988
    %v3046 = vadd.f32 %v2825, %v2990
    %v3047 = vadd.f32 %v2826, %v2991
    %v3048 = vadd.f32 %v2827, %v2992
    %v3049 = vadd.f32 %v2828, %v2993
    %v3050 = vadd.f32 %v2829, %v2994
    %v3051 = vadd.f32 %v2830, %v2995
    %v3052 = vadd.f32 %v2831, %v2996
    %v3053 = vadd.f32 %v2832, %v2997
    %v3054 = vadd.f32 %v2833, %v2998
    %v3055 = vadd.f32 %v2834, %v2999
    %v3056 = vadd.f32 %v2835, %v3000
    %v3057 = vadd.f32 %v2836, %v3001
    %v3058 = vadd.f32 %v2837, %v3002
    %v3059 = vadd.f32 %v2838, %v3003
    %v3060 = vadd.f32 %v2839, %v3004
    %v3061 = vadd.f32 %v2840, %v3005
    %v3062 = vadd.f32 %v2841, %v3006
    %v3063 = vadd.f32 %v2842, %v3007
    %v3064 = vadd.f32 %v2843, %v3008
    %v3065 = vadd.f32 %v2844, %v3009
    %v3066 = vadd.f32 %v2845, %v3010
    %v3067 = vadd.f32 %v2846, %v3011
    %v3068 = vadd.f32 %v2847, %v3012
    %v3069 = vadd.f32 %v2848, %v3013
    %v3070 = vadd.f32 %v2849, %v3014
    %v3071 = vadd.f32 %v2850, %v3015
    %v3072 = vadd.f32 %v2851, %v3016
    %v3073 = vadd.f32 %v2852, %v3017
    %3074 = vset.pattern.permute.xlu0 14
    %3075 = vperm.xlu0 %3074, %v35
    %v3076 = vpop.permute.xlu0 %3075
    %3078 = vset.pattern.permute.xlu0 14
    %3079 = vperm.xlu0 %3078, %v36
    %v3080 = vpop.permute.xlu0 %3079
    %v3082 = vmul.f32 %v3076, %v68
    %v3083 = vmul.f32 %v3076, %v72
    %v3084 = vmul.f32 %v3076, %v76
    %v3085 = vmul.f32 %v3076, %v80
    %v3086 = vmul.f32 %v3076, %v84
    %v3087 = vmul.f32 %v3076, %v88
    %v3088 = vmul.f32 %v3076, %v92
    %v3089 = vmul.f32 %v3076, %v202
    %v3090 = vmul.f32 %v3080, %v68
    %v3091 = vmul.f32 %v3080, %v72
    %v3092 = vmul.f32 %v3080, %v76
    %v3093 = vmul.f32 %v3080, %v80
    %v3094 = vmul.f32 %v3080, %v84
    %v3095 = vmul.f32 %v3080, %v88
    %v3096 = vmul.f32 %v3080, %v92
    %v3097 = vmul.f32 %v3080, %v202
    %v3098 = vmul.f32 %v3076, %v96
    %v3099 = vmul.f32 %v3076, %v100
    %v3100 = vmul.f32 %v3076, %v104
    %v3101 = vmul.f32 %v3076, %v108
    %v3102 = vmul.f32 %v3076, %v112
    %v3103 = vmul.f32 %v3076, %v116
    %v3104 = vmul.f32 %v3076, %v120
    %v3105 = vmul.f32 %v3076, %v206
    %v3106 = vmul.f32 %v3080, %v96
    %v3107 = vmul.f32 %v3080, %v100
    %v3108 = vmul.f32 %v3080, %v104
    %v3109 = vmul.f32 %v3080, %v108
    %v3110 = vmul.f32 %v3080, %v112
    %v3111 = vmul.f32 %v3080, %v116
    %v3112 = vmul.f32 %v3080, %v120
    %v3113 = vmul.f32 %v3080, %v206
    %3146 = vrot.lane.b32.xlu0 %v3082, 60
    %v3147 = vpop.permute.xlu0 %3146
    %3148 = vrot.lane.b32.xlu0 %v3083, 60
    %v3149 = vpop.permute.xlu0 %3148
    %3150 = vrot.lane.b32.xlu0 %v3084, 60
    %v3151 = vpop.permute.xlu0 %3150
    %3152 = vrot.lane.b32.xlu0 %v3085, 60
    %v3153 = vpop.permute.xlu0 %3152
    %3154 = vrot.lane.b32.xlu0 %v3086, 60
    %v3155 = vpop.permute.xlu0 %3154
    %3156 = vrot.lane.b32.xlu0 %v3087, 60
    %v3157 = vpop.permute.xlu0 %3156
    %3158 = vrot.lane.b32.xlu0 %v3088, 60
    %v3159 = vpop.permute.xlu0 %3158
    %3160 = vrot.lane.b32.xlu0 %v3089, 60
    %v3161 = vpop.permute.xlu0 %3160
    %3162 = vrot.lane.b32.xlu0 %v3090, 60
    %v3163 = vpop.permute.xlu0 %3162
    %3164 = vrot.lane.b32.xlu0 %v3091, 60
    %v3165 = vpop.permute.xlu0 %3164
    %3166 = vrot.lane.b32.xlu0 %v3092, 60
    %v3167 = vpop.permute.xlu0 %3166
    %3168 = vrot.lane.b32.xlu0 %v3093, 60
    %v3169 = vpop.permute.xlu0 %3168
    %3170 = vrot.lane.b32.xlu0 %v3094, 60
    %v3171 = vpop.permute.xlu0 %3170
    %3172 = vrot.lane.b32.xlu0 %v3095, 60
    %v3173 = vpop.permute.xlu0 %3172
    %3174 = vrot.lane.b32.xlu0 %v3096, 60
    %v3175 = vpop.permute.xlu0 %3174
    %3176 = vrot.lane.b32.xlu0 %v3097, 60
    %v3177 = vpop.permute.xlu0 %3176
    %3178 = vrot.lane.b32.xlu0 %v3098, 60
    %v3179 = vpop.permute.xlu0 %3178
    %3180 = vrot.lane.b32.xlu0 %v3099, 60
    %v3181 = vpop.permute.xlu0 %3180
    %3182 = vrot.lane.b32.xlu0 %v3100, 60
    %v3183 = vpop.permute.xlu0 %3182
    %3184 = vrot.lane.b32.xlu0 %v3101, 60
    %v3185 = vpop.permute.xlu0 %3184
    %3186 = vrot.lane.b32.xlu0 %v3102, 60
    %v3187 = vpop.permute.xlu0 %3186
    %3188 = vrot.lane.b32.xlu0 %v3103, 60
    %v3189 = vpop.permute.xlu0 %3188
    %3190 = vrot.lane.b32.xlu0 %v3104, 60
    %v3191 = vpop.permute.xlu0 %3190
    %3192 = vrot.lane.b32.xlu0 %v3105, 60
    %v3193 = vpop.permute.xlu0 %3192
    %3194 = vrot.lane.b32.xlu0 %v3106, 60
    %v3195 = vpop.permute.xlu0 %3194
    %3196 = vrot.lane.b32.xlu0 %v3107, 60
    %v3197 = vpop.permute.xlu0 %3196
    %3198 = vrot.lane.b32.xlu0 %v3108, 60
    %v3199 = vpop.permute.xlu0 %3198
    %3200 = vrot.lane.b32.xlu0 %v3109, 60
    %v3201 = vpop.permute.xlu0 %3200
    %3202 = vrot.lane.b32.xlu0 %v3110, 60
    %v3203 = vpop.permute.xlu0 %3202
    %3204 = vrot.lane.b32.xlu0 %v3111, 60
    %v3205 = vpop.permute.xlu0 %3204
    %3206 = vrot.lane.b32.xlu0 %v3112, 60
    %v3207 = vpop.permute.xlu0 %3206
    %3208 = vrot.lane.b32.xlu0 %v3113, 60
    %v3209 = vpop.permute.xlu0 %3208
    %vm3210 = vcmask 490496
    %v3211 = vsel %vm3210, %v3147, %v3149
    %v3212 = vsel %vm3210, %v3149, %v3151
    %v3213 = vsel %vm3210, %v3151, %v3153
    %v3214 = vsel %vm3210, %v3153, %v3155
    %v3215 = vsel %vm3210, %v3155, %v3157
    %v3216 = vsel %vm3210, %v3157, %v3159
    %v3217 = vsel %vm3210, %v3159, %v3161
    %v3218 = vsel %vm3210, %v3163, %v3165
    %v3219 = vsel %vm3210, %v3165, %v3167
    %v3220 = vsel %vm3210, %v3167, %v3169
    %v3221 = vsel %vm3210, %v3169, %v3171
    %v3222 = vsel %vm3210, %v3171, %v3173
    %v3223 = vsel %vm3210, %v3173, %v3175
    %v3224 = vsel %vm3210, %v3175, %v3177
    %v3225 = vsel %vm3210, %v3179, %v3181
    %v3226 = vsel %vm3210, %v3181, %v3183
    %v3227 = vsel %vm3210, %v3183, %v3185
    %v3228 = vsel %vm3210, %v3185, %v3187
    %v3229 = vsel %vm3210, %v3187, %v3189
    %v3230 = vsel %vm3210, %v3189, %v3191
    %v3231 = vsel %vm3210, %v3191, %v3193
    %v3232 = vsel %vm3210, %v3195, %v3197
    %v3233 = vsel %vm3210, %v3197, %v3199
    %v3234 = vsel %vm3210, %v3199, %v3201
    %v3235 = vsel %vm3210, %v3201, %v3203
    %v3236 = vsel %vm3210, %v3203, %v3205
    %v3237 = vsel %vm3210, %v3205, %v3207
    %v3238 = vsel %vm3210, %v3207, %v3209
    %v3267 = vadd.f32 %v3046, %v3211
    %v3268 = vadd.f32 %v3047, %v3212
    %v3269 = vadd.f32 %v3048, %v3213
    %v3270 = vadd.f32 %v3049, %v3214
    %v3271 = vadd.f32 %v3050, %v3215
    %v3272 = vadd.f32 %v3051, %v3216
    %v3273 = vadd.f32 %v3052, %v3217
    %v3274 = vadd.f32 %v3053, %v3218
    %v3275 = vadd.f32 %v3054, %v3219
    %v3276 = vadd.f32 %v3055, %v3220
    %v3277 = vadd.f32 %v3056, %v3221
    %v3278 = vadd.f32 %v3057, %v3222
    %v3279 = vadd.f32 %v3058, %v3223
    %v3280 = vadd.f32 %v3059, %v3224
    %v3281 = vadd.f32 %v3060, %v3225
    %v3282 = vadd.f32 %v3061, %v3226
    %v3283 = vadd.f32 %v3062, %v3227
    %v3284 = vadd.f32 %v3063, %v3228
    %v3285 = vadd.f32 %v3064, %v3229
    %v3286 = vadd.f32 %v3065, %v3230
    %v3287 = vadd.f32 %v3066, %v3231
    %v3288 = vadd.f32 %v3067, %v3232
    %v3289 = vadd.f32 %v3068, %v3233
    %v3290 = vadd.f32 %v3069, %v3234
    %v3291 = vadd.f32 %v3070, %v3235
    %v3292 = vadd.f32 %v3071, %v3236
    %v3293 = vadd.f32 %v3072, %v3237
    %v3294 = vadd.f32 %v3073, %v3238
    %3295 = vset.pattern.permute.xlu0 15
    %3296 = vperm.xlu0 %3295, %v35
    %v3297 = vpop.permute.xlu0 %3296
    %3299 = vset.pattern.permute.xlu0 15
    %3300 = vperm.xlu0 %3299, %v36
    %v3301 = vpop.permute.xlu0 %3300
    %v3303 = vmul.f32 %v3297, %v68
    %v3304 = vmul.f32 %v3297, %v72
    %v3305 = vmul.f32 %v3297, %v76
    %v3306 = vmul.f32 %v3297, %v80
    %v3307 = vmul.f32 %v3297, %v84
    %v3308 = vmul.f32 %v3297, %v88
    %v3309 = vmul.f32 %v3297, %v92
    %v3310 = vmul.f32 %v3297, %v202
    %v3311 = vmul.f32 %v3301, %v68
    %v3312 = vmul.f32 %v3301, %v72
    %v3313 = vmul.f32 %v3301, %v76
    %v3314 = vmul.f32 %v3301, %v80
    %v3315 = vmul.f32 %v3301, %v84
    %v3316 = vmul.f32 %v3301, %v88
    %v3317 = vmul.f32 %v3301, %v92
    %v3318 = vmul.f32 %v3301, %v202
    %v3319 = vmul.f32 %v3297, %v96
    %v3320 = vmul.f32 %v3297, %v100
    %v3321 = vmul.f32 %v3297, %v104
    %v3322 = vmul.f32 %v3297, %v108
    %v3323 = vmul.f32 %v3297, %v112
    %v3324 = vmul.f32 %v3297, %v116
    %v3325 = vmul.f32 %v3297, %v120
    %v3326 = vmul.f32 %v3297, %v206
    %v3327 = vmul.f32 %v3301, %v96
    %v3328 = vmul.f32 %v3301, %v100
    %v3329 = vmul.f32 %v3301, %v104
    %v3330 = vmul.f32 %v3301, %v108
    %v3331 = vmul.f32 %v3301, %v112
    %v3332 = vmul.f32 %v3301, %v116
    %v3333 = vmul.f32 %v3301, %v120
    %v3334 = vmul.f32 %v3301, %v206
    %3367 = vrot.lane.b32.xlu0 %v3303, 32
    %v3368 = vpop.permute.xlu0 %3367
    %3369 = vrot.lane.b32.xlu0 %v3304, 32
    %v3370 = vpop.permute.xlu0 %3369
    %3371 = vrot.lane.b32.xlu0 %v3305, 32
    %v3372 = vpop.permute.xlu0 %3371
    %3373 = vrot.lane.b32.xlu0 %v3306, 32
    %v3374 = vpop.permute.xlu0 %3373
    %3375 = vrot.lane.b32.xlu0 %v3307, 32
    %v3376 = vpop.permute.xlu0 %3375
    %3377 = vrot.lane.b32.xlu0 %v3308, 32
    %v3378 = vpop.permute.xlu0 %3377
    %3379 = vrot.lane.b32.xlu0 %v3309, 32
    %v3380 = vpop.permute.xlu0 %3379
    %3381 = vrot.lane.b32.xlu0 %v3310, 32
    %v3382 = vpop.permute.xlu0 %3381
    %3383 = vrot.lane.b32.xlu0 %v3311, 32
    %v3384 = vpop.permute.xlu0 %3383
    %3385 = vrot.lane.b32.xlu0 %v3312, 32
    %v3386 = vpop.permute.xlu0 %3385
    %3387 = vrot.lane.b32.xlu0 %v3313, 32
    %v3388 = vpop.permute.xlu0 %3387
    %3389 = vrot.lane.b32.xlu0 %v3314, 32
    %v3390 = vpop.permute.xlu0 %3389
    %3391 = vrot.lane.b32.xlu0 %v3315, 32
    %v3392 = vpop.permute.xlu0 %3391
    %3393 = vrot.lane.b32.xlu0 %v3316, 32
    %v3394 = vpop.permute.xlu0 %3393
    %3395 = vrot.lane.b32.xlu0 %v3317, 32
    %v3396 = vpop.permute.xlu0 %3395
    %3397 = vrot.lane.b32.xlu0 %v3318, 32
    %v3398 = vpop.permute.xlu0 %3397
    %3399 = vrot.lane.b32.xlu0 %v3319, 32
    %v3400 = vpop.permute.xlu0 %3399
    %3401 = vrot.lane.b32.xlu0 %v3320, 32
    %v3402 = vpop.permute.xlu0 %3401
    %3403 = vrot.lane.b32.xlu0 %v3321, 32
    %v3404 = vpop.permute.xlu0 %3403
    %3405 = vrot.lane.b32.xlu0 %v3322, 32
    %v3406 = vpop.permute.xlu0 %3405
    %3407 = vrot.lane.b32.xlu0 %v3323, 32
    %v3408 = vpop.permute.xlu0 %3407
    %3409 = vrot.lane.b32.xlu0 %v3324, 32
    %v3410 = vpop.permute.xlu0 %3409
    %3411 = vrot.lane.b32.xlu0 %v3325, 32
    %v3412 = vpop.permute.xlu0 %3411
    %3413 = vrot.lane.b32.xlu0 %v3326, 32
    %v3414 = vpop.permute.xlu0 %3413
    %3415 = vrot.lane.b32.xlu0 %v3327, 32
    %v3416 = vpop.permute.xlu0 %3415
    %3417 = vrot.lane.b32.xlu0 %v3328, 32
    %v3418 = vpop.permute.xlu0 %3417
    %3419 = vrot.lane.b32.xlu0 %v3329, 32
    %v3420 = vpop.permute.xlu0 %3419
    %3421 = vrot.lane.b32.xlu0 %v3330, 32
    %v3422 = vpop.permute.xlu0 %3421
    %3423 = vrot.lane.b32.xlu0 %v3331, 32
    %v3424 = vpop.permute.xlu0 %3423
    %3425 = vrot.lane.b32.xlu0 %v3332, 32
    %v3426 = vpop.permute.xlu0 %3425
    %3427 = vrot.lane.b32.xlu0 %v3333, 32
    %v3428 = vpop.permute.xlu0 %3427
    %3429 = vrot.lane.b32.xlu0 %v3334, 32
    %v3430 = vpop.permute.xlu0 %3429
    %vm3431 = vcmask 261120
    %v3432 = vsel %vm3431, %v3368, %v3370
    %v3433 = vsel %vm3431, %v3370, %v3372
    %v3434 = vsel %vm3431, %v3372, %v3374
    %v3435 = vsel %vm3431, %v3374, %v3376
    %v3436 = vsel %vm3431, %v3376, %v3378
    %v3437 = vsel %vm3431, %v3378, %v3380
    %v3438 = vsel %vm3431, %v3380, %v3382
    %v3439 = vsel %vm3431, %v3384, %v3386
    %v3440 = vsel %vm3431, %v3386, %v3388
    %v3441 = vsel %vm3431, %v3388, %v3390
    %v3442 = vsel %vm3431, %v3390, %v3392
    %v3443 = vsel %vm3431, %v3392, %v3394
    %v3444 = vsel %vm3431, %v3394, %v3396
    %v3445 = vsel %vm3431, %v3396, %v3398
    %v3446 = vsel %vm3431, %v3400, %v3402
    %v3447 = vsel %vm3431, %v3402, %v3404
    %v3448 = vsel %vm3431, %v3404, %v3406
    %v3449 = vsel %vm3431, %v3406, %v3408
    %v3450 = vsel %vm3431, %v3408, %v3410
    %v3451 = vsel %vm3431, %v3410, %v3412
    %v3452 = vsel %vm3431, %v3412, %v3414
    %v3453 = vsel %vm3431, %v3416, %v3418
    %v3454 = vsel %vm3431, %v3418, %v3420
    %v3455 = vsel %vm3431, %v3420, %v3422
    %v3456 = vsel %vm3431, %v3422, %v3424
    %v3457 = vsel %vm3431, %v3424, %v3426
    %v3458 = vsel %vm3431, %v3426, %v3428
    %v3459 = vsel %vm3431, %v3428, %v3430
    %v3488 = vadd.f32 %v3267, %v3432
    %v3489 = vadd.f32 %v3268, %v3433
    %v3490 = vadd.f32 %v3269, %v3434
    %v3491 = vadd.f32 %v3270, %v3435
    %v3492 = vadd.f32 %v3271, %v3436
    %v3493 = vadd.f32 %v3272, %v3437
    %v3494 = vadd.f32 %v3273, %v3438
    %v3495 = vadd.f32 %v3274, %v3439
    %v3496 = vadd.f32 %v3275, %v3440
    %v3497 = vadd.f32 %v3276, %v3441
    %v3498 = vadd.f32 %v3277, %v3442
    %v3499 = vadd.f32 %v3278, %v3443
    %v3500 = vadd.f32 %v3279, %v3444
    %v3501 = vadd.f32 %v3280, %v3445
    %v3502 = vadd.f32 %v3281, %v3446
    %v3503 = vadd.f32 %v3282, %v3447
    %v3504 = vadd.f32 %v3283, %v3448
    %v3505 = vadd.f32 %v3284, %v3449
    %v3506 = vadd.f32 %v3285, %v3450
    %v3507 = vadd.f32 %v3286, %v3451
    %v3508 = vadd.f32 %v3287, %v3452
    %v3509 = vadd.f32 %v3288, %v3453
    %v3510 = vadd.f32 %v3289, %v3454
    %v3511 = vadd.f32 %v3290, %v3455
    %v3512 = vadd.f32 %v3291, %v3456
    %v3513 = vadd.f32 %v3292, %v3457
    %v3514 = vadd.f32 %v3293, %v3458
    %v3515 = vadd.f32 %v3294, %v3459
    %3516 = vset.pattern.permute.xlu0 16
    %3517 = vperm.xlu0 %3516, %v35
    %v3518 = vpop.permute.xlu0 %3517
    %3520 = vset.pattern.permute.xlu0 16
    %3521 = vperm.xlu0 %3520, %v36
    %v3522 = vpop.permute.xlu0 %3521
    %v3524 = vmul.f32 %v3518, %v68
    %v3525 = vmul.f32 %v3518, %v72
    %v3526 = vmul.f32 %v3518, %v76
    %v3527 = vmul.f32 %v3518, %v80
    %v3528 = vmul.f32 %v3518, %v84
    %v3529 = vmul.f32 %v3518, %v88
    %v3530 = vmul.f32 %v3518, %v92
    %v3531 = vmul.f32 %v3518, %v202
    %v3532 = vmul.f32 %v3522, %v68
    %v3533 = vmul.f32 %v3522, %v72
    %v3534 = vmul.f32 %v3522, %v76
    %v3535 = vmul.f32 %v3522, %v80
    %v3536 = vmul.f32 %v3522, %v84
    %v3537 = vmul.f32 %v3522, %v88
    %v3538 = vmul.f32 %v3522, %v92
    %v3539 = vmul.f32 %v3522, %v202
    %v3540 = vmul.f32 %v3518, %v96
    %v3541 = vmul.f32 %v3518, %v100
    %v3542 = vmul.f32 %v3518, %v104
    %v3543 = vmul.f32 %v3518, %v108
    %v3544 = vmul.f32 %v3518, %v112
    %v3545 = vmul.f32 %v3518, %v116
    %v3546 = vmul.f32 %v3518, %v120
    %v3547 = vmul.f32 %v3518, %v206
    %v3548 = vmul.f32 %v3522, %v96
    %v3549 = vmul.f32 %v3522, %v100
    %v3550 = vmul.f32 %v3522, %v104
    %v3551 = vmul.f32 %v3522, %v108
    %v3552 = vmul.f32 %v3522, %v112
    %v3553 = vmul.f32 %v3522, %v116
    %v3554 = vmul.f32 %v3522, %v120
    %v3555 = vmul.f32 %v3522, %v206
    %3588 = vrot.lane.b32.xlu0 %v3524, 31
    %v3589 = vpop.permute.xlu0 %3588
    %3590 = vrot.lane.b32.xlu0 %v3525, 31
    %v3591 = vpop.permute.xlu0 %3590
    %3592 = vrot.lane.b32.xlu0 %v3526, 31
    %v3593 = vpop.permute.xlu0 %3592
    %3594 = vrot.lane.b32.xlu0 %v3527, 31
    %v3595 = vpop.permute.xlu0 %3594
    %3596 = vrot.lane.b32.xlu0 %v3528, 31
    %v3597 = vpop.permute.xlu0 %3596
    %3598 = vrot.lane.b32.xlu0 %v3529, 31
    %v3599 = vpop.permute.xlu0 %3598
    %3600 = vrot.lane.b32.xlu0 %v3530, 31
    %v3601 = vpop.permute.xlu0 %3600
    %3602 = vrot.lane.b32.xlu0 %v3531, 31
    %v3603 = vpop.permute.xlu0 %3602
    %3604 = vrot.lane.b32.xlu0 %v3532, 31
    %v3605 = vpop.permute.xlu0 %3604
    %3606 = vrot.lane.b32.xlu0 %v3533, 31
    %v3607 = vpop.permute.xlu0 %3606
    %3608 = vrot.lane.b32.xlu0 %v3534, 31
    %v3609 = vpop.permute.xlu0 %3608
    %3610 = vrot.lane.b32.xlu0 %v3535, 31
    %v3611 = vpop.permute.xlu0 %3610
    %3612 = vrot.lane.b32.xlu0 %v3536, 31
    %v3613 = vpop.permute.xlu0 %3612
    %3614 = vrot.lane.b32.xlu0 %v3537, 31
    %v3615 = vpop.permute.xlu0 %3614
    %3616 = vrot.lane.b32.xlu0 %v3538, 31
    %v3617 = vpop.permute.xlu0 %3616
    %3618 = vrot.lane.b32.xlu0 %v3539, 31
    %v3619 = vpop.permute.xlu0 %3618
    %3620 = vrot.lane.b32.xlu0 %v3540, 31
    %v3621 = vpop.permute.xlu0 %3620
    %3622 = vrot.lane.b32.xlu0 %v3541, 31
    %v3623 = vpop.permute.xlu0 %3622
    %3624 = vrot.lane.b32.xlu0 %v3542, 31
    %v3625 = vpop.permute.xlu0 %3624
    %3626 = vrot.lane.b32.xlu0 %v3543, 31
    %v3627 = vpop.permute.xlu0 %3626
    %3628 = vrot.lane.b32.xlu0 %v3544, 31
    %v3629 = vpop.permute.xlu0 %3628
    %3630 = vrot.lane.b32.xlu0 %v3545, 31
    %v3631 = vpop.permute.xlu0 %3630
    %3632 = vrot.lane.b32.xlu0 %v3546, 31
    %v3633 = vpop.permute.xlu0 %3632
    %3634 = vrot.lane.b32.xlu0 %v3547, 31
    %v3635 = vpop.permute.xlu0 %3634
    %3636 = vrot.lane.b32.xlu0 %v3548, 31
    %v3637 = vpop.permute.xlu0 %3636
    %3638 = vrot.lane.b32.xlu0 %v3549, 31
    %v3639 = vpop.permute.xlu0 %3638
    %3640 = vrot.lane.b32.xlu0 %v3550, 31
    %v3641 = vpop.permute.xlu0 %3640
    %3642 = vrot.lane.b32.xlu0 %v3551, 31
    %v3643 = vpop.permute.xlu0 %3642
    %3644 = vrot.lane.b32.xlu0 %v3552, 31
    %v3645 = vpop.permute.xlu0 %3644
    %3646 = vrot.lane.b32.xlu0 %v3553, 31
    %v3647 = vpop.permute.xlu0 %3646
    %3648 = vrot.lane.b32.xlu0 %v3554, 31
    %v3649 = vpop.permute.xlu0 %3648
    %3650 = vrot.lane.b32.xlu0 %v3555, 31
    %v3651 = vpop.permute.xlu0 %3650
    %vm3652 = vcmask 252928
    %v3653 = vsel %vm3652, %v3589, %v3591
    %v3654 = vsel %vm3652, %v3591, %v3593
    %v3655 = vsel %vm3652, %v3593, %v3595
    %v3656 = vsel %vm3652, %v3595, %v3597
    %v3657 = vsel %vm3652, %v3597, %v3599
    %v3658 = vsel %vm3652, %v3599, %v3601
    %v3659 = vsel %vm3652, %v3601, %v3603
    %v3660 = vsel %vm3652, %v3605, %v3607
    %v3661 = vsel %vm3652, %v3607, %v3609
    %v3662 = vsel %vm3652, %v3609, %v3611
    %v3663 = vsel %vm3652, %v3611, %v3613
    %v3664 = vsel %vm3652, %v3613, %v3615
    %v3665 = vsel %vm3652, %v3615, %v3617
    %v3666 = vsel %vm3652, %v3617, %v3619
    %v3667 = vsel %vm3652, %v3621, %v3623
    %v3668 = vsel %vm3652, %v3623, %v3625
    %v3669 = vsel %vm3652, %v3625, %v3627
    %v3670 = vsel %vm3652, %v3627, %v3629
    %v3671 = vsel %vm3652, %v3629, %v3631
    %v3672 = vsel %vm3652, %v3631, %v3633
    %v3673 = vsel %vm3652, %v3633, %v3635
    %v3674 = vsel %vm3652, %v3637, %v3639
    %v3675 = vsel %vm3652, %v3639, %v3641
    %v3676 = vsel %vm3652, %v3641, %v3643
    %v3677 = vsel %vm3652, %v3643, %v3645
    %v3678 = vsel %vm3652, %v3645, %v3647
    %v3679 = vsel %vm3652, %v3647, %v3649
    %v3680 = vsel %vm3652, %v3649, %v3651
    %v3709 = vadd.f32 %v3488, %v3653
    %v3710 = vadd.f32 %v3489, %v3654
    %v3711 = vadd.f32 %v3490, %v3655
    %v3712 = vadd.f32 %v3491, %v3656
    %v3713 = vadd.f32 %v3492, %v3657
    %v3714 = vadd.f32 %v3493, %v3658
    %v3715 = vadd.f32 %v3494, %v3659
    %v3716 = vadd.f32 %v3495, %v3660
    %v3717 = vadd.f32 %v3496, %v3661
    %v3718 = vadd.f32 %v3497, %v3662
    %v3719 = vadd.f32 %v3498, %v3663
    %v3720 = vadd.f32 %v3499, %v3664
    %v3721 = vadd.f32 %v3500, %v3665
    %v3722 = vadd.f32 %v3501, %v3666
    %v3723 = vadd.f32 %v3502, %v3667
    %v3724 = vadd.f32 %v3503, %v3668
    %v3725 = vadd.f32 %v3504, %v3669
    %v3726 = vadd.f32 %v3505, %v3670
    %v3727 = vadd.f32 %v3506, %v3671
    %v3728 = vadd.f32 %v3507, %v3672
    %v3729 = vadd.f32 %v3508, %v3673
    %v3730 = vadd.f32 %v3509, %v3674
    %v3731 = vadd.f32 %v3510, %v3675
    %v3732 = vadd.f32 %v3511, %v3676
    %v3733 = vadd.f32 %v3512, %v3677
    %v3734 = vadd.f32 %v3513, %v3678
    %v3735 = vadd.f32 %v3514, %v3679
    %v3736 = vadd.f32 %v3515, %v3680
    %3737 = vset.pattern.permute.xlu0 17
    %3738 = vperm.xlu0 %3737, %v35
    %v3739 = vpop.permute.xlu0 %3738
    %3741 = vset.pattern.permute.xlu0 17
    %3742 = vperm.xlu0 %3741, %v36
    %v3743 = vpop.permute.xlu0 %3742
    %v3745 = vmul.f32 %v3739, %v68
    %v3746 = vmul.f32 %v3739, %v72
    %v3747 = vmul.f32 %v3739, %v76
    %v3748 = vmul.f32 %v3739, %v80
    %v3749 = vmul.f32 %v3739, %v84
    %v3750 = vmul.f32 %v3739, %v88
    %v3751 = vmul.f32 %v3739, %v92
    %v3752 = vmul.f32 %v3739, %v202
    %v3753 = vmul.f32 %v3743, %v68
    %v3754 = vmul.f32 %v3743, %v72
    %v3755 = vmul.f32 %v3743, %v76
    %v3756 = vmul.f32 %v3743, %v80
    %v3757 = vmul.f32 %v3743, %v84
    %v3758 = vmul.f32 %v3743, %v88
    %v3759 = vmul.f32 %v3743, %v92
    %v3760 = vmul.f32 %v3743, %v202
    %v3761 = vmul.f32 %v3739, %v96
    %v3762 = vmul.f32 %v3739, %v100
    %v3763 = vmul.f32 %v3739, %v104
    %v3764 = vmul.f32 %v3739, %v108
    %v3765 = vmul.f32 %v3739, %v112
    %v3766 = vmul.f32 %v3739, %v116
    %v3767 = vmul.f32 %v3739, %v120
    %v3768 = vmul.f32 %v3739, %v206
    %v3769 = vmul.f32 %v3743, %v96
    %v3770 = vmul.f32 %v3743, %v100
    %v3771 = vmul.f32 %v3743, %v104
    %v3772 = vmul.f32 %v3743, %v108
    %v3773 = vmul.f32 %v3743, %v112
    %v3774 = vmul.f32 %v3743, %v116
    %v3775 = vmul.f32 %v3743, %v120
    %v3776 = vmul.f32 %v3743, %v206
    %3809 = vrot.lane.b32.xlu0 %v3745, 30
    %v3810 = vpop.permute.xlu0 %3809
    %3811 = vrot.lane.b32.xlu0 %v3746, 30
    %v3812 = vpop.permute.xlu0 %3811
    %3813 = vrot.lane.b32.xlu0 %v3747, 30
    %v3814 = vpop.permute.xlu0 %3813
    %3815 = vrot.lane.b32.xlu0 %v3748, 30
    %v3816 = vpop.permute.xlu0 %3815
    %3817 = vrot.lane.b32.xlu0 %v3749, 30
    %v3818 = vpop.permute.xlu0 %3817
    %3819 = vrot.lane.b32.xlu0 %v3750, 30
    %v3820 = vpop.permute.xlu0 %3819
    %3821 = vrot.lane.b32.xlu0 %v3751, 30
    %v3822 = vpop.permute.xlu0 %3821
    %3823 = vrot.lane.b32.xlu0 %v3752, 30
    %v3824 = vpop.permute.xlu0 %3823
    %3825 = vrot.lane.b32.xlu0 %v3753, 30
    %v3826 = vpop.permute.xlu0 %3825
    %3827 = vrot.lane.b32.xlu0 %v3754, 30
    %v3828 = vpop.permute.xlu0 %3827
    %3829 = vrot.lane.b32.xlu0 %v3755, 30
    %v3830 = vpop.permute.xlu0 %3829
    %3831 = vrot.lane.b32.xlu0 %v3756, 30
    %v3832 = vpop.permute.xlu0 %3831
    %3833 = vrot.lane.b32.xlu0 %v3757, 30
    %v3834 = vpop.permute.xlu0 %3833
    %3835 = vrot.lane.b32.xlu0 %v3758, 30
    %v3836 = vpop.permute.xlu0 %3835
    %3837 = vrot.lane.b32.xlu0 %v3759, 30
    %v3838 = vpop.permute.xlu0 %3837
    %3839 = vrot.lane.b32.xlu0 %v3760, 30
    %v3840 = vpop.permute.xlu0 %3839
    %3841 = vrot.lane.b32.xlu0 %v3761, 30
    %v3842 = vpop.permute.xlu0 %3841
    %3843 = vrot.lane.b32.xlu0 %v3762, 30
    %v3844 = vpop.permute.xlu0 %3843
    %3845 = vrot.lane.b32.xlu0 %v3763, 30
    %v3846 = vpop.permute.xlu0 %3845
    %3847 = vrot.lane.b32.xlu0 %v3764, 30
    %v3848 = vpop.permute.xlu0 %3847
    %3849 = vrot.lane.b32.xlu0 %v3765, 30
    %v3850 = vpop.permute.xlu0 %3849
    %3851 = vrot.lane.b32.xlu0 %v3766, 30
    %v3852 = vpop.permute.xlu0 %3851
    %3853 = vrot.lane.b32.xlu0 %v3767, 30
    %v3854 = vpop.permute.xlu0 %3853
    %3855 = vrot.lane.b32.xlu0 %v3768, 30
    %v3856 = vpop.permute.xlu0 %3855
    %3857 = vrot.lane.b32.xlu0 %v3769, 30
    %v3858 = vpop.permute.xlu0 %3857
    %3859 = vrot.lane.b32.xlu0 %v3770, 30
    %v3860 = vpop.permute.xlu0 %3859
    %3861 = vrot.lane.b32.xlu0 %v3771, 30
    %v3862 = vpop.permute.xlu0 %3861
    %3863 = vrot.lane.b32.xlu0 %v3772, 30
    %v3864 = vpop.permute.xlu0 %3863
    %3865 = vrot.lane.b32.xlu0 %v3773, 30
    %v3866 = vpop.permute.xlu0 %3865
    %3867 = vrot.lane.b32.xlu0 %v3774, 30
    %v3868 = vpop.permute.xlu0 %3867
    %3869 = vrot.lane.b32.xlu0 %v3775, 30
    %v3870 = vpop.permute.xlu0 %3869
    %3871 = vrot.lane.b32.xlu0 %v3776, 30
    %v3872 = vpop.permute.xlu0 %3871
    %vm3873 = vcmask 244736
    %v3874 = vsel %vm3873, %v3810, %v3812
    %v3875 = vsel %vm3873, %v3812, %v3814
    %v3876 = vsel %vm3873, %v3814, %v3816
    %v3877 = vsel %vm3873, %v3816, %v3818
    %v3878 = vsel %vm3873, %v3818, %v3820
    %v3879 = vsel %vm3873, %v3820, %v3822
    %v3880 = vsel %vm3873, %v3822, %v3824
    %v3881 = vsel %vm3873, %v3826, %v3828
    %v3882 = vsel %vm3873, %v3828, %v3830
    %v3883 = vsel %vm3873, %v3830, %v3832
    %v3884 = vsel %vm3873, %v3832, %v3834
    %v3885 = vsel %vm3873, %v3834, %v3836
    %v3886 = vsel %vm3873, %v3836, %v3838
    %v3887 = vsel %vm3873, %v3838, %v3840
    %v3888 = vsel %vm3873, %v3842, %v3844
    %v3889 = vsel %vm3873, %v3844, %v3846
    %v3890 = vsel %vm3873, %v3846, %v3848
    %v3891 = vsel %vm3873, %v3848, %v3850
    %v3892 = vsel %vm3873, %v3850, %v3852
    %v3893 = vsel %vm3873, %v3852, %v3854
    %v3894 = vsel %vm3873, %v3854, %v3856
    %v3895 = vsel %vm3873, %v3858, %v3860
    %v3896 = vsel %vm3873, %v3860, %v3862
    %v3897 = vsel %vm3873, %v3862, %v3864
    %v3898 = vsel %vm3873, %v3864, %v3866
    %v3899 = vsel %vm3873, %v3866, %v3868
    %v3900 = vsel %vm3873, %v3868, %v3870
    %v3901 = vsel %vm3873, %v3870, %v3872
    %v3930 = vadd.f32 %v3709, %v3874
    %v3931 = vadd.f32 %v3710, %v3875
    %v3932 = vadd.f32 %v3711, %v3876
    %v3933 = vadd.f32 %v3712, %v3877
    %v3934 = vadd.f32 %v3713, %v3878
    %v3935 = vadd.f32 %v3714, %v3879
    %v3936 = vadd.f32 %v3715, %v3880
    %v3937 = vadd.f32 %v3716, %v3881
    %v3938 = vadd.f32 %v3717, %v3882
    %v3939 = vadd.f32 %v3718, %v3883
    %v3940 = vadd.f32 %v3719, %v3884
    %v3941 = vadd.f32 %v3720, %v3885
    %v3942 = vadd.f32 %v3721, %v3886
    %v3943 = vadd.f32 %v3722, %v3887
    %v3944 = vadd.f32 %v3723, %v3888
    %v3945 = vadd.f32 %v3724, %v3889
    %v3946 = vadd.f32 %v3725, %v3890
    %v3947 = vadd.f32 %v3726, %v3891
    %v3948 = vadd.f32 %v3727, %v3892
    %v3949 = vadd.f32 %v3728, %v3893
    %v3950 = vadd.f32 %v3729, %v3894
    %v3951 = vadd.f32 %v3730, %v3895
    %v3952 = vadd.f32 %v3731, %v3896
    %v3953 = vadd.f32 %v3732, %v3897
    %v3954 = vadd.f32 %v3733, %v3898
    %v3955 = vadd.f32 %v3734, %v3899
    %v3956 = vadd.f32 %v3735, %v3900
    %v3957 = vadd.f32 %v3736, %v3901
    %3958 = vset.pattern.permute.xlu0 18
    %3959 = vperm.xlu0 %3958, %v35
    %v3960 = vpop.permute.xlu0 %3959
    %3962 = vset.pattern.permute.xlu0 18
    %3963 = vperm.xlu0 %3962, %v36
    %v3964 = vpop.permute.xlu0 %3963
    %v3966 = vmul.f32 %v3960, %v68
    %v3967 = vmul.f32 %v3960, %v72
    %v3968 = vmul.f32 %v3960, %v76
    %v3969 = vmul.f32 %v3960, %v80
    %v3970 = vmul.f32 %v3960, %v84
    %v3971 = vmul.f32 %v3960, %v88
    %v3972 = vmul.f32 %v3960, %v92
    %v3973 = vmul.f32 %v3960, %v202
    %v3974 = vmul.f32 %v3964, %v68
    %v3975 = vmul.f32 %v3964, %v72
    %v3976 = vmul.f32 %v3964, %v76
    %v3977 = vmul.f32 %v3964, %v80
    %v3978 = vmul.f32 %v3964, %v84
    %v3979 = vmul.f32 %v3964, %v88
    %v3980 = vmul.f32 %v3964, %v92
    %v3981 = vmul.f32 %v3964, %v202
    %v3982 = vmul.f32 %v3960, %v96
    %v3983 = vmul.f32 %v3960, %v100
    %v3984 = vmul.f32 %v3960, %v104
    %v3985 = vmul.f32 %v3960, %v108
    %v3986 = vmul.f32 %v3960, %v112
    %v3987 = vmul.f32 %v3960, %v116
    %v3988 = vmul.f32 %v3960, %v120
    %v3989 = vmul.f32 %v3960, %v206
    %v3990 = vmul.f32 %v3964, %v96
    %v3991 = vmul.f32 %v3964, %v100
    %v3992 = vmul.f32 %v3964, %v104
    %v3993 = vmul.f32 %v3964, %v108
    %v3994 = vmul.f32 %v3964, %v112
    %v3995 = vmul.f32 %v3964, %v116
    %v3996 = vmul.f32 %v3964, %v120
    %v3997 = vmul.f32 %v3964, %v206
    %4030 = vrot.lane.b32.xlu0 %v3966, 29
    %v4031 = vpop.permute.xlu0 %4030
    %4032 = vrot.lane.b32.xlu0 %v3967, 29
    %v4033 = vpop.permute.xlu0 %4032
    %4034 = vrot.lane.b32.xlu0 %v3968, 29
    %v4035 = vpop.permute.xlu0 %4034
    %4036 = vrot.lane.b32.xlu0 %v3969, 29
    %v4037 = vpop.permute.xlu0 %4036
    %4038 = vrot.lane.b32.xlu0 %v3970, 29
    %v4039 = vpop.permute.xlu0 %4038
    %4040 = vrot.lane.b32.xlu0 %v3971, 29
    %v4041 = vpop.permute.xlu0 %4040
    %4042 = vrot.lane.b32.xlu0 %v3972, 29
    %v4043 = vpop.permute.xlu0 %4042
    %4044 = vrot.lane.b32.xlu0 %v3973, 29
    %v4045 = vpop.permute.xlu0 %4044
    %4046 = vrot.lane.b32.xlu0 %v3974, 29
    %v4047 = vpop.permute.xlu0 %4046
    %4048 = vrot.lane.b32.xlu0 %v3975, 29
    %v4049 = vpop.permute.xlu0 %4048
    %4050 = vrot.lane.b32.xlu0 %v3976, 29
    %v4051 = vpop.permute.xlu0 %4050
    %4052 = vrot.lane.b32.xlu0 %v3977, 29
    %v4053 = vpop.permute.xlu0 %4052
    %4054 = vrot.lane.b32.xlu0 %v3978, 29
    %v4055 = vpop.permute.xlu0 %4054
    %4056 = vrot.lane.b32.xlu0 %v3979, 29
    %v4057 = vpop.permute.xlu0 %4056
    %4058 = vrot.lane.b32.xlu0 %v3980, 29
    %v4059 = vpop.permute.xlu0 %4058
    %4060 = vrot.lane.b32.xlu0 %v3981, 29
    %v4061 = vpop.permute.xlu0 %4060
    %4062 = vrot.lane.b32.xlu0 %v3982, 29
    %v4063 = vpop.permute.xlu0 %4062
    %4064 = vrot.lane.b32.xlu0 %v3983, 29
    %v4065 = vpop.permute.xlu0 %4064
    %4066 = vrot.lane.b32.xlu0 %v3984, 29
    %v4067 = vpop.permute.xlu0 %4066
    %4068 = vrot.lane.b32.xlu0 %v3985, 29
    %v4069 = vpop.permute.xlu0 %4068
    %4070 = vrot.lane.b32.xlu0 %v3986, 29
    %v4071 = vpop.permute.xlu0 %4070
    %4072 = vrot.lane.b32.xlu0 %v3987, 29
    %v4073 = vpop.permute.xlu0 %4072
    %4074 = vrot.lane.b32.xlu0 %v3988, 29
    %v4075 = vpop.permute.xlu0 %4074
    %4076 = vrot.lane.b32.xlu0 %v3989, 29
    %v4077 = vpop.permute.xlu0 %4076
    %4078 = vrot.lane.b32.xlu0 %v3990, 29
    %v4079 = vpop.permute.xlu0 %4078
    %4080 = vrot.lane.b32.xlu0 %v3991, 29
    %v4081 = vpop.permute.xlu0 %4080
    %4082 = vrot.lane.b32.xlu0 %v3992, 29
    %v4083 = vpop.permute.xlu0 %4082
    %4084 = vrot.lane.b32.xlu0 %v3993, 29
    %v4085 = vpop.permute.xlu0 %4084
    %4086 = vrot.lane.b32.xlu0 %v3994, 29
    %v4087 = vpop.permute.xlu0 %4086
    %4088 = vrot.lane.b32.xlu0 %v3995, 29
    %v4089 = vpop.permute.xlu0 %4088
    %4090 = vrot.lane.b32.xlu0 %v3996, 29
    %v4091 = vpop.permute.xlu0 %4090
    %4092 = vrot.lane.b32.xlu0 %v3997, 29
    %v4093 = vpop.permute.xlu0 %4092
    %vm4094 = vcmask 236544
    %v4095 = vsel %vm4094, %v4031, %v4033
    %v4096 = vsel %vm4094, %v4033, %v4035
    %v4097 = vsel %vm4094, %v4035, %v4037
    %v4098 = vsel %vm4094, %v4037, %v4039
    %v4099 = vsel %vm4094, %v4039, %v4041
    %v4100 = vsel %vm4094, %v4041, %v4043
    %v4101 = vsel %vm4094, %v4043, %v4045
    %v4102 = vsel %vm4094, %v4047, %v4049
    %v4103 = vsel %vm4094, %v4049, %v4051
    %v4104 = vsel %vm4094, %v4051, %v4053
    %v4105 = vsel %vm4094, %v4053, %v4055
    %v4106 = vsel %vm4094, %v4055, %v4057
    %v4107 = vsel %vm4094, %v4057, %v4059
    %v4108 = vsel %vm4094, %v4059, %v4061
    %v4109 = vsel %vm4094, %v4063, %v4065
    %v4110 = vsel %vm4094, %v4065, %v4067
    %v4111 = vsel %vm4094, %v4067, %v4069
    %v4112 = vsel %vm4094, %v4069, %v4071
    %v4113 = vsel %vm4094, %v4071, %v4073
    %v4114 = vsel %vm4094, %v4073, %v4075
    %v4115 = vsel %vm4094, %v4075, %v4077
    %v4116 = vsel %vm4094, %v4079, %v4081
    %v4117 = vsel %vm4094, %v4081, %v4083
    %v4118 = vsel %vm4094, %v4083, %v4085
    %v4119 = vsel %vm4094, %v4085, %v4087
    %v4120 = vsel %vm4094, %v4087, %v4089
    %v4121 = vsel %vm4094, %v4089, %v4091
    %v4122 = vsel %vm4094, %v4091, %v4093
    %v4151 = vadd.f32 %v3930, %v4095
    %v4152 = vadd.f32 %v3931, %v4096
    %v4153 = vadd.f32 %v3932, %v4097
    %v4154 = vadd.f32 %v3933, %v4098
    %v4155 = vadd.f32 %v3934, %v4099
    %v4156 = vadd.f32 %v3935, %v4100
    %v4157 = vadd.f32 %v3936, %v4101
    %v4158 = vadd.f32 %v3937, %v4102
    %v4159 = vadd.f32 %v3938, %v4103
    %v4160 = vadd.f32 %v3939, %v4104
    %v4161 = vadd.f32 %v3940, %v4105
    %v4162 = vadd.f32 %v3941, %v4106
    %v4163 = vadd.f32 %v3942, %v4107
    %v4164 = vadd.f32 %v3943, %v4108
    %v4165 = vadd.f32 %v3944, %v4109
    %v4166 = vadd.f32 %v3945, %v4110
    %v4167 = vadd.f32 %v3946, %v4111
    %v4168 = vadd.f32 %v3947, %v4112
    %v4169 = vadd.f32 %v3948, %v4113
    %v4170 = vadd.f32 %v3949, %v4114
    %v4171 = vadd.f32 %v3950, %v4115
    %v4172 = vadd.f32 %v3951, %v4116
    %v4173 = vadd.f32 %v3952, %v4117
    %v4174 = vadd.f32 %v3953, %v4118
    %v4175 = vadd.f32 %v3954, %v4119
    %v4176 = vadd.f32 %v3955, %v4120
    %v4177 = vadd.f32 %v3956, %v4121
    %v4178 = vadd.f32 %v3957, %v4122
    %4179 = vset.pattern.permute.xlu0 19
    %4180 = vperm.xlu0 %4179, %v35
    %v4181 = vpop.permute.xlu0 %4180
    %4183 = vset.pattern.permute.xlu0 19
    %4184 = vperm.xlu0 %4183, %v36
    %v4185 = vpop.permute.xlu0 %4184
    %v4187 = vmul.f32 %v4181, %v68
    %v4188 = vmul.f32 %v4181, %v72
    %v4189 = vmul.f32 %v4181, %v76
    %v4190 = vmul.f32 %v4181, %v80
    %v4191 = vmul.f32 %v4181, %v84
    %v4192 = vmul.f32 %v4181, %v88
    %v4193 = vmul.f32 %v4181, %v92
    %v4194 = vmul.f32 %v4181, %v202
    %v4195 = vmul.f32 %v4185, %v68
    %v4196 = vmul.f32 %v4185, %v72
    %v4197 = vmul.f32 %v4185, %v76
    %v4198 = vmul.f32 %v4185, %v80
    %v4199 = vmul.f32 %v4185, %v84
    %v4200 = vmul.f32 %v4185, %v88
    %v4201 = vmul.f32 %v4185, %v92
    %v4202 = vmul.f32 %v4185, %v202
    %v4203 = vmul.f32 %v4181, %v96
    %v4204 = vmul.f32 %v4181, %v100
    %v4205 = vmul.f32 %v4181, %v104
    %v4206 = vmul.f32 %v4181, %v108
    %v4207 = vmul.f32 %v4181, %v112
    %v4208 = vmul.f32 %v4181, %v116
    %v4209 = vmul.f32 %v4181, %v120
    %v4210 = vmul.f32 %v4181, %v206
    %v4211 = vmul.f32 %v4185, %v96
    %v4212 = vmul.f32 %v4185, %v100
    %v4213 = vmul.f32 %v4185, %v104
    %v4214 = vmul.f32 %v4185, %v108
    %v4215 = vmul.f32 %v4185, %v112
    %v4216 = vmul.f32 %v4185, %v116
    %v4217 = vmul.f32 %v4185, %v120
    %v4218 = vmul.f32 %v4185, %v206
    %4251 = vrot.lane.b32.xlu0 %v4187, 28
    %v4252 = vpop.permute.xlu0 %4251
    %4253 = vrot.lane.b32.xlu0 %v4188, 28
    %v4254 = vpop.permute.xlu0 %4253
    %4255 = vrot.lane.b32.xlu0 %v4189, 28
    %v4256 = vpop.permute.xlu0 %4255
    %4257 = vrot.lane.b32.xlu0 %v4190, 28
    %v4258 = vpop.permute.xlu0 %4257
    %4259 = vrot.lane.b32.xlu0 %v4191, 28
    %v4260 = vpop.permute.xlu0 %4259
    %4261 = vrot.lane.b32.xlu0 %v4192, 28
    %v4262 = vpop.permute.xlu0 %4261
    %4263 = vrot.lane.b32.xlu0 %v4193, 28
    %v4264 = vpop.permute.xlu0 %4263
    %4265 = vrot.lane.b32.xlu0 %v4194, 28
    %v4266 = vpop.permute.xlu0 %4265
    %4267 = vrot.lane.b32.xlu0 %v4195, 28
    %v4268 = vpop.permute.xlu0 %4267
    %4269 = vrot.lane.b32.xlu0 %v4196, 28
    %v4270 = vpop.permute.xlu0 %4269
    %4271 = vrot.lane.b32.xlu0 %v4197, 28
    %v4272 = vpop.permute.xlu0 %4271
    %4273 = vrot.lane.b32.xlu0 %v4198, 28
    %v4274 = vpop.permute.xlu0 %4273
    %4275 = vrot.lane.b32.xlu0 %v4199, 28
    %v4276 = vpop.permute.xlu0 %4275
    %4277 = vrot.lane.b32.xlu0 %v4200, 28
    %v4278 = vpop.permute.xlu0 %4277
    %4279 = vrot.lane.b32.xlu0 %v4201, 28
    %v4280 = vpop.permute.xlu0 %4279
    %4281 = vrot.lane.b32.xlu0 %v4202, 28
    %v4282 = vpop.permute.xlu0 %4281
    %4283 = vrot.lane.b32.xlu0 %v4203, 28
    %v4284 = vpop.permute.xlu0 %4283
    %4285 = vrot.lane.b32.xlu0 %v4204, 28
    %v4286 = vpop.permute.xlu0 %4285
    %4287 = vrot.lane.b32.xlu0 %v4205, 28
    %v4288 = vpop.permute.xlu0 %4287
    %4289 = vrot.lane.b32.xlu0 %v4206, 28
    %v4290 = vpop.permute.xlu0 %4289
    %4291 = vrot.lane.b32.xlu0 %v4207, 28
    %v4292 = vpop.permute.xlu0 %4291
    %4293 = vrot.lane.b32.xlu0 %v4208, 28
    %v4294 = vpop.permute.xlu0 %4293
    %4295 = vrot.lane.b32.xlu0 %v4209, 28
    %v4296 = vpop.permute.xlu0 %4295
    %4297 = vrot.lane.b32.xlu0 %v4210, 28
    %v4298 = vpop.permute.xlu0 %4297
    %4299 = vrot.lane.b32.xlu0 %v4211, 28
    %v4300 = vpop.permute.xlu0 %4299
    %4301 = vrot.lane.b32.xlu0 %v4212, 28
    %v4302 = vpop.permute.xlu0 %4301
    %4303 = vrot.lane.b32.xlu0 %v4213, 28
    %v4304 = vpop.permute.xlu0 %4303
    %4305 = vrot.lane.b32.xlu0 %v4214, 28
    %v4306 = vpop.permute.xlu0 %4305
    %4307 = vrot.lane.b32.xlu0 %v4215, 28
    %v4308 = vpop.permute.xlu0 %4307
    %4309 = vrot.lane.b32.xlu0 %v4216, 28
    %v4310 = vpop.permute.xlu0 %4309
    %4311 = vrot.lane.b32.xlu0 %v4217, 28
    %v4312 = vpop.permute.xlu0 %4311
    %4313 = vrot.lane.b32.xlu0 %v4218, 28
    %v4314 = vpop.permute.xlu0 %4313
    %vm4315 = vcmask 228352
    %v4316 = vsel %vm4315, %v4252, %v4254
    %v4317 = vsel %vm4315, %v4254, %v4256
    %v4318 = vsel %vm4315, %v4256, %v4258
    %v4319 = vsel %vm4315, %v4258, %v4260
    %v4320 = vsel %vm4315, %v4260, %v4262
    %v4321 = vsel %vm4315, %v4262, %v4264
    %v4322 = vsel %vm4315, %v4264, %v4266
    %v4323 = vsel %vm4315, %v4268, %v4270
    %v4324 = vsel %vm4315, %v4270, %v4272
    %v4325 = vsel %vm4315, %v4272, %v4274
    %v4326 = vsel %vm4315, %v4274, %v4276
    %v4327 = vsel %vm4315, %v4276, %v4278
    %v4328 = vsel %vm4315, %v4278, %v4280
    %v4329 = vsel %vm4315, %v4280, %v4282
    %v4330 = vsel %vm4315, %v4284, %v4286
    %v4331 = vsel %vm4315, %v4286, %v4288
    %v4332 = vsel %vm4315, %v4288, %v4290
    %v4333 = vsel %vm4315, %v4290, %v4292
    %v4334 = vsel %vm4315, %v4292, %v4294
    %v4335 = vsel %vm4315, %v4294, %v4296
    %v4336 = vsel %vm4315, %v4296, %v4298
    %v4337 = vsel %vm4315, %v4300, %v4302
    %v4338 = vsel %vm4315, %v4302, %v4304
    %v4339 = vsel %vm4315, %v4304, %v4306
    %v4340 = vsel %vm4315, %v4306, %v4308
    %v4341 = vsel %vm4315, %v4308, %v4310
    %v4342 = vsel %vm4315, %v4310, %v4312
    %v4343 = vsel %vm4315, %v4312, %v4314
    %v4372 = vadd.f32 %v4151, %v4316
    %v4373 = vadd.f32 %v4152, %v4317
    %v4374 = vadd.f32 %v4153, %v4318
    %v4375 = vadd.f32 %v4154, %v4319
    %v4376 = vadd.f32 %v4155, %v4320
    %v4377 = vadd.f32 %v4156, %v4321
    %v4378 = vadd.f32 %v4157, %v4322
    %v4379 = vadd.f32 %v4158, %v4323
    %v4380 = vadd.f32 %v4159, %v4324
    %v4381 = vadd.f32 %v4160, %v4325
    %v4382 = vadd.f32 %v4161, %v4326
    %v4383 = vadd.f32 %v4162, %v4327
    %v4384 = vadd.f32 %v4163, %v4328
    %v4385 = vadd.f32 %v4164, %v4329
    %v4386 = vadd.f32 %v4165, %v4330
    %v4387 = vadd.f32 %v4166, %v4331
    %v4388 = vadd.f32 %v4167, %v4332
    %v4389 = vadd.f32 %v4168, %v4333
    %v4390 = vadd.f32 %v4169, %v4334
    %v4391 = vadd.f32 %v4170, %v4335
    %v4392 = vadd.f32 %v4171, %v4336
    %v4393 = vadd.f32 %v4172, %v4337
    %v4394 = vadd.f32 %v4173, %v4338
    %v4395 = vadd.f32 %v4174, %v4339
    %v4396 = vadd.f32 %v4175, %v4340
    %v4397 = vadd.f32 %v4176, %v4341
    %v4398 = vadd.f32 %v4177, %v4342
    %v4399 = vadd.f32 %v4178, %v4343
    %v4400 = vrot.slane %v53, 1
    %v4401 = vrot.slane %v54, 1
    %4402 = vset.pattern.permute.xlu0 20
    %4403 = vperm.xlu0 %4402, %v35
    %v4404 = vpop.permute.xlu0 %4403
    %4406 = vset.pattern.permute.xlu0 20
    %4407 = vperm.xlu0 %4406, %v36
    %v4408 = vpop.permute.xlu0 %4407
    %v4410 = vlaneseq
    %v4411 = vshrl.u32 %v4410, 7
    %v4412 = vsub.s32 0, %v4411
    %v4413 = vrot.slane %v4400, %v4412
    %v4414 = vlaneseq
    %v4415 = vshrl.u32 %v4414, 7
    %v4416 = vsub.s32 1, %v4415
    %v4417 = vrot.slane %v4400, %v4416
    %v4418 = vlaneseq
    %v4419 = vshrl.u32 %v4418, 7
    %v4420 = vsub.s32 2, %v4419
    %v4421 = vrot.slane %v4400, %v4420
    %v4422 = vlaneseq
    %v4423 = vshrl.u32 %v4422, 7
    %v4424 = vsub.s32 3, %v4423
    %v4425 = vrot.slane %v4400, %v4424
    %v4426 = vlaneseq
    %v4427 = vshrl.u32 %v4426, 7
    %v4428 = vsub.s32 4, %v4427
    %v4429 = vrot.slane %v4400, %v4428
    %v4430 = vlaneseq
    %v4431 = vshrl.u32 %v4430, 7
    %v4432 = vsub.s32 5, %v4431
    %v4433 = vrot.slane %v4400, %v4432
    %v4434 = vlaneseq
    %v4435 = vshrl.u32 %v4434, 7
    %v4436 = vsub.s32 6, %v4435
    %v4437 = vrot.slane %v4400, %v4436
    %v4438 = vlaneseq
    %v4439 = vshrl.u32 %v4438, 7
    %v4440 = vsub.s32 0, %v4439
    %v4441 = vrot.slane %v4401, %v4440
    %v4442 = vlaneseq
    %v4443 = vshrl.u32 %v4442, 7
    %v4444 = vsub.s32 1, %v4443
    %v4445 = vrot.slane %v4401, %v4444
    %v4446 = vlaneseq
    %v4447 = vshrl.u32 %v4446, 7
    %v4448 = vsub.s32 2, %v4447
    %v4449 = vrot.slane %v4401, %v4448
    %v4450 = vlaneseq
    %v4451 = vshrl.u32 %v4450, 7
    %v4452 = vsub.s32 3, %v4451
    %v4453 = vrot.slane %v4401, %v4452
    %v4454 = vlaneseq
    %v4455 = vshrl.u32 %v4454, 7
    %v4456 = vsub.s32 4, %v4455
    %v4457 = vrot.slane %v4401, %v4456
    %v4458 = vlaneseq
    %v4459 = vshrl.u32 %v4458, 7
    %v4460 = vsub.s32 5, %v4459
    %v4461 = vrot.slane %v4401, %v4460
    %v4462 = vlaneseq
    %v4463 = vshrl.u32 %v4462, 7
    %v4464 = vsub.s32 6, %v4463
    %v4465 = vrot.slane %v4401, %v4464
    %v4480 = vmul.f32 %v4404, %v4413
    %v4481 = vmul.f32 %v4404, %v4417
    %v4482 = vmul.f32 %v4404, %v4421
    %v4483 = vmul.f32 %v4404, %v4425
    %v4484 = vmul.f32 %v4404, %v4429
    %v4485 = vmul.f32 %v4404, %v4433
    %v4486 = vmul.f32 %v4404, %v4437
    %v4487 = vmul.f32 %v4408, %v4413
    %v4488 = vmul.f32 %v4408, %v4417
    %v4489 = vmul.f32 %v4408, %v4421
    %v4490 = vmul.f32 %v4408, %v4425
    %v4491 = vmul.f32 %v4408, %v4429
    %v4492 = vmul.f32 %v4408, %v4433
    %v4493 = vmul.f32 %v4408, %v4437
    %v4494 = vmul.f32 %v4404, %v4441
    %v4495 = vmul.f32 %v4404, %v4445
    %v4496 = vmul.f32 %v4404, %v4449
    %v4497 = vmul.f32 %v4404, %v4453
    %v4498 = vmul.f32 %v4404, %v4457
    %v4499 = vmul.f32 %v4404, %v4461
    %v4500 = vmul.f32 %v4404, %v4465
    %v4501 = vmul.f32 %v4408, %v4441
    %v4502 = vmul.f32 %v4408, %v4445
    %v4503 = vmul.f32 %v4408, %v4449
    %v4504 = vmul.f32 %v4408, %v4453
    %v4505 = vmul.f32 %v4408, %v4457
    %v4506 = vmul.f32 %v4408, %v4461
    %v4507 = vmul.f32 %v4408, %v4465
    %v4508 = vadd.f32 %v4372, %v4480
    %v4509 = vadd.f32 %v4373, %v4481
    %v4510 = vadd.f32 %v4374, %v4482
    %v4511 = vadd.f32 %v4375, %v4483
    %v4512 = vadd.f32 %v4376, %v4484
    %v4513 = vadd.f32 %v4377, %v4485
    %v4514 = vadd.f32 %v4378, %v4486
    %v4515 = vadd.f32 %v4379, %v4487
    %v4516 = vadd.f32 %v4380, %v4488
    %v4517 = vadd.f32 %v4381, %v4489
    %v4518 = vadd.f32 %v4382, %v4490
    %v4519 = vadd.f32 %v4383, %v4491
    %v4520 = vadd.f32 %v4384, %v4492
    %v4521 = vadd.f32 %v4385, %v4493
    %v4522 = vadd.f32 %v4386, %v4494
    %v4523 = vadd.f32 %v4387, %v4495
    %v4524 = vadd.f32 %v4388, %v4496
    %v4525 = vadd.f32 %v4389, %v4497
    %v4526 = vadd.f32 %v4390, %v4498
    %v4527 = vadd.f32 %v4391, %v4499
    %v4528 = vadd.f32 %v4392, %v4500
    %v4529 = vadd.f32 %v4393, %v4501
    %v4530 = vadd.f32 %v4394, %v4502
    %v4531 = vadd.f32 %v4395, %v4503
    %v4532 = vadd.f32 %v4396, %v4504
    %v4533 = vadd.f32 %v4397, %v4505
    %v4534 = vadd.f32 %v4398, %v4506
    %v4535 = vadd.f32 %v4399, %v4507
    %v4538 = vunpack.c.l.s4 1966171168
    %v4539 = vunpack.c.0.s8 %v4538
    %v4540 = vlaneseq
    %v4541 = vshrl.u32 %v4540, 7
    %v4542 = vsub.s32 %v4539, %v4541
    %v4543 = vrot.slane %v34, %v4542
    %v4544 = vcombine.high %v4543, %v4543
    %4545 = vrot.lane.b32.xlu0 %v53, 127
    %v4546 = vpop.permute.xlu0 %4545
    %4547 = vrot.lane.b32.xlu0 %v4543, 127
    %v4548 = vpop.permute.xlu0 %4547
    %4549 = vrot.lane.b32.xlu0 %v54, 127
    %v4550 = vpop.permute.xlu0 %4549
    %4551 = vrot.lane.b32.xlu0 %v4544, 127
    %v4552 = vpop.permute.xlu0 %4551
    %v4553 = vrot.slane %v4546, 1
    %v4554 = vrot.slane %v4550, 1
    %v4555 = vrot.slane %v4546, 2
    %v4556 = vrot.slane %v4548, 2
    %v4557 = vrot.slane %v4550, 2
    %v4558 = vrot.slane %v4552, 2
    %vm4559 = vcmask 1045504
    %v4560 = vsel %vm4559, %v4555, %v4556
    %v4561 = vsel %vm337, %v4553, %v4560
    %v4562 = vsel %vm4559, %v4557, %v4558
    %v4563 = vsel %vm337, %v4554, %v4562
    %4564 = vset.pattern.permute.xlu0 21
    %4565 = vperm.xlu0 %4564, %v35
    %v4566 = vpop.permute.xlu0 %4565
    %4568 = vset.pattern.permute.xlu0 21
    %4569 = vperm.xlu0 %4568, %v36
    %v4570 = vpop.permute.xlu0 %4569
    %v4572 = vlaneseq
    %v4573 = vshrl.u32 %v4572, 7
    %v4574 = vsub.s32 0, %v4573
    %v4575 = vrot.slane %v4561, %v4574
    %v4576 = vlaneseq
    %v4577 = vshrl.u32 %v4576, 7
    %v4578 = vsub.s32 1, %v4577
    %v4579 = vrot.slane %v4561, %v4578
    %v4580 = vlaneseq
    %v4581 = vshrl.u32 %v4580, 7
    %v4582 = vsub.s32 2, %v4581
    %v4583 = vrot.slane %v4561, %v4582
    %v4584 = vlaneseq
    %v4585 = vshrl.u32 %v4584, 7
    %v4586 = vsub.s32 3, %v4585
    %v4587 = vrot.slane %v4561, %v4586
    %v4588 = vlaneseq
    %v4589 = vshrl.u32 %v4588, 7
    %v4590 = vsub.s32 4, %v4589
    %v4591 = vrot.slane %v4561, %v4590
    %v4592 = vlaneseq
    %v4593 = vshrl.u32 %v4592, 7
    %v4594 = vsub.s32 5, %v4593
    %v4595 = vrot.slane %v4561, %v4594
    %v4596 = vlaneseq
    %v4597 = vshrl.u32 %v4596, 7
    %v4598 = vsub.s32 6, %v4597
    %v4599 = vrot.slane %v4561, %v4598
    %v4600 = vlaneseq
    %v4601 = vshrl.u32 %v4600, 7
    %v4602 = vsub.s32 0, %v4601
    %v4603 = vrot.slane %v4563, %v4602
    %v4604 = vlaneseq
    %v4605 = vshrl.u32 %v4604, 7
    %v4606 = vsub.s32 1, %v4605
    %v4607 = vrot.slane %v4563, %v4606
    %v4608 = vlaneseq
    %v4609 = vshrl.u32 %v4608, 7
    %v4610 = vsub.s32 2, %v4609
    %v4611 = vrot.slane %v4563, %v4610
    %v4612 = vlaneseq
    %v4613 = vshrl.u32 %v4612, 7
    %v4614 = vsub.s32 3, %v4613
    %v4615 = vrot.slane %v4563, %v4614
    %v4616 = vlaneseq
    %v4617 = vshrl.u32 %v4616, 7
    %v4618 = vsub.s32 4, %v4617
    %v4619 = vrot.slane %v4563, %v4618
    %v4620 = vlaneseq
    %v4621 = vshrl.u32 %v4620, 7
    %v4622 = vsub.s32 5, %v4621
    %v4623 = vrot.slane %v4563, %v4622
    %v4624 = vlaneseq
    %v4625 = vshrl.u32 %v4624, 7
    %v4626 = vsub.s32 6, %v4625
    %v4627 = vrot.slane %v4563, %v4626
    %v4642 = vmul.f32 %v4566, %v4575
    %v4643 = vmul.f32 %v4566, %v4579
    %v4644 = vmul.f32 %v4566, %v4583
    %v4645 = vmul.f32 %v4566, %v4587
    %v4646 = vmul.f32 %v4566, %v4591
    %v4647 = vmul.f32 %v4566, %v4595
    %v4648 = vmul.f32 %v4566, %v4599
    %v4649 = vmul.f32 %v4570, %v4575
    %v4650 = vmul.f32 %v4570, %v4579
    %v4651 = vmul.f32 %v4570, %v4583
    %v4652 = vmul.f32 %v4570, %v4587
    %v4653 = vmul.f32 %v4570, %v4591
    %v4654 = vmul.f32 %v4570, %v4595
    %v4655 = vmul.f32 %v4570, %v4599
    %v4656 = vmul.f32 %v4566, %v4603
    %v4657 = vmul.f32 %v4566, %v4607
    %v4658 = vmul.f32 %v4566, %v4611
    %v4659 = vmul.f32 %v4566, %v4615
    %v4660 = vmul.f32 %v4566, %v4619
    %v4661 = vmul.f32 %v4566, %v4623
    %v4662 = vmul.f32 %v4566, %v4627
    %v4663 = vmul.f32 %v4570, %v4603
    %v4664 = vmul.f32 %v4570, %v4607
    %v4665 = vmul.f32 %v4570, %v4611
    %v4666 = vmul.f32 %v4570, %v4615
    %v4667 = vmul.f32 %v4570, %v4619
    %v4668 = vmul.f32 %v4570, %v4623
    %v4669 = vmul.f32 %v4570, %v4627
    %v4670 = vadd.f32 %v4508, %v4642
    %v4671 = vadd.f32 %v4509, %v4643
    %v4672 = vadd.f32 %v4510, %v4644
    %v4673 = vadd.f32 %v4511, %v4645
    %v4674 = vadd.f32 %v4512, %v4646
    %v4675 = vadd.f32 %v4513, %v4647
    %v4676 = vadd.f32 %v4514, %v4648
    %v4677 = vadd.f32 %v4515, %v4649
    %v4678 = vadd.f32 %v4516, %v4650
    %v4679 = vadd.f32 %v4517, %v4651
    %v4680 = vadd.f32 %v4518, %v4652
    %v4681 = vadd.f32 %v4519, %v4653
    %v4682 = vadd.f32 %v4520, %v4654
    %v4683 = vadd.f32 %v4521, %v4655
    %v4684 = vadd.f32 %v4522, %v4656
    %v4685 = vadd.f32 %v4523, %v4657
    %v4686 = vadd.f32 %v4524, %v4658
    %v4687 = vadd.f32 %v4525, %v4659
    %v4688 = vadd.f32 %v4526, %v4660
    %v4689 = vadd.f32 %v4527, %v4661
    %v4690 = vadd.f32 %v4528, %v4662
    %v4691 = vadd.f32 %v4529, %v4663
    %v4692 = vadd.f32 %v4530, %v4664
    %v4693 = vadd.f32 %v4531, %v4665
    %v4694 = vadd.f32 %v4532, %v4666
    %v4695 = vadd.f32 %v4533, %v4667
    %v4696 = vadd.f32 %v4534, %v4668
    %v4697 = vadd.f32 %v4535, %v4669
    %4698 = vrot.lane.b32.xlu0 %v53, 126
    %v4699 = vpop.permute.xlu0 %4698
    %4700 = vrot.lane.b32.xlu0 %v4543, 126
    %v4701 = vpop.permute.xlu0 %4700
    %4702 = vrot.lane.b32.xlu0 %v54, 126
    %v4703 = vpop.permute.xlu0 %4702
    %4704 = vrot.lane.b32.xlu0 %v4544, 126
    %v4705 = vpop.permute.xlu0 %4704
    %v4706 = vrot.slane %v4699, 1
    %v4707 = vrot.slane %v4703, 1
    %v4708 = vrot.slane %v4699, 2
    %v4709 = vrot.slane %v4701, 2
    %v4710 = vrot.slane %v4703, 2
    %v4711 = vrot.slane %v4705, 2
    %v4712 = vsel %vm4559, %v4708, %v4709
    %v4713 = vsel %vm558, %v4706, %v4712
    %v4714 = vsel %vm4559, %v4710, %v4711
    %v4715 = vsel %vm558, %v4707, %v4714
    %4716 = vset.pattern.permute.xlu0 22
    %4717 = vperm.xlu0 %4716, %v35
    %v4718 = vpop.permute.xlu0 %4717
    %4720 = vset.pattern.permute.xlu0 22
    %4721 = vperm.xlu0 %4720, %v36
    %v4722 = vpop.permute.xlu0 %4721
    %v4724 = vlaneseq
    %v4725 = vshrl.u32 %v4724, 7
    %v4726 = vsub.s32 0, %v4725
    %v4727 = vrot.slane %v4713, %v4726
    %v4728 = vlaneseq
    %v4729 = vshrl.u32 %v4728, 7
    %v4730 = vsub.s32 1, %v4729
    %v4731 = vrot.slane %v4713, %v4730
    %v4732 = vlaneseq
    %v4733 = vshrl.u32 %v4732, 7
    %v4734 = vsub.s32 2, %v4733
    %v4735 = vrot.slane %v4713, %v4734
    %v4736 = vlaneseq
    %v4737 = vshrl.u32 %v4736, 7
    %v4738 = vsub.s32 3, %v4737
    %v4739 = vrot.slane %v4713, %v4738
    %v4740 = vlaneseq
    %v4741 = vshrl.u32 %v4740, 7
    %v4742 = vsub.s32 4, %v4741
    %v4743 = vrot.slane %v4713, %v4742
    %v4744 = vlaneseq
    %v4745 = vshrl.u32 %v4744, 7
    %v4746 = vsub.s32 5, %v4745
    %v4747 = vrot.slane %v4713, %v4746
    %v4748 = vlaneseq
    %v4749 = vshrl.u32 %v4748, 7
    %v4750 = vsub.s32 6, %v4749
    %v4751 = vrot.slane %v4713, %v4750
    %v4752 = vlaneseq
    %v4753 = vshrl.u32 %v4752, 7
    %v4754 = vsub.s32 0, %v4753
    %v4755 = vrot.slane %v4715, %v4754
    %v4756 = vlaneseq
    %v4757 = vshrl.u32 %v4756, 7
    %v4758 = vsub.s32 1, %v4757
    %v4759 = vrot.slane %v4715, %v4758
    %v4760 = vlaneseq
    %v4761 = vshrl.u32 %v4760, 7
    %v4762 = vsub.s32 2, %v4761
    %v4763 = vrot.slane %v4715, %v4762
    %v4764 = vlaneseq
    %v4765 = vshrl.u32 %v4764, 7
    %v4766 = vsub.s32 3, %v4765
    %v4767 = vrot.slane %v4715, %v4766
    %v4768 = vlaneseq
    %v4769 = vshrl.u32 %v4768, 7
    %v4770 = vsub.s32 4, %v4769
    %v4771 = vrot.slane %v4715, %v4770
    %v4772 = vlaneseq
    %v4773 = vshrl.u32 %v4772, 7
    %v4774 = vsub.s32 5, %v4773
    %v4775 = vrot.slane %v4715, %v4774
    %v4776 = vlaneseq
    %v4777 = vshrl.u32 %v4776, 7
    %v4778 = vsub.s32 6, %v4777
    %v4779 = vrot.slane %v4715, %v4778
    %v4794 = vmul.f32 %v4718, %v4727
    %v4795 = vmul.f32 %v4718, %v4731
    %v4796 = vmul.f32 %v4718, %v4735
    %v4797 = vmul.f32 %v4718, %v4739
    %v4798 = vmul.f32 %v4718, %v4743
    %v4799 = vmul.f32 %v4718, %v4747
    %v4800 = vmul.f32 %v4718, %v4751
    %v4801 = vmul.f32 %v4722, %v4727
    %v4802 = vmul.f32 %v4722, %v4731
    %v4803 = vmul.f32 %v4722, %v4735
    %v4804 = vmul.f32 %v4722, %v4739
    %v4805 = vmul.f32 %v4722, %v4743
    %v4806 = vmul.f32 %v4722, %v4747
    %v4807 = vmul.f32 %v4722, %v4751
    %v4808 = vmul.f32 %v4718, %v4755
    %v4809 = vmul.f32 %v4718, %v4759
    %v4810 = vmul.f32 %v4718, %v4763
    %v4811 = vmul.f32 %v4718, %v4767
    %v4812 = vmul.f32 %v4718, %v4771
    %v4813 = vmul.f32 %v4718, %v4775
    %v4814 = vmul.f32 %v4718, %v4779
    %v4815 = vmul.f32 %v4722, %v4755
    %v4816 = vmul.f32 %v4722, %v4759
    %v4817 = vmul.f32 %v4722, %v4763
    %v4818 = vmul.f32 %v4722, %v4767
    %v4819 = vmul.f32 %v4722, %v4771
    %v4820 = vmul.f32 %v4722, %v4775
    %v4821 = vmul.f32 %v4722, %v4779
    %v4822 = vadd.f32 %v4670, %v4794
    %v4823 = vadd.f32 %v4671, %v4795
    %v4824 = vadd.f32 %v4672, %v4796
    %v4825 = vadd.f32 %v4673, %v4797
    %v4826 = vadd.f32 %v4674, %v4798
    %v4827 = vadd.f32 %v4675, %v4799
    %v4828 = vadd.f32 %v4676, %v4800
    %v4829 = vadd.f32 %v4677, %v4801
    %v4830 = vadd.f32 %v4678, %v4802
    %v4831 = vadd.f32 %v4679, %v4803
    %v4832 = vadd.f32 %v4680, %v4804
    %v4833 = vadd.f32 %v4681, %v4805
    %v4834 = vadd.f32 %v4682, %v4806
    %v4835 = vadd.f32 %v4683, %v4807
    %v4836 = vadd.f32 %v4684, %v4808
    %v4837 = vadd.f32 %v4685, %v4809
    %v4838 = vadd.f32 %v4686, %v4810
    %v4839 = vadd.f32 %v4687, %v4811
    %v4840 = vadd.f32 %v4688, %v4812
    %v4841 = vadd.f32 %v4689, %v4813
    %v4842 = vadd.f32 %v4690, %v4814
    %v4843 = vadd.f32 %v4691, %v4815
    %v4844 = vadd.f32 %v4692, %v4816
    %v4845 = vadd.f32 %v4693, %v4817
    %v4846 = vadd.f32 %v4694, %v4818
    %v4847 = vadd.f32 %v4695, %v4819
    %v4848 = vadd.f32 %v4696, %v4820
    %v4849 = vadd.f32 %v4697, %v4821
    %4850 = vrot.lane.b32.xlu0 %v53, 125
    %v4851 = vpop.permute.xlu0 %4850
    %4852 = vrot.lane.b32.xlu0 %v4543, 125
    %v4853 = vpop.permute.xlu0 %4852
    %4854 = vrot.lane.b32.xlu0 %v54, 125
    %v4855 = vpop.permute.xlu0 %4854
    %4856 = vrot.lane.b32.xlu0 %v4544, 125
    %v4857 = vpop.permute.xlu0 %4856
    %v4858 = vrot.slane %v4851, 1
    %v4859 = vrot.slane %v4855, 1
    %v4860 = vrot.slane %v4851, 2
    %v4861 = vrot.slane %v4853, 2
    %v4862 = vrot.slane %v4855, 2
    %v4863 = vrot.slane %v4857, 2
    %v4864 = vsel %vm4559, %v4860, %v4861
    %v4865 = vsel %vm779, %v4858, %v4864
    %v4866 = vsel %vm4559, %v4862, %v4863
    %v4867 = vsel %vm779, %v4859, %v4866
    %4868 = vset.pattern.permute.xlu0 23
    %4869 = vperm.xlu0 %4868, %v35
    %v4870 = vpop.permute.xlu0 %4869
    %4872 = vset.pattern.permute.xlu0 23
    %4873 = vperm.xlu0 %4872, %v36
    %v4874 = vpop.permute.xlu0 %4873
    %v4876 = vlaneseq
    %v4877 = vshrl.u32 %v4876, 7
    %v4878 = vsub.s32 0, %v4877
    %v4879 = vrot.slane %v4865, %v4878
    %v4880 = vlaneseq
    %v4881 = vshrl.u32 %v4880, 7
    %v4882 = vsub.s32 1, %v4881
    %v4883 = vrot.slane %v4865, %v4882
    %v4884 = vlaneseq
    %v4885 = vshrl.u32 %v4884, 7
    %v4886 = vsub.s32 2, %v4885
    %v4887 = vrot.slane %v4865, %v4886
    %v4888 = vlaneseq
    %v4889 = vshrl.u32 %v4888, 7
    %v4890 = vsub.s32 3, %v4889
    %v4891 = vrot.slane %v4865, %v4890
    %v4892 = vlaneseq
    %v4893 = vshrl.u32 %v4892, 7
    %v4894 = vsub.s32 4, %v4893
    %v4895 = vrot.slane %v4865, %v4894
    %v4896 = vlaneseq
    %v4897 = vshrl.u32 %v4896, 7
    %v4898 = vsub.s32 5, %v4897
    %v4899 = vrot.slane %v4865, %v4898
    %v4900 = vlaneseq
    %v4901 = vshrl.u32 %v4900, 7
    %v4902 = vsub.s32 6, %v4901
    %v4903 = vrot.slane %v4865, %v4902
    %v4904 = vlaneseq
    %v4905 = vshrl.u32 %v4904, 7
    %v4906 = vsub.s32 0, %v4905
    %v4907 = vrot.slane %v4867, %v4906
    %v4908 = vlaneseq
    %v4909 = vshrl.u32 %v4908, 7
    %v4910 = vsub.s32 1, %v4909
    %v4911 = vrot.slane %v4867, %v4910
    %v4912 = vlaneseq
    %v4913 = vshrl.u32 %v4912, 7
    %v4914 = vsub.s32 2, %v4913
    %v4915 = vrot.slane %v4867, %v4914
    %v4916 = vlaneseq
    %v4917 = vshrl.u32 %v4916, 7
    %v4918 = vsub.s32 3, %v4917
    %v4919 = vrot.slane %v4867, %v4918
    %v4920 = vlaneseq
    %v4921 = vshrl.u32 %v4920, 7
    %v4922 = vsub.s32 4, %v4921
    %v4923 = vrot.slane %v4867, %v4922
    %v4924 = vlaneseq
    %v4925 = vshrl.u32 %v4924, 7
    %v4926 = vsub.s32 5, %v4925
    %v4927 = vrot.slane %v4867, %v4926
    %v4928 = vlaneseq
    %v4929 = vshrl.u32 %v4928, 7
    %v4930 = vsub.s32 6, %v4929
    %v4931 = vrot.slane %v4867, %v4930
    %v4946 = vmul.f32 %v4870, %v4879
    %v4947 = vmul.f32 %v4870, %v4883
    %v4948 = vmul.f32 %v4870, %v4887
    %v4949 = vmul.f32 %v4870, %v4891
    %v4950 = vmul.f32 %v4870, %v4895
    %v4951 = vmul.f32 %v4870, %v4899
    %v4952 = vmul.f32 %v4870, %v4903
    %v4953 = vmul.f32 %v4874, %v4879
    %v4954 = vmul.f32 %v4874, %v4883
    %v4955 = vmul.f32 %v4874, %v4887
    %v4956 = vmul.f32 %v4874, %v4891
    %v4957 = vmul.f32 %v4874, %v4895
    %v4958 = vmul.f32 %v4874, %v4899
    %v4959 = vmul.f32 %v4874, %v4903
    %v4960 = vmul.f32 %v4870, %v4907
    %v4961 = vmul.f32 %v4870, %v4911
    %v4962 = vmul.f32 %v4870, %v4915
    %v4963 = vmul.f32 %v4870, %v4919
    %v4964 = vmul.f32 %v4870, %v4923
    %v4965 = vmul.f32 %v4870, %v4927
    %v4966 = vmul.f32 %v4870, %v4931
    %v4967 = vmul.f32 %v4874, %v4907
    %v4968 = vmul.f32 %v4874, %v4911
    %v4969 = vmul.f32 %v4874, %v4915
    %v4970 = vmul.f32 %v4874, %v4919
    %v4971 = vmul.f32 %v4874, %v4923
    %v4972 = vmul.f32 %v4874, %v4927
    %v4973 = vmul.f32 %v4874, %v4931
    %v4974 = vadd.f32 %v4822, %v4946
    %v4975 = vadd.f32 %v4823, %v4947
    %v4976 = vadd.f32 %v4824, %v4948
    %v4977 = vadd.f32 %v4825, %v4949
    %v4978 = vadd.f32 %v4826, %v4950
    %v4979 = vadd.f32 %v4827, %v4951
    %v4980 = vadd.f32 %v4828, %v4952
    %v4981 = vadd.f32 %v4829, %v4953
    %v4982 = vadd.f32 %v4830, %v4954
    %v4983 = vadd.f32 %v4831, %v4955
    %v4984 = vadd.f32 %v4832, %v4956
    %v4985 = vadd.f32 %v4833, %v4957
    %v4986 = vadd.f32 %v4834, %v4958
    %v4987 = vadd.f32 %v4835, %v4959
    %v4988 = vadd.f32 %v4836, %v4960
    %v4989 = vadd.f32 %v4837, %v4961
    %v4990 = vadd.f32 %v4838, %v4962
    %v4991 = vadd.f32 %v4839, %v4963
    %v4992 = vadd.f32 %v4840, %v4964
    %v4993 = vadd.f32 %v4841, %v4965
    %v4994 = vadd.f32 %v4842, %v4966
    %v4995 = vadd.f32 %v4843, %v4967
    %v4996 = vadd.f32 %v4844, %v4968
    %v4997 = vadd.f32 %v4845, %v4969
    %v4998 = vadd.f32 %v4846, %v4970
    %v4999 = vadd.f32 %v4847, %v4971
    %v5000 = vadd.f32 %v4848, %v4972
    %v5001 = vadd.f32 %v4849, %v4973
    %5002 = vrot.lane.b32.xlu0 %v53, 124
    %v5003 = vpop.permute.xlu0 %5002
    %5004 = vrot.lane.b32.xlu0 %v4543, 124
    %v5005 = vpop.permute.xlu0 %5004
    %5006 = vrot.lane.b32.xlu0 %v54, 124
    %v5007 = vpop.permute.xlu0 %5006
    %5008 = vrot.lane.b32.xlu0 %v4544, 124
    %v5009 = vpop.permute.xlu0 %5008
    %v5010 = vrot.slane %v5003, 1
    %v5011 = vrot.slane %v5007, 1
    %v5012 = vrot.slane %v5003, 2
    %v5013 = vrot.slane %v5005, 2
    %v5014 = vrot.slane %v5007, 2
    %v5015 = vrot.slane %v5009, 2
    %v5016 = vsel %vm4559, %v5012, %v5013
    %v5017 = vsel %vm1000, %v5010, %v5016
    %v5018 = vsel %vm4559, %v5014, %v5015
    %v5019 = vsel %vm1000, %v5011, %v5018
    %5020 = vset.pattern.permute.xlu0 24
    %5021 = vperm.xlu0 %5020, %v35
    %v5022 = vpop.permute.xlu0 %5021
    %5024 = vset.pattern.permute.xlu0 24
    %5025 = vperm.xlu0 %5024, %v36
    %v5026 = vpop.permute.xlu0 %5025
    %v5028 = vlaneseq
    %v5029 = vshrl.u32 %v5028, 7
    %v5030 = vsub.s32 0, %v5029
    %v5031 = vrot.slane %v5017, %v5030
    %v5032 = vlaneseq
    %v5033 = vshrl.u32 %v5032, 7
    %v5034 = vsub.s32 1, %v5033
    %v5035 = vrot.slane %v5017, %v5034
    %v5036 = vlaneseq
    %v5037 = vshrl.u32 %v5036, 7
    %v5038 = vsub.s32 2, %v5037
    %v5039 = vrot.slane %v5017, %v5038
    %v5040 = vlaneseq
    %v5041 = vshrl.u32 %v5040, 7
    %v5042 = vsub.s32 3, %v5041
    %v5043 = vrot.slane %v5017, %v5042
    %v5044 = vlaneseq
    %v5045 = vshrl.u32 %v5044, 7
    %v5046 = vsub.s32 4, %v5045
    %v5047 = vrot.slane %v5017, %v5046
    %v5048 = vlaneseq
    %v5049 = vshrl.u32 %v5048, 7
    %v5050 = vsub.s32 5, %v5049
    %v5051 = vrot.slane %v5017, %v5050
    %v5052 = vlaneseq
    %v5053 = vshrl.u32 %v5052, 7
    %v5054 = vsub.s32 6, %v5053
    %v5055 = vrot.slane %v5017, %v5054
    %v5056 = vlaneseq
    %v5057 = vshrl.u32 %v5056, 7
    %v5058 = vsub.s32 0, %v5057
    %v5059 = vrot.slane %v5019, %v5058
    %v5060 = vlaneseq
    %v5061 = vshrl.u32 %v5060, 7
    %v5062 = vsub.s32 1, %v5061
    %v5063 = vrot.slane %v5019, %v5062
    %v5064 = vlaneseq
    %v5065 = vshrl.u32 %v5064, 7
    %v5066 = vsub.s32 2, %v5065
    %v5067 = vrot.slane %v5019, %v5066
    %v5068 = vlaneseq
    %v5069 = vshrl.u32 %v5068, 7
    %v5070 = vsub.s32 3, %v5069
    %v5071 = vrot.slane %v5019, %v5070
    %v5072 = vlaneseq
    %v5073 = vshrl.u32 %v5072, 7
    %v5074 = vsub.s32 4, %v5073
    %v5075 = vrot.slane %v5019, %v5074
    %v5076 = vlaneseq
    %v5077 = vshrl.u32 %v5076, 7
    %v5078 = vsub.s32 5, %v5077
    %v5079 = vrot.slane %v5019, %v5078
    %v5080 = vlaneseq
    %v5081 = vshrl.u32 %v5080, 7
    %v5082 = vsub.s32 6, %v5081
    %v5083 = vrot.slane %v5019, %v5082
    %v5098 = vmul.f32 %v5022, %v5031
    %v5099 = vmul.f32 %v5022, %v5035
    %v5100 = vmul.f32 %v5022, %v5039
    %v5101 = vmul.f32 %v5022, %v5043
    %v5102 = vmul.f32 %v5022, %v5047
    %v5103 = vmul.f32 %v5022, %v5051
    %v5104 = vmul.f32 %v5022, %v5055
    %v5105 = vmul.f32 %v5026, %v5031
    %v5106 = vmul.f32 %v5026, %v5035
    %v5107 = vmul.f32 %v5026, %v5039
    %v5108 = vmul.f32 %v5026, %v5043
    %v5109 = vmul.f32 %v5026, %v5047
    %v5110 = vmul.f32 %v5026, %v5051
    %v5111 = vmul.f32 %v5026, %v5055
    %v5112 = vmul.f32 %v5022, %v5059
    %v5113 = vmul.f32 %v5022, %v5063
    %v5114 = vmul.f32 %v5022, %v5067
    %v5115 = vmul.f32 %v5022, %v5071
    %v5116 = vmul.f32 %v5022, %v5075
    %v5117 = vmul.f32 %v5022, %v5079
    %v5118 = vmul.f32 %v5022, %v5083
    %v5119 = vmul.f32 %v5026, %v5059
    %v5120 = vmul.f32 %v5026, %v5063
    %v5121 = vmul.f32 %v5026, %v5067
    %v5122 = vmul.f32 %v5026, %v5071
    %v5123 = vmul.f32 %v5026, %v5075
    %v5124 = vmul.f32 %v5026, %v5079
    %v5125 = vmul.f32 %v5026, %v5083
    %v5126 = vadd.f32 %v4974, %v5098
    %v5127 = vadd.f32 %v4975, %v5099
    %v5128 = vadd.f32 %v4976, %v5100
    %v5129 = vadd.f32 %v4977, %v5101
    %v5130 = vadd.f32 %v4978, %v5102
    %v5131 = vadd.f32 %v4979, %v5103
    %v5132 = vadd.f32 %v4980, %v5104
    %v5133 = vadd.f32 %v4981, %v5105
    %v5134 = vadd.f32 %v4982, %v5106
    %v5135 = vadd.f32 %v4983, %v5107
    %v5136 = vadd.f32 %v4984, %v5108
    %v5137 = vadd.f32 %v4985, %v5109
    %v5138 = vadd.f32 %v4986, %v5110
    %v5139 = vadd.f32 %v4987, %v5111
    %v5140 = vadd.f32 %v4988, %v5112
    %v5141 = vadd.f32 %v4989, %v5113
    %v5142 = vadd.f32 %v4990, %v5114
    %v5143 = vadd.f32 %v4991, %v5115
    %v5144 = vadd.f32 %v4992, %v5116
    %v5145 = vadd.f32 %v4993, %v5117
    %v5146 = vadd.f32 %v4994, %v5118
    %v5147 = vadd.f32 %v4995, %v5119
    %v5148 = vadd.f32 %v4996, %v5120
    %v5149 = vadd.f32 %v4997, %v5121
    %v5150 = vadd.f32 %v4998, %v5122
    %v5151 = vadd.f32 %v4999, %v5123
    %v5152 = vadd.f32 %v5000, %v5124
    %v5153 = vadd.f32 %v5001, %v5125
    %v5154 = vld [vmem:[%s2] sm:$0xff]
    %v5155 = vld [vmem:[%s2 + $0x8] sm:$0xff]
    %5157 = vset.pattern.permute.xlu0 0
    %5158 = vperm.xlu0 %5157, %v5154
    %v5159 = vpop.permute.xlu0 %5158
    %5162 = vset.pattern.permute.xlu0 0
    %5163 = vperm.xlu0 %5162, %v5155
    %v5164 = vpop.permute.xlu0 %5163
    %v5166 = vadd.f32 %v5126, %v5159
    %v5167 = vadd.f32 %v5127, %v5159
    %v5168 = vadd.f32 %v5128, %v5159
    %v5169 = vadd.f32 %v5129, %v5159
    %v5170 = vadd.f32 %v5130, %v5159
    %v5171 = vadd.f32 %v5131, %v5159
    %v5172 = vadd.f32 %v5132, %v5159
    %v5173 = vadd.f32 %v5133, %v5164
    %v5174 = vadd.f32 %v5134, %v5164
    %v5175 = vadd.f32 %v5135, %v5164
    %v5176 = vadd.f32 %v5136, %v5164
    %v5177 = vadd.f32 %v5137, %v5164
    %v5178 = vadd.f32 %v5138, %v5164
    %v5179 = vadd.f32 %v5139, %v5164
    %v5180 = vadd.f32 %v5140, %v5159
    %v5181 = vadd.f32 %v5141, %v5159
    %v5182 = vadd.f32 %v5142, %v5159
    %v5183 = vadd.f32 %v5143, %v5159
    %v5184 = vadd.f32 %v5144, %v5159
    %v5185 = vadd.f32 %v5145, %v5159
    %v5186 = vadd.f32 %v5146, %v5159
    %v5187 = vadd.f32 %v5147, %v5164
    %v5188 = vadd.f32 %v5148, %v5164
    %v5189 = vadd.f32 %v5149, %v5164
    %v5190 = vadd.f32 %v5150, %v5164
    %v5191 = vadd.f32 %v5151, %v5164
    %v5192 = vadd.f32 %v5152, %v5164
    %v5193 = vadd.f32 %v5153, %v5164
    %v5194 = vmax.f32 %v5166, 0.0
    %v5195 = vmax.f32 %v5167, 0.0
    %v5196 = vmax.f32 %v5168, 0.0
    %v5197 = vmax.f32 %v5169, 0.0
    %v5198 = vmax.f32 %v5170, 0.0
    %v5199 = vmax.f32 %v5171, 0.0
    %v5200 = vmax.f32 %v5172, 0.0
    %v5201 = vmax.f32 %v5173, 0.0
    %v5202 = vmax.f32 %v5174, 0.0
    %v5203 = vmax.f32 %v5175, 0.0
    %v5204 = vmax.f32 %v5176, 0.0
    %v5205 = vmax.f32 %v5177, 0.0
    %v5206 = vmax.f32 %v5178, 0.0
    %v5207 = vmax.f32 %v5179, 0.0
    %v5208 = vmax.f32 %v5180, 0.0
    %v5209 = vmax.f32 %v5181, 0.0
    %v5210 = vmax.f32 %v5182, 0.0
    %v5211 = vmax.f32 %v5183, 0.0
    %v5212 = vmax.f32 %v5184, 0.0
    %v5213 = vmax.f32 %v5185, 0.0
    %v5214 = vmax.f32 %v5186, 0.0
    %v5215 = vmax.f32 %v5187, 0.0
    %v5216 = vmax.f32 %v5188, 0.0
    %v5217 = vmax.f32 %v5189, 0.0
    %v5218 = vmax.f32 %v5190, 0.0
    %v5219 = vmax.f32 %v5191, 0.0
    %v5220 = vmax.f32 %v5192, 0.0
    %v5221 = vmax.f32 %v5193, 0.0
    %5250 = vrot.lane.b32.xlu0 %v5194, 127
    %v5251 = vpop.permute.xlu0 %5250
    %5252 = vrot.lane.b32.xlu0 %v5195, 127
    %v5253 = vpop.permute.xlu0 %5252
    %5254 = vrot.lane.b32.xlu0 %v5196, 127
    %v5255 = vpop.permute.xlu0 %5254
    %5256 = vrot.lane.b32.xlu0 %v5197, 127
    %v5257 = vpop.permute.xlu0 %5256
    %5258 = vrot.lane.b32.xlu0 %v5198, 127
    %v5259 = vpop.permute.xlu0 %5258
    %5260 = vrot.lane.b32.xlu0 %v5199, 127
    %v5261 = vpop.permute.xlu0 %5260
    %5262 = vrot.lane.b32.xlu0 %v5200, 127
    %v5263 = vpop.permute.xlu0 %5262
    %5264 = vrot.lane.b32.xlu0 %v5201, 127
    %v5265 = vpop.permute.xlu0 %5264
    %5266 = vrot.lane.b32.xlu0 %v5202, 127
    %v5267 = vpop.permute.xlu0 %5266
    %5268 = vrot.lane.b32.xlu0 %v5203, 127
    %v5269 = vpop.permute.xlu0 %5268
    %5270 = vrot.lane.b32.xlu0 %v5204, 127
    %v5271 = vpop.permute.xlu0 %5270
    %5272 = vrot.lane.b32.xlu0 %v5205, 127
    %v5273 = vpop.permute.xlu0 %5272
    %5274 = vrot.lane.b32.xlu0 %v5206, 127
    %v5275 = vpop.permute.xlu0 %5274
    %5276 = vrot.lane.b32.xlu0 %v5207, 127
    %v5277 = vpop.permute.xlu0 %5276
    %5278 = vrot.lane.b32.xlu0 %v5208, 127
    %v5279 = vpop.permute.xlu0 %5278
    %5280 = vrot.lane.b32.xlu0 %v5209, 127
    %v5281 = vpop.permute.xlu0 %5280
    %5282 = vrot.lane.b32.xlu0 %v5210, 127
    %v5283 = vpop.permute.xlu0 %5282
    %5284 = vrot.lane.b32.xlu0 %v5211, 127
    %v5285 = vpop.permute.xlu0 %5284
    %5286 = vrot.lane.b32.xlu0 %v5212, 127
    %v5287 = vpop.permute.xlu0 %5286
    %5288 = vrot.lane.b32.xlu0 %v5213, 127
    %v5289 = vpop.permute.xlu0 %5288
    %5290 = vrot.lane.b32.xlu0 %v5214, 127
    %v5291 = vpop.permute.xlu0 %5290
    %5292 = vrot.lane.b32.xlu0 %v5215, 127
    %v5293 = vpop.permute.xlu0 %5292
    %5294 = vrot.lane.b32.xlu0 %v5216, 127
    %v5295 = vpop.permute.xlu0 %5294
    %5296 = vrot.lane.b32.xlu0 %v5217, 127
    %v5297 = vpop.permute.xlu0 %5296
    %5298 = vrot.lane.b32.xlu0 %v5218, 127
    %v5299 = vpop.permute.xlu0 %5298
    %5300 = vrot.lane.b32.xlu0 %v5219, 127
    %v5301 = vpop.permute.xlu0 %5300
    %5302 = vrot.lane.b32.xlu0 %v5220, 127
    %v5303 = vpop.permute.xlu0 %5302
    %5304 = vrot.lane.b32.xlu0 %v5221, 127
    %v5305 = vpop.permute.xlu0 %5304
    %v5306 = vsel %vm337, %v5251, %v5253
    %v5307 = vsel %vm337, %v5253, %v5255
    %v5308 = vsel %vm337, %v5255, %v5257
    %v5309 = vsel %vm337, %v5257, %v5259
    %v5310 = vsel %vm337, %v5259, %v5261
    %v5311 = vsel %vm337, %v5261, %v5263
    %v5312 = vsel %vm337, %v5265, %v5267
    %v5313 = vsel %vm337, %v5267, %v5269
    %v5314 = vsel %vm337, %v5269, %v5271
    %v5315 = vsel %vm337, %v5271, %v5273
    %v5316 = vsel %vm337, %v5273, %v5275
    %v5317 = vsel %vm337, %v5275, %v5277
    %v5318 = vsel %vm337, %v5279, %v5281
    %v5319 = vsel %vm337, %v5281, %v5283
    %v5320 = vsel %vm337, %v5283, %v5285
    %v5321 = vsel %vm337, %v5285, %v5287
    %v5322 = vsel %vm337, %v5287, %v5289
    %v5323 = vsel %vm337, %v5289, %v5291
    %v5324 = vsel %vm337, %v5293, %v5295
    %v5325 = vsel %vm337, %v5295, %v5297
    %v5326 = vsel %vm337, %v5297, %v5299
    %v5327 = vsel %vm337, %v5299, %v5301
    %v5328 = vsel %vm337, %v5301, %v5303
    %v5329 = vsel %vm337, %v5303, %v5305
    %v5358 = vmax.f32 %v5194, %v5306
    %v5359 = vmax.f32 %v5195, %v5307
    %v5360 = vmax.f32 %v5196, %v5308
    %v5361 = vmax.f32 %v5197, %v5309
    %v5362 = vmax.f32 %v5198, %v5310
    %v5363 = vmax.f32 %v5199, %v5311
    %v5364 = vmax.f32 %v5200, %v5263
    %v5365 = vmax.f32 %v5201, %v5312
    %v5366 = vmax.f32 %v5202, %v5313
    %v5367 = vmax.f32 %v5203, %v5314
    %v5368 = vmax.f32 %v5204, %v5315
    %v5369 = vmax.f32 %v5205, %v5316
    %v5370 = vmax.f32 %v5206, %v5317
    %v5371 = vmax.f32 %v5207, %v5277
    %v5372 = vmax.f32 %v5208, %v5318
    %v5373 = vmax.f32 %v5209, %v5319
    %v5374 = vmax.f32 %v5210, %v5320
    %v5375 = vmax.f32 %v5211, %v5321
    %v5376 = vmax.f32 %v5212, %v5322
    %v5377 = vmax.f32 %v5213, %v5323
    %v5378 = vmax.f32 %v5214, %v5291
    %v5379 = vmax.f32 %v5215, %v5324
    %v5380 = vmax.f32 %v5216, %v5325
    %v5381 = vmax.f32 %v5217, %v5326
    %v5382 = vmax.f32 %v5218, %v5327
    %v5383 = vmax.f32 %v5219, %v5328
    %v5384 = vmax.f32 %v5220, %v5329
    %v5385 = vmax.f32 %v5221, %v5305
    %5414 = vrot.lane.b32.xlu0 %v5358, 96
    %v5415 = vpop.permute.xlu0 %5414
    %5416 = vrot.lane.b32.xlu0 %v5359, 96
    %v5417 = vpop.permute.xlu0 %5416
    %5418 = vrot.lane.b32.xlu0 %v5360, 96
    %v5419 = vpop.permute.xlu0 %5418
    %5420 = vrot.lane.b32.xlu0 %v5361, 96
    %v5421 = vpop.permute.xlu0 %5420
    %5422 = vrot.lane.b32.xlu0 %v5362, 96
    %v5423 = vpop.permute.xlu0 %5422
    %5424 = vrot.lane.b32.xlu0 %v5363, 96
    %v5425 = vpop.permute.xlu0 %5424
    %5426 = vrot.lane.b32.xlu0 %v5364, 96
    %v5427 = vpop.permute.xlu0 %5426
    %5428 = vrot.lane.b32.xlu0 %v5365, 96
    %v5429 = vpop.permute.xlu0 %5428
    %5430 = vrot.lane.b32.xlu0 %v5366, 96
    %v5431 = vpop.permute.xlu0 %5430
    %5432 = vrot.lane.b32.xlu0 %v5367, 96
    %v5433 = vpop.permute.xlu0 %5432
    %5434 = vrot.lane.b32.xlu0 %v5368, 96
    %v5435 = vpop.permute.xlu0 %5434
    %5436 = vrot.lane.b32.xlu0 %v5369, 96
    %v5437 = vpop.permute.xlu0 %5436
    %5438 = vrot.lane.b32.xlu0 %v5370, 96
    %v5439 = vpop.permute.xlu0 %5438
    %5440 = vrot.lane.b32.xlu0 %v5371, 96
    %v5441 = vpop.permute.xlu0 %5440
    %5442 = vrot.lane.b32.xlu0 %v5372, 96
    %v5443 = vpop.permute.xlu0 %5442
    %5444 = vrot.lane.b32.xlu0 %v5373, 96
    %v5445 = vpop.permute.xlu0 %5444
    %5446 = vrot.lane.b32.xlu0 %v5374, 96
    %v5447 = vpop.permute.xlu0 %5446
    %5448 = vrot.lane.b32.xlu0 %v5375, 96
    %v5449 = vpop.permute.xlu0 %5448
    %5450 = vrot.lane.b32.xlu0 %v5376, 96
    %v5451 = vpop.permute.xlu0 %5450
    %5452 = vrot.lane.b32.xlu0 %v5377, 96
    %v5453 = vpop.permute.xlu0 %5452
    %5454 = vrot.lane.b32.xlu0 %v5378, 96
    %v5455 = vpop.permute.xlu0 %5454
    %5456 = vrot.lane.b32.xlu0 %v5379, 96
    %v5457 = vpop.permute.xlu0 %5456
    %5458 = vrot.lane.b32.xlu0 %v5380, 96
    %v5459 = vpop.permute.xlu0 %5458
    %5460 = vrot.lane.b32.xlu0 %v5381, 96
    %v5461 = vpop.permute.xlu0 %5460
    %5462 = vrot.lane.b32.xlu0 %v5382, 96
    %v5463 = vpop.permute.xlu0 %5462
    %5464 = vrot.lane.b32.xlu0 %v5383, 96
    %v5465 = vpop.permute.xlu0 %5464
    %5466 = vrot.lane.b32.xlu0 %v5384, 96
    %v5467 = vpop.permute.xlu0 %5466
    %5468 = vrot.lane.b32.xlu0 %v5385, 96
    %v5469 = vpop.permute.xlu0 %5468
    %v5470 = vsel %vm1221, %v5415, %v5417
    %v5471 = vsel %vm1221, %v5417, %v5419
    %v5472 = vsel %vm1221, %v5419, %v5421
    %v5473 = vsel %vm1221, %v5421, %v5423
    %v5474 = vsel %vm1221, %v5423, %v5425
    %v5475 = vsel %vm1221, %v5425, %v5427
    %v5476 = vsel %vm1221, %v5429, %v5431
    %v5477 = vsel %vm1221, %v5431, %v5433
    %v5478 = vsel %vm1221, %v5433, %v5435
    %v5479 = vsel %vm1221, %v5435, %v5437
    %v5480 = vsel %vm1221, %v5437, %v5439
    %v5481 = vsel %vm1221, %v5439, %v5441
    %v5482 = vsel %vm1221, %v5443, %v5445
    %v5483 = vsel %vm1221, %v5445, %v5447
    %v5484 = vsel %vm1221, %v5447, %v5449
    %v5485 = vsel %vm1221, %v5449, %v5451
    %v5486 = vsel %vm1221, %v5451, %v5453
    %v5487 = vsel %vm1221, %v5453, %v5455
    %v5488 = vsel %vm1221, %v5457, %v5459
    %v5489 = vsel %vm1221, %v5459, %v5461
    %v5490 = vsel %vm1221, %v5461, %v5463
    %v5491 = vsel %vm1221, %v5463, %v5465
    %v5492 = vsel %vm1221, %v5465, %v5467
    %v5493 = vsel %vm1221, %v5467, %v5469
    %v5522 = vmax.f32 %v5358, %v5470
    %v5523 = vmax.f32 %v5359, %v5471
    %v5524 = vmax.f32 %v5360, %v5472
    %v5525 = vmax.f32 %v5361, %v5473
    %v5526 = vmax.f32 %v5362, %v5474
    %v5527 = vmax.f32 %v5363, %v5475
    %v5528 = vmax.f32 %v5364, %v5427
    %v5529 = vmax.f32 %v5365, %v5476
    %v5530 = vmax.f32 %v5366, %v5477
    %v5531 = vmax.f32 %v5367, %v5478
    %v5532 = vmax.f32 %v5368, %v5479
    %v5533 = vmax.f32 %v5369, %v5480
    %v5534 = vmax.f32 %v5370, %v5481
    %v5535 = vmax.f32 %v5371, %v5441
    %v5536 = vmax.f32 %v5372, %v5482
    %v5537 = vmax.f32 %v5373, %v5483
    %v5538 = vmax.f32 %v5374, %v5484
    %v5539 = vmax.f32 %v5375, %v5485
    %v5540 = vmax.f32 %v5376, %v5486
    %v5541 = vmax.f32 %v5377, %v5487
    %v5542 = vmax.f32 %v5378, %v5455
    %v5543 = vmax.f32 %v5379, %v5488
    %v5544 = vmax.f32 %v5380, %v5489
    %v5545 = vmax.f32 %v5381, %v5490
    %v5546 = vmax.f32 %v5382, %v5491
    %v5547 = vmax.f32 %v5383, %v5492
    %v5548 = vmax.f32 %v5384, %v5493
    %v5549 = vmax.f32 %v5385, %v5469
    %v5550 = vpack.c.bf16 %v5529, %v5522
    %v5551 = vpack.c.bf16 %v5530, %v5523
    %v5552 = vpack.c.bf16 %v5531, %v5524
    %v5553 = vpack.c.bf16 %v5532, %v5525
    %v5554 = vpack.c.bf16 %v5533, %v5526
    %v5555 = vpack.c.bf16 %v5534, %v5527
    %v5556 = vpack.c.bf16 %v5535, %v5528
    %v5557 = vpack.c.bf16 %v5543, %v5536
    %v5558 = vpack.c.bf16 %v5544, %v5537
    %v5559 = vpack.c.bf16 %v5545, %v5538
    %v5560 = vpack.c.bf16 %v5546, %v5539
    %v5561 = vpack.c.bf16 %v5547, %v5540
    %v5562 = vpack.c.bf16 %v5548, %v5541
    %v5563 = vpack.c.bf16 %v5549, %v5542
    %v5564 = vld [vmem:[#allocation2] sm:$0xff]
    %v5565 = vld [vmem:[#allocation2 + $0x8] sm:$0xf]
    %v5566 = vld [vmem:[#allocation2 + $0xc] sm:$0xff]
    %v5567 = vld [vmem:[#allocation2 + $0x14] sm:$0xf]
    %v5568 = vld [vmem:[#allocation2 + $0x18] sm:$0xff]
    %v5569 = vld [vmem:[#allocation2 + $0x20] sm:$0xf]
    %v5570 = vld [vmem:[#allocation2 + $0x24] sm:$0xff]
    %v5571 = vld [vmem:[#allocation2 + $0x2c] sm:$0xf]
    %v5572 = vld [vmem:[#allocation2 + $0x30] sm:$0xff]
    %v5573 = vld [vmem:[#allocation2 + $0x38] sm:$0xf]
    %v5574 = vld [vmem:[#allocation2 + $0x3c] sm:$0xff]
    %v5575 = vld [vmem:[#allocation2 + $0x44] sm:$0xf]
    %v5576 = vld [vmem:[#allocation2 + $0x48] sm:$0xff]
    %v5577 = vld [vmem:[#allocation2 + $0x50] sm:$0xf]
    %v5578 = vld [vmem:[#allocation2 + $0x54] sm:$0xff]
    %v5579 = vld [vmem:[#allocation2 + $0x5c] sm:$0xf]
    %v5580 = vld [vmem:[#allocation2 + $0x60] sm:$0xff]
    %v5581 = vld [vmem:[#allocation2 + $0x68] sm:$0xf]
    %v5582 = vld [vmem:[#allocation2 + $0x6c] sm:$0xff]
    %v5583 = vld [vmem:[#allocation2 + $0x74] sm:$0xf]
    %v5584 = vld [vmem:[#allocation2 + $0x78] sm:$0xff]
    %v5585 = vld [vmem:[#allocation2 + $0x80] sm:$0xf]
    %v5586 = vld [vmem:[#allocation2 + $0x84] sm:$0xff]
    %v5587 = vld [vmem:[#allocation2 + $0x8c] sm:$0xf]
    %v5588 = vld [vmem:[#allocation2 + $0x90] sm:$0xff]
    %v5589 = vld [vmem:[#allocation2 + $0x98] sm:$0xf]
    %v5590 = vld [vmem:[#allocation2 + $0x9c] sm:$0xff]
    %v5591 = vld [vmem:[#allocation2 + $0xa4] sm:$0xf]
    %v5592 = vld [vmem:[#allocation2 + $0xa8] sm:$0xff]
    %v5593 = vld [vmem:[#allocation2 + $0xb0] sm:$0xf]
    %v5594 = vld [vmem:[#allocation2 + $0xb4] sm:$0xff]
    %v5595 = vld [vmem:[#allocation2 + $0xbc] sm:$0xf]
    %v5596 = vld [vmem:[#allocation2 + $0xc0] sm:$0xff]
    %v5597 = vld [vmem:[#allocation2 + $0xc8] sm:$0xf]
    %v5598 = vld [vmem:[#allocation2 + $0xcc] sm:$0xff]
    %v5599 = vld [vmem:[#allocation2 + $0xd4] sm:$0xf]
    %v5600 = vld [vmem:[#allocation2 + $0xd8] sm:$0xff]
    %v5601 = vld [vmem:[#allocation2 + $0xe0] sm:$0xf]
    %v5602 = vld [vmem:[#allocation2 + $0xe4] sm:$0xff]
    %v5603 = vld [vmem:[#allocation2 + $0xec] sm:$0xf]
    %v5604 = vld [vmem:[#allocation2 + $0xf0] sm:$0xff]
    %v5605 = vld [vmem:[#allocation2 + $0xf8] sm:$0xf]
    %v5606 = vld [vmem:[#allocation2 + $0xfc] sm:$0xff]
    %v5607 = vld [vmem:[#allocation2 + $0x104] sm:$0xf]
    %v5608 = vld [vmem:[#allocation2 + $0x108] sm:$0xff]
    %v5609 = vld [vmem:[#allocation2 + $0x110] sm:$0xf]
    %v5610 = vld [vmem:[#allocation2 + $0x114] sm:$0xff]
    %v5611 = vld [vmem:[#allocation2 + $0x11c] sm:$0xf]
    %v5612 = vld [vmem:[#allocation2 + $0x120] sm:$0xff]
    %v5613 = vld [vmem:[#allocation2 + $0x128] sm:$0xf]
    %v5614 = vld [vmem:[#allocation2 + $0x12c] sm:$0xff]
    %v5615 = vld [vmem:[#allocation2 + $0x134] sm:$0xf]
    %v5616 = vld [vmem:[#allocation2 + $0x138] sm:$0xff]
    %v5617 = vld [vmem:[#allocation2 + $0x140] sm:$0xf]
    %v5618 = vld [vmem:[#allocation2 + $0x144] sm:$0xff]
    %v5619 = vld [vmem:[#allocation2 + $0x14c] sm:$0xf]
    %v5620 = vld [vmem:[#allocation2 + $0x150] sm:$0xff]
    %v5621 = vld [vmem:[#allocation2 + $0x158] sm:$0xf]
    %v5622 = vld [vmem:[#allocation2 + $0x15c] sm:$0xff]
    %v5623 = vld [vmem:[#allocation2 + $0x164] sm:$0xf]
    %v5624 = vld [vmem:[#allocation2 + $0x168] sm:$0xff]
    %v5625 = vld [vmem:[#allocation2 + $0x170] sm:$0xf]
    %v5626 = vld [vmem:[#allocation2 + $0x174] sm:$0xff]
    %v5627 = vld [vmem:[#allocation2 + $0x17c] sm:$0xf]
    %v5628 = vld [vmem:[#allocation2 + $0x180] sm:$0xff]
    %v5629 = vld [vmem:[#allocation2 + $0x188] sm:$0xf]
    %v5630 = vld [vmem:[#allocation2 + $0x18c] sm:$0xff]
    %v5631 = vld [vmem:[#allocation2 + $0x194] sm:$0xf]
    %v5632 = vld [vmem:[#allocation2 + $0x198] sm:$0xff]
    %v5633 = vld [vmem:[#allocation2 + $0x1a0] sm:$0xf]
    %v5634 = vld [vmem:[#allocation2 + $0x1a4] sm:$0xff]
    %v5635 = vld [vmem:[#allocation2 + $0x1ac] sm:$0xf]
    %v5636 = vld [vmem:[#allocation2 + $0x1b0] sm:$0xff]
    %v5637 = vld [vmem:[#allocation2 + $0x1b8] sm:$0xf]
    %v5638 = vld [vmem:[#allocation2 + $0x1bc] sm:$0xff]
    %v5639 = vld [vmem:[#allocation2 + $0x1c4] sm:$0xf]
    %v5640 = vld [vmem:[#allocation2 + $0x1c8] sm:$0xff]
    %v5641 = vld [vmem:[#allocation2 + $0x1d0] sm:$0xf]
    %v5642 = vld [vmem:[#allocation2 + $0x1d4] sm:$0xff]
    %v5643 = vld [vmem:[#allocation2 + $0x1dc] sm:$0xf]
    %v5644 = vld [vmem:[#allocation2 + $0x1e0] sm:$0xff]
    %v5645 = vld [vmem:[#allocation2 + $0x1e8] sm:$0xf]
    %v5646 = vld [vmem:[#allocation2 + $0x1ec] sm:$0xff]
    %v5647 = vld [vmem:[#allocation2 + $0x1f4] sm:$0xf]
    %v5648 = vld [vmem:[#allocation2 + $0x1f8] sm:$0xff]
    %v5649 = vld [vmem:[#allocation2 + $0x200] sm:$0xf]
    %v5650 = vld [vmem:[#allocation2 + $0x204] sm:$0xff]
    %v5651 = vld [vmem:[#allocation2 + $0x20c] sm:$0xf]
    %v5652 = vld [vmem:[#allocation2 + $0x210] sm:$0xff]
    %v5653 = vld [vmem:[#allocation2 + $0x218] sm:$0xf]
    %v5654 = vld [vmem:[#allocation2 + $0x21c] sm:$0xff]
    %v5655 = vld [vmem:[#allocation2 + $0x224] sm:$0xf]
    %v5656 = vld [vmem:[#allocation2 + $0x228] sm:$0xff]
    %v5657 = vld [vmem:[#allocation2 + $0x230] sm:$0xf]
    %v5658 = vld [vmem:[#allocation2 + $0x234] sm:$0xff]
    %v5659 = vld [vmem:[#allocation2 + $0x23c] sm:$0xf]
    %v5660 = vld [vmem:[#allocation2 + $0x240] sm:$0xff]
    %v5661 = vld [vmem:[#allocation2 + $0x248] sm:$0xf]
    %v5662 = vld [vmem:[#allocation2 + $0x24c] sm:$0xff]
    %v5663 = vld [vmem:[#allocation2 + $0x254] sm:$0xf]
    %v5664 = vld [vmem:[#allocation2 + $0x258] sm:$0xff]
    %v5665 = vld [vmem:[#allocation2 + $0x260] sm:$0xf]
    %v5666 = vld [vmem:[#allocation2 + $0x264] sm:$0xff]
    %v5667 = vld [vmem:[#allocation2 + $0x26c] sm:$0xf]
    %v5668 = vld [vmem:[#allocation2 + $0x270] sm:$0xff]
    %v5669 = vld [vmem:[#allocation2 + $0x278] sm:$0xf]
    %v5670 = vld [vmem:[#allocation2 + $0x27c] sm:$0xff]
    %v5671 = vld [vmem:[#allocation2 + $0x284] sm:$0xf]
    %v5672 = vld [vmem:[#allocation2 + $0x288] sm:$0xff]
    %v5673 = vld [vmem:[#allocation2 + $0x290] sm:$0xf]
    %v5674 = vld [vmem:[#allocation2 + $0x294] sm:$0xff]
    %v5675 = vld [vmem:[#allocation2 + $0x29c] sm:$0xf]
    %v5676 = vld [vmem:[#allocation2 + $0x2a0] sm:$0xff]
    %v5677 = vld [vmem:[#allocation2 + $0x2a8] sm:$0xf]
    %v5678 = vld [vmem:[#allocation2 + $0x2ac] sm:$0xff]
    %v5679 = vld [vmem:[#allocation2 + $0x2b4] sm:$0xf]
    %v5680 = vld [vmem:[#allocation2 + $0x2b8] sm:$0xff]
    %v5681 = vld [vmem:[#allocation2 + $0x2c0] sm:$0xf]
    %v5682 = vld [vmem:[#allocation2 + $0x2c4] sm:$0xff]
    %v5683 = vld [vmem:[#allocation2 + $0x2cc] sm:$0xf]
    %v5684 = vld [vmem:[#allocation2 + $0x2d0] sm:$0xff]
    %v5685 = vld [vmem:[#allocation2 + $0x2d8] sm:$0xf]
    %v5686 = vld [vmem:[#allocation2 + $0x2dc] sm:$0xff]
    %v5687 = vld [vmem:[#allocation2 + $0x2e4] sm:$0xf]
    %v5688 = vld [vmem:[#allocation2 + $0x2e8] sm:$0xff]
    %v5689 = vld [vmem:[#allocation2 + $0x2f0] sm:$0xf]
    %v5690 = vld [vmem:[#allocation2 + $0x2f4] sm:$0xff]
    %v5691 = vld [vmem:[#allocation2 + $0x2fc] sm:$0xf]
    %v5692 = vld [vmem:[#allocation2 + $0x300] sm:$0xff]
    %v5693 = vld [vmem:[#allocation2 + $0x308] sm:$0xf]
    %v5694 = vld [vmem:[#allocation2 + $0x30c] sm:$0xff]
    %v5695 = vld [vmem:[#allocation2 + $0x314] sm:$0xf]
    %v5696 = vld [vmem:[#allocation2 + $0x318] sm:$0xff]
    %v5697 = vld [vmem:[#allocation2 + $0x320] sm:$0xf]
    %v5698 = vld [vmem:[#allocation2 + $0x324] sm:$0xff]
    %v5699 = vld [vmem:[#allocation2 + $0x32c] sm:$0xf]
    %v5700 = vld [vmem:[#allocation2 + $0x330] sm:$0xff]
    %v5701 = vld [vmem:[#allocation2 + $0x338] sm:$0xf]
    %v5702 = vld [vmem:[#allocation2 + $0x33c] sm:$0xff]
    %v5703 = vld [vmem:[#allocation2 + $0x344] sm:$0xf]
    %v5704 = vld [vmem:[#allocation2 + $0x348] sm:$0xff]
    %v5705 = vld [vmem:[#allocation2 + $0x350] sm:$0xf]
    %v5706 = vld [vmem:[#allocation2 + $0x354] sm:$0xff]
    %v5707 = vld [vmem:[#allocation2 + $0x35c] sm:$0xf]
    %v5708 = vld [vmem:[#allocation2 + $0x360] sm:$0xff]
    %v5709 = vld [vmem:[#allocation2 + $0x368] sm:$0xf]
    %v5710 = vld [vmem:[#allocation2 + $0x36c] sm:$0xff]
    %v5711 = vld [vmem:[#allocation2 + $0x374] sm:$0xf]
    %v5712 = vld [vmem:[#allocation2 + $0x378] sm:$0xff]
    %v5713 = vld [vmem:[#allocation2 + $0x380] sm:$0xf]
    %v5714 = vld [vmem:[#allocation2 + $0x384] sm:$0xff]
    %v5715 = vld [vmem:[#allocation2 + $0x38c] sm:$0xf]
    %v5716 = vld [vmem:[#allocation2 + $0x390] sm:$0xff]
    %v5717 = vld [vmem:[#allocation2 + $0x398] sm:$0xf]
    %v5718 = vld [vmem:[#allocation2 + $0x39c] sm:$0xff]
    %v5719 = vld [vmem:[#allocation2 + $0x3a4] sm:$0xf]
    %v5720 = vld [vmem:[#allocation2 + $0x3a8] sm:$0xff]
    %v5721 = vld [vmem:[#allocation2 + $0x3b0] sm:$0xf]
    %v5722 = vld [vmem:[#allocation2 + $0x3b4] sm:$0xff]
    %v5723 = vld [vmem:[#allocation2 + $0x3bc] sm:$0xf]
    %v5724 = vld [vmem:[#allocation2 + $0x3c0] sm:$0xff]
    %v5725 = vld [vmem:[#allocation2 + $0x3c8] sm:$0xf]
    %v5726 = vld [vmem:[#allocation2 + $0x3cc] sm:$0xff]
    %v5727 = vld [vmem:[#allocation2 + $0x3d4] sm:$0xf]
    %v5728 = vld [vmem:[#allocation2 + $0x3d8] sm:$0xff]
    %v5729 = vld [vmem:[#allocation2 + $0x3e0] sm:$0xf]
    %v5730 = vld [vmem:[#allocation2 + $0x3e4] sm:$0xff]
    %v5731 = vld [vmem:[#allocation2 + $0x3ec] sm:$0xf]
    %v5732 = vld [vmem:[#allocation2 + $0x3f0] sm:$0xff]
    %v5733 = vld [vmem:[#allocation2 + $0x3f8] sm:$0xf]
    %v5734 = vld [vmem:[#allocation2 + $0x3fc] sm:$0xff]
    %v5735 = vld [vmem:[#allocation2 + $0x404] sm:$0xf]
    %v5736 = vld [vmem:[#allocation2 + $0x408] sm:$0xff]
    %v5737 = vld [vmem:[#allocation2 + $0x410] sm:$0xf]
    %v5738 = vld [vmem:[#allocation2 + $0x414] sm:$0xff]
    %v5739 = vld [vmem:[#allocation2 + $0x41c] sm:$0xf]
    %v5740 = vld [vmem:[#allocation2 + $0x420] sm:$0xff]
    %v5741 = vld [vmem:[#allocation2 + $0x428] sm:$0xf]
    %v5742 = vld [vmem:[#allocation2 + $0x42c] sm:$0xff]
    %v5743 = vld [vmem:[#allocation2 + $0x434] sm:$0xf]
    %v5744 = vld [vmem:[#allocation2 + $0x438] sm:$0xff]
    %v5745 = vld [vmem:[#allocation2 + $0x440] sm:$0xf]
    %v5746 = vld [vmem:[#allocation2 + $0x444] sm:$0xff]
    %v5747 = vld [vmem:[#allocation2 + $0x44c] sm:$0xf]
    %v5748 = vld [vmem:[#allocation2 + $0x450] sm:$0xff]
    %v5749 = vld [vmem:[#allocation2 + $0x458] sm:$0xf]
    %v5750 = vld [vmem:[#allocation2 + $0x45c] sm:$0xff]
    %v5751 = vld [vmem:[#allocation2 + $0x464] sm:$0xf]
    %v5752 = vld [vmem:[#allocation2 + $0x468] sm:$0xff]
    %v5753 = vld [vmem:[#allocation2 + $0x470] sm:$0xf]
    %v5754 = vld [vmem:[#allocation2 + $0x474] sm:$0xff]
    %v5755 = vld [vmem:[#allocation2 + $0x47c] sm:$0xf]
    %v5756 = vld [vmem:[#allocation2 + $0x480] sm:$0xff]
    %v5757 = vld [vmem:[#allocation2 + $0x488] sm:$0xf]
    %v5758 = vld [vmem:[#allocation2 + $0x48c] sm:$0xff]
    %v5759 = vld [vmem:[#allocation2 + $0x494] sm:$0xf]
    %v5760 = vld [vmem:[#allocation2 + $0x498] sm:$0xff]
    %v5761 = vld [vmem:[#allocation2 + $0x4a0] sm:$0xf]
    %v5762 = vld [vmem:[#allocation2 + $0x4a4] sm:$0xff]
    %v5763 = vld [vmem:[#allocation2 + $0x4ac] sm:$0xf]
    %v5764 = vld [vmem:[#allocation2 + $0x4b0] sm:$0xff]
    %v5765 = vld [vmem:[#allocation2 + $0x4b8] sm:$0xf]
    %v5766 = vld [vmem:[#allocation2 + $0x4bc] sm:$0xff]
    %v5767 = vld [vmem:[#allocation2 + $0x4c4] sm:$0xf]
    %v5768 = vld [vmem:[#allocation2 + $0x4c8] sm:$0xff]
    %v5769 = vld [vmem:[#allocation2 + $0x4d0] sm:$0xf]
    %v5770 = vld [vmem:[#allocation2 + $0x4d4] sm:$0xff]
    %v5771 = vld [vmem:[#allocation2 + $0x4dc] sm:$0xf]
    %v5772 = vld [vmem:[#allocation2 + $0x4e0] sm:$0xff]
    %v5773 = vld [vmem:[#allocation2 + $0x4e8] sm:$0xf]
    %v5774 = vld [vmem:[#allocation2 + $0x4ec] sm:$0xff]
    %v5775 = vld [vmem:[#allocation2 + $0x4f4] sm:$0xf]
    %v5776 = vld [vmem:[#allocation2 + $0x4f8] sm:$0xff]
    %v5777 = vld [vmem:[#allocation2 + $0x500] sm:$0xf]
    %v5778 = vld [vmem:[#allocation2 + $0x504] sm:$0xff]
    %v5779 = vld [vmem:[#allocation2 + $0x50c] sm:$0xf]
    %v5996 = vunpack.c.l.b16 %v5564
    %v5997 = vunpack.c.h.b16 %v5564
    %v5998 = vunpack.c.l.b16 %v5565
    %v5999 = vunpack.c.l.b16 %v5566
    %v6000 = vunpack.c.h.b16 %v5566
    %v6001 = vunpack.c.l.b16 %v5567
    %v6002 = vunpack.c.l.b16 %v5568
    %v6003 = vunpack.c.h.b16 %v5568
    %v6004 = vunpack.c.l.b16 %v5569
    %v6005 = vunpack.c.l.b16 %v5570
    %v6006 = vunpack.c.h.b16 %v5570
    %v6007 = vunpack.c.l.b16 %v5571
    %v6008 = vunpack.c.l.b16 %v5572
    %v6009 = vunpack.c.h.b16 %v5572
    %v6010 = vunpack.c.l.b16 %v5573
    %v6011 = vunpack.c.l.b16 %v5574
    %v6012 = vunpack.c.h.b16 %v5574
    %v6013 = vunpack.c.l.b16 %v5575
    %v6014 = vunpack.c.l.b16 %v5576
    %v6015 = vunpack.c.h.b16 %v5576
    %v6016 = vunpack.c.l.b16 %v5577
    %v6017 = vunpack.c.l.b16 %v5578
    %v6018 = vunpack.c.h.b16 %v5578
    %v6019 = vunpack.c.l.b16 %v5579
    %v6020 = vunpack.c.l.b16 %v5580
    %v6021 = vunpack.c.h.b16 %v5580
    %v6022 = vunpack.c.l.b16 %v5581
    %v6023 = vunpack.c.l.b16 %v5582
    %v6024 = vunpack.c.h.b16 %v5582
    %v6025 = vunpack.c.l.b16 %v5583
    %v6026 = vunpack.c.l.b16 %v5584
    %v6027 = vunpack.c.h.b16 %v5584
    %v6028 = vunpack.c.l.b16 %v5585
    %v6029 = vunpack.c.l.b16 %v5586
    %v6030 = vunpack.c.h.b16 %v5586
    %v6031 = vunpack.c.l.b16 %v5587
    %v6032 = vunpack.c.l.b16 %v5588
    %v6033 = vunpack.c.h.b16 %v5588
    %v6034 = vunpack.c.l.b16 %v5589
    %v6035 = vunpack.c.l.b16 %v5590
    %v6036 = vunpack.c.h.b16 %v5590
    %v6037 = vunpack.c.l.b16 %v5591
    %v6038 = vunpack.c.l.b16 %v5592
    %v6039 = vunpack.c.h.b16 %v5592
    %v6040 = vunpack.c.l.b16 %v5593
    %v6041 = vunpack.c.l.b16 %v5594
    %v6042 = vunpack.c.h.b16 %v5594
    %v6043 = vunpack.c.l.b16 %v5595
    %v6044 = vunpack.c.l.b16 %v5596
    %v6045 = vunpack.c.h.b16 %v5596
    %v6046 = vunpack.c.l.b16 %v5597
    %v6047 = vunpack.c.l.b16 %v5598
    %v6048 = vunpack.c.h.b16 %v5598
    %v6049 = vunpack.c.l.b16 %v5599
    %v6050 = vunpack.c.l.b16 %v5600
    %v6051 = vunpack.c.h.b16 %v5600
    %v6052 = vunpack.c.l.b16 %v5601
    %v6053 = vunpack.c.l.b16 %v5602
    %v6054 = vunpack.c.h.b16 %v5602
    %v6055 = vunpack.c.l.b16 %v5603
    %v6056 = vunpack.c.l.b16 %v5604
    %v6057 = vunpack.c.h.b16 %v5604
    %v6058 = vunpack.c.l.b16 %v5605
    %v6059 = vunpack.c.l.b16 %v5606
    %v6060 = vunpack.c.h.b16 %v5606
    %v6061 = vunpack.c.l.b16 %v5607
    %v6062 = vunpack.c.l.b16 %v5608
    %v6063 = vunpack.c.h.b16 %v5608
    %v6064 = vunpack.c.l.b16 %v5609
    %v6065 = vunpack.c.l.b16 %v5610
    %v6066 = vunpack.c.h.b16 %v5610
    %v6067 = vunpack.c.l.b16 %v5611
    %v6068 = vunpack.c.l.b16 %v5612
    %v6069 = vunpack.c.h.b16 %v5612
    %v6070 = vunpack.c.l.b16 %v5613
    %v6071 = vunpack.c.l.b16 %v5614
    %v6072 = vunpack.c.h.b16 %v5614
    %v6073 = vunpack.c.l.b16 %v5615
    %v6074 = vunpack.c.l.b16 %v5616
    %v6075 = vunpack.c.h.b16 %v5616
    %v6076 = vunpack.c.l.b16 %v5617
    %v6077 = vunpack.c.l.b16 %v5618
    %v6078 = vunpack.c.h.b16 %v5618
    %v6079 = vunpack.c.l.b16 %v5619
    %v6080 = vunpack.c.l.b16 %v5620
    %v6081 = vunpack.c.h.b16 %v5620
    %v6082 = vunpack.c.l.b16 %v5621
    %v6083 = vunpack.c.l.b16 %v5622
    %v6084 = vunpack.c.h.b16 %v5622
    %v6085 = vunpack.c.l.b16 %v5623
    %v6086 = vunpack.c.l.b16 %v5624
    %v6087 = vunpack.c.h.b16 %v5624
    %v6088 = vunpack.c.l.b16 %v5625
    %v6089 = vunpack.c.l.b16 %v5626
    %v6090 = vunpack.c.h.b16 %v5626
    %v6091 = vunpack.c.l.b16 %v5627
    %v6092 = vunpack.c.l.b16 %v5628
    %v6093 = vunpack.c.h.b16 %v5628
    %v6094 = vunpack.c.l.b16 %v5629
    %v6095 = vunpack.c.l.b16 %v5630
    %v6096 = vunpack.c.h.b16 %v5630
    %v6097 = vunpack.c.l.b16 %v5631
    %v6098 = vunpack.c.l.b16 %v5632
    %v6099 = vunpack.c.h.b16 %v5632
    %v6100 = vunpack.c.l.b16 %v5633
    %v6101 = vunpack.c.l.b16 %v5634
    %v6102 = vunpack.c.h.b16 %v5634
    %v6103 = vunpack.c.l.b16 %v5635
    %v6104 = vunpack.c.l.b16 %v5636
    %v6105 = vunpack.c.h.b16 %v5636
    %v6106 = vunpack.c.l.b16 %v5637
    %v6107 = vunpack.c.l.b16 %v5638
    %v6108 = vunpack.c.h.b16 %v5638
    %v6109 = vunpack.c.l.b16 %v5639
    %v6110 = vunpack.c.l.b16 %v5640
    %v6111 = vunpack.c.h.b16 %v5640
    %v6112 = vunpack.c.l.b16 %v5641
    %v6113 = vunpack.c.l.b16 %v5642
    %v6114 = vunpack.c.h.b16 %v5642
    %v6115 = vunpack.c.l.b16 %v5643
    %v6116 = vunpack.c.l.b16 %v5644
    %v6117 = vunpack.c.h.b16 %v5644
    %v6118 = vunpack.c.l.b16 %v5645
    %v6119 = vunpack.c.l.b16 %v5646
    %v6120 = vunpack.c.h.b16 %v5646
    %v6121 = vunpack.c.l.b16 %v5647
    %v6122 = vunpack.c.l.b16 %v5648
    %v6123 = vunpack.c.h.b16 %v5648
    %v6124 = vunpack.c.l.b16 %v5649
    %v6125 = vunpack.c.l.b16 %v5650
    %v6126 = vunpack.c.h.b16 %v5650
    %v6127 = vunpack.c.l.b16 %v5651
    %v6128 = vunpack.c.l.b16 %v5652
    %v6129 = vunpack.c.h.b16 %v5652
    %v6130 = vunpack.c.l.b16 %v5653
    %v6131 = vunpack.c.l.b16 %v5654
    %v6132 = vunpack.c.h.b16 %v5654
    %v6133 = vunpack.c.l.b16 %v5655
    %v6134 = vunpack.c.l.b16 %v5656
    %v6135 = vunpack.c.h.b16 %v5656
    %v6136 = vunpack.c.l.b16 %v5657
    %v6137 = vunpack.c.l.b16 %v5658
    %v6138 = vunpack.c.h.b16 %v5658
    %v6139 = vunpack.c.l.b16 %v5659
    %v6140 = vunpack.c.l.b16 %v5660
    %v6141 = vunpack.c.h.b16 %v5660
    %v6142 = vunpack.c.l.b16 %v5661
    %v6143 = vunpack.c.l.b16 %v5662
    %v6144 = vunpack.c.h.b16 %v5662
    %v6145 = vunpack.c.l.b16 %v5663
    %v6146 = vunpack.c.l.b16 %v5664
    %v6147 = vunpack.c.h.b16 %v5664
    %v6148 = vunpack.c.l.b16 %v5665
    %v6149 = vunpack.c.l.b16 %v5666
    %v6150 = vunpack.c.h.b16 %v5666
    %v6151 = vunpack.c.l.b16 %v5667
    %v6152 = vunpack.c.l.b16 %v5668
    %v6153 = vunpack.c.h.b16 %v5668
    %v6154 = vunpack.c.l.b16 %v5669
    %v6155 = vunpack.c.l.b16 %v5670
    %v6156 = vunpack.c.h.b16 %v5670
    %v6157 = vunpack.c.l.b16 %v5671
    %v6158 = vunpack.c.l.b16 %v5672
    %v6159 = vunpack.c.h.b16 %v5672
    %v6160 = vunpack.c.l.b16 %v5673
    %v6161 = vunpack.c.l.b16 %v5674
    %v6162 = vunpack.c.h.b16 %v5674
    %v6163 = vunpack.c.l.b16 %v5675
    %v6164 = vunpack.c.l.b16 %v5676
    %v6165 = vunpack.c.h.b16 %v5676
    %v6166 = vunpack.c.l.b16 %v5677
    %v6167 = vunpack.c.l.b16 %v5678
    %v6168 = vunpack.c.h.b16 %v5678
    %v6169 = vunpack.c.l.b16 %v5679
    %v6170 = vunpack.c.l.b16 %v5680
    %v6171 = vunpack.c.h.b16 %v5680
    %v6172 = vunpack.c.l.b16 %v5681
    %v6173 = vunpack.c.l.b16 %v5682
    %v6174 = vunpack.c.h.b16 %v5682
    %v6175 = vunpack.c.l.b16 %v5683
    %v6176 = vunpack.c.l.b16 %v5684
    %v6177 = vunpack.c.h.b16 %v5684
    %v6178 = vunpack.c.l.b16 %v5685
    %v6179 = vunpack.c.l.b16 %v5686
    %v6180 = vunpack.c.h.b16 %v5686
    %v6181 = vunpack.c.l.b16 %v5687
    %v6182 = vunpack.c.l.b16 %v5688
    %v6183 = vunpack.c.h.b16 %v5688
    %v6184 = vunpack.c.l.b16 %v5689
    %v6185 = vunpack.c.l.b16 %v5690
    %v6186 = vunpack.c.h.b16 %v5690
    %v6187 = vunpack.c.l.b16 %v5691
    %v6188 = vunpack.c.l.b16 %v5692
    %v6189 = vunpack.c.h.b16 %v5692
    %v6190 = vunpack.c.l.b16 %v5693
    %v6191 = vunpack.c.l.b16 %v5694
    %v6192 = vunpack.c.h.b16 %v5694
    %v6193 = vunpack.c.l.b16 %v5695
    %v6194 = vunpack.c.l.b16 %v5696
    %v6195 = vunpack.c.h.b16 %v5696
    %v6196 = vunpack.c.l.b16 %v5697
    %v6197 = vunpack.c.l.b16 %v5698
    %v6198 = vunpack.c.h.b16 %v5698
    %v6199 = vunpack.c.l.b16 %v5699
    %v6200 = vunpack.c.l.b16 %v5700
    %v6201 = vunpack.c.h.b16 %v5700
    %v6202 = vunpack.c.l.b16 %v5701
    %v6203 = vunpack.c.l.b16 %v5702
    %v6204 = vunpack.c.h.b16 %v5702
    %v6205 = vunpack.c.l.b16 %v5703
    %v6206 = vunpack.c.l.b16 %v5704
    %v6207 = vunpack.c.h.b16 %v5704
    %v6208 = vunpack.c.l.b16 %v5705
    %v6209 = vunpack.c.l.b16 %v5706
    %v6210 = vunpack.c.h.b16 %v5706
    %v6211 = vunpack.c.l.b16 %v5707
    %v6212 = vunpack.c.l.b16 %v5708
    %v6213 = vunpack.c.h.b16 %v5708
    %v6214 = vunpack.c.l.b16 %v5709
    %v6215 = vunpack.c.l.b16 %v5710
    %v6216 = vunpack.c.h.b16 %v5710
    %v6217 = vunpack.c.l.b16 %v5711
    %v6218 = vunpack.c.l.b16 %v5712
    %v6219 = vunpack.c.h.b16 %v5712
    %v6220 = vunpack.c.l.b16 %v5713
    %v6221 = vunpack.c.l.b16 %v5714
    %v6222 = vunpack.c.h.b16 %v5714
    %v6223 = vunpack.c.l.b16 %v5715
    %v6224 = vunpack.c.l.b16 %v5716
    %v6225 = vunpack.c.h.b16 %v5716
    %v6226 = vunpack.c.l.b16 %v5717
    %v6227 = vunpack.c.l.b16 %v5718
    %v6228 = vunpack.c.h.b16 %v5718
    %v6229 = vunpack.c.l.b16 %v5719
    %v6230 = vunpack.c.l.b16 %v5720
    %v6231 = vunpack.c.h.b16 %v5720
    %v6232 = vunpack.c.l.b16 %v5721
    %v6233 = vunpack.c.l.b16 %v5722
    %v6234 = vunpack.c.h.b16 %v5722
    %v6235 = vunpack.c.l.b16 %v5723
    %v6236 = vunpack.c.l.b16 %v5724
    %v6237 = vunpack.c.h.b16 %v5724
    %v6238 = vunpack.c.l.b16 %v5725
    %v6239 = vunpack.c.l.b16 %v5726
    %v6240 = vunpack.c.h.b16 %v5726
    %v6241 = vunpack.c.l.b16 %v5727
    %v6242 = vunpack.c.l.b16 %v5728
    %v6243 = vunpack.c.h.b16 %v5728
    %v6244 = vunpack.c.l.b16 %v5729
    %v6245 = vunpack.c.l.b16 %v5730
    %v6246 = vunpack.c.h.b16 %v5730
    %v6247 = vunpack.c.l.b16 %v5731
    %v6248 = vunpack.c.l.b16 %v5732
    %v6249 = vunpack.c.h.b16 %v5732
    %v6250 = vunpack.c.l.b16 %v5733
    %v6251 = vunpack.c.l.b16 %v5734
    %v6252 = vunpack.c.h.b16 %v5734
    %v6253 = vunpack.c.l.b16 %v5735
    %v6254 = vunpack.c.l.b16 %v5736
    %v6255 = vunpack.c.h.b16 %v5736
    %v6256 = vunpack.c.l.b16 %v5737
    %v6257 = vunpack.c.l.b16 %v5738
    %v6258 = vunpack.c.h.b16 %v5738
    %v6259 = vunpack.c.l.b16 %v5739
    %v6260 = vunpack.c.l.b16 %v5740
    %v6261 = vunpack.c.h.b16 %v5740
    %v6262 = vunpack.c.l.b16 %v5741
    %v6263 = vunpack.c.l.b16 %v5742
    %v6264 = vunpack.c.h.b16 %v5742
    %v6265 = vunpack.c.l.b16 %v5743
    %v6266 = vunpack.c.l.b16 %v5744
    %v6267 = vunpack.c.h.b16 %v5744
    %v6268 = vunpack.c.l.b16 %v5745
    %v6269 = vunpack.c.l.b16 %v5746
    %v6270 = vunpack.c.h.b16 %v5746
    %v6271 = vunpack.c.l.b16 %v5747
    %v6272 = vunpack.c.l.b16 %v5748
    %v6273 = vunpack.c.h.b16 %v5748
    %v6274 = vunpack.c.l.b16 %v5749
    %v6275 = vunpack.c.l.b16 %v5750
    %v6276 = vunpack.c.h.b16 %v5750
    %v6277 = vunpack.c.l.b16 %v5751
    %v6278 = vunpack.c.l.b16 %v5752
    %v6279 = vunpack.c.h.b16 %v5752
    %v6280 = vunpack.c.l.b16 %v5753
    %v6281 = vunpack.c.l.b16 %v5754
    %v6282 = vunpack.c.h.b16 %v5754
    %v6283 = vunpack.c.l.b16 %v5755
    %v6284 = vunpack.c.l.b16 %v5756
    %v6285 = vunpack.c.h.b16 %v5756
    %v6286 = vunpack.c.l.b16 %v5757
    %v6287 = vunpack.c.l.b16 %v5758
    %v6288 = vunpack.c.h.b16 %v5758
    %v6289 = vunpack.c.l.b16 %v5759
    %v6290 = vunpack.c.l.b16 %v5760
    %v6291 = vunpack.c.h.b16 %v5760
    %v6292 = vunpack.c.l.b16 %v5761
    %v6293 = vunpack.c.l.b16 %v5762
    %v6294 = vunpack.c.h.b16 %v5762
    %v6295 = vunpack.c.l.b16 %v5763
    %v6296 = vunpack.c.l.b16 %v5764
    %v6297 = vunpack.c.h.b16 %v5764
    %v6298 = vunpack.c.l.b16 %v5765
    %v6299 = vunpack.c.l.b16 %v5766
    %v6300 = vunpack.c.h.b16 %v5766
    %v6301 = vunpack.c.l.b16 %v5767
    %v6302 = vunpack.c.l.b16 %v5768
    %v6303 = vunpack.c.h.b16 %v5768
    %v6304 = vunpack.c.l.b16 %v5769
    %v6305 = vunpack.c.l.b16 %v5770
    %v6306 = vunpack.c.h.b16 %v5770
    %v6307 = vunpack.c.l.b16 %v5771
    %v6308 = vunpack.c.l.b16 %v5772
    %v6309 = vunpack.c.h.b16 %v5772
    %v6310 = vunpack.c.l.b16 %v5773
    %v6311 = vunpack.c.l.b16 %v5774
    %v6312 = vunpack.c.h.b16 %v5774
    %v6313 = vunpack.c.l.b16 %v5775
    %v6314 = vunpack.c.l.b16 %v5776
    %v6315 = vunpack.c.h.b16 %v5776
    %v6316 = vunpack.c.l.b16 %v5777
    %v6317 = vunpack.c.l.b16 %v5778
    %v6318 = vunpack.c.h.b16 %v5778
    %v6319 = vunpack.c.l.b16 %v5779
    %v6320 = vpack.c.b16 %v5999, %v5996
    %v6321 = vpack.c.b16 %v6000, %v5997
    %v6322 = vpack.c.b16 %v6001, %v5998
    %v6323 = vpack.c.b16 %v6005, %v6002
    %v6324 = vpack.c.b16 %v6006, %v6003
    %v6325 = vpack.c.b16 %v6007, %v6004
    %v6326 = vpack.c.b16 %v6011, %v6008
    %v6327 = vpack.c.b16 %v6012, %v6009
    %v6328 = vpack.c.b16 %v6013, %v6010
    %v6329 = vpack.c.b16 %v6017, %v6014
    %v6330 = vpack.c.b16 %v6018, %v6015
    %v6331 = vpack.c.b16 %v6019, %v6016
    %v6332 = vpack.c.b16 %v6023, %v6020
    %v6333 = vpack.c.b16 %v6024, %v6021
    %v6334 = vpack.c.b16 %v6025, %v6022
    %v6335 = vpack.c.b16 %v6029, %v6026
    %v6336 = vpack.c.b16 %v6030, %v6027
    %v6337 = vpack.c.b16 %v6031, %v6028
    %v6338 = vpack.c.b16 %v6035, %v6032
    %v6339 = vpack.c.b16 %v6036, %v6033
    %v6340 = vpack.c.b16 %v6037, %v6034
    %v6341 = vpack.c.b16 %v6041, %v6038
    %v6342 = vpack.c.b16 %v6042, %v6039
    %v6343 = vpack.c.b16 %v6043, %v6040
    %v6344 = vpack.c.b16 %v6047, %v6044
    %v6345 = vpack.c.b16 %v6048, %v6045
    %v6346 = vpack.c.b16 %v6049, %v6046
    %v6347 = vpack.c.b16 %v6053, %v6050
    %v6348 = vpack.c.b16 %v6054, %v6051
    %v6349 = vpack.c.b16 %v6055, %v6052
    %v6350 = vpack.c.b16 %v6059, %v6056
    %v6351 = vpack.c.b16 %v6060, %v6057
    %v6352 = vpack.c.b16 %v6061, %v6058
    %v6353 = vpack.c.b16 %v6065, %v6062
    %v6354 = vpack.c.b16 %v6066, %v6063
    %v6355 = vpack.c.b16 %v6067, %v6064
    %v6356 = vpack.c.b16 %v6071, %v6068
    %v6357 = vpack.c.b16 %v6072, %v6069
    %v6358 = vpack.c.b16 %v6073, %v6070
    %v6359 = vpack.c.b16 %v6077, %v6074
    %v6360 = vpack.c.b16 %v6078, %v6075
    %v6361 = vpack.c.b16 %v6079, %v6076
    %v6362 = vpack.c.b16 %v6083, %v6080
    %v6363 = vpack.c.b16 %v6084, %v6081
    %v6364 = vpack.c.b16 %v6085, %v6082
    %v6365 = vpack.c.b16 %v6089, %v6086
    %v6366 = vpack.c.b16 %v6090, %v6087
    %v6367 = vpack.c.b16 %v6091, %v6088
    %v6368 = vpack.c.b16 %v6095, %v6092
    %v6369 = vpack.c.b16 %v6096, %v6093
    %v6370 = vpack.c.b16 %v6097, %v6094
    %v6371 = vpack.c.b16 %v6101, %v6098
    %v6372 = vpack.c.b16 %v6102, %v6099
    %v6373 = vpack.c.b16 %v6103, %v6100
    %v6374 = vpack.c.b16 %v6107, %v6104
    %v6375 = vpack.c.b16 %v6108, %v6105
    %v6376 = vpack.c.b16 %v6109, %v6106
    %v6377 = vpack.c.b16 %v6113, %v6110
    %v6378 = vpack.c.b16 %v6114, %v6111
    %v6379 = vpack.c.b16 %v6115, %v6112
    %v6380 = vpack.c.b16 %v6119, %v6116
    %v6381 = vpack.c.b16 %v6120, %v6117
    %v6382 = vpack.c.b16 %v6121, %v6118
    %v6383 = vpack.c.b16 %v6125, %v6122
    %v6384 = vpack.c.b16 %v6126, %v6123
    %v6385 = vpack.c.b16 %v6127, %v6124
    %v6386 = vpack.c.b16 %v6131, %v6128
    %v6387 = vpack.c.b16 %v6132, %v6129
    %v6388 = vpack.c.b16 %v6133, %v6130
    %v6389 = vpack.c.b16 %v6137, %v6134
    %v6390 = vpack.c.b16 %v6138, %v6135
    %v6391 = vpack.c.b16 %v6139, %v6136
    %v6392 = vpack.c.b16 %v6143, %v6140
    %v6393 = vpack.c.b16 %v6144, %v6141
    %v6394 = vpack.c.b16 %v6145, %v6142
    %v6395 = vpack.c.b16 %v6149, %v6146
    %v6396 = vpack.c.b16 %v6150, %v6147
    %v6397 = vpack.c.b16 %v6151, %v6148
    %v6398 = vpack.c.b16 %v6155, %v6152
    %v6399 = vpack.c.b16 %v6156, %v6153
    %v6400 = vpack.c.b16 %v6157, %v6154
    %v6401 = vpack.c.b16 %v6161, %v6158
    %v6402 = vpack.c.b16 %v6162, %v6159
    %v6403 = vpack.c.b16 %v6163, %v6160
    %v6404 = vpack.c.b16 %v6167, %v6164
    %v6405 = vpack.c.b16 %v6168, %v6165
    %v6406 = vpack.c.b16 %v6169, %v6166
    %v6407 = vpack.c.b16 %v6173, %v6170
    %v6408 = vpack.c.b16 %v6174, %v6171
    %v6409 = vpack.c.b16 %v6175, %v6172
    %v6410 = vpack.c.b16 %v6179, %v6176
    %v6411 = vpack.c.b16 %v6180, %v6177
    %v6412 = vpack.c.b16 %v6181, %v6178
    %v6413 = vpack.c.b16 %v6185, %v6182
    %v6414 = vpack.c.b16 %v6186, %v6183
    %v6415 = vpack.c.b16 %v6187, %v6184
    %v6416 = vpack.c.b16 %v6191, %v6188
    %v6417 = vpack.c.b16 %v6192, %v6189
    %v6418 = vpack.c.b16 %v6193, %v6190
    %v6419 = vpack.c.b16 %v6197, %v6194
    %v6420 = vpack.c.b16 %v6198, %v6195
    %v6421 = vpack.c.b16 %v6199, %v6196
    %v6422 = vpack.c.b16 %v6203, %v6200
    %v6423 = vpack.c.b16 %v6204, %v6201
    %v6424 = vpack.c.b16 %v6205, %v6202
    %v6425 = vpack.c.b16 %v6209, %v6206
    %v6426 = vpack.c.b16 %v6210, %v6207
    %v6427 = vpack.c.b16 %v6211, %v6208
    %v6428 = vpack.c.b16 %v6215, %v6212
    %v6429 = vpack.c.b16 %v6216, %v6213
    %v6430 = vpack.c.b16 %v6217, %v6214
    %v6431 = vpack.c.b16 %v6221, %v6218
    %v6432 = vpack.c.b16 %v6222, %v6219
    %v6433 = vpack.c.b16 %v6223, %v6220
    %v6434 = vpack.c.b16 %v6227, %v6224
    %v6435 = vpack.c.b16 %v6228, %v6225
    %v6436 = vpack.c.b16 %v6229, %v6226
    %v6437 = vpack.c.b16 %v6233, %v6230
    %v6438 = vpack.c.b16 %v6234, %v6231
    %v6439 = vpack.c.b16 %v6235, %v6232
    %v6440 = vpack.c.b16 %v6239, %v6236
    %v6441 = vpack.c.b16 %v6240, %v6237
    %v6442 = vpack.c.b16 %v6241, %v6238
    %v6443 = vpack.c.b16 %v6245, %v6242
    %v6444 = vpack.c.b16 %v6246, %v6243
    %v6445 = vpack.c.b16 %v6247, %v6244
    %v6446 = vpack.c.b16 %v6251, %v6248
    %v6447 = vpack.c.b16 %v6252, %v6249
    %v6448 = vpack.c.b16 %v6253, %v6250
    %v6449 = vpack.c.b16 %v6257, %v6254
    %v6450 = vpack.c.b16 %v6258, %v6255
    %v6451 = vpack.c.b16 %v6259, %v6256
    %v6452 = vpack.c.b16 %v6263, %v6260
    %v6453 = vpack.c.b16 %v6264, %v6261
    %v6454 = vpack.c.b16 %v6265, %v6262
    %v6455 = vpack.c.b16 %v6269, %v6266
    %v6456 = vpack.c.b16 %v6270, %v6267
    %v6457 = vpack.c.b16 %v6271, %v6268
    %v6458 = vpack.c.b16 %v6275, %v6272
    %v6459 = vpack.c.b16 %v6276, %v6273
    %v6460 = vpack.c.b16 %v6277, %v6274
    %v6461 = vpack.c.b16 %v6281, %v6278
    %v6462 = vpack.c.b16 %v6282, %v6279
    %v6463 = vpack.c.b16 %v6283, %v6280
    %v6464 = vpack.c.b16 %v6287, %v6284
    %v6465 = vpack.c.b16 %v6288, %v6285
    %v6466 = vpack.c.b16 %v6289, %v6286
    %v6467 = vpack.c.b16 %v6293, %v6290
    %v6468 = vpack.c.b16 %v6294, %v6291
    %v6469 = vpack.c.b16 %v6295, %v6292
    %v6470 = vpack.c.b16 %v6299, %v6296
    %v6471 = vpack.c.b16 %v6300, %v6297
    %v6472 = vpack.c.b16 %v6301, %v6298
    %v6473 = vpack.c.b16 %v6305, %v6302
    %v6474 = vpack.c.b16 %v6306, %v6303
    %v6475 = vpack.c.b16 %v6307, %v6304
    %v6476 = vpack.c.b16 %v6311, %v6308
    %v6477 = vpack.c.b16 %v6312, %v6309
    %v6478 = vpack.c.b16 %v6313, %v6310
    %v6479 = vpack.c.b16 %v6317, %v6314
    %v6480 = vpack.c.b16 %v6318, %v6315
    %v6481 = vpack.c.b16 %v6319, %v6316
    %v6642 = vsel %vm1442, %v5556, 0
    %v6645 = vsel %vm1442, %v5563, 0
    %vm6647 = vcmask 1046528
    %vm6648 = vcmask 1047552
    %v6649 = vsel %vm6647, 4294967295, 65535
    %v6650 = vsel %vm6648, %v6649, 0
    %v6652 = vand.u32 %v6479, %v6650
    %v6655 = vand.u32 %v6480, %v6650
    %v6658 = vand.u32 %v6481, %v6650
    %6660 = vmatprep.subr.bf16.mxu0 %v6321
    %6661 = vmatpush1.bf16.msra.mxu0 %v6320
    %6662 = vmatprep.subr.bf16.mxu0 %v6324
    %6663 = vmatpush1.bf16.msra.mxu0 %v6323
    %6664 = vmatprep.subr.bf16.mxu0 %v6327
    %6665 = vmatpush1.bf16.msra.mxu0 %v6326
    %6666 = vmatprep.subr.bf16.mxu0 %v6330
    %6667 = vmatpush1.bf16.msra.mxu0 %v6329
    %6668 = vmatprep.subr.bf16.mxu0 %v6333
    %6669 = vmatpush1.bf16.msra.mxu0 %v6332
    %6670 = vmatprep.subr.bf16.mxu0 %v6336
    %6671 = vmatpush1.bf16.msra.mxu0 %v6335
    %6672 = vmatprep.subr.bf16.mxu0 %v6339
    %6673 = vmatpush1.bf16.msra.mxu0 %v6338
    %6674 = vmatprep.subr.bf16.mxu0 %v6342
    %6675 = vmatpush1.bf16.msra.mxu0 %v6341
    %6676 = vmatprep.subr.bf16.mxu0 %v6345
    %6677 = vmatpush1.bf16.msra.mxu0 %v6344
    %6678 = vmatprep.subr.bf16.mxu0 %v6348
    %6679 = vmatpush1.bf16.msra.mxu0 %v6347
    %6680 = vmatprep.subr.bf16.mxu0 %v6351
    %6681 = vmatpush1.bf16.msra.mxu0 %v6350
    %6682 = vmatprep.subr.bf16.mxu0 %v6354
    %6683 = vmatpush1.bf16.msra.mxu0 %v6353
    %6684 = vmatprep.subr.bf16.mxu0 %v6357
    %6685 = vmatpush1.bf16.msra.mxu0 %v6356
    %6686 = vmatprep.subr.bf16.mxu0 %v6360
    %6687 = vmatpush1.bf16.msra.mxu0 %v6359
    %6688 = vmatprep.subr.bf16.mxu0 %v6363
    %6689 = vmatpush1.bf16.msra.mxu0 %v6362
    %6690 = vmatprep.subr.bf16.mxu0 %v6366
    %6691 = vmatpush1.bf16.msra.mxu0 %v6365
    %6692 = vmatprep.mubr.bf16.mxu0 %v5551
    %6693 = vmatmul.mubr.bf16.gmra.mrb[0].mxu0 %v5550
    %v6694 = vpop.f32.mrb[0].mxu0
    %v6695 = vadd.f32 0.0, %v6694
    %v6696 = vpop.f32.mrb[0].mxu0
    %v6697 = vadd.f32 0.0, %v6696
    %v6698 = vpop.f32.mrb[0].mxu0
    %v6699 = vadd.f32 0.0, %v6698
    %v6700 = vpop.f32.mrb[0].mxu0
    %v6701 = vadd.f32 0.0, %v6700
    %6702 = vmatprep.mubr.bf16.mxu0 %v5558
    %6703 = vmatmul.mubr.bf16.gmra.mrb[0].mxu0 %v5557
    %v6704 = vpop.f32.mrb[0].mxu0
    %v6705 = vadd.f32 0.0, %v6704
    %v6706 = vpop.f32.mrb[0].mxu0
    %v6707 = vadd.f32 0.0, %v6706
    %v6708 = vpop.f32.mrb[0].mxu0
    %v6709 = vadd.f32 0.0, %v6708
    %v6710 = vpop.f32.mrb[0].mxu0
    %v6711 = vadd.f32 0.0, %v6710
    %6712 = vdwg.mxu0
    %6713 = vmatprep.subr.bf16.mxu0 %v6369
    %6714 = vmatpush1.bf16.msra.mxu0 %v6368
    %6715 = vmatprep.subr.bf16.mxu0 %v6372
    %6716 = vmatpush1.bf16.msra.mxu0 %v6371
    %6717 = vmatprep.subr.bf16.mxu0 %v6375
    %6718 = vmatpush1.bf16.msra.mxu0 %v6374
    %6719 = vmatprep.subr.bf16.mxu0 %v6378
    %6720 = vmatpush1.bf16.msra.mxu0 %v6377
    %6721 = vmatprep.subr.bf16.mxu0 %v6381
    %6722 = vmatpush1.bf16.msra.mxu0 %v6380
    %6723 = vmatprep.subr.bf16.mxu0 %v6384
    %6724 = vmatpush1.bf16.msra.mxu0 %v6383
    %6725 = vmatprep.subr.bf16.mxu0 %v6387
    %6726 = vmatpush1.bf16.msra.mxu0 %v6386
    %6727 = vmatprep.subr.bf16.mxu0 %v6390
    %6728 = vmatpush1.bf16.msra.mxu0 %v6389
    %6729 = vmatprep.subr.bf16.mxu0 %v6393
    %6730 = vmatpush1.bf16.msra.mxu0 %v6392
    %6731 = vmatprep.subr.bf16.mxu0 %v6396
    %6732 = vmatpush1.bf16.msra.mxu0 %v6395
    %6733 = vmatprep.subr.bf16.mxu0 %v6399
    %6734 = vmatpush1.bf16.msra.mxu0 %v6398
    %6735 = vmatprep.subr.bf16.mxu0 %v6402
    %6736 = vmatpush1.bf16.msra.mxu0 %v6401
    %6737 = vmatprep.subr.bf16.mxu0 %v6405
    %6738 = vmatpush1.bf16.msra.mxu0 %v6404
    %6739 = vmatprep.subr.bf16.mxu0 %v6408
    %6740 = vmatpush1.bf16.msra.mxu0 %v6407
    %6741 = vmatprep.subr.bf16.mxu0 %v6411
    %6742 = vmatpush1.bf16.msra.mxu0 %v6410
    %6743 = vmatprep.subr.bf16.mxu0 %v6414
    %6744 = vmatpush1.bf16.msra.mxu0 %v6413
    %6745 = vmatprep.mubr.bf16.mxu0 %v5553
    %6746 = vmatmul.mubr.bf16.gmra.mrb[0].mxu0 %v5552
    %v6747 = vpop.f32.mrb[0].mxu0
    %v6748 = vadd.f32 %v6695, %v6747
    %v6749 = vpop.f32.mrb[0].mxu0
    %v6750 = vadd.f32 %v6697, %v6749
    %v6751 = vpop.f32.mrb[0].mxu0
    %v6752 = vadd.f32 %v6699, %v6751
    %v6753 = vpop.f32.mrb[0].mxu0
    %v6754 = vadd.f32 %v6701, %v6753
    %6755 = vmatprep.mubr.bf16.mxu0 %v5560
    %6756 = vmatmul.mubr.bf16.gmra.mrb[0].mxu0 %v5559
    %v6757 = vpop.f32.mrb[0].mxu0
    %v6758 = vadd.f32 %v6705, %v6757
    %v6759 = vpop.f32.mrb[0].mxu0
    %v6760 = vadd.f32 %v6707, %v6759
    %v6761 = vpop.f32.mrb[0].mxu0
    %v6762 = vadd.f32 %v6709, %v6761
    %v6763 = vpop.f32.mrb[0].mxu0
    %v6764 = vadd.f32 %v6711, %v6763
    %6765 = vdwg.mxu0
    %6766 = vmatprep.subr.bf16.mxu0 %v6417
    %6767 = vmatpush1.bf16.msra.mxu0 %v6416
    %6768 = vmatprep.subr.bf16.mxu0 %v6420
    %6769 = vmatpush1.bf16.msra.mxu0 %v6419
    %6770 = vmatprep.subr.bf16.mxu0 %v6423
    %6771 = vmatpush1.bf16.msra.mxu0 %v6422
    %6772 = vmatprep.subr.bf16.mxu0 %v6426
    %6773 = vmatpush1.bf16.msra.mxu0 %v6425
    %6774 = vmatprep.subr.bf16.mxu0 %v6429
    %6775 = vmatpush1.bf16.msra.mxu0 %v6428
    %6776 = vmatprep.subr.bf16.mxu0 %v6432
    %6777 = vmatpush1.bf16.msra.mxu0 %v6431
    %6778 = vmatprep.subr.bf16.mxu0 %v6435
    %6779 = vmatpush1.bf16.msra.mxu0 %v6434
    %6780 = vmatprep.subr.bf16.mxu0 %v6438
    %6781 = vmatpush1.bf16.msra.mxu0 %v6437
    %6782 = vmatprep.subr.bf16.mxu0 %v6441
    %6783 = vmatpush1.bf16.msra.mxu0 %v6440
    %6784 = vmatprep.subr.bf16.mxu0 %v6444
    %6785 = vmatpush1.bf16.msra.mxu0 %v6443
    %6786 = vmatprep.subr.bf16.mxu0 %v6447
    %6787 = vmatpush1.bf16.msra.mxu0 %v6446
    %6788 = vmatprep.subr.bf16.mxu0 %v6450
    %6789 = vmatpush1.bf16.msra.mxu0 %v6449
    %6790 = vmatprep.subr.bf16.mxu0 %v6453
    %6791 = vmatpush1.bf16.msra.mxu0 %v6452
    %6792 = vmatprep.subr.bf16.mxu0 %v6456
    %6793 = vmatpush1.bf16.msra.mxu0 %v6455
    %6794 = vmatprep.subr.bf16.mxu0 %v6459
    %6795 = vmatpush1.bf16.msra.mxu0 %v6458
    %6796 = vmatprep.subr.bf16.mxu0 %v6462
    %6797 = vmatpush1.bf16.msra.mxu0 %v6461
    %6798 = vmatprep.mubr.bf16.mxu0 %v5555
    %6799 = vmatmul.mubr.bf16.gmra.mrb[0].mxu0 %v5554
    %v6800 = vpop.f32.mrb[0].mxu0
    %v6801 = vadd.f32 %v6748, %v6800
    %v6802 = vpop.f32.mrb[0].mxu0
    %v6803 = vadd.f32 %v6750, %v6802
    %v6804 = vpop.f32.mrb[0].mxu0
    %v6805 = vadd.f32 %v6752, %v6804
    %v6806 = vpop.f32.mrb[0].mxu0
    %v6807 = vadd.f32 %v6754, %v6806
    %6808 = vmatprep.mubr.bf16.mxu0 %v5562
    %6809 = vmatmul.mubr.bf16.gmra.mrb[0].mxu0 %v5561
    %v6810 = vpop.f32.mrb[0].mxu0
    %v6811 = vadd.f32 %v6758, %v6810
    %v6812 = vpop.f32.mrb[0].mxu0
    %v6813 = vadd.f32 %v6760, %v6812
    %v6814 = vpop.f32.mrb[0].mxu0
    %v6815 = vadd.f32 %v6762, %v6814
    %v6816 = vpop.f32.mrb[0].mxu0
    %v6817 = vadd.f32 %v6764, %v6816
    %6818 = vdwg.mxu0
    %6819 = vmatprep.subr.bf16.mxu0 %v6465
    %6820 = vmatpush1.bf16.msra.mxu0 %v6464
    %6821 = vmatprep.subr.bf16.mxu0 %v6468
    %6822 = vmatpush1.bf16.msra.mxu0 %v6467
    %6823 = vmatprep.subr.bf16.mxu0 %v6471
    %6824 = vmatpush1.bf16.msra.mxu0 %v6470
    %6825 = vmatprep.subr.bf16.mxu0 %v6474
    %6826 = vmatpush1.bf16.msra.mxu0 %v6473
    %6827 = vmatprep.subr.bf16.mxu0 %v6477
    %6828 = vmatpush1.bf16.msra.mxu0 %v6476
    %6829 = vmatprep.subr.bf16.mxu0 %v6655
    %6830 = vmatpush1.bf16.msra.mxu0 %v6652
    %6831 = vmatprep.subr.bf16.mxu0 0
    %6832 = vmatpush1.bf16.msra.mxu0 0
    %6833 = vmatprep.subr.bf16.mxu0 0
    %6834 = vmatpush1.bf16.msra.mxu0 0
    %6835 = vmatprep.subr.bf16.mxu0 0
    %6836 = vmatpush1.bf16.msra.mxu0 0
    %6837 = vmatprep.subr.bf16.mxu0 0
    %6838 = vmatpush1.bf16.msra.mxu0 0
    %6839 = vmatprep.subr.bf16.mxu0 0
    %6840 = vmatpush1.bf16.msra.mxu0 0
    %6841 = vmatprep.subr.bf16.mxu0 0
    %6842 = vmatpush1.bf16.msra.mxu0 0
    %6843 = vmatprep.subr.bf16.mxu0 0
    %6844 = vmatpush1.bf16.msra.mxu0 0
    %6845 = vmatprep.subr.bf16.mxu0 0
    %6846 = vmatpush1.bf16.msra.mxu0 0
    %6847 = vmatprep.subr.bf16.mxu0 0
    %6848 = vmatpush1.bf16.msra.mxu0 0
    %6849 = vmatprep.subr.bf16.mxu0 0
    %6850 = vmatpush1.bf16.msra.mxu0 0
    %6851 = vmatprep.mubr.bf16.mxu0 0
    %6852 = vmatmul.mubr.bf16.gmra.mrb[0].mxu0 %v6642
    %v6853 = vpop.f32.mrb[0].mxu0
    %v6854 = vadd.f32 %v6801, %v6853
    %v6855 = vpop.f32.mrb[0].mxu0
    %v6856 = vadd.f32 %v6803, %v6855
    %v6857 = vpop.f32.mrb[0].mxu0
    %v6858 = vadd.f32 %v6805, %v6857
    %v6859 = vpop.f32.mrb[0].mxu0
    %v6860 = vadd.f32 %v6807, %v6859
    %6861 = vmatprep.mubr.bf16.mxu0 0
    %6862 = vmatmul.mubr.bf16.gmra.mrb[0].mxu0 %v6645
    %v6863 = vpop.f32.mrb[0].mxu0
    %v6864 = vadd.f32 %v6811, %v6863
    %v6865 = vpop.f32.mrb[0].mxu0
    %v6866 = vadd.f32 %v6813, %v6865
    %v6867 = vpop.f32.mrb[0].mxu0
    %v6868 = vadd.f32 %v6815, %v6867
    %v6869 = vpop.f32.mrb[0].mxu0
    %v6870 = vadd.f32 %v6817, %v6869
    %6871 = vdwg.mxu0
    %6872 = vmatprep.subr.bf16.mxu0 0
    %6873 = vmatpush1.bf16.msra.mxu0 %v6322
    %6874 = vmatprep.subr.bf16.mxu0 0
    %6875 = vmatpush1.bf16.msra.mxu0 %v6325
    %6876 = vmatprep.subr.bf16.mxu0 0
    %6877 = vmatpush1.bf16.msra.mxu0 %v6328
    %6878 = vmatprep.subr.bf16.mxu0 0
    %6879 = vmatpush1.bf16.msra.mxu0 %v6331
    %6880 = vmatprep.subr.bf16.mxu0 0
    %6881 = vmatpush1.bf16.msra.mxu0 %v6334
    %6882 = vmatprep.subr.bf16.mxu0 0
    %6883 = vmatpush1.bf16.msra.mxu0 %v6337
    %6884 = vmatprep.subr.bf16.mxu0 0
    %6885 = vmatpush1.bf16.msra.mxu0 %v6340
    %6886 = vmatprep.subr.bf16.mxu0 0
    %6887 = vmatpush1.bf16.msra.mxu0 %v6343
    %6888 = vmatprep.subr.bf16.mxu0 0
    %6889 = vmatpush1.bf16.msra.mxu0 %v6346
    %6890 = vmatprep.subr.bf16.mxu0 0
    %6891 = vmatpush1.bf16.msra.mxu0 %v6349
    %6892 = vmatprep.subr.bf16.mxu0 0
    %6893 = vmatpush1.bf16.msra.mxu0 %v6352
    %6894 = vmatprep.subr.bf16.mxu0 0
    %6895 = vmatpush1.bf16.msra.mxu0 %v6355
    %6896 = vmatprep.subr.bf16.mxu0 0
    %6897 = vmatpush1.bf16.msra.mxu0 %v6358
    %6898 = vmatprep.subr.bf16.mxu0 0
    %6899 = vmatpush1.bf16.msra.mxu0 %v6361
    %6900 = vmatprep.subr.bf16.mxu0 0
    %6901 = vmatpush1.bf16.msra.mxu0 %v6364
    %6902 = vmatprep.subr.bf16.mxu0 0
    %6903 = vmatpush1.bf16.msra.mxu0 %v6367
    %6904 = vmatprep.mubr.bf16.mxu0 %v5551
    %6905 = vmatmul.mubr.bf16.gmra.mrb[0].mxu0 %v5550
    %v6906 = vpop.f32.mrb[0].mxu0
    %v6907 = vadd.f32 0.0, %v6906
    %v6908 = vpop.f32.mrb[0].mxu0
    %v6909 = vpop.f32.mrb[0].mxu0
    %v6910 = vadd.f32 0.0, %v6909
    %v6911 = vpop.f32.mrb[0].mxu0
    %6912 = vmatprep.mubr.bf16.mxu0 %v5558
    %6913 = vmatmul.mubr.bf16.gmra.mrb[0].mxu0 %v5557
    %v6914 = vpop.f32.mrb[0].mxu0
    %v6915 = vadd.f32 0.0, %v6914
    %v6916 = vpop.f32.mrb[0].mxu0
    %v6917 = vpop.f32.mrb[0].mxu0
    %v6918 = vadd.f32 0.0, %v6917
    %v6919 = vpop.f32.mrb[0].mxu0
    %6920 = vdwg.mxu0
    %6921 = vmatprep.subr.bf16.mxu0 0
    %6922 = vmatpush1.bf16.msra.mxu0 %v6370
    %6923 = vmatprep.subr.bf16.mxu0 0
    %6924 = vmatpush1.bf16.msra.mxu0 %v6373
    %6925 = vmatprep.subr.bf16.mxu0 0
    %6926 = vmatpush1.bf16.msra.mxu0 %v6376
    %6927 = vmatprep.subr.bf16.mxu0 0
    %6928 = vmatpush1.bf16.msra.mxu0 %v6379
    %6929 = vmatprep.subr.bf16.mxu0 0
    %6930 = vmatpush1.bf16.msra.mxu0 %v6382
    %6931 = vmatprep.subr.bf16.mxu0 0
    %6932 = vmatpush1.bf16.msra.mxu0 %v6385
    %6933 = vmatprep.subr.bf16.mxu0 0
    %6934 = vmatpush1.bf16.msra.mxu0 %v6388
    %6935 = vmatprep.subr.bf16.mxu0 0
    %6936 = vmatpush1.bf16.msra.mxu0 %v6391
    %6937 = vmatprep.subr.bf16.mxu0 0
    %6938 = vmatpush1.bf16.msra.mxu0 %v6394
    %6939 = vmatprep.subr.bf16.mxu0 0
    %6940 = vmatpush1.bf16.msra.mxu0 %v6397
    %6941 = vmatprep.subr.bf16.mxu0 0
    %6942 = vmatpush1.bf16.msra.mxu0 %v6400
    %6943 = vmatprep.subr.bf16.mxu0 0
    %6944 = vmatpush1.bf16.msra.mxu0 %v6403
    %6945 = vmatprep.subr.bf16.mxu0 0
    %6946 = vmatpush1.bf16.msra.mxu0 %v6406
    %6947 = vmatprep.subr.bf16.mxu0 0
    %6948 = vmatpush1.bf16.msra.mxu0 %v6409
    %6949 = vmatprep.subr.bf16.mxu0 0
    %6950 = vmatpush1.bf16.msra.mxu0 %v6412
    %6951 = vmatprep.subr.bf16.mxu0 0
    %6952 = vmatpush1.bf16.msra.mxu0 %v6415
    %6953 = vmatprep.mubr.bf16.mxu0 %v5553
    %6954 = vmatmul.mubr.bf16.gmra.mrb[0].mxu0 %v5552
    %v6955 = vpop.f32.mrb[0].mxu0
    %v6956 = vadd.f32 %v6907, %v6955
    %v6957 = vpop.f32.mrb[0].mxu0
    %v6958 = vpop.f32.mrb[0].mxu0
    %v6959 = vadd.f32 %v6910, %v6958
    %v6960 = vpop.f32.mrb[0].mxu0
    %6961 = vmatprep.mubr.bf16.mxu0 %v5560
    %6962 = vmatmul.mubr.bf16.gmra.mrb[0].mxu0 %v5559
    %v6963 = vpop.f32.mrb[0].mxu0
    %v6964 = vadd.f32 %v6915, %v6963
    %v6965 = vpop.f32.mrb[0].mxu0
    %v6966 = vpop.f32.mrb[0].mxu0
    %v6967 = vadd.f32 %v6918, %v6966
    %v6968 = vpop.f32.mrb[0].mxu0
    %6969 = vdwg.mxu0
    %6970 = vmatprep.subr.bf16.mxu0 0
    %6971 = vmatpush1.bf16.msra.mxu0 %v6418
    %6972 = vmatprep.subr.bf16.mxu0 0
    %6973 = vmatpush1.bf16.msra.mxu0 %v6421
    %6974 = vmatprep.subr.bf16.mxu0 0
    %6975 = vmatpush1.bf16.msra.mxu0 %v6424
    %6976 = vmatprep.subr.bf16.mxu0 0
    %6977 = vmatpush1.bf16.msra.mxu0 %v6427
    %6978 = vmatprep.subr.bf16.mxu0 0
    %6979 = vmatpush1.bf16.msra.mxu0 %v6430
    %6980 = vmatprep.subr.bf16.mxu0 0
    %6981 = vmatpush1.bf16.msra.mxu0 %v6433
    %6982 = vmatprep.subr.bf16.mxu0 0
    %6983 = vmatpush1.bf16.msra.mxu0 %v6436
    %6984 = vmatprep.subr.bf16.mxu0 0
    %6985 = vmatpush1.bf16.msra.mxu0 %v6439
    %6986 = vmatprep.subr.bf16.mxu0 0
    %6987 = vmatpush1.bf16.msra.mxu0 %v6442
    %6988 = vmatprep.subr.bf16.mxu0 0
    %6989 = vmatpush1.bf16.msra.mxu0 %v6445
    %6990 = vmatprep.subr.bf16.mxu0 0
    %6991 = vmatpush1.bf16.msra.mxu0 %v6448
    %6992 = vmatprep.subr.bf16.mxu0 0
    %6993 = vmatpush1.bf16.msra.mxu0 %v6451
    %6994 = vmatprep.subr.bf16.mxu0 0
    %6995 = vmatpush1.bf16.msra.mxu0 %v6454
    %6996 = vmatprep.subr.bf16.mxu0 0
    %6997 = vmatpush1.bf16.msra.mxu0 %v6457
    %6998 = vmatprep.subr.bf16.mxu0 0
    %6999 = vmatpush1.bf16.msra.mxu0 %v6460
    %7000 = vmatprep.subr.bf16.mxu0 0
    %7001 = vmatpush1.bf16.msra.mxu0 %v6463
    %7002 = vmatprep.mubr.bf16.mxu0 %v5555
    %7003 = vmatmul.mubr.bf16.gmra.mrb[0].mxu0 %v5554
    %v7004 = vpop.f32.mrb[0].mxu0
    %v7005 = vadd.f32 %v6956, %v7004
    %v7006 = vpop.f32.mrb[0].mxu0
    %v7007 = vpop.f32.mrb[0].mxu0
    %v7008 = vadd.f32 %v6959, %v7007
    %v7009 = vpop.f32.mrb[0].mxu0
    %7010 = vmatprep.mubr.bf16.mxu0 %v5562
    %7011 = vmatmul.mubr.bf16.gmra.mrb[0].mxu0 %v5561
    %v7012 = vpop.f32.mrb[0].mxu0
    %v7013 = vadd.f32 %v6964, %v7012
    %v7014 = vpop.f32.mrb[0].mxu0
    %v7015 = vpop.f32.mrb[0].mxu0
    %v7016 = vadd.f32 %v6967, %v7015
    %v7017 = vpop.f32.mrb[0].mxu0
    %7018 = vdwg.mxu0
    %7019 = vmatprep.subr.bf16.mxu0 0
    %7020 = vmatpush1.bf16.msra.mxu0 %v6466
    %7021 = vmatprep.subr.bf16.mxu0 0
    %7022 = vmatpush1.bf16.msra.mxu0 %v6469
    %7023 = vmatprep.subr.bf16.mxu0 0
    %7024 = vmatpush1.bf16.msra.mxu0 %v6472
    %7025 = vmatprep.subr.bf16.mxu0 0
    %7026 = vmatpush1.bf16.msra.mxu0 %v6475
    %7027 = vmatprep.subr.bf16.mxu0 0
    %7028 = vmatpush1.bf16.msra.mxu0 %v6478
    %7029 = vmatprep.subr.bf16.mxu0 0
    %7030 = vmatpush1.bf16.msra.mxu0 %v6658
    %7031 = vmatprep.subr.bf16.mxu0 0
    %7032 = vmatpush1.bf16.msra.mxu0 0
    %7033 = vmatprep.subr.bf16.mxu0 0
    %7034 = vmatpush1.bf16.msra.mxu0 0
    %7035 = vmatprep.subr.bf16.mxu0 0
    %7036 = vmatpush1.bf16.msra.mxu0 0
    %7037 = vmatprep.subr.bf16.mxu0 0
    %7038 = vmatpush1.bf16.msra.mxu0 0
    %7039 = vmatprep.subr.bf16.mxu0 0
    %7040 = vmatpush1.bf16.msra.mxu0 0
    %7041 = vmatprep.subr.bf16.mxu0 0
    %7042 = vmatpush1.bf16.msra.mxu0 0
    %7043 = vmatprep.subr.bf16.mxu0 0
    %7044 = vmatpush1.bf16.msra.mxu0 0
    %7045 = vmatprep.subr.bf16.mxu0 0
    %7046 = vmatpush1.bf16.msra.mxu0 0
    %7047 = vmatprep.subr.bf16.mxu0 0
    %7048 = vmatpush1.bf16.msra.mxu0 0
    %7049 = vmatprep.subr.bf16.mxu0 0
    %7050 = vmatpush1.bf16.msra.mxu0 0
    %7051 = vmatprep.mubr.bf16.mxu0 0
    %7052 = vmatmul.mubr.bf16.gmra.mrb[0].mxu0 %v6642
    %v7053 = vpop.f32.mrb[0].mxu0
    %v7054 = vadd.f32 %v7005, %v7053
    %v7055 = vpop.f32.mrb[0].mxu0
    %v7056 = vpop.f32.mrb[0].mxu0
    %v7057 = vadd.f32 %v7008, %v7056
    %v7058 = vpop.f32.mrb[0].mxu0
    %7059 = vmatprep.mubr.bf16.mxu0 0
    %7060 = vmatmul.mubr.bf16.gmra.mrb[0].mxu0 %v6645
    %v7061 = vpop.f32.mrb[0].mxu0
    %v7062 = vadd.f32 %v7013, %v7061
    %v7063 = vpop.f32.mrb[0].mxu0
    %v7064 = vpop.f32.mrb[0].mxu0
    %v7065 = vadd.f32 %v7016, %v7064
    %v7066 = vpop.f32.mrb[0].mxu0
    %7067 = vdwg.mxu0
    %v7068 = vpack.c.bf16 %v6858, %v6854
    %v7069 = vpack.c.bf16 %v6860, %v6856
    %v7070 = vpack.c.bf16 %v7057, %v7054
    %v7071 = vpack.c.bf16 %v6868, %v6864
    %v7072 = vpack.c.bf16 %v6870, %v6866
    %v7073 = vpack.c.bf16 %v7065, %v7062
    %v7080 = vunpack.c.l.b16 %v7068
    %v7081 = vunpack.c.l.b16 %v7069
    %v7082 = vunpack.c.l.b16 %v7070
    %v7083 = vunpack.c.h.b16 %v7068
    %v7084 = vunpack.c.h.b16 %v7069
    %v7085 = vunpack.c.h.b16 %v7070
    %v7086 = vunpack.c.l.b16 %v7071
    %v7087 = vunpack.c.l.b16 %v7072
    %v7088 = vunpack.c.l.b16 %v7073
    %v7089 = vunpack.c.h.b16 %v7071
    %v7090 = vunpack.c.h.b16 %v7072
    %v7091 = vunpack.c.h.b16 %v7073
    %v7092 = vpack.c.b16 %v7081, %v7080
    %v7093 = vpack.c.b16 %v7082, %v7082
    %v7094 = vpack.c.b16 %v7084, %v7083
    %v7095 = vpack.c.b16 %v7085, %v7085
    %v7096 = vpack.c.b16 %v7087, %v7086
    %v7097 = vpack.c.b16 %v7088, %v7088
    %v7098 = vpack.c.b16 %v7090, %v7089
    %v7099 = vpack.c.b16 %v7091, %v7091
    %7108 = vst [vmem:[%s4] sm:$0xff] %v7092
    %7109 = vst [vmem:[%s4 + $0x8] sm:$0xf] %v7093
    %7110 = vst [vmem:[%s4 + $0xc] sm:$0xff] %v7094
    %7111 = vst [vmem:[%s4 + $0x14] sm:$0xf] %v7095
    %7112 = vst [vmem:[%s4 + $0x18] sm:$0xff] %v7096
    %7113 = vst [vmem:[%s4 + $0x20] sm:$0xf] %v7097
    %7114 = vst [vmem:[%s4 + $0x24] sm:$0xff] %v7098
    %7115 = vst [vmem:[%s4 + $0x2c] sm:$0xf] %v7099
    // Predicated region
    $region22: #{mnist_net_forward.3} parent=1 // pred_check
      _
    $region23: #{mnist_net_forward.3} parent=1 // pred_check_branch
      %7117 = sbr.rel (0) target = $region25
    $region24: #{mnist_net_forward.3} parent=1 // pred_region
      _
    $region25: #{mnist_net_forward.3} parent=1 // pred_fallthru
      _
    // Predicated region
    $region26: #{mnist_net_forward.3} parent=1 // pred_check
      _
    $region27: #{mnist_net_forward.3} parent=1 // pred_check_branch
      %7119 = sbr.rel (0) target = $region29
    $region28: #{mnist_net_forward.3} parent=1 // pred_region
      _
    $region29: #{mnist_net_forward.3} parent=1 // pred_fallthru
      _
    %7120 = vsyncpa [#allocation3], 1

</llo_original>
